<compile_context>
chip_gen: v5e
topology: v5e:2x2
jax: 0.10.0
libtpu: 0.0.40
codegen_flags: <defaults>
</compile_context>

<pallas_src>
import functools

import numpy as np
import jax
import jax.numpy as jnp
from jax.experimental import pallas as pl
from jax.experimental.pallas import tpu as pltpu

GAMMA = 0.05
EPS = 1e-6
R_PAD = 128           # lane-width padding of the radial-profile axis
_TINY = 1e-30         # guards rsqrt at exactly-zero spectral power
_KRON_MAX_HW = 1024   # flat Kronecker-DFT path used up to this H*W

# HIGHEST keeps the fwd+inv DFT round trip (and the bin/gather matmuls, whose
# 0/1 operand is exact in bf16) at ~f32 accuracy.  At these sizes the kernel is
# HBM/overhead bound, so the extra bf16 MXU passes are not the binding unit;
# drop to a lower precision once the batched DFT GEMMs become MXU-bound.
_PREC = jax.lax.Precision.HIGHEST


def _dot(a, b):
    return jnp.dot(a, b, precision=_PREC, preferred_element_type=jnp.float32)


# ----------------------------------------------------------------------------
# Fused kernel: forward DFT -> radial profile -> shape mixing -> radial scatter
#               -> re-phase -> inverse DFT (real part)
# ----------------------------------------------------------------------------
def _freq_pert_kernel(x_ref, f2dr_ref, f2di_ref, bin_ref, invc_ref, gat_ref,
                      gprior_ref, o_ref, *, gamma, eps):
    x = x_ref[...]                                   # (bc, HW) f32, lane-dense
    f2dr = f2dr_ref[...]                             # (HW, HW) Re kron-DFT (symmetric)
    f2di = f2di_ref[...]                             # (HW, HW) Im kron-DFT (symmetric)

    # Forward orthonormal 2-D DFT of every plane (row):  Y = X @ F2D  (F2D symmetric).
    yr = _dot(x, f2dr)
    yi = _dot(x, f2di)

    pow2 = yr * yr + yi * yi
    inv_amp = jax.lax.rsqrt(pow2 + _TINY)            # EUP rsqrt: no sqrt, no divides
    amp = pow2 * inv_amp                             # |Y|

    # Radial mean profile: one-hot membership matmul + per-bin 1/count on the VPU.
    prof = _dot(amp, bin_ref[...].astype(jnp.float32)) * invc_ref[...]   # (bc, R_PAD)
    energy = jnp.sum(prof, axis=1, keepdims=True)                        # (bc, 1)

    # (1-gamma) * P_u_norm * energy  ==  prof * (1-gamma) * energy / (energy+eps)
    scale_u = (1.0 - gamma) * energy * pl.reciprocal(energy + eps, approx=True)
    pert = prof * scale_u + gprior_ref[...] * energy                     # (bc, R_PAD)

    # Scatter the 1-D perturbed profile back onto the 2-D spectrum (one-hot gather).
    amp_new = _dot(pert, gat_ref[...].astype(jnp.float32))               # (bc, HW)

    # Re-phase.  The reference uses angle(0)=0, so at exactly-zero bins the new
    # spectrum is (amp_new, 0) rather than (0, 0).
    scale = amp_new * inv_amp
    is_zero = pow2 == 0.0
    zr = jnp.where(is_zero, amp_new, yr * scale)
    zi = jnp.where(is_zero, 0.0, yi * scale)

    # Inverse orthonormal DFT, real part:  Re(Z @ conj(F2D)) = zr@F2Dr + zi@F2Di.
    o_ref[...] = _dot(zr, f2dr) + _dot(zi, f2di)


# ----------------------------------------------------------------------------
# Host-side constants
# ----------------------------------------------------------------------------
def _ortho_dft(n):
    k = np.arange(n)
    ang = -2.0 * np.pi * np.outer(k, k) / n
    return np.cos(ang) / np.sqrt(n), np.sin(ang) / np.sqrt(n)      # float64


@functools.lru_cache(maxsize=None)
def _make_constants(H, W, eff_radius):
    # Flat (Kronecker) orthonormal 2-D DFT matrix for row-major (h*W + w) planes.
    fhr, fhi = _ortho_dft(H)
    fwr, fwi = _ortho_dft(W)
    f2dr = np.kron(fhr, fwr) - np.kron(fhi, fwi)      # Re kron(F_H, F_W); symmetric
    f2di = np.kron(fhr, fwi) + np.kron(fhi, fwr)      # Im kron(F_H, F_W); symmetric

    # Radius map in fftshift-ed coordinates, moved to unshifted spectrum positions
    # so fftshift/ifftshift never need to touch the spectrum itself.
    ch, cw = H // 2, W // 2
    yy, xx = np.meshgrid(np.arange(H), np.arange(W), indexing='ij')
    rad_shift = np.sqrt(((yy - ch) ** 2 + (xx - cw) ** 2).astype(np.float64)).astype(np.int64)
    rad_unshift = np.fft.ifftshift(rad_shift).reshape(-1)          # flat index u*W + v
    max_radius = min(ch, cw)
    assert max_radius <= R_PAD, "R_PAD too small for this image size"

    # 0/1 membership matrix (exact in bf16); 1/count folded into a VPU multiply.
    bin01 = np.zeros((H * W, R_PAD), np.float32)
    inv_cnt = np.zeros((1, R_PAD), np.float32)
    for r in range(max_radius):
        sel = rad_unshift == r
        cnt = int(sel.sum())
        if cnt > 0:
            bin01[sel, r] = 1.0
            inv_cnt[0, r] = 1.0 / cnt

    # One-hot radial gather: column p picks bin clamp(radius(p), eff_radius - 1).
    gat = np.zeros((R_PAD, H * W), np.float32)
    clamped = np.minimum(rad_unshift, eff_radius - 1)
    gat[clamped, np.arange(H * W)] = 1.0

    return (jnp.asarray(f2dr, jnp.float32), jnp.asarray(f2di, jnp.float32),
            jnp.asarray(bin01, jnp.bfloat16), jnp.asarray(inv_cnt, jnp.float32),
            jnp.asarray(gat, jnp.bfloat16))


def _round_up(x, m):
    return ((x + m - 1) // m) * m


# ----------------------------------------------------------------------------
# Wrapper
# ----------------------------------------------------------------------------
def freq_perturbation(image, running_mean_freq_profile, gamma=GAMMA, eps=EPS):
    """JAX/Pallas equivalent of FreqPerturbation.forward (NCHW input)."""
    if running_mean_freq_profile is None or gamma == 0.0:
        return image
    B, C, H, W = image.shape
    HW = H * W
    # TODO(synk): for H*W > _KRON_MAX_HW switch to a separable (H,H)/(W,W) DFT
    # pipeline (dense (HW,HW) constants no longer fit VMEM); only the flat
    # Kronecker path is implemented here.
    assert HW <= _KRON_MAX_HW, "flat Kronecker-DFT path only supports H*W <= 1024"

    max_radius = min(H // 2, W // 2)
    eff = min(int(running_mean_freq_profile.shape[0]), max_radius)

    f2dr, f2di, bin01, inv_cnt, gat = _make_constants(H, W, eff)

    # Normalized prior shape, pre-scaled by gamma, padded to R_PAD lanes.
    prior_c = running_mean_freq_profile[:eff].astype(jnp.float32)
    prior_norm = prior_c / (jnp.sum(prior_c) + eps)
    gprior = jnp.zeros((1, R_PAD), jnp.float32).at[0, :eff].set(gamma * prior_norm)

    # ---- plane-block (grid) sizing ------------------------------------------
    BC = B * C
    BCP8 = _round_up(BC, 8)
    if BCP8 >= 16:
        # Keep >= 2 grid steps so the "parallel" axis shards across v7x's two
        # TensorCores; up to 256 planes per step keeps MXU M-dim and per-step
        # overhead healthy on every generation.
        BCB = min(256, _round_up(BCP8 // 2, 8))
    else:
        BCB = BCP8
    BCP = _round_up(BCP8, BCB)
    n_steps = BCP // BCB

    x = image.astype(jnp.float32).reshape(BC, HW)        # lane-dense flat planes
    if BCP != BC:
        x = jnp.pad(x, ((0, BCP - BC), (0, 0)))          # padded rows -> zeros -> zero out

    block_bytes = BCB * HW * 4
    const_bytes = 2 * HW * HW * 4 + 2 * HW * R_PAD * 2 + 2 * R_PAD * 4
    # in+out blocks double-buffered, constants double-buffered, ~10 live
    # (BCB, HW) f32 intermediates, plus slack; capped at 48 MiB (v7x-safe).
    need = 4 * block_bytes + 2 * const_bytes + 10 * block_bytes + (4 << 20)
    vmem_limit = int(min(max(need, 32 << 20), 48 << 20))

    cost = pl.CostEstimate(
        flops=int(BCP * (8 * HW * HW + 4 * HW * R_PAD)),
        transcendentals=int(BCP * HW + BCP),
        bytes_accessed=int(2 * BCP * HW * 4 + const_bytes))

    out = pl.pallas_call(
        functools.partial(_freq_pert_kernel, gamma=float(gamma), eps=float(eps)),
        out_shape=jax.ShapeDtypeStruct((BCP, HW), jnp.float32),
        grid_spec=pltpu.PrefetchScalarGridSpec(
            num_scalar_prefetch=0,
            grid=(n_steps,),
            in_specs=[
                pl.BlockSpec((BCB, HW), lambda i: (i, 0)),      # image planes
                pl.BlockSpec((HW, HW), lambda i: (0, 0)),       # Re F2D
                pl.BlockSpec((HW, HW), lambda i: (0, 0)),       # Im F2D
                pl.BlockSpec((HW, R_PAD), lambda i: (0, 0)),    # radial membership (bf16)
                pl.BlockSpec((1, R_PAD), lambda i: (0, 0)),     # 1/count per bin
                pl.BlockSpec((R_PAD, HW), lambda i: (0, 0)),    # radial gather (bf16)
                pl.BlockSpec((1, R_PAD), lambda i: (0, 0)),     # gamma * normalized prior
            ],
            out_specs=pl.BlockSpec((BCB, HW), lambda i: (i, 0)),
        ),
        compiler_params=pltpu.CompilerParams(
            dimension_semantics=("parallel",),
            vmem_limit_bytes=vmem_limit),
        cost_estimate=cost,
    )(x, f2dr, f2di, bin01, inv_cnt, gat, gprior)

    return out[:BC].reshape(B, C, H, W).astype(image.dtype)


# ----------------------------------------------------------------------------
# Pure-JAX reference (mirrors the PyTorch forward) for verification
# ----------------------------------------------------------------------------
def _reference_forward(image, prior, gamma, eps):
    B, C, H, W = image.shape
    fftc = jnp.fft.fft2(image, norm='ortho')
    amp = jnp.abs(fftc)
    phase = jnp.angle(fftc)
    amp_s = jnp.fft.fftshift(amp, axes=(-2, -1))
    ch, cw = H // 2, W // 2
    yy, xx = jnp.meshgrid(jnp.arange(H), jnp.arange(W), indexing='ij')
    radius = jnp.sqrt(((yy - ch) ** 2 + (xx - cw) ** 2).astype(jnp.float32)).astype(jnp.int32)
    max_radius = min(ch, cw)
    amp_flat = amp_s.reshape(B * C, H, W)
    profs = []
    for r in range(max_radius):
        m = (radius == r).astype(jnp.float32)
        profs.append((amp_flat * m).sum((-2, -1)) / m.sum())
    P_u = jnp.stack(profs, axis=-1).reshape(B, C, max_radius)
    energy = P_u.sum(-1, keepdims=True)
    P_u_norm = P_u / (energy + eps)
    eff = min(int(prior.shape[0]), max_radius)
    prior_c = prior[:eff]
    prior_n = prior_c / (prior_c.sum() + eps)
    P_pert = (1.0 - gamma) * P_u_norm[..., :eff] + gamma * prior_n
    P_perturbed = P_pert * energy
    clamped = jnp.clip(radius, 0, eff - 1)
    Amp_pert = P_perturbed[..., clamped]
    Amp_unshift = jnp.fft.ifftshift(Amp_pert, axes=(-2, -1))
    out = jnp.fft.ifft2(Amp_unshift * jnp.exp(1j * phase), norm='ortho').real
    return out.astype(jnp.float32)


if __name__ == "__main__":
    key = jax.random.PRNGKey(0)
    k_img, k_prior = jax.random.split(key)

    B, C, H, W = 2, 4, 16, 16
    image = jax.random.normal(k_img, (B, C, H, W), jnp.float32)

    # Deterministic synthetic "running_mean_freq_profile".
    # TODO(synk): update_freq_prior / EMA buffer update is training-side state,
    # not part of the forward hot path, so it is not implemented as a kernel.
    max_radius = min(H // 2, W // 2)
    prior = jnp.abs(jax.random.normal(k_prior, (max_radius,), jnp.float32)) + 0.1

    out = freq_perturbation(image, prior)
    out = jax.block_until_ready(out)

    ref = _reference_forward(image, prior, GAMMA, EPS)
    err = float(jnp.max(jnp.abs(out - ref)))
    assert out.shape == (B, C, H, W)
    assert err < 1e-2, f"max abs error too large: {err}"
    print("KERNEL_OK")
</pallas_src>

<mosaic_0001>
module attributes {stable_mosaic.version = 11 : i64} {
  func.func @_freq_pert_kernel(%arg0: i32, %arg1: memref<8x256xf32, #tpu.memory_space<vmem>>, %arg2: memref<256x256xf32, #tpu.memory_space<vmem>>, %arg3: memref<256x256xf32, #tpu.memory_space<vmem>>, %arg4: memref<256x128xbf16, #tpu.memory_space<vmem>>, %arg5: memref<1x128xf32, #tpu.memory_space<vmem>>, %arg6: memref<128x256xbf16, #tpu.memory_space<vmem>>, %arg7: memref<1x128xf32, #tpu.memory_space<vmem>>, %arg8: memref<8x256xf32, #tpu.memory_space<vmem>>) attributes {dimension_semantics = [#tpu.dimension_semantics<parallel>], iteration_bounds = array<i64: 1>, scalar_prefetch = 0 : i64, scratch_operands = 0 : i64, tpu.core_type = #tpu.core_type<tc>, window_params = [{transform_indices = @transform_0, window_bounds = array<i64: 8, 256>}, {pipeline_mode = #tpu.pipeline_mode<synchronous>, transform_indices = @transform_1, window_bounds = array<i64: 256, 256>}, {pipeline_mode = #tpu.pipeline_mode<synchronous>, transform_indices = @transform_2, window_bounds = array<i64: 256, 256>}, {pipeline_mode = #tpu.pipeline_mode<synchronous>, transform_indices = @transform_3, window_bounds = array<i64: 256, 128>}, {pipeline_mode = #tpu.pipeline_mode<synchronous>, transform_indices = @transform_4, window_bounds = array<i64: 1, 128>}, {pipeline_mode = #tpu.pipeline_mode<synchronous>, transform_indices = @transform_5, window_bounds = array<i64: 128, 256>}, {pipeline_mode = #tpu.pipeline_mode<synchronous>, transform_indices = @transform_6, window_bounds = array<i64: 1, 128>}, {transform_indices = @transform_7, window_bounds = array<i64: 8, 256>}]} {
    %c0 = arith.constant 0 : index
    %c0_0 = arith.constant 0 : index
    %0 = vector.load %arg1[%c0, %c0_0] : memref<8x256xf32, #tpu.memory_space<vmem>>, vector<8x256xf32>
    %c0_1 = arith.constant 0 : index
    %c0_2 = arith.constant 0 : index
    %1 = vector.load %arg2[%c0_1, %c0_2] : memref<256x256xf32, #tpu.memory_space<vmem>>, vector<256x256xf32>
    %c0_3 = arith.constant 0 : index
    %c0_4 = arith.constant 0 : index
    %2 = vector.load %arg3[%c0_3, %c0_4] : memref<256x256xf32, #tpu.memory_space<vmem>>, vector<256x256xf32>
    %cst = arith.constant dense<0.000000e+00> : vector<8x256xf32>
    %3 = tpu.matmul %0, %1, %cst {dimension_numbers = #tpu.dot_dimension_numbers<[1], [0], [0], [1], [0, 0, 1, 1], [], []>, precision = #tpu.contract_precision<fp32>} : vector<8x256xf32>, vector<256x256xf32>, vector<8x256xf32> -> vector<8x256xf32>
    %cst_5 = arith.constant dense<0.000000e+00> : vector<8x256xf32>
    %4 = tpu.matmul %0, %2, %cst_5 {dimension_numbers = #tpu.dot_dimension_numbers<[1], [0], [0], [1], [0, 0, 1, 1], [], []>, precision = #tpu.contract_precision<fp32>} : vector<8x256xf32>, vector<256x256xf32>, vector<8x256xf32> -> vector<8x256xf32>
    %5 = arith.mulf %3, %3 : vector<8x256xf32>
    %6 = arith.mulf %4, %4 : vector<8x256xf32>
    %7 = arith.addf %5, %6 : vector<8x256xf32>
    %cst_6 = arith.constant 1.000000e-30 : f32
    %8 = vector.broadcast %cst_6 : f32 to vector<8x256xf32>
    %9 = arith.addf %7, %8 : vector<8x256xf32>
    %10 = math.rsqrt %9 : vector<8x256xf32>
    %11 = arith.mulf %7, %10 : vector<8x256xf32>
    %c0_7 = arith.constant 0 : index
    %c0_8 = arith.constant 0 : index
    %12 = vector.load %arg4[%c0_7, %c0_8] : memref<256x128xbf16, #tpu.memory_space<vmem>>, vector<256x128xbf16>
    %13 = arith.extf %12 : vector<256x128xbf16> to vector<256x128xf32>
    %cst_9 = arith.constant dense<0.000000e+00> : vector<8x128xf32>
    %14 = tpu.matmul %11, %13, %cst_9 {dimension_numbers = #tpu.dot_dimension_numbers<[1], [0], [0], [1], [0, 0, 1, 1], [], []>, precision = #tpu.contract_precision<fp32>} : vector<8x256xf32>, vector<256x128xf32>, vector<8x128xf32> -> vector<8x128xf32>
    %c0_10 = arith.constant 0 : index
    %c0_11 = arith.constant 0 : index
    %15 = vector.load %arg5[%c0_10, %c0_11] : memref<1x128xf32, #tpu.memory_space<vmem>>, vector<1x128xf32>
    %16 = vector.broadcast %15 : vector<1x128xf32> to vector<8x128xf32>
    %17 = arith.mulf %14, %16 : vector<8x128xf32>
    %cst_12 = arith.constant dense<0.000000e+00> : vector<8xf32>
    %18 = vector.multi_reduction <add>, %17, %cst_12 [1] : vector<8x128xf32> to vector<8xf32>
    %19 = vector.shape_cast %18 : vector<8xf32> to vector<8x1xf32>
    %cst_13 = arith.constant 0.949999988 : f32
    %20 = vector.broadcast %cst_13 : f32 to vector<8x1xf32>
    %21 = arith.mulf %20, %19 : vector<8x1xf32>
    %cst_14 = arith.constant 9.99999997E-7 : f32
    %22 = vector.broadcast %cst_14 : f32 to vector<8x1xf32>
    %23 = arith.addf %19, %22 : vector<8x1xf32>
    %24 = tpu.reciprocal %23 {approx = true} : vector<8x1xf32> -> vector<8x1xf32>
    %25 = arith.mulf %21, %24 : vector<8x1xf32>
    %26 = vector.broadcast %25 : vector<8x1xf32> to vector<8x128xf32>
    %27 = arith.mulf %17, %26 : vector<8x128xf32>
    %c0_15 = arith.constant 0 : index
    %c0_16 = arith.constant 0 : index
    %28 = vector.load %arg7[%c0_15, %c0_16] : memref<1x128xf32, #tpu.memory_space<vmem>>, vector<1x128xf32>
    %29 = vector.broadcast %28 : vector<1x128xf32> to vector<8x128xf32>
    %30 = vector.broadcast %19 : vector<8x1xf32> to vector<8x128xf32>
    %31 = arith.mulf %29, %30 : vector<8x128xf32>
    %32 = arith.addf %27, %31 : vector<8x128xf32>
    %c0_17 = arith.constant 0 : index
    %c0_18 = arith.constant 0 : index
    %33 = vector.load %arg6[%c0_17, %c0_18] : memref<128x256xbf16, #tpu.memory_space<vmem>>, vector<128x256xbf16>
    %34 = arith.extf %33 : vector<128x256xbf16> to vector<128x256xf32>
    %cst_19 = arith.constant dense<0.000000e+00> : vector<8x256xf32>
    %35 = tpu.matmul %32, %34, %cst_19 {dimension_numbers = #tpu.dot_dimension_numbers<[1], [0], [0], [1], [0, 0, 1, 1], [], []>, precision = #tpu.contract_precision<fp32>} : vector<8x128xf32>, vector<128x256xf32>, vector<8x256xf32> -> vector<8x256xf32>
    %36 = arith.mulf %35, %10 : vector<8x256xf32>
    %cst_20 = arith.constant 0.000000e+00 : f32
    %37 = vector.broadcast %cst_20 : f32 to vector<8x256xf32>
    %38 = arith.cmpf oeq, %7, %37 : vector<8x256xf32>
    %39 = arith.mulf %3, %36 : vector<8x256xf32>
    %40 = arith.select %38, %35, %39 : vector<8x256xi1>, vector<8x256xf32>
    %41 = arith.mulf %4, %36 : vector<8x256xf32>
    %cst_21 = arith.constant 0.000000e+00 : f32
    %42 = vector.broadcast %cst_21 : f32 to vector<8x256xf32>
    %43 = arith.select %38, %42, %41 : vector<8x256xi1>, vector<8x256xf32>
    %cst_22 = arith.constant dense<0.000000e+00> : vector<8x256xf32>
    %44 = tpu.matmul %40, %1, %cst_22 {dimension_numbers = #tpu.dot_dimension_numbers<[1], [0], [0], [1], [0, 0, 1, 1], [], []>, precision = #tpu.contract_precision<fp32>} : vector<8x256xf32>, vector<256x256xf32>, vector<8x256xf32> -> vector<8x256xf32>
    %cst_23 = arith.constant dense<0.000000e+00> : vector<8x256xf32>
    %45 = tpu.matmul %43, %2, %cst_23 {dimension_numbers = #tpu.dot_dimension_numbers<[1], [0], [0], [1], [0, 0, 1, 1], [], []>, precision = #tpu.contract_precision<fp32>} : vector<8x256xf32>, vector<256x256xf32>, vector<8x256xf32> -> vector<8x256xf32>
    %46 = arith.addf %44, %45 : vector<8x256xf32>
    %c0_24 = arith.constant 0 : index
    %c0_25 = arith.constant 0 : index
    %47 = vector.load %arg8[%c0_24, %c0_25] : memref<8x256xf32, #tpu.memory_space<vmem>>, vector<8x256xf32>
    tpu.vector_store %arg8[%c0_24, %c0_25], %46 {strides = array<i32>} : memref<8x256xf32, #tpu.memory_space<vmem>>, vector<8x256xf32>,
    return
  }
  func.func @transform_0(%arg0: i32) -> (i32, i32) {
    %c0_i32 = arith.constant 0 : i32
    %c0_i32_0 = arith.constant 0 : i32
    return %arg0, %c0_i32 : i32, i32
  }
  func.func @transform_1(%arg0: i32) -> (i32, i32) {
    %c0_i32 = arith.constant 0 : i32
    %c0_i32_0 = arith.constant 0 : i32
    %c0_i32_1 = arith.constant 0 : i32
    return %c0_i32, %c0_i32_0 : i32, i32
  }
  func.func @transform_2(%arg0: i32) -> (i32, i32) {
    %c0_i32 = arith.constant 0 : i32
    %c0_i32_0 = arith.constant 0 : i32
    %c0_i32_1 = arith.constant 0 : i32
    return %c0_i32, %c0_i32_0 : i32, i32
  }
  func.func @transform_3(%arg0: i32) -> (i32, i32) {
    %c0_i32 = arith.constant 0 : i32
    %c0_i32_0 = arith.constant 0 : i32
    %c0_i32_1 = arith.constant 0 : i32
    return %c0_i32, %c0_i32_0 : i32, i32
  }
  func.func @transform_4(%arg0: i32) -> (i32, i32) {
    %c0_i32 = arith.constant 0 : i32
    %c0_i32_0 = arith.constant 0 : i32
    %c0_i32_1 = arith.constant 0 : i32
    return %c0_i32, %c0_i32_0 : i32, i32
  }
  func.func @transform_5(%arg0: i32) -> (i32, i32) {
    %c0_i32 = arith.constant 0 : i32
    %c0_i32_0 = arith.constant 0 : i32
    %c0_i32_1 = arith.constant 0 : i32
    return %c0_i32, %c0_i32_0 : i32, i32
  }
  func.func @transform_6(%arg0: i32) -> (i32, i32) {
    %c0_i32 = arith.constant 0 : i32
    %c0_i32_0 = arith.constant 0 : i32
    %c0_i32_1 = arith.constant 0 : i32
    return %c0_i32, %c0_i32_0 : i32, i32
  }
  func.func @transform_7(%arg0: i32) -> (i32, i32) {
    %c0_i32 = arith.constant 0 : i32
    %c0_i32_0 = arith.constant 0 : i32
    return %arg0, %c0_i32 : i32, i32
  }
}

</mosaic_0001>

<llo_original>
// kernel: tpu_custom_call.1
$region0: #{tpu_custom_call.1}
  #allocation0 [shape = 'u32[]', space=smem, size = 0x4, offset = 0x4, fixed_abs, tag = 'smem constant byte address 0x4 - core index']
  #allocation1 [shape = 'u32[72,128]{1,0:T(1,128)}', space=vmem, size = 0x9000, scoped, tag = 'internal scratch']
  %s0 = inlined_call_operand.hbm [shape: f32[8,256], index: 0, kind: input, shape index: {}]
  %s1 = inlined_call_operand.hbm [shape: f32[256,256], index: 1, kind: input, shape index: {}]
  %s2 = inlined_call_operand.hbm [shape: f32[256,256], index: 2, kind: input, shape index: {}]
  %s3 = inlined_call_operand.hbm [shape: bf16[256,128], index: 3, kind: input, shape index: {}]
  %s4 = inlined_call_operand.vmem [shape: f32[1,128], index: 4, kind: input, shape index: {}]
  %s5 = inlined_call_operand.hbm [shape: bf16[128,256], index: 5, kind: input, shape index: {}]
  %s6 = inlined_call_operand.vmem [shape: f32[1,128], index: 6, kind: input, shape index: {}]
  %s7 = inlined_call_operand.hbm [shape: f32[8,256], index: 7, kind: output, shape index: {}]
  %s8 = sld [smem:[#allocation0]]
  $region58: #{tpu_custom_call.1} parent=0
    _
  %s10 = ssub.s32 1, %s8
  %s11 = scalar_select 0, %s10, %s8
  $region1: #{tpu_custom_call.1} parent=0
    #allocation2 [shape = 'u8[8192]{0}', space=vmem, size = 0x2000, scoped, tag = 'input window, operand 0, single buffered']
    #allocation3 [shape = 's32[1]{0}', space=sflag, size = 0x4, scoped, tag = 'scoped memory for tpu_custom_call.1']
    #allocation4 [shape = 's32[1]{0}', space=sflag, size = 0x4, scoped, tag = 'scoped memory for tpu_custom_call.1']
    #allocation5 [shape = 'u8[262144]{0}', space=vmem, size = 0x40000, scoped, tag = 'input window, operand 1, single buffered']
    #allocation6 [shape = 's32[1]{0}', space=sflag, size = 0x4, scoped, tag = 'scoped memory for tpu_custom_call.1']
    #allocation7 [shape = 'u8[262144]{0}', space=vmem, size = 0x40000, scoped, tag = 'input window, operand 2, single buffered']
    #allocation8 [shape = 'u8[65536]{0}', space=vmem, size = 0x10000, scoped, tag = 'input window, operand 3, single buffered']
    #allocation9 [shape = 's32[1]{0}', space=sflag, size = 0x4, scoped, tag = 'scoped memory for tpu_custom_call.1']
    #allocation10 [shape = 'u8[65536]{0}', space=vmem, size = 0x10000, scoped, tag = 'input window, operand 5, single buffered']
    #allocation11 [shape = 'u8[8192]{0}', space=vmem, size = 0x2000, scoped, tag = 'output window, operand 0, single buffered']
    %12 = vsyncpa [#allocation3], 0
    %13 = vsyncpa [#allocation6], 0
    %14 = vsyncpa [#allocation9], 0
    %15 = vsyncpa [#allocation4], 0
    // Predicated region
    $region2: #{tpu_custom_call.1} parent=1 // pred_check
      _
    $region3: #{tpu_custom_call.1} parent=1 // pred_check_branch
      %17 = sbr.rel (0) target = $region5
    $region4: #{tpu_custom_call.1} parent=1 // pred_region
      %19 = vsyncadd [#allocation3], 0
      %s21 = sshll.u32 %s0, 4
      %s22 = int_to_ptr.hbm [resolvable:$true] %s21
      %s23 = sshll.u32 [#allocation2], 4
      %s24 = int_to_ptr.vmem [resolvable:$true] %s23
      %26 = dma.hbm_to_vmem [thread:$0]  %s22, 256, %s24, [#allocation3]
    $region5: #{tpu_custom_call.1} parent=1 // pred_fallthru
      _
    // Predicated region
    $region6: #{tpu_custom_call.1} parent=1 // pred_check
      _
    $region7: #{tpu_custom_call.1} parent=1 // pred_check_branch
      %28 = sbr.rel (0) target = $region9
    $region8: #{tpu_custom_call.1} parent=1 // pred_region
      %30 = vsyncadd [#allocation6], 0
      %s31 = sshll.u32 %s1, 4
      %s32 = int_to_ptr.hbm [resolvable:$true] %s31
      %s33 = sshll.u32 [#allocation5], 4
      %s34 = int_to_ptr.vmem [resolvable:$true] %s33
      %39 = dma.hbm_to_vmem [thread:$0]  %s32, 8192, %s34, [#allocation6], 256, 256, 16
    $region9: #{tpu_custom_call.1} parent=1 // pred_fallthru
      _
    // Predicated region
    $region10: #{tpu_custom_call.1} parent=1 // pred_check
      _
    $region11: #{tpu_custom_call.1} parent=1 // pred_check_branch
      %41 = sbr.rel (0) target = $region13
    $region12: #{tpu_custom_call.1} parent=1 // pred_region
      %43 = vsyncadd [#allocation6], 0
      %s44 = sshll.u32 %s2, 4
      %s45 = int_to_ptr.hbm [resolvable:$true] %s44
      %s46 = sshll.u32 [#allocation7], 4
      %s47 = int_to_ptr.vmem [resolvable:$true] %s46
      %52 = dma.hbm_to_vmem [thread:$0]  %s45, 8192, %s47, [#allocation6], 256, 256, 16
    $region13: #{tpu_custom_call.1} parent=1 // pred_fallthru
      _
    // Predicated region
    $region14: #{tpu_custom_call.1} parent=1 // pred_check
      _
    $region15: #{tpu_custom_call.1} parent=1 // pred_check_branch
      %54 = sbr.rel (0) target = $region17
    $region16: #{tpu_custom_call.1} parent=1 // pred_region
      %56 = vsyncadd [#allocation9], 0
      %s57 = sshll.u32 %s3, 4
      %s58 = int_to_ptr.hbm [resolvable:$true] %s57
      %s59 = sshll.u32 [#allocation8], 4
      %s60 = int_to_ptr.vmem [resolvable:$true] %s59
      %65 = dma.hbm_to_vmem [thread:$0]  %s58, 2048, %s60, [#allocation9], 64, 64, 4
    $region17: #{tpu_custom_call.1} parent=1 // pred_fallthru
      _
    // Predicated region
    $region18: #{tpu_custom_call.1} parent=1 // pred_check
      _
    $region19: #{tpu_custom_call.1} parent=1 // pred_check_branch
      %67 = sbr.rel (0) target = $region21
    $region20: #{tpu_custom_call.1} parent=1 // pred_region
      _
    $region21: #{tpu_custom_call.1} parent=1 // pred_fallthru
      _
    // Predicated region
    $region22: #{tpu_custom_call.1} parent=1 // pred_check
      _
    $region23: #{tpu_custom_call.1} parent=1 // pred_check_branch
      %69 = sbr.rel (0) target = $region25
    $region24: #{tpu_custom_call.1} parent=1 // pred_region
      %71 = vsyncadd [#allocation9], 0
      %s72 = sshll.u32 %s5, 4
      %s73 = int_to_ptr.hbm [resolvable:$true] %s72
      %s74 = sshll.u32 [#allocation10], 4
      %s75 = int_to_ptr.vmem [resolvable:$true] %s74
      %80 = dma.hbm_to_vmem [thread:$0]  %s73, 2048, %s75, [#allocation9], 128, 128, 8
    $region25: #{tpu_custom_call.1} parent=1 // pred_fallthru
      _
    // Predicated region
    $region26: #{tpu_custom_call.1} parent=1 // pred_check
      _
    $region27: #{tpu_custom_call.1} parent=1 // pred_check_branch
      %82 = sbr.rel (0) target = $region29
    $region28: #{tpu_custom_call.1} parent=1 // pred_region
      _
    $region29: #{tpu_custom_call.1} parent=1 // pred_fallthru
      _
    // Predicated region
    $region30: #{tpu_custom_call.1} parent=1 // pred_check
      _
    $region31: #{tpu_custom_call.1} parent=1 // pred_check_branch
      %84 = sbr.rel (0) target = $region33
    $region32: #{tpu_custom_call.1} parent=1 // pred_region
      %86 = dma.done [#allocation3], 256
    $region33: #{tpu_custom_call.1} parent=1 // pred_fallthru
      _
    // Predicated region
    $region34: #{tpu_custom_call.1} parent=1 // pred_check
      _
    $region35: #{tpu_custom_call.1} parent=1 // pred_check_branch
      %88 = sbr.rel (0) target = $region37
    $region36: #{tpu_custom_call.1} parent=1 // pred_region
      %90 = dma.done [#allocation6], 8192
    $region37: #{tpu_custom_call.1} parent=1 // pred_fallthru
      _
    // Predicated region
    $region38: #{tpu_custom_call.1} parent=1 // pred_check
      _
    $region39: #{tpu_custom_call.1} parent=1 // pred_check_branch
      %92 = sbr.rel (0) target = $region41
    $region40: #{tpu_custom_call.1} parent=1 // pred_region
      %94 = dma.done [#allocation6], 8192
    $region41: #{tpu_custom_call.1} parent=1 // pred_fallthru
      _
    // Predicated region
    $region42: #{tpu_custom_call.1} parent=1 // pred_check
      _
    $region43: #{tpu_custom_call.1} parent=1 // pred_check_branch
      %96 = sbr.rel (0) target = $region45
    $region44: #{tpu_custom_call.1} parent=1 // pred_region
      %98 = dma.done [#allocation9], 2048
    $region45: #{tpu_custom_call.1} parent=1 // pred_fallthru
      _
    // Predicated region
    $region46: #{tpu_custom_call.1} parent=1 // pred_check
      _
    $region47: #{tpu_custom_call.1} parent=1 // pred_check_branch
      %100 = sbr.rel (0) target = $region49
    $region48: #{tpu_custom_call.1} parent=1 // pred_region
      %102 = dma.done [#allocation9], 2048
    $region49: #{tpu_custom_call.1} parent=1 // pred_fallthru
      _
    %v103 = vld [vmem:[#allocation2] sm:$0xff]
    %v104 = vld [vmem:[#allocation2 + $0x8] sm:$0xff]
    %v105 = vld [vmem:[#allocation5] sm:$0xff]
    %v106 = vld [vmem:[#allocation5 + $0x8] sm:$0xff]
    %v107 = vld [vmem:[#allocation5 + $0x10] sm:$0xff]
    %v108 = vld [vmem:[#allocation5 + $0x18] sm:$0xff]
    %v109 = vld [vmem:[#allocation5 + $0x20] sm:$0xff]
    %v110 = vld [vmem:[#allocation5 + $0x28] sm:$0xff]
    %v111 = vld [vmem:[#allocation5 + $0x30] sm:$0xff]
    %v112 = vld [vmem:[#allocation5 + $0x38] sm:$0xff]
    %v113 = vld [vmem:[#allocation5 + $0x40] sm:$0xff]
    %v114 = vld [vmem:[#allocation5 + $0x48] sm:$0xff]
    %v115 = vld [vmem:[#allocation5 + $0x50] sm:$0xff]
    %v116 = vld [vmem:[#allocation5 + $0x58] sm:$0xff]
    %v117 = vld [vmem:[#allocation5 + $0x60] sm:$0xff]
    %v118 = vld [vmem:[#allocation5 + $0x68] sm:$0xff]
    %v119 = vld [vmem:[#allocation5 + $0x70] sm:$0xff]
    %v120 = vld [vmem:[#allocation5 + $0x78] sm:$0xff]
    %v121 = vld [vmem:[#allocation5 + $0x80] sm:$0xff]
    %v122 = vld [vmem:[#allocation5 + $0x88] sm:$0xff]
    %v123 = vld [vmem:[#allocation5 + $0x90] sm:$0xff]
    %v124 = vld [vmem:[#allocation5 + $0x98] sm:$0xff]
    %v125 = vld [vmem:[#allocation5 + $0xa0] sm:$0xff]
    %v126 = vld [vmem:[#allocation5 + $0xa8] sm:$0xff]
    %v127 = vld [vmem:[#allocation5 + $0xb0] sm:$0xff]
    %v128 = vld [vmem:[#allocation5 + $0xb8] sm:$0xff]
    %v129 = vld [vmem:[#allocation5 + $0xc0] sm:$0xff]
    %v130 = vld [vmem:[#allocation5 + $0xc8] sm:$0xff]
    %v131 = vld [vmem:[#allocation5 + $0xd0] sm:$0xff]
    %v132 = vld [vmem:[#allocation5 + $0xd8] sm:$0xff]
    %v133 = vld [vmem:[#allocation5 + $0xe0] sm:$0xff]
    %v134 = vld [vmem:[#allocation5 + $0xe8] sm:$0xff]
    %v135 = vld [vmem:[#allocation5 + $0xf0] sm:$0xff]
    %v136 = vld [vmem:[#allocation5 + $0xf8] sm:$0xff]
    %v137 = vld [vmem:[#allocation5 + $0x100] sm:$0xff]
    %v138 = vld [vmem:[#allocation5 + $0x108] sm:$0xff]
    %v139 = vld [vmem:[#allocation5 + $0x110] sm:$0xff]
    %v140 = vld [vmem:[#allocation5 + $0x118] sm:$0xff]
    %v141 = vld [vmem:[#allocation5 + $0x120] sm:$0xff]
    %v142 = vld [vmem:[#allocation5 + $0x128] sm:$0xff]
    %v143 = vld [vmem:[#allocation5 + $0x130] sm:$0xff]
    %v144 = vld [vmem:[#allocation5 + $0x138] sm:$0xff]
    %v145 = vld [vmem:[#allocation5 + $0x140] sm:$0xff]
    %v146 = vld [vmem:[#allocation5 + $0x148] sm:$0xff]
    %v147 = vld [vmem:[#allocation5 + $0x150] sm:$0xff]
    %v148 = vld [vmem:[#allocation5 + $0x158] sm:$0xff]
    %v149 = vld [vmem:[#allocation5 + $0x160] sm:$0xff]
    %v150 = vld [vmem:[#allocation5 + $0x168] sm:$0xff]
    %v151 = vld [vmem:[#allocation5 + $0x170] sm:$0xff]
    %v152 = vld [vmem:[#allocation5 + $0x178] sm:$0xff]
    %v153 = vld [vmem:[#allocation5 + $0x180] sm:$0xff]
    %v154 = vld [vmem:[#allocation5 + $0x188] sm:$0xff]
    %v155 = vld [vmem:[#allocation5 + $0x190] sm:$0xff]
    %v156 = vld [vmem:[#allocation5 + $0x198] sm:$0xff]
    %v157 = vld [vmem:[#allocation5 + $0x1a0] sm:$0xff]
    %v158 = vld [vmem:[#allocation5 + $0x1a8] sm:$0xff]
    %v159 = vld [vmem:[#allocation5 + $0x1b0] sm:$0xff]
    %v160 = vld [vmem:[#allocation5 + $0x1b8] sm:$0xff]
    %v161 = vld [vmem:[#allocation5 + $0x1c0] sm:$0xff]
    %v162 = vld [vmem:[#allocation5 + $0x1c8] sm:$0xff]
    %v163 = vld [vmem:[#allocation5 + $0x1d0] sm:$0xff]
    %v164 = vld [vmem:[#allocation5 + $0x1d8] sm:$0xff]
    %v165 = vld [vmem:[#allocation5 + $0x1e0] sm:$0xff]
    %v166 = vld [vmem:[#allocation5 + $0x1e8] sm:$0xff]
    %v167 = vld [vmem:[#allocation5 + $0x1f0] sm:$0xff]
    %v168 = vld [vmem:[#allocation5 + $0x1f8] sm:$0xff]
    %v169 = vld [vmem:[#allocation7] sm:$0xff]
    %v170 = vld [vmem:[#allocation7 + $0x8] sm:$0xff]
    %v171 = vld [vmem:[#allocation7 + $0x10] sm:$0xff]
    %v172 = vld [vmem:[#allocation7 + $0x18] sm:$0xff]
    %v173 = vld [vmem:[#allocation7 + $0x20] sm:$0xff]
    %v174 = vld [vmem:[#allocation7 + $0x28] sm:$0xff]
    %v175 = vld [vmem:[#allocation7 + $0x30] sm:$0xff]
    %v176 = vld [vmem:[#allocation7 + $0x38] sm:$0xff]
    %v177 = vld [vmem:[#allocation7 + $0x40] sm:$0xff]
    %v178 = vld [vmem:[#allocation7 + $0x48] sm:$0xff]
    %v179 = vld [vmem:[#allocation7 + $0x50] sm:$0xff]
    %v180 = vld [vmem:[#allocation7 + $0x58] sm:$0xff]
    %v181 = vld [vmem:[#allocation7 + $0x60] sm:$0xff]
    %v182 = vld [vmem:[#allocation7 + $0x68] sm:$0xff]
    %v183 = vld [vmem:[#allocation7 + $0x70] sm:$0xff]
    %v184 = vld [vmem:[#allocation7 + $0x78] sm:$0xff]
    %v185 = vld [vmem:[#allocation7 + $0x80] sm:$0xff]
    %v186 = vld [vmem:[#allocation7 + $0x88] sm:$0xff]
    %v187 = vld [vmem:[#allocation7 + $0x90] sm:$0xff]
    %v188 = vld [vmem:[#allocation7 + $0x98] sm:$0xff]
    %v189 = vld [vmem:[#allocation7 + $0xa0] sm:$0xff]
    %v190 = vld [vmem:[#allocation7 + $0xa8] sm:$0xff]
    %v191 = vld [vmem:[#allocation7 + $0xb0] sm:$0xff]
    %v192 = vld [vmem:[#allocation7 + $0xb8] sm:$0xff]
    %v193 = vld [vmem:[#allocation7 + $0xc0] sm:$0xff]
    %v194 = vld [vmem:[#allocation7 + $0xc8] sm:$0xff]
    %v195 = vld [vmem:[#allocation7 + $0xd0] sm:$0xff]
    %v196 = vld [vmem:[#allocation7 + $0xd8] sm:$0xff]
    %v197 = vld [vmem:[#allocation7 + $0xe0] sm:$0xff]
    %v198 = vld [vmem:[#allocation7 + $0xe8] sm:$0xff]
    %v199 = vld [vmem:[#allocation7 + $0xf0] sm:$0xff]
    %v200 = vld [vmem:[#allocation7 + $0xf8] sm:$0xff]
    %v201 = vld [vmem:[#allocation7 + $0x100] sm:$0xff]
    %v202 = vld [vmem:[#allocation7 + $0x108] sm:$0xff]
    %v203 = vld [vmem:[#allocation7 + $0x110] sm:$0xff]
    %v204 = vld [vmem:[#allocation7 + $0x118] sm:$0xff]
    %v205 = vld [vmem:[#allocation7 + $0x120] sm:$0xff]
    %v206 = vld [vmem:[#allocation7 + $0x128] sm:$0xff]
    %v207 = vld [vmem:[#allocation7 + $0x130] sm:$0xff]
    %v208 = vld [vmem:[#allocation7 + $0x138] sm:$0xff]
    %v209 = vld [vmem:[#allocation7 + $0x140] sm:$0xff]
    %v210 = vld [vmem:[#allocation7 + $0x148] sm:$0xff]
    %v211 = vld [vmem:[#allocation7 + $0x150] sm:$0xff]
    %v212 = vld [vmem:[#allocation7 + $0x158] sm:$0xff]
    %v213 = vld [vmem:[#allocation7 + $0x160] sm:$0xff]
    %v214 = vld [vmem:[#allocation7 + $0x168] sm:$0xff]
    %v215 = vld [vmem:[#allocation7 + $0x170] sm:$0xff]
    %v216 = vld [vmem:[#allocation7 + $0x178] sm:$0xff]
    %v217 = vld [vmem:[#allocation7 + $0x180] sm:$0xff]
    %v218 = vld [vmem:[#allocation7 + $0x188] sm:$0xff]
    %v219 = vld [vmem:[#allocation7 + $0x190] sm:$0xff]
    %v220 = vld [vmem:[#allocation7 + $0x198] sm:$0xff]
    %v221 = vld [vmem:[#allocation7 + $0x1a0] sm:$0xff]
    %v222 = vld [vmem:[#allocation7 + $0x1a8] sm:$0xff]
    %v223 = vld [vmem:[#allocation7 + $0x1b0] sm:$0xff]
    %v224 = vld [vmem:[#allocation7 + $0x1b8] sm:$0xff]
    %v225 = vld [vmem:[#allocation7 + $0x1c0] sm:$0xff]
    %v226 = vld [vmem:[#allocation7 + $0x1c8] sm:$0xff]
    %v227 = vld [vmem:[#allocation7 + $0x1d0] sm:$0xff]
    %v228 = vld [vmem:[#allocation7 + $0x1d8] sm:$0xff]
    %v229 = vld [vmem:[#allocation7 + $0x1e0] sm:$0xff]
    %v230 = vld [vmem:[#allocation7 + $0x1e8] sm:$0xff]
    %v231 = vld [vmem:[#allocation7 + $0x1f0] sm:$0xff]
    %v232 = vld [vmem:[#allocation7 + $0x1f8] sm:$0xff]
    %v233 = vand.u32 %v135, 4294901760
    %234 = vmatpush.msra.mxu0 %v233
    %v235 = vand.u32 %v133, 4294901760
    %236 = vmatpush.msra.mxu0 %v235
    %v237 = vand.u32 %v131, 4294901760
    %238 = vmatpush.msra.mxu0 %v237
    %v239 = vand.u32 %v129, 4294901760
    %240 = vmatpush.msra.mxu0 %v239
    %v241 = vand.u32 %v127, 4294901760
    %242 = vmatpush.msra.mxu0 %v241
    %v243 = vand.u32 %v125, 4294901760
    %244 = vmatpush.msra.mxu0 %v243
    %v245 = vand.u32 %v123, 4294901760
    %246 = vmatpush.msra.mxu0 %v245
    %v247 = vand.u32 %v121, 4294901760
    %248 = vmatpush.msra.mxu0 %v247
    %v249 = vand.u32 %v119, 4294901760
    %250 = vmatpush.msra.mxu0 %v249
    %v251 = vand.u32 %v117, 4294901760
    %252 = vmatpush.msra.mxu0 %v251
    %v253 = vand.u32 %v115, 4294901760
    %254 = vmatpush.msra.mxu0 %v253
    %v255 = vand.u32 %v113, 4294901760
    %256 = vmatpush.msra.mxu0 %v255
    %v257 = vand.u32 %v111, 4294901760
    %258 = vmatpush.msra.mxu0 %v257
    %v259 = vand.u32 %v109, 4294901760
    %260 = vmatpush.msra.mxu0 %v259
    %v261 = vand.u32 %v107, 4294901760
    %262 = vmatpush.msra.mxu0 %v261
    %v263 = vand.u32 %v105, 4294901760
    %264 = vmatpush.msra.mxu0 %v263
    %v265 = vand.u32 %v103, 4294901760
    %v266 = vsub.f32 %v103, %v265
    %v267 = vand.u32 %v266, 4294901760
    %v268 = vsub.f32 %v266, %v267
    %v269 = vand.u32 %v268, 4294901760
    %270 = vmatmul.f32.gmra.mxu0 %v269
    %v271 = vpop.f32.mrf.mxu0
    %v272 = vadd.f32 0.0, %v271
    %273 = vdwg.mxu0
    %v274 = vand.u32 %v135, 4294901760
    %v275 = vsub.f32 %v135, %v274
    %v276 = vand.u32 %v275, 4294901760
    %v277 = vsub.f32 %v275, %v276
    %v278 = vand.u32 %v277, 4294901760
    %279 = vmatpush.msra.mxu0 %v278
    %v280 = vand.u32 %v133, 4294901760
    %v281 = vsub.f32 %v133, %v280
    %v282 = vand.u32 %v281, 4294901760
    %v283 = vsub.f32 %v281, %v282
    %v284 = vand.u32 %v283, 4294901760
    %285 = vmatpush.msra.mxu0 %v284
    %v286 = vand.u32 %v131, 4294901760
    %v287 = vsub.f32 %v131, %v286
    %v288 = vand.u32 %v287, 4294901760
    %v289 = vsub.f32 %v287, %v288
    %v290 = vand.u32 %v289, 4294901760
    %291 = vmatpush.msra.mxu0 %v290
    %v292 = vand.u32 %v129, 4294901760
    %v293 = vsub.f32 %v129, %v292
    %v294 = vand.u32 %v293, 4294901760
    %v295 = vsub.f32 %v293, %v294
    %v296 = vand.u32 %v295, 4294901760
    %297 = vmatpush.msra.mxu0 %v296
    %v298 = vand.u32 %v127, 4294901760
    %v299 = vsub.f32 %v127, %v298
    %v300 = vand.u32 %v299, 4294901760
    %v301 = vsub.f32 %v299, %v300
    %v302 = vand.u32 %v301, 4294901760
    %303 = vmatpush.msra.mxu0 %v302
    %v304 = vand.u32 %v125, 4294901760
    %v305 = vsub.f32 %v125, %v304
    %v306 = vand.u32 %v305, 4294901760
    %v307 = vsub.f32 %v305, %v306
    %v308 = vand.u32 %v307, 4294901760
    %309 = vmatpush.msra.mxu0 %v308
    %v310 = vand.u32 %v123, 4294901760
    %v311 = vsub.f32 %v123, %v310
    %v312 = vand.u32 %v311, 4294901760
    %v313 = vsub.f32 %v311, %v312
    %v314 = vand.u32 %v313, 4294901760
    %315 = vmatpush.msra.mxu0 %v314
    %v316 = vand.u32 %v121, 4294901760
    %v317 = vsub.f32 %v121, %v316
    %v318 = vand.u32 %v317, 4294901760
    %v319 = vsub.f32 %v317, %v318
    %v320 = vand.u32 %v319, 4294901760
    %321 = vmatpush.msra.mxu0 %v320
    %v322 = vand.u32 %v119, 4294901760
    %v323 = vsub.f32 %v119, %v322
    %v324 = vand.u32 %v323, 4294901760
    %v325 = vsub.f32 %v323, %v324
    %v326 = vand.u32 %v325, 4294901760
    %327 = vmatpush.msra.mxu0 %v326
    %v328 = vand.u32 %v117, 4294901760
    %v329 = vsub.f32 %v117, %v328
    %v330 = vand.u32 %v329, 4294901760
    %v331 = vsub.f32 %v329, %v330
    %v332 = vand.u32 %v331, 4294901760
    %333 = vmatpush.msra.mxu0 %v332
    %v334 = vand.u32 %v115, 4294901760
    %v335 = vsub.f32 %v115, %v334
    %v336 = vand.u32 %v335, 4294901760
    %v337 = vsub.f32 %v335, %v336
    %v338 = vand.u32 %v337, 4294901760
    %339 = vmatpush.msra.mxu0 %v338
    %v340 = vand.u32 %v113, 4294901760
    %v341 = vsub.f32 %v113, %v340
    %v342 = vand.u32 %v341, 4294901760
    %v343 = vsub.f32 %v341, %v342
    %v344 = vand.u32 %v343, 4294901760
    %345 = vmatpush.msra.mxu0 %v344
    %v346 = vand.u32 %v111, 4294901760
    %v347 = vsub.f32 %v111, %v346
    %v348 = vand.u32 %v347, 4294901760
    %v349 = vsub.f32 %v347, %v348
    %v350 = vand.u32 %v349, 4294901760
    %351 = vmatpush.msra.mxu0 %v350
    %v352 = vand.u32 %v109, 4294901760
    %v353 = vsub.f32 %v109, %v352
    %v354 = vand.u32 %v353, 4294901760
    %v355 = vsub.f32 %v353, %v354
    %v356 = vand.u32 %v355, 4294901760
    %357 = vmatpush.msra.mxu0 %v356
    %v358 = vand.u32 %v107, 4294901760
    %v359 = vsub.f32 %v107, %v358
    %v360 = vand.u32 %v359, 4294901760
    %v361 = vsub.f32 %v359, %v360
    %v362 = vand.u32 %v361, 4294901760
    %363 = vmatpush.msra.mxu0 %v362
    %v364 = vand.u32 %v105, 4294901760
    %v365 = vsub.f32 %v105, %v364
    %v366 = vand.u32 %v365, 4294901760
    %v367 = vsub.f32 %v365, %v366
    %v368 = vand.u32 %v367, 4294901760
    %369 = vmatpush.msra.mxu0 %v368
    %v370 = vand.u32 %v103, 4294901760
    %371 = vmatmul.f32.gmra.mxu0 %v370
    %v372 = vpop.f32.mrf.mxu0
    %v373 = vadd.f32 %v272, %v372
    %374 = vdwg.mxu0
    %v375 = vand.u32 %v135, 4294901760
    %v376 = vsub.f32 %v135, %v375
    %377 = vmatpush.msra.mxu0 %v376
    %v378 = vand.u32 %v133, 4294901760
    %v379 = vsub.f32 %v133, %v378
    %380 = vmatpush.msra.mxu0 %v379
    %v381 = vand.u32 %v131, 4294901760
    %v382 = vsub.f32 %v131, %v381
    %383 = vmatpush.msra.mxu0 %v382
    %v384 = vand.u32 %v129, 4294901760
    %v385 = vsub.f32 %v129, %v384
    %386 = vmatpush.msra.mxu0 %v385
    %v387 = vand.u32 %v127, 4294901760
    %v388 = vsub.f32 %v127, %v387
    %389 = vmatpush.msra.mxu0 %v388
    %v390 = vand.u32 %v125, 4294901760
    %v391 = vsub.f32 %v125, %v390
    %392 = vmatpush.msra.mxu0 %v391
    %v393 = vand.u32 %v123, 4294901760
    %v394 = vsub.f32 %v123, %v393
    %395 = vmatpush.msra.mxu0 %v394
    %v396 = vand.u32 %v121, 4294901760
    %v397 = vsub.f32 %v121, %v396
    %398 = vmatpush.msra.mxu0 %v397
    %v399 = vand.u32 %v119, 4294901760
    %v400 = vsub.f32 %v119, %v399
    %401 = vmatpush.msra.mxu0 %v400
    %v402 = vand.u32 %v117, 4294901760
    %v403 = vsub.f32 %v117, %v402
    %404 = vmatpush.msra.mxu0 %v403
    %v405 = vand.u32 %v115, 4294901760
    %v406 = vsub.f32 %v115, %v405
    %407 = vmatpush.msra.mxu0 %v406
    %v408 = vand.u32 %v113, 4294901760
    %v409 = vsub.f32 %v113, %v408
    %410 = vmatpush.msra.mxu0 %v409
    %v411 = vand.u32 %v111, 4294901760
    %v412 = vsub.f32 %v111, %v411
    %413 = vmatpush.msra.mxu0 %v412
    %v414 = vand.u32 %v109, 4294901760
    %v415 = vsub.f32 %v109, %v414
    %416 = vmatpush.msra.mxu0 %v415
    %v417 = vand.u32 %v107, 4294901760
    %v418 = vsub.f32 %v107, %v417
    %419 = vmatpush.msra.mxu0 %v418
    %v420 = vand.u32 %v105, 4294901760
    %v421 = vsub.f32 %v105, %v420
    %422 = vmatpush.msra.mxu0 %v421
    %v423 = vand.u32 %v103, 4294901760
    %v424 = vsub.f32 %v103, %v423
    %425 = vmatmul.f32.gmra.mxu0 %v424
    %v426 = vpop.f32.mrf.mxu0
    %v427 = vadd.f32 %v373, %v426
    %428 = vdwg.mxu0
    %v429 = vand.u32 %v135, 4294901760
    %430 = vmatpush.msra.mxu0 %v429
    %v431 = vand.u32 %v133, 4294901760
    %432 = vmatpush.msra.mxu0 %v431
    %v433 = vand.u32 %v131, 4294901760
    %434 = vmatpush.msra.mxu0 %v433
    %v435 = vand.u32 %v129, 4294901760
    %436 = vmatpush.msra.mxu0 %v435
    %v437 = vand.u32 %v127, 4294901760
    %438 = vmatpush.msra.mxu0 %v437
    %v439 = vand.u32 %v125, 4294901760
    %440 = vmatpush.msra.mxu0 %v439
    %v441 = vand.u32 %v123, 4294901760
    %442 = vmatpush.msra.mxu0 %v441
    %v443 = vand.u32 %v121, 4294901760
    %444 = vmatpush.msra.mxu0 %v443
    %v445 = vand.u32 %v119, 4294901760
    %446 = vmatpush.msra.mxu0 %v445
    %v447 = vand.u32 %v117, 4294901760
    %448 = vmatpush.msra.mxu0 %v447
    %v449 = vand.u32 %v115, 4294901760
    %450 = vmatpush.msra.mxu0 %v449
    %v451 = vand.u32 %v113, 4294901760
    %452 = vmatpush.msra.mxu0 %v451
    %v453 = vand.u32 %v111, 4294901760
    %454 = vmatpush.msra.mxu0 %v453
    %v455 = vand.u32 %v109, 4294901760
    %456 = vmatpush.msra.mxu0 %v455
    %v457 = vand.u32 %v107, 4294901760
    %458 = vmatpush.msra.mxu0 %v457
    %v459 = vand.u32 %v105, 4294901760
    %460 = vmatpush.msra.mxu0 %v459
    %v461 = vand.u32 %v103, 4294901760
    %v462 = vsub.f32 %v103, %v461
    %v463 = vand.u32 %v462, 4294901760
    %464 = vmatmul.f32.gmra.mxu0 %v463
    %v465 = vpop.f32.mrf.mxu0
    %v466 = vadd.f32 %v427, %v465
    %467 = vdwg.mxu0
    %v468 = vand.u32 %v135, 4294901760
    %v469 = vsub.f32 %v135, %v468
    %v470 = vand.u32 %v469, 4294901760
    %471 = vmatpush.msra.mxu0 %v470
    %v472 = vand.u32 %v133, 4294901760
    %v473 = vsub.f32 %v133, %v472
    %v474 = vand.u32 %v473, 4294901760
    %475 = vmatpush.msra.mxu0 %v474
    %v476 = vand.u32 %v131, 4294901760
    %v477 = vsub.f32 %v131, %v476
    %v478 = vand.u32 %v477, 4294901760
    %479 = vmatpush.msra.mxu0 %v478
    %v480 = vand.u32 %v129, 4294901760
    %v481 = vsub.f32 %v129, %v480
    %v482 = vand.u32 %v481, 4294901760
    %483 = vmatpush.msra.mxu0 %v482
    %v484 = vand.u32 %v127, 4294901760
    %v485 = vsub.f32 %v127, %v484
    %v486 = vand.u32 %v485, 4294901760
    %487 = vmatpush.msra.mxu0 %v486
    %v488 = vand.u32 %v125, 4294901760
    %v489 = vsub.f32 %v125, %v488
    %v490 = vand.u32 %v489, 4294901760
    %491 = vmatpush.msra.mxu0 %v490
    %v492 = vand.u32 %v123, 4294901760
    %v493 = vsub.f32 %v123, %v492
    %v494 = vand.u32 %v493, 4294901760
    %495 = vmatpush.msra.mxu0 %v494
    %v496 = vand.u32 %v121, 4294901760
    %v497 = vsub.f32 %v121, %v496
    %v498 = vand.u32 %v497, 4294901760
    %499 = vmatpush.msra.mxu0 %v498
    %v500 = vand.u32 %v119, 4294901760
    %v501 = vsub.f32 %v119, %v500
    %v502 = vand.u32 %v501, 4294901760
    %503 = vmatpush.msra.mxu0 %v502
    %v504 = vand.u32 %v117, 4294901760
    %v505 = vsub.f32 %v117, %v504
    %v506 = vand.u32 %v505, 4294901760
    %507 = vmatpush.msra.mxu0 %v506
    %v508 = vand.u32 %v115, 4294901760
    %v509 = vsub.f32 %v115, %v508
    %v510 = vand.u32 %v509, 4294901760
    %511 = vmatpush.msra.mxu0 %v510
    %v512 = vand.u32 %v113, 4294901760
    %v513 = vsub.f32 %v113, %v512
    %v514 = vand.u32 %v513, 4294901760
    %515 = vmatpush.msra.mxu0 %v514
    %v516 = vand.u32 %v111, 4294901760
    %v517 = vsub.f32 %v111, %v516
    %v518 = vand.u32 %v517, 4294901760
    %519 = vmatpush.msra.mxu0 %v518
    %v520 = vand.u32 %v109, 4294901760
    %v521 = vsub.f32 %v109, %v520
    %v522 = vand.u32 %v521, 4294901760
    %523 = vmatpush.msra.mxu0 %v522
    %v524 = vand.u32 %v107, 4294901760
    %v525 = vsub.f32 %v107, %v524
    %v526 = vand.u32 %v525, 4294901760
    %527 = vmatpush.msra.mxu0 %v526
    %v528 = vand.u32 %v105, 4294901760
    %v529 = vsub.f32 %v105, %v528
    %v530 = vand.u32 %v529, 4294901760
    %531 = vmatpush.msra.mxu0 %v530
    %v532 = vand.u32 %v103, 4294901760
    %533 = vmatmul.f32.gmra.mxu0 %v532
    %v534 = vpop.f32.mrf.mxu0
    %v535 = vadd.f32 %v466, %v534
    %536 = vdwg.mxu0
    %v537 = vand.u32 %v135, 4294901760
    %538 = vmatpush.msra.mxu0 %v537
    %v539 = vand.u32 %v133, 4294901760
    %540 = vmatpush.msra.mxu0 %v539
    %v541 = vand.u32 %v131, 4294901760
    %542 = vmatpush.msra.mxu0 %v541
    %v543 = vand.u32 %v129, 4294901760
    %544 = vmatpush.msra.mxu0 %v543
    %v545 = vand.u32 %v127, 4294901760
    %546 = vmatpush.msra.mxu0 %v545
    %v547 = vand.u32 %v125, 4294901760
    %548 = vmatpush.msra.mxu0 %v547
    %v549 = vand.u32 %v123, 4294901760
    %550 = vmatpush.msra.mxu0 %v549
    %v551 = vand.u32 %v121, 4294901760
    %552 = vmatpush.msra.mxu0 %v551
    %v553 = vand.u32 %v119, 4294901760
    %554 = vmatpush.msra.mxu0 %v553
    %v555 = vand.u32 %v117, 4294901760
    %556 = vmatpush.msra.mxu0 %v555
    %v557 = vand.u32 %v115, 4294901760
    %558 = vmatpush.msra.mxu0 %v557
    %v559 = vand.u32 %v113, 4294901760
    %560 = vmatpush.msra.mxu0 %v559
    %v561 = vand.u32 %v111, 4294901760
    %562 = vmatpush.msra.mxu0 %v561
    %v563 = vand.u32 %v109, 4294901760
    %564 = vmatpush.msra.mxu0 %v563
    %v565 = vand.u32 %v107, 4294901760
    %566 = vmatpush.msra.mxu0 %v565
    %v567 = vand.u32 %v105, 4294901760
    %568 = vmatpush.msra.mxu0 %v567
    %v569 = vand.u32 %v103, 4294901760
    %570 = vmatmul.f32.gmra.mxu0 %v569
    %v571 = vpop.f32.mrf.mxu0
    %v572 = vadd.f32 %v535, %v571
    %573 = vdwg.mxu0
    %v574 = vand.u32 %v167, 4294901760
    %575 = vmatpush.msra.mxu0 %v574
    %v576 = vand.u32 %v165, 4294901760
    %577 = vmatpush.msra.mxu0 %v576
    %v578 = vand.u32 %v163, 4294901760
    %579 = vmatpush.msra.mxu0 %v578
    %v580 = vand.u32 %v161, 4294901760
    %581 = vmatpush.msra.mxu0 %v580
    %v582 = vand.u32 %v159, 4294901760
    %583 = vmatpush.msra.mxu0 %v582
    %v584 = vand.u32 %v157, 4294901760
    %585 = vmatpush.msra.mxu0 %v584
    %v586 = vand.u32 %v155, 4294901760
    %587 = vmatpush.msra.mxu0 %v586
    %v588 = vand.u32 %v153, 4294901760
    %589 = vmatpush.msra.mxu0 %v588
    %v590 = vand.u32 %v151, 4294901760
    %591 = vmatpush.msra.mxu0 %v590
    %v592 = vand.u32 %v149, 4294901760
    %593 = vmatpush.msra.mxu0 %v592
    %v594 = vand.u32 %v147, 4294901760
    %595 = vmatpush.msra.mxu0 %v594
    %v596 = vand.u32 %v145, 4294901760
    %597 = vmatpush.msra.mxu0 %v596
    %v598 = vand.u32 %v143, 4294901760
    %599 = vmatpush.msra.mxu0 %v598
    %v600 = vand.u32 %v141, 4294901760
    %601 = vmatpush.msra.mxu0 %v600
    %v602 = vand.u32 %v139, 4294901760
    %603 = vmatpush.msra.mxu0 %v602
    %v604 = vand.u32 %v137, 4294901760
    %605 = vmatpush.msra.mxu0 %v604
    %v606 = vand.u32 %v104, 4294901760
    %v607 = vsub.f32 %v104, %v606
    %v608 = vand.u32 %v607, 4294901760
    %v609 = vsub.f32 %v607, %v608
    %v610 = vand.u32 %v609, 4294901760
    %611 = vmatmul.f32.gmra.mxu0 %v610
    %v612 = vpop.f32.mrf.mxu0
    %v613 = vadd.f32 %v572, %v612
    %614 = vdwg.mxu0
    %v615 = vand.u32 %v167, 4294901760
    %v616 = vsub.f32 %v167, %v615
    %v617 = vand.u32 %v616, 4294901760
    %v618 = vsub.f32 %v616, %v617
    %v619 = vand.u32 %v618, 4294901760
    %620 = vmatpush.msra.mxu0 %v619
    %v621 = vand.u32 %v165, 4294901760
    %v622 = vsub.f32 %v165, %v621
    %v623 = vand.u32 %v622, 4294901760
    %v624 = vsub.f32 %v622, %v623
    %v625 = vand.u32 %v624, 4294901760
    %626 = vmatpush.msra.mxu0 %v625
    %v627 = vand.u32 %v163, 4294901760
    %v628 = vsub.f32 %v163, %v627
    %v629 = vand.u32 %v628, 4294901760
    %v630 = vsub.f32 %v628, %v629
    %v631 = vand.u32 %v630, 4294901760
    %632 = vmatpush.msra.mxu0 %v631
    %v633 = vand.u32 %v161, 4294901760
    %v634 = vsub.f32 %v161, %v633
    %v635 = vand.u32 %v634, 4294901760
    %v636 = vsub.f32 %v634, %v635
    %v637 = vand.u32 %v636, 4294901760
    %638 = vmatpush.msra.mxu0 %v637
    %v639 = vand.u32 %v159, 4294901760
    %v640 = vsub.f32 %v159, %v639
    %v641 = vand.u32 %v640, 4294901760
    %v642 = vsub.f32 %v640, %v641
    %v643 = vand.u32 %v642, 4294901760
    %644 = vmatpush.msra.mxu0 %v643
    %v645 = vand.u32 %v157, 4294901760
    %v646 = vsub.f32 %v157, %v645
    %v647 = vand.u32 %v646, 4294901760
    %v648 = vsub.f32 %v646, %v647
    %v649 = vand.u32 %v648, 4294901760
    %650 = vmatpush.msra.mxu0 %v649
    %v651 = vand.u32 %v155, 4294901760
    %v652 = vsub.f32 %v155, %v651
    %v653 = vand.u32 %v652, 4294901760
    %v654 = vsub.f32 %v652, %v653
    %v655 = vand.u32 %v654, 4294901760
    %656 = vmatpush.msra.mxu0 %v655
    %v657 = vand.u32 %v153, 4294901760
    %v658 = vsub.f32 %v153, %v657
    %v659 = vand.u32 %v658, 4294901760
    %v660 = vsub.f32 %v658, %v659
    %v661 = vand.u32 %v660, 4294901760
    %662 = vmatpush.msra.mxu0 %v661
    %v663 = vand.u32 %v151, 4294901760
    %v664 = vsub.f32 %v151, %v663
    %v665 = vand.u32 %v664, 4294901760
    %v666 = vsub.f32 %v664, %v665
    %v667 = vand.u32 %v666, 4294901760
    %668 = vmatpush.msra.mxu0 %v667
    %v669 = vand.u32 %v149, 4294901760
    %v670 = vsub.f32 %v149, %v669
    %v671 = vand.u32 %v670, 4294901760
    %v672 = vsub.f32 %v670, %v671
    %v673 = vand.u32 %v672, 4294901760
    %674 = vmatpush.msra.mxu0 %v673
    %v675 = vand.u32 %v147, 4294901760
    %v676 = vsub.f32 %v147, %v675
    %v677 = vand.u32 %v676, 4294901760
    %v678 = vsub.f32 %v676, %v677
    %v679 = vand.u32 %v678, 4294901760
    %680 = vmatpush.msra.mxu0 %v679
    %v681 = vand.u32 %v145, 4294901760
    %v682 = vsub.f32 %v145, %v681
    %v683 = vand.u32 %v682, 4294901760
    %v684 = vsub.f32 %v682, %v683
    %v685 = vand.u32 %v684, 4294901760
    %686 = vmatpush.msra.mxu0 %v685
    %v687 = vand.u32 %v143, 4294901760
    %v688 = vsub.f32 %v143, %v687
    %v689 = vand.u32 %v688, 4294901760
    %v690 = vsub.f32 %v688, %v689
    %v691 = vand.u32 %v690, 4294901760
    %692 = vmatpush.msra.mxu0 %v691
    %v693 = vand.u32 %v141, 4294901760
    %v694 = vsub.f32 %v141, %v693
    %v695 = vand.u32 %v694, 4294901760
    %v696 = vsub.f32 %v694, %v695
    %v697 = vand.u32 %v696, 4294901760
    %698 = vmatpush.msra.mxu0 %v697
    %v699 = vand.u32 %v139, 4294901760
    %v700 = vsub.f32 %v139, %v699
    %v701 = vand.u32 %v700, 4294901760
    %v702 = vsub.f32 %v700, %v701
    %v703 = vand.u32 %v702, 4294901760
    %704 = vmatpush.msra.mxu0 %v703
    %v705 = vand.u32 %v137, 4294901760
    %v706 = vsub.f32 %v137, %v705
    %v707 = vand.u32 %v706, 4294901760
    %v708 = vsub.f32 %v706, %v707
    %v709 = vand.u32 %v708, 4294901760
    %710 = vmatpush.msra.mxu0 %v709
    %v711 = vand.u32 %v104, 4294901760
    %712 = vmatmul.f32.gmra.mxu0 %v711
    %v713 = vpop.f32.mrf.mxu0
    %v714 = vadd.f32 %v613, %v713
    %715 = vdwg.mxu0
    %v716 = vand.u32 %v167, 4294901760
    %v717 = vsub.f32 %v167, %v716
    %718 = vmatpush.msra.mxu0 %v717
    %v719 = vand.u32 %v165, 4294901760
    %v720 = vsub.f32 %v165, %v719
    %721 = vmatpush.msra.mxu0 %v720
    %v722 = vand.u32 %v163, 4294901760
    %v723 = vsub.f32 %v163, %v722
    %724 = vmatpush.msra.mxu0 %v723
    %v725 = vand.u32 %v161, 4294901760
    %v726 = vsub.f32 %v161, %v725
    %727 = vmatpush.msra.mxu0 %v726
    %v728 = vand.u32 %v159, 4294901760
    %v729 = vsub.f32 %v159, %v728
    %730 = vmatpush.msra.mxu0 %v729
    %v731 = vand.u32 %v157, 4294901760
    %v732 = vsub.f32 %v157, %v731
    %733 = vmatpush.msra.mxu0 %v732
    %v734 = vand.u32 %v155, 4294901760
    %v735 = vsub.f32 %v155, %v734
    %736 = vmatpush.msra.mxu0 %v735
    %v737 = vand.u32 %v153, 4294901760
    %v738 = vsub.f32 %v153, %v737
    %739 = vmatpush.msra.mxu0 %v738
    %v740 = vand.u32 %v151, 4294901760
    %v741 = vsub.f32 %v151, %v740
    %742 = vmatpush.msra.mxu0 %v741
    %v743 = vand.u32 %v149, 4294901760
    %v744 = vsub.f32 %v149, %v743
    %745 = vmatpush.msra.mxu0 %v744
    %v746 = vand.u32 %v147, 4294901760
    %v747 = vsub.f32 %v147, %v746
    %748 = vmatpush.msra.mxu0 %v747
    %v749 = vand.u32 %v145, 4294901760
    %v750 = vsub.f32 %v145, %v749
    %751 = vmatpush.msra.mxu0 %v750
    %v752 = vand.u32 %v143, 4294901760
    %v753 = vsub.f32 %v143, %v752
    %754 = vmatpush.msra.mxu0 %v753
    %v755 = vand.u32 %v141, 4294901760
    %v756 = vsub.f32 %v141, %v755
    %757 = vmatpush.msra.mxu0 %v756
    %v758 = vand.u32 %v139, 4294901760
    %v759 = vsub.f32 %v139, %v758
    %760 = vmatpush.msra.mxu0 %v759
    %v761 = vand.u32 %v137, 4294901760
    %v762 = vsub.f32 %v137, %v761
    %763 = vmatpush.msra.mxu0 %v762
    %v764 = vand.u32 %v104, 4294901760
    %v765 = vsub.f32 %v104, %v764
    %766 = vmatmul.f32.gmra.mxu0 %v765
    %v767 = vpop.f32.mrf.mxu0
    %v768 = vadd.f32 %v714, %v767
    %769 = vdwg.mxu0
    %v770 = vand.u32 %v167, 4294901760
    %771 = vmatpush.msra.mxu0 %v770
    %v772 = vand.u32 %v165, 4294901760
    %773 = vmatpush.msra.mxu0 %v772
    %v774 = vand.u32 %v163, 4294901760
    %775 = vmatpush.msra.mxu0 %v774
    %v776 = vand.u32 %v161, 4294901760
    %777 = vmatpush.msra.mxu0 %v776
    %v778 = vand.u32 %v159, 4294901760
    %779 = vmatpush.msra.mxu0 %v778
    %v780 = vand.u32 %v157, 4294901760
    %781 = vmatpush.msra.mxu0 %v780
    %v782 = vand.u32 %v155, 4294901760
    %783 = vmatpush.msra.mxu0 %v782
    %v784 = vand.u32 %v153, 4294901760
    %785 = vmatpush.msra.mxu0 %v784
    %v786 = vand.u32 %v151, 4294901760
    %787 = vmatpush.msra.mxu0 %v786
    %v788 = vand.u32 %v149, 4294901760
    %789 = vmatpush.msra.mxu0 %v788
    %v790 = vand.u32 %v147, 4294901760
    %791 = vmatpush.msra.mxu0 %v790
    %v792 = vand.u32 %v145, 4294901760
    %793 = vmatpush.msra.mxu0 %v792
    %v794 = vand.u32 %v143, 4294901760
    %795 = vmatpush.msra.mxu0 %v794
    %v796 = vand.u32 %v141, 4294901760
    %797 = vmatpush.msra.mxu0 %v796
    %v798 = vand.u32 %v139, 4294901760
    %799 = vmatpush.msra.mxu0 %v798
    %v800 = vand.u32 %v137, 4294901760
    %801 = vmatpush.msra.mxu0 %v800
    %v802 = vand.u32 %v104, 4294901760
    %v803 = vsub.f32 %v104, %v802
    %v804 = vand.u32 %v803, 4294901760
    %805 = vmatmul.f32.gmra.mxu0 %v804
    %v806 = vpop.f32.mrf.mxu0
    %v807 = vadd.f32 %v768, %v806
    %808 = vdwg.mxu0
    %v809 = vand.u32 %v167, 4294901760
    %v810 = vsub.f32 %v167, %v809
    %v811 = vand.u32 %v810, 4294901760
    %812 = vmatpush.msra.mxu0 %v811
    %v813 = vand.u32 %v165, 4294901760
    %v814 = vsub.f32 %v165, %v813
    %v815 = vand.u32 %v814, 4294901760
    %816 = vmatpush.msra.mxu0 %v815
    %v817 = vand.u32 %v163, 4294901760
    %v818 = vsub.f32 %v163, %v817
    %v819 = vand.u32 %v818, 4294901760
    %820 = vmatpush.msra.mxu0 %v819
    %v821 = vand.u32 %v161, 4294901760
    %v822 = vsub.f32 %v161, %v821
    %v823 = vand.u32 %v822, 4294901760
    %824 = vmatpush.msra.mxu0 %v823
    %v825 = vand.u32 %v159, 4294901760
    %v826 = vsub.f32 %v159, %v825
    %v827 = vand.u32 %v826, 4294901760
    %828 = vmatpush.msra.mxu0 %v827
    %v829 = vand.u32 %v157, 4294901760
    %v830 = vsub.f32 %v157, %v829
    %v831 = vand.u32 %v830, 4294901760
    %832 = vmatpush.msra.mxu0 %v831
    %v833 = vand.u32 %v155, 4294901760
    %v834 = vsub.f32 %v155, %v833
    %v835 = vand.u32 %v834, 4294901760
    %836 = vmatpush.msra.mxu0 %v835
    %v837 = vand.u32 %v153, 4294901760
    %v838 = vsub.f32 %v153, %v837
    %v839 = vand.u32 %v838, 4294901760
    %840 = vmatpush.msra.mxu0 %v839
    %v841 = vand.u32 %v151, 4294901760
    %v842 = vsub.f32 %v151, %v841
    %v843 = vand.u32 %v842, 4294901760
    %844 = vmatpush.msra.mxu0 %v843
    %v845 = vand.u32 %v149, 4294901760
    %v846 = vsub.f32 %v149, %v845
    %v847 = vand.u32 %v846, 4294901760
    %848 = vmatpush.msra.mxu0 %v847
    %v849 = vand.u32 %v147, 4294901760
    %v850 = vsub.f32 %v147, %v849
    %v851 = vand.u32 %v850, 4294901760
    %852 = vmatpush.msra.mxu0 %v851
    %v853 = vand.u32 %v145, 4294901760
    %v854 = vsub.f32 %v145, %v853
    %v855 = vand.u32 %v854, 4294901760
    %856 = vmatpush.msra.mxu0 %v855
    %v857 = vand.u32 %v143, 4294901760
    %v858 = vsub.f32 %v143, %v857
    %v859 = vand.u32 %v858, 4294901760
    %860 = vmatpush.msra.mxu0 %v859
    %v861 = vand.u32 %v141, 4294901760
    %v862 = vsub.f32 %v141, %v861
    %v863 = vand.u32 %v862, 4294901760
    %864 = vmatpush.msra.mxu0 %v863
    %v865 = vand.u32 %v139, 4294901760
    %v866 = vsub.f32 %v139, %v865
    %v867 = vand.u32 %v866, 4294901760
    %868 = vmatpush.msra.mxu0 %v867
    %v869 = vand.u32 %v137, 4294901760
    %v870 = vsub.f32 %v137, %v869
    %v871 = vand.u32 %v870, 4294901760
    %872 = vmatpush.msra.mxu0 %v871
    %v873 = vand.u32 %v104, 4294901760
    %874 = vmatmul.f32.gmra.mxu0 %v873
    %v875 = vpop.f32.mrf.mxu0
    %v876 = vadd.f32 %v807, %v875
    %877 = vdwg.mxu0
    %v878 = vand.u32 %v167, 4294901760
    %879 = vmatpush.msra.mxu0 %v878
    %v880 = vand.u32 %v165, 4294901760
    %881 = vmatpush.msra.mxu0 %v880
    %v882 = vand.u32 %v163, 4294901760
    %883 = vmatpush.msra.mxu0 %v882
    %v884 = vand.u32 %v161, 4294901760
    %885 = vmatpush.msra.mxu0 %v884
    %v886 = vand.u32 %v159, 4294901760
    %887 = vmatpush.msra.mxu0 %v886
    %v888 = vand.u32 %v157, 4294901760
    %889 = vmatpush.msra.mxu0 %v888
    %v890 = vand.u32 %v155, 4294901760
    %891 = vmatpush.msra.mxu0 %v890
    %v892 = vand.u32 %v153, 4294901760
    %893 = vmatpush.msra.mxu0 %v892
    %v894 = vand.u32 %v151, 4294901760
    %895 = vmatpush.msra.mxu0 %v894
    %v896 = vand.u32 %v149, 4294901760
    %897 = vmatpush.msra.mxu0 %v896
    %v898 = vand.u32 %v147, 4294901760
    %899 = vmatpush.msra.mxu0 %v898
    %v900 = vand.u32 %v145, 4294901760
    %901 = vmatpush.msra.mxu0 %v900
    %v902 = vand.u32 %v143, 4294901760
    %903 = vmatpush.msra.mxu0 %v902
    %v904 = vand.u32 %v141, 4294901760
    %905 = vmatpush.msra.mxu0 %v904
    %v906 = vand.u32 %v139, 4294901760
    %907 = vmatpush.msra.mxu0 %v906
    %v908 = vand.u32 %v137, 4294901760
    %909 = vmatpush.msra.mxu0 %v908
    %v910 = vand.u32 %v104, 4294901760
    %911 = vmatmul.f32.gmra.mxu0 %v910
    %v912 = vpop.f32.mrf.mxu0
    %v913 = vadd.f32 %v876, %v912
    %914 = vdwg.mxu0
    %v915 = vand.u32 %v136, 4294901760
    %916 = vmatpush.msra.mxu0 %v915
    %v917 = vand.u32 %v134, 4294901760
    %918 = vmatpush.msra.mxu0 %v917
    %v919 = vand.u32 %v132, 4294901760
    %920 = vmatpush.msra.mxu0 %v919
    %v921 = vand.u32 %v130, 4294901760
    %922 = vmatpush.msra.mxu0 %v921
    %v923 = vand.u32 %v128, 4294901760
    %924 = vmatpush.msra.mxu0 %v923
    %v925 = vand.u32 %v126, 4294901760
    %926 = vmatpush.msra.mxu0 %v925
    %v927 = vand.u32 %v124, 4294901760
    %928 = vmatpush.msra.mxu0 %v927
    %v929 = vand.u32 %v122, 4294901760
    %930 = vmatpush.msra.mxu0 %v929
    %v931 = vand.u32 %v120, 4294901760
    %932 = vmatpush.msra.mxu0 %v931
    %v933 = vand.u32 %v118, 4294901760
    %934 = vmatpush.msra.mxu0 %v933
    %v935 = vand.u32 %v116, 4294901760
    %936 = vmatpush.msra.mxu0 %v935
    %v937 = vand.u32 %v114, 4294901760
    %938 = vmatpush.msra.mxu0 %v937
    %v939 = vand.u32 %v112, 4294901760
    %940 = vmatpush.msra.mxu0 %v939
    %v941 = vand.u32 %v110, 4294901760
    %942 = vmatpush.msra.mxu0 %v941
    %v943 = vand.u32 %v108, 4294901760
    %944 = vmatpush.msra.mxu0 %v943
    %v945 = vand.u32 %v106, 4294901760
    %946 = vmatpush.msra.mxu0 %v945
    %v947 = vand.u32 %v103, 4294901760
    %v948 = vsub.f32 %v103, %v947
    %v949 = vand.u32 %v948, 4294901760
    %v950 = vsub.f32 %v948, %v949
    %v951 = vand.u32 %v950, 4294901760
    %952 = vmatmul.f32.gmra.mxu0 %v951
    %v953 = vpop.f32.mrf.mxu0
    %v954 = vadd.f32 0.0, %v953
    %955 = vdwg.mxu0
    %v956 = vand.u32 %v136, 4294901760
    %v957 = vsub.f32 %v136, %v956
    %v958 = vand.u32 %v957, 4294901760
    %v959 = vsub.f32 %v957, %v958
    %v960 = vand.u32 %v959, 4294901760
    %961 = vmatpush.msra.mxu0 %v960
    %v962 = vand.u32 %v134, 4294901760
    %v963 = vsub.f32 %v134, %v962
    %v964 = vand.u32 %v963, 4294901760
    %v965 = vsub.f32 %v963, %v964
    %v966 = vand.u32 %v965, 4294901760
    %967 = vmatpush.msra.mxu0 %v966
    %v968 = vand.u32 %v132, 4294901760
    %v969 = vsub.f32 %v132, %v968
    %v970 = vand.u32 %v969, 4294901760
    %v971 = vsub.f32 %v969, %v970
    %v972 = vand.u32 %v971, 4294901760
    %973 = vmatpush.msra.mxu0 %v972
    %v974 = vand.u32 %v130, 4294901760
    %v975 = vsub.f32 %v130, %v974
    %v976 = vand.u32 %v975, 4294901760
    %v977 = vsub.f32 %v975, %v976
    %v978 = vand.u32 %v977, 4294901760
    %979 = vmatpush.msra.mxu0 %v978
    %v980 = vand.u32 %v128, 4294901760
    %v981 = vsub.f32 %v128, %v980
    %v982 = vand.u32 %v981, 4294901760
    %v983 = vsub.f32 %v981, %v982
    %v984 = vand.u32 %v983, 4294901760
    %985 = vmatpush.msra.mxu0 %v984
    %v986 = vand.u32 %v126, 4294901760
    %v987 = vsub.f32 %v126, %v986
    %v988 = vand.u32 %v987, 4294901760
    %v989 = vsub.f32 %v987, %v988
    %v990 = vand.u32 %v989, 4294901760
    %991 = vmatpush.msra.mxu0 %v990
    %v992 = vand.u32 %v124, 4294901760
    %v993 = vsub.f32 %v124, %v992
    %v994 = vand.u32 %v993, 4294901760
    %v995 = vsub.f32 %v993, %v994
    %v996 = vand.u32 %v995, 4294901760
    %997 = vmatpush.msra.mxu0 %v996
    %v998 = vand.u32 %v122, 4294901760
    %v999 = vsub.f32 %v122, %v998
    %v1000 = vand.u32 %v999, 4294901760
    %v1001 = vsub.f32 %v999, %v1000
    %v1002 = vand.u32 %v1001, 4294901760
    %1003 = vmatpush.msra.mxu0 %v1002
    %v1004 = vand.u32 %v120, 4294901760
    %v1005 = vsub.f32 %v120, %v1004
    %v1006 = vand.u32 %v1005, 4294901760
    %v1007 = vsub.f32 %v1005, %v1006
    %v1008 = vand.u32 %v1007, 4294901760
    %1009 = vmatpush.msra.mxu0 %v1008
    %v1010 = vand.u32 %v118, 4294901760
    %v1011 = vsub.f32 %v118, %v1010
    %v1012 = vand.u32 %v1011, 4294901760
    %v1013 = vsub.f32 %v1011, %v1012
    %v1014 = vand.u32 %v1013, 4294901760
    %1015 = vmatpush.msra.mxu0 %v1014
    %v1016 = vand.u32 %v116, 4294901760
    %v1017 = vsub.f32 %v116, %v1016
    %v1018 = vand.u32 %v1017, 4294901760
    %v1019 = vsub.f32 %v1017, %v1018
    %v1020 = vand.u32 %v1019, 4294901760
    %1021 = vmatpush.msra.mxu0 %v1020
    %v1022 = vand.u32 %v114, 4294901760
    %v1023 = vsub.f32 %v114, %v1022
    %v1024 = vand.u32 %v1023, 4294901760
    %v1025 = vsub.f32 %v1023, %v1024
    %v1026 = vand.u32 %v1025, 4294901760
    %1027 = vmatpush.msra.mxu0 %v1026
    %v1028 = vand.u32 %v112, 4294901760
    %v1029 = vsub.f32 %v112, %v1028
    %v1030 = vand.u32 %v1029, 4294901760
    %v1031 = vsub.f32 %v1029, %v1030
    %v1032 = vand.u32 %v1031, 4294901760
    %1033 = vmatpush.msra.mxu0 %v1032
    %v1034 = vand.u32 %v110, 4294901760
    %v1035 = vsub.f32 %v110, %v1034
    %v1036 = vand.u32 %v1035, 4294901760
    %v1037 = vsub.f32 %v1035, %v1036
    %v1038 = vand.u32 %v1037, 4294901760
    %1039 = vmatpush.msra.mxu0 %v1038
    %v1040 = vand.u32 %v108, 4294901760
    %v1041 = vsub.f32 %v108, %v1040
    %v1042 = vand.u32 %v1041, 4294901760
    %v1043 = vsub.f32 %v1041, %v1042
    %v1044 = vand.u32 %v1043, 4294901760
    %1045 = vmatpush.msra.mxu0 %v1044
    %v1046 = vand.u32 %v106, 4294901760
    %v1047 = vsub.f32 %v106, %v1046
    %v1048 = vand.u32 %v1047, 4294901760
    %v1049 = vsub.f32 %v1047, %v1048
    %v1050 = vand.u32 %v1049, 4294901760
    %1051 = vmatpush.msra.mxu0 %v1050
    %v1052 = vand.u32 %v103, 4294901760
    %1053 = vmatmul.f32.gmra.mxu0 %v1052
    %v1054 = vpop.f32.mrf.mxu0
    %v1055 = vadd.f32 %v954, %v1054
    %1056 = vdwg.mxu0
    %v1057 = vand.u32 %v136, 4294901760
    %v1058 = vsub.f32 %v136, %v1057
    %1059 = vmatpush.msra.mxu0 %v1058
    %v1060 = vand.u32 %v134, 4294901760
    %v1061 = vsub.f32 %v134, %v1060
    %1062 = vmatpush.msra.mxu0 %v1061
    %v1063 = vand.u32 %v132, 4294901760
    %v1064 = vsub.f32 %v132, %v1063
    %1065 = vmatpush.msra.mxu0 %v1064
    %v1066 = vand.u32 %v130, 4294901760
    %v1067 = vsub.f32 %v130, %v1066
    %1068 = vmatpush.msra.mxu0 %v1067
    %v1069 = vand.u32 %v128, 4294901760
    %v1070 = vsub.f32 %v128, %v1069
    %1071 = vmatpush.msra.mxu0 %v1070
    %v1072 = vand.u32 %v126, 4294901760
    %v1073 = vsub.f32 %v126, %v1072
    %1074 = vmatpush.msra.mxu0 %v1073
    %v1075 = vand.u32 %v124, 4294901760
    %v1076 = vsub.f32 %v124, %v1075
    %1077 = vmatpush.msra.mxu0 %v1076
    %v1078 = vand.u32 %v122, 4294901760
    %v1079 = vsub.f32 %v122, %v1078
    %1080 = vmatpush.msra.mxu0 %v1079
    %v1081 = vand.u32 %v120, 4294901760
    %v1082 = vsub.f32 %v120, %v1081
    %1083 = vmatpush.msra.mxu0 %v1082
    %v1084 = vand.u32 %v118, 4294901760
    %v1085 = vsub.f32 %v118, %v1084
    %1086 = vmatpush.msra.mxu0 %v1085
    %v1087 = vand.u32 %v116, 4294901760
    %v1088 = vsub.f32 %v116, %v1087
    %1089 = vmatpush.msra.mxu0 %v1088
    %v1090 = vand.u32 %v114, 4294901760
    %v1091 = vsub.f32 %v114, %v1090
    %1092 = vmatpush.msra.mxu0 %v1091
    %v1093 = vand.u32 %v112, 4294901760
    %v1094 = vsub.f32 %v112, %v1093
    %1095 = vmatpush.msra.mxu0 %v1094
    %v1096 = vand.u32 %v110, 4294901760
    %v1097 = vsub.f32 %v110, %v1096
    %1098 = vmatpush.msra.mxu0 %v1097
    %v1099 = vand.u32 %v108, 4294901760
    %v1100 = vsub.f32 %v108, %v1099
    %1101 = vmatpush.msra.mxu0 %v1100
    %v1102 = vand.u32 %v106, 4294901760
    %v1103 = vsub.f32 %v106, %v1102
    %1104 = vmatpush.msra.mxu0 %v1103
    %v1105 = vand.u32 %v103, 4294901760
    %v1106 = vsub.f32 %v103, %v1105
    %1107 = vmatmul.f32.gmra.mxu0 %v1106
    %v1108 = vpop.f32.mrf.mxu0
    %v1109 = vadd.f32 %v1055, %v1108
    %1110 = vdwg.mxu0
    %v1111 = vand.u32 %v136, 4294901760
    %1112 = vmatpush.msra.mxu0 %v1111
    %v1113 = vand.u32 %v134, 4294901760
    %1114 = vmatpush.msra.mxu0 %v1113
    %v1115 = vand.u32 %v132, 4294901760
    %1116 = vmatpush.msra.mxu0 %v1115
    %v1117 = vand.u32 %v130, 4294901760
    %1118 = vmatpush.msra.mxu0 %v1117
    %v1119 = vand.u32 %v128, 4294901760
    %1120 = vmatpush.msra.mxu0 %v1119
    %v1121 = vand.u32 %v126, 4294901760
    %1122 = vmatpush.msra.mxu0 %v1121
    %v1123 = vand.u32 %v124, 4294901760
    %1124 = vmatpush.msra.mxu0 %v1123
    %v1125 = vand.u32 %v122, 4294901760
    %1126 = vmatpush.msra.mxu0 %v1125
    %v1127 = vand.u32 %v120, 4294901760
    %1128 = vmatpush.msra.mxu0 %v1127
    %v1129 = vand.u32 %v118, 4294901760
    %1130 = vmatpush.msra.mxu0 %v1129
    %v1131 = vand.u32 %v116, 4294901760
    %1132 = vmatpush.msra.mxu0 %v1131
    %v1133 = vand.u32 %v114, 4294901760
    %1134 = vmatpush.msra.mxu0 %v1133
    %v1135 = vand.u32 %v112, 4294901760
    %1136 = vmatpush.msra.mxu0 %v1135
    %v1137 = vand.u32 %v110, 4294901760
    %1138 = vmatpush.msra.mxu0 %v1137
    %v1139 = vand.u32 %v108, 4294901760
    %1140 = vmatpush.msra.mxu0 %v1139
    %v1141 = vand.u32 %v106, 4294901760
    %1142 = vmatpush.msra.mxu0 %v1141
    %v1143 = vand.u32 %v103, 4294901760
    %v1144 = vsub.f32 %v103, %v1143
    %v1145 = vand.u32 %v1144, 4294901760
    %1146 = vmatmul.f32.gmra.mxu0 %v1145
    %v1147 = vpop.f32.mrf.mxu0
    %v1148 = vadd.f32 %v1109, %v1147
    %1149 = vdwg.mxu0
    %v1150 = vand.u32 %v136, 4294901760
    %v1151 = vsub.f32 %v136, %v1150
    %v1152 = vand.u32 %v1151, 4294901760
    %1153 = vmatpush.msra.mxu0 %v1152
    %v1154 = vand.u32 %v134, 4294901760
    %v1155 = vsub.f32 %v134, %v1154
    %v1156 = vand.u32 %v1155, 4294901760
    %1157 = vmatpush.msra.mxu0 %v1156
    %v1158 = vand.u32 %v132, 4294901760
    %v1159 = vsub.f32 %v132, %v1158
    %v1160 = vand.u32 %v1159, 4294901760
    %1161 = vmatpush.msra.mxu0 %v1160
    %v1162 = vand.u32 %v130, 4294901760
    %v1163 = vsub.f32 %v130, %v1162
    %v1164 = vand.u32 %v1163, 4294901760
    %1165 = vmatpush.msra.mxu0 %v1164
    %v1166 = vand.u32 %v128, 4294901760
    %v1167 = vsub.f32 %v128, %v1166
    %v1168 = vand.u32 %v1167, 4294901760
    %1169 = vmatpush.msra.mxu0 %v1168
    %v1170 = vand.u32 %v126, 4294901760
    %v1171 = vsub.f32 %v126, %v1170
    %v1172 = vand.u32 %v1171, 4294901760
    %1173 = vmatpush.msra.mxu0 %v1172
    %v1174 = vand.u32 %v124, 4294901760
    %v1175 = vsub.f32 %v124, %v1174
    %v1176 = vand.u32 %v1175, 4294901760
    %1177 = vmatpush.msra.mxu0 %v1176
    %v1178 = vand.u32 %v122, 4294901760
    %v1179 = vsub.f32 %v122, %v1178
    %v1180 = vand.u32 %v1179, 4294901760
    %1181 = vmatpush.msra.mxu0 %v1180
    %v1182 = vand.u32 %v120, 4294901760
    %v1183 = vsub.f32 %v120, %v1182
    %v1184 = vand.u32 %v1183, 4294901760
    %1185 = vmatpush.msra.mxu0 %v1184
    %v1186 = vand.u32 %v118, 4294901760
    %v1187 = vsub.f32 %v118, %v1186
    %v1188 = vand.u32 %v1187, 4294901760
    %1189 = vmatpush.msra.mxu0 %v1188
    %v1190 = vand.u32 %v116, 4294901760
    %v1191 = vsub.f32 %v116, %v1190
    %v1192 = vand.u32 %v1191, 4294901760
    %1193 = vmatpush.msra.mxu0 %v1192
    %v1194 = vand.u32 %v114, 4294901760
    %v1195 = vsub.f32 %v114, %v1194
    %v1196 = vand.u32 %v1195, 4294901760
    %1197 = vmatpush.msra.mxu0 %v1196
    %v1198 = vand.u32 %v112, 4294901760
    %v1199 = vsub.f32 %v112, %v1198
    %v1200 = vand.u32 %v1199, 4294901760
    %1201 = vmatpush.msra.mxu0 %v1200
    %v1202 = vand.u32 %v110, 4294901760
    %v1203 = vsub.f32 %v110, %v1202
    %v1204 = vand.u32 %v1203, 4294901760
    %1205 = vmatpush.msra.mxu0 %v1204
    %v1206 = vand.u32 %v108, 4294901760
    %v1207 = vsub.f32 %v108, %v1206
    %v1208 = vand.u32 %v1207, 4294901760
    %1209 = vmatpush.msra.mxu0 %v1208
    %v1210 = vand.u32 %v106, 4294901760
    %v1211 = vsub.f32 %v106, %v1210
    %v1212 = vand.u32 %v1211, 4294901760
    %1213 = vmatpush.msra.mxu0 %v1212
    %v1214 = vand.u32 %v103, 4294901760
    %1215 = vmatmul.f32.gmra.mxu0 %v1214
    %v1216 = vpop.f32.mrf.mxu0
    %v1217 = vadd.f32 %v1148, %v1216
    %1218 = vdwg.mxu0
    %v1219 = vand.u32 %v136, 4294901760
    %1220 = vmatpush.msra.mxu0 %v1219
    %v1221 = vand.u32 %v134, 4294901760
    %1222 = vmatpush.msra.mxu0 %v1221
    %v1223 = vand.u32 %v132, 4294901760
    %1224 = vmatpush.msra.mxu0 %v1223
    %v1225 = vand.u32 %v130, 4294901760
    %1226 = vmatpush.msra.mxu0 %v1225
    %v1227 = vand.u32 %v128, 4294901760
    %1228 = vmatpush.msra.mxu0 %v1227
    %v1229 = vand.u32 %v126, 4294901760
    %1230 = vmatpush.msra.mxu0 %v1229
    %v1231 = vand.u32 %v124, 4294901760
    %1232 = vmatpush.msra.mxu0 %v1231
    %v1233 = vand.u32 %v122, 4294901760
    %1234 = vmatpush.msra.mxu0 %v1233
    %v1235 = vand.u32 %v120, 4294901760
    %1236 = vmatpush.msra.mxu0 %v1235
    %v1237 = vand.u32 %v118, 4294901760
    %1238 = vmatpush.msra.mxu0 %v1237
    %v1239 = vand.u32 %v116, 4294901760
    %1240 = vmatpush.msra.mxu0 %v1239
    %v1241 = vand.u32 %v114, 4294901760
    %1242 = vmatpush.msra.mxu0 %v1241
    %v1243 = vand.u32 %v112, 4294901760
    %1244 = vmatpush.msra.mxu0 %v1243
    %v1245 = vand.u32 %v110, 4294901760
    %1246 = vmatpush.msra.mxu0 %v1245
    %v1247 = vand.u32 %v108, 4294901760
    %1248 = vmatpush.msra.mxu0 %v1247
    %v1249 = vand.u32 %v106, 4294901760
    %1250 = vmatpush.msra.mxu0 %v1249
    %v1251 = vand.u32 %v103, 4294901760
    %1252 = vmatmul.f32.gmra.mxu0 %v1251
    %v1253 = vpop.f32.mrf.mxu0
    %v1254 = vadd.f32 %v1217, %v1253
    %1255 = vdwg.mxu0
    %v1256 = vand.u32 %v168, 4294901760
    %1257 = vmatpush.msra.mxu0 %v1256
    %v1258 = vand.u32 %v166, 4294901760
    %1259 = vmatpush.msra.mxu0 %v1258
    %v1260 = vand.u32 %v164, 4294901760
    %1261 = vmatpush.msra.mxu0 %v1260
    %v1262 = vand.u32 %v162, 4294901760
    %1263 = vmatpush.msra.mxu0 %v1262
    %v1264 = vand.u32 %v160, 4294901760
    %1265 = vmatpush.msra.mxu0 %v1264
    %v1266 = vand.u32 %v158, 4294901760
    %1267 = vmatpush.msra.mxu0 %v1266
    %v1268 = vand.u32 %v156, 4294901760
    %1269 = vmatpush.msra.mxu0 %v1268
    %v1270 = vand.u32 %v154, 4294901760
    %1271 = vmatpush.msra.mxu0 %v1270
    %v1272 = vand.u32 %v152, 4294901760
    %1273 = vmatpush.msra.mxu0 %v1272
    %v1274 = vand.u32 %v150, 4294901760
    %1275 = vmatpush.msra.mxu0 %v1274
    %v1276 = vand.u32 %v148, 4294901760
    %1277 = vmatpush.msra.mxu0 %v1276
    %v1278 = vand.u32 %v146, 4294901760
    %1279 = vmatpush.msra.mxu0 %v1278
    %v1280 = vand.u32 %v144, 4294901760
    %1281 = vmatpush.msra.mxu0 %v1280
    %v1282 = vand.u32 %v142, 4294901760
    %1283 = vmatpush.msra.mxu0 %v1282
    %v1284 = vand.u32 %v140, 4294901760
    %1285 = vmatpush.msra.mxu0 %v1284
    %v1286 = vand.u32 %v138, 4294901760
    %1287 = vmatpush.msra.mxu0 %v1286
    %v1288 = vand.u32 %v104, 4294901760
    %v1289 = vsub.f32 %v104, %v1288
    %v1290 = vand.u32 %v1289, 4294901760
    %v1291 = vsub.f32 %v1289, %v1290
    %v1292 = vand.u32 %v1291, 4294901760
    %1293 = vmatmul.f32.gmra.mxu0 %v1292
    %v1294 = vpop.f32.mrf.mxu0
    %v1295 = vadd.f32 %v1254, %v1294
    %1296 = vdwg.mxu0
    %v1297 = vand.u32 %v168, 4294901760
    %v1298 = vsub.f32 %v168, %v1297
    %v1299 = vand.u32 %v1298, 4294901760
    %v1300 = vsub.f32 %v1298, %v1299
    %v1301 = vand.u32 %v1300, 4294901760
    %1302 = vmatpush.msra.mxu0 %v1301
    %v1303 = vand.u32 %v166, 4294901760
    %v1304 = vsub.f32 %v166, %v1303
    %v1305 = vand.u32 %v1304, 4294901760
    %v1306 = vsub.f32 %v1304, %v1305
    %v1307 = vand.u32 %v1306, 4294901760
    %1308 = vmatpush.msra.mxu0 %v1307
    %v1309 = vand.u32 %v164, 4294901760
    %v1310 = vsub.f32 %v164, %v1309
    %v1311 = vand.u32 %v1310, 4294901760
    %v1312 = vsub.f32 %v1310, %v1311
    %v1313 = vand.u32 %v1312, 4294901760
    %1314 = vmatpush.msra.mxu0 %v1313
    %v1315 = vand.u32 %v162, 4294901760
    %v1316 = vsub.f32 %v162, %v1315
    %v1317 = vand.u32 %v1316, 4294901760
    %v1318 = vsub.f32 %v1316, %v1317
    %v1319 = vand.u32 %v1318, 4294901760
    %1320 = vmatpush.msra.mxu0 %v1319
    %v1321 = vand.u32 %v160, 4294901760
    %v1322 = vsub.f32 %v160, %v1321
    %v1323 = vand.u32 %v1322, 4294901760
    %v1324 = vsub.f32 %v1322, %v1323
    %v1325 = vand.u32 %v1324, 4294901760
    %1326 = vmatpush.msra.mxu0 %v1325
    %v1327 = vand.u32 %v158, 4294901760
    %v1328 = vsub.f32 %v158, %v1327
    %v1329 = vand.u32 %v1328, 4294901760
    %v1330 = vsub.f32 %v1328, %v1329
    %v1331 = vand.u32 %v1330, 4294901760
    %1332 = vmatpush.msra.mxu0 %v1331
    %v1333 = vand.u32 %v156, 4294901760
    %v1334 = vsub.f32 %v156, %v1333
    %v1335 = vand.u32 %v1334, 4294901760
    %v1336 = vsub.f32 %v1334, %v1335
    %v1337 = vand.u32 %v1336, 4294901760
    %1338 = vmatpush.msra.mxu0 %v1337
    %v1339 = vand.u32 %v154, 4294901760
    %v1340 = vsub.f32 %v154, %v1339
    %v1341 = vand.u32 %v1340, 4294901760
    %v1342 = vsub.f32 %v1340, %v1341
    %v1343 = vand.u32 %v1342, 4294901760
    %1344 = vmatpush.msra.mxu0 %v1343
    %v1345 = vand.u32 %v152, 4294901760
    %v1346 = vsub.f32 %v152, %v1345
    %v1347 = vand.u32 %v1346, 4294901760
    %v1348 = vsub.f32 %v1346, %v1347
    %v1349 = vand.u32 %v1348, 4294901760
    %1350 = vmatpush.msra.mxu0 %v1349
    %v1351 = vand.u32 %v150, 4294901760
    %v1352 = vsub.f32 %v150, %v1351
    %v1353 = vand.u32 %v1352, 4294901760
    %v1354 = vsub.f32 %v1352, %v1353
    %v1355 = vand.u32 %v1354, 4294901760
    %1356 = vmatpush.msra.mxu0 %v1355
    %v1357 = vand.u32 %v148, 4294901760
    %v1358 = vsub.f32 %v148, %v1357
    %v1359 = vand.u32 %v1358, 4294901760
    %v1360 = vsub.f32 %v1358, %v1359
    %v1361 = vand.u32 %v1360, 4294901760
    %1362 = vmatpush.msra.mxu0 %v1361
    %v1363 = vand.u32 %v146, 4294901760
    %v1364 = vsub.f32 %v146, %v1363
    %v1365 = vand.u32 %v1364, 4294901760
    %v1366 = vsub.f32 %v1364, %v1365
    %v1367 = vand.u32 %v1366, 4294901760
    %1368 = vmatpush.msra.mxu0 %v1367
    %v1369 = vand.u32 %v144, 4294901760
    %v1370 = vsub.f32 %v144, %v1369
    %v1371 = vand.u32 %v1370, 4294901760
    %v1372 = vsub.f32 %v1370, %v1371
    %v1373 = vand.u32 %v1372, 4294901760
    %1374 = vmatpush.msra.mxu0 %v1373
    %v1375 = vand.u32 %v142, 4294901760
    %v1376 = vsub.f32 %v142, %v1375
    %v1377 = vand.u32 %v1376, 4294901760
    %v1378 = vsub.f32 %v1376, %v1377
    %v1379 = vand.u32 %v1378, 4294901760
    %1380 = vmatpush.msra.mxu0 %v1379
    %v1381 = vand.u32 %v140, 4294901760
    %v1382 = vsub.f32 %v140, %v1381
    %v1383 = vand.u32 %v1382, 4294901760
    %v1384 = vsub.f32 %v1382, %v1383
    %v1385 = vand.u32 %v1384, 4294901760
    %1386 = vmatpush.msra.mxu0 %v1385
    %v1387 = vand.u32 %v138, 4294901760
    %v1388 = vsub.f32 %v138, %v1387
    %v1389 = vand.u32 %v1388, 4294901760
    %v1390 = vsub.f32 %v1388, %v1389
    %v1391 = vand.u32 %v1390, 4294901760
    %1392 = vmatpush.msra.mxu0 %v1391
    %v1393 = vand.u32 %v104, 4294901760
    %1394 = vmatmul.f32.gmra.mxu0 %v1393
    %v1395 = vpop.f32.mrf.mxu0
    %v1396 = vadd.f32 %v1295, %v1395
    %1397 = vdwg.mxu0
    %v1398 = vand.u32 %v168, 4294901760
    %v1399 = vsub.f32 %v168, %v1398
    %1400 = vmatpush.msra.mxu0 %v1399
    %v1401 = vand.u32 %v166, 4294901760
    %v1402 = vsub.f32 %v166, %v1401
    %1403 = vmatpush.msra.mxu0 %v1402
    %v1404 = vand.u32 %v164, 4294901760
    %v1405 = vsub.f32 %v164, %v1404
    %1406 = vmatpush.msra.mxu0 %v1405
    %v1407 = vand.u32 %v162, 4294901760
    %v1408 = vsub.f32 %v162, %v1407
    %1409 = vmatpush.msra.mxu0 %v1408
    %v1410 = vand.u32 %v160, 4294901760
    %v1411 = vsub.f32 %v160, %v1410
    %1412 = vmatpush.msra.mxu0 %v1411
    %v1413 = vand.u32 %v158, 4294901760
    %v1414 = vsub.f32 %v158, %v1413
    %1415 = vmatpush.msra.mxu0 %v1414
    %v1416 = vand.u32 %v156, 4294901760
    %v1417 = vsub.f32 %v156, %v1416
    %1418 = vmatpush.msra.mxu0 %v1417
    %v1419 = vand.u32 %v154, 4294901760
    %v1420 = vsub.f32 %v154, %v1419
    %1421 = vmatpush.msra.mxu0 %v1420
    %v1422 = vand.u32 %v152, 4294901760
    %v1423 = vsub.f32 %v152, %v1422
    %1424 = vmatpush.msra.mxu0 %v1423
    %v1425 = vand.u32 %v150, 4294901760
    %v1426 = vsub.f32 %v150, %v1425
    %1427 = vmatpush.msra.mxu0 %v1426
    %v1428 = vand.u32 %v148, 4294901760
    %v1429 = vsub.f32 %v148, %v1428
    %1430 = vmatpush.msra.mxu0 %v1429
    %v1431 = vand.u32 %v146, 4294901760
    %v1432 = vsub.f32 %v146, %v1431
    %1433 = vmatpush.msra.mxu0 %v1432
    %v1434 = vand.u32 %v144, 4294901760
    %v1435 = vsub.f32 %v144, %v1434
    %1436 = vmatpush.msra.mxu0 %v1435
    %v1437 = vand.u32 %v142, 4294901760
    %v1438 = vsub.f32 %v142, %v1437
    %1439 = vmatpush.msra.mxu0 %v1438
    %v1440 = vand.u32 %v140, 4294901760
    %v1441 = vsub.f32 %v140, %v1440
    %1442 = vmatpush.msra.mxu0 %v1441
    %v1443 = vand.u32 %v138, 4294901760
    %v1444 = vsub.f32 %v138, %v1443
    %1445 = vmatpush.msra.mxu0 %v1444
    %v1446 = vand.u32 %v104, 4294901760
    %v1447 = vsub.f32 %v104, %v1446
    %1448 = vmatmul.f32.gmra.mxu0 %v1447
    %v1449 = vpop.f32.mrf.mxu0
    %v1450 = vadd.f32 %v1396, %v1449
    %1451 = vdwg.mxu0
    %v1452 = vand.u32 %v168, 4294901760
    %1453 = vmatpush.msra.mxu0 %v1452
    %v1454 = vand.u32 %v166, 4294901760
    %1455 = vmatpush.msra.mxu0 %v1454
    %v1456 = vand.u32 %v164, 4294901760
    %1457 = vmatpush.msra.mxu0 %v1456
    %v1458 = vand.u32 %v162, 4294901760
    %1459 = vmatpush.msra.mxu0 %v1458
    %v1460 = vand.u32 %v160, 4294901760
    %1461 = vmatpush.msra.mxu0 %v1460
    %v1462 = vand.u32 %v158, 4294901760
    %1463 = vmatpush.msra.mxu0 %v1462
    %v1464 = vand.u32 %v156, 4294901760
    %1465 = vmatpush.msra.mxu0 %v1464
    %v1466 = vand.u32 %v154, 4294901760
    %1467 = vmatpush.msra.mxu0 %v1466
    %v1468 = vand.u32 %v152, 4294901760
    %1469 = vmatpush.msra.mxu0 %v1468
    %v1470 = vand.u32 %v150, 4294901760
    %1471 = vmatpush.msra.mxu0 %v1470
    %v1472 = vand.u32 %v148, 4294901760
    %1473 = vmatpush.msra.mxu0 %v1472
    %v1474 = vand.u32 %v146, 4294901760
    %1475 = vmatpush.msra.mxu0 %v1474
    %v1476 = vand.u32 %v144, 4294901760
    %1477 = vmatpush.msra.mxu0 %v1476
    %v1478 = vand.u32 %v142, 4294901760
    %1479 = vmatpush.msra.mxu0 %v1478
    %v1480 = vand.u32 %v140, 4294901760
    %1481 = vmatpush.msra.mxu0 %v1480
    %v1482 = vand.u32 %v138, 4294901760
    %1483 = vmatpush.msra.mxu0 %v1482
    %v1484 = vand.u32 %v104, 4294901760
    %v1485 = vsub.f32 %v104, %v1484
    %v1486 = vand.u32 %v1485, 4294901760
    %1487 = vmatmul.f32.gmra.mxu0 %v1486
    %v1488 = vpop.f32.mrf.mxu0
    %v1489 = vadd.f32 %v1450, %v1488
    %1490 = vdwg.mxu0
    %v1491 = vand.u32 %v168, 4294901760
    %v1492 = vsub.f32 %v168, %v1491
    %v1493 = vand.u32 %v1492, 4294901760
    %1494 = vmatpush.msra.mxu0 %v1493
    %v1495 = vand.u32 %v166, 4294901760
    %v1496 = vsub.f32 %v166, %v1495
    %v1497 = vand.u32 %v1496, 4294901760
    %1498 = vmatpush.msra.mxu0 %v1497
    %v1499 = vand.u32 %v164, 4294901760
    %v1500 = vsub.f32 %v164, %v1499
    %v1501 = vand.u32 %v1500, 4294901760
    %1502 = vmatpush.msra.mxu0 %v1501
    %v1503 = vand.u32 %v162, 4294901760
    %v1504 = vsub.f32 %v162, %v1503
    %v1505 = vand.u32 %v1504, 4294901760
    %1506 = vmatpush.msra.mxu0 %v1505
    %v1507 = vand.u32 %v160, 4294901760
    %v1508 = vsub.f32 %v160, %v1507
    %v1509 = vand.u32 %v1508, 4294901760
    %1510 = vmatpush.msra.mxu0 %v1509
    %v1511 = vand.u32 %v158, 4294901760
    %v1512 = vsub.f32 %v158, %v1511
    %v1513 = vand.u32 %v1512, 4294901760
    %1514 = vmatpush.msra.mxu0 %v1513
    %v1515 = vand.u32 %v156, 4294901760
    %v1516 = vsub.f32 %v156, %v1515
    %v1517 = vand.u32 %v1516, 4294901760
    %1518 = vmatpush.msra.mxu0 %v1517
    %v1519 = vand.u32 %v154, 4294901760
    %v1520 = vsub.f32 %v154, %v1519
    %v1521 = vand.u32 %v1520, 4294901760
    %1522 = vmatpush.msra.mxu0 %v1521
    %v1523 = vand.u32 %v152, 4294901760
    %v1524 = vsub.f32 %v152, %v1523
    %v1525 = vand.u32 %v1524, 4294901760
    %1526 = vmatpush.msra.mxu0 %v1525
    %v1527 = vand.u32 %v150, 4294901760
    %v1528 = vsub.f32 %v150, %v1527
    %v1529 = vand.u32 %v1528, 4294901760
    %1530 = vmatpush.msra.mxu0 %v1529
    %v1531 = vand.u32 %v148, 4294901760
    %v1532 = vsub.f32 %v148, %v1531
    %v1533 = vand.u32 %v1532, 4294901760
    %1534 = vmatpush.msra.mxu0 %v1533
    %v1535 = vand.u32 %v146, 4294901760
    %v1536 = vsub.f32 %v146, %v1535
    %v1537 = vand.u32 %v1536, 4294901760
    %1538 = vmatpush.msra.mxu0 %v1537
    %v1539 = vand.u32 %v144, 4294901760
    %v1540 = vsub.f32 %v144, %v1539
    %v1541 = vand.u32 %v1540, 4294901760
    %1542 = vmatpush.msra.mxu0 %v1541
    %v1543 = vand.u32 %v142, 4294901760
    %v1544 = vsub.f32 %v142, %v1543
    %v1545 = vand.u32 %v1544, 4294901760
    %1546 = vmatpush.msra.mxu0 %v1545
    %v1547 = vand.u32 %v140, 4294901760
    %v1548 = vsub.f32 %v140, %v1547
    %v1549 = vand.u32 %v1548, 4294901760
    %1550 = vmatpush.msra.mxu0 %v1549
    %v1551 = vand.u32 %v138, 4294901760
    %v1552 = vsub.f32 %v138, %v1551
    %v1553 = vand.u32 %v1552, 4294901760
    %1554 = vmatpush.msra.mxu0 %v1553
    %v1555 = vand.u32 %v104, 4294901760
    %1556 = vmatmul.f32.gmra.mxu0 %v1555
    %v1557 = vpop.f32.mrf.mxu0
    %v1558 = vadd.f32 %v1489, %v1557
    %1559 = vdwg.mxu0
    %v1560 = vand.u32 %v168, 4294901760
    %1561 = vmatpush.msra.mxu0 %v1560
    %v1562 = vand.u32 %v166, 4294901760
    %1563 = vmatpush.msra.mxu0 %v1562
    %v1564 = vand.u32 %v164, 4294901760
    %1565 = vmatpush.msra.mxu0 %v1564
    %v1566 = vand.u32 %v162, 4294901760
    %1567 = vmatpush.msra.mxu0 %v1566
    %v1568 = vand.u32 %v160, 4294901760
    %1569 = vmatpush.msra.mxu0 %v1568
    %v1570 = vand.u32 %v158, 4294901760
    %1571 = vmatpush.msra.mxu0 %v1570
    %v1572 = vand.u32 %v156, 4294901760
    %1573 = vmatpush.msra.mxu0 %v1572
    %v1574 = vand.u32 %v154, 4294901760
    %1575 = vmatpush.msra.mxu0 %v1574
    %v1576 = vand.u32 %v152, 4294901760
    %1577 = vmatpush.msra.mxu0 %v1576
    %v1578 = vand.u32 %v150, 4294901760
    %1579 = vmatpush.msra.mxu0 %v1578
    %v1580 = vand.u32 %v148, 4294901760
    %1581 = vmatpush.msra.mxu0 %v1580
    %v1582 = vand.u32 %v146, 4294901760
    %1583 = vmatpush.msra.mxu0 %v1582
    %v1584 = vand.u32 %v144, 4294901760
    %1585 = vmatpush.msra.mxu0 %v1584
    %v1586 = vand.u32 %v142, 4294901760
    %1587 = vmatpush.msra.mxu0 %v1586
    %v1588 = vand.u32 %v140, 4294901760
    %1589 = vmatpush.msra.mxu0 %v1588
    %v1590 = vand.u32 %v138, 4294901760
    %1591 = vmatpush.msra.mxu0 %v1590
    %v1592 = vand.u32 %v104, 4294901760
    %1593 = vmatmul.f32.gmra.mxu0 %v1592
    %v1594 = vpop.f32.mrf.mxu0
    %v1595 = vadd.f32 %v1558, %v1594
    %1596 = vdwg.mxu0
    %v1597 = vand.u32 %v199, 4294901760
    %1598 = vmatpush.msra.mxu0 %v1597
    %v1599 = vand.u32 %v197, 4294901760
    %1600 = vmatpush.msra.mxu0 %v1599
    %v1601 = vand.u32 %v195, 4294901760
    %1602 = vmatpush.msra.mxu0 %v1601
    %v1603 = vand.u32 %v193, 4294901760
    %1604 = vmatpush.msra.mxu0 %v1603
    %v1605 = vand.u32 %v191, 4294901760
    %1606 = vmatpush.msra.mxu0 %v1605
    %v1607 = vand.u32 %v189, 4294901760
    %1608 = vmatpush.msra.mxu0 %v1607
    %v1609 = vand.u32 %v187, 4294901760
    %1610 = vmatpush.msra.mxu0 %v1609
    %v1611 = vand.u32 %v185, 4294901760
    %1612 = vmatpush.msra.mxu0 %v1611
    %v1613 = vand.u32 %v183, 4294901760
    %1614 = vmatpush.msra.mxu0 %v1613
    %v1615 = vand.u32 %v181, 4294901760
    %1616 = vmatpush.msra.mxu0 %v1615
    %v1617 = vand.u32 %v179, 4294901760
    %1618 = vmatpush.msra.mxu0 %v1617
    %v1619 = vand.u32 %v177, 4294901760
    %1620 = vmatpush.msra.mxu0 %v1619
    %v1621 = vand.u32 %v175, 4294901760
    %1622 = vmatpush.msra.mxu0 %v1621
    %v1623 = vand.u32 %v173, 4294901760
    %1624 = vmatpush.msra.mxu0 %v1623
    %v1625 = vand.u32 %v171, 4294901760
    %1626 = vmatpush.msra.mxu0 %v1625
    %v1627 = vand.u32 %v169, 4294901760
    %1628 = vmatpush.msra.mxu0 %v1627
    %v1629 = vand.u32 %v103, 4294901760
    %v1630 = vsub.f32 %v103, %v1629
    %v1631 = vand.u32 %v1630, 4294901760
    %v1632 = vsub.f32 %v1630, %v1631
    %v1633 = vand.u32 %v1632, 4294901760
    %1634 = vmatmul.f32.gmra.mxu0 %v1633
    %v1635 = vpop.f32.mrf.mxu0
    %v1636 = vadd.f32 0.0, %v1635
    %1637 = vdwg.mxu0
    %v1638 = vand.u32 %v199, 4294901760
    %v1639 = vsub.f32 %v199, %v1638
    %v1640 = vand.u32 %v1639, 4294901760
    %v1641 = vsub.f32 %v1639, %v1640
    %v1642 = vand.u32 %v1641, 4294901760
    %1643 = vmatpush.msra.mxu0 %v1642
    %v1644 = vand.u32 %v197, 4294901760
    %v1645 = vsub.f32 %v197, %v1644
    %v1646 = vand.u32 %v1645, 4294901760
    %v1647 = vsub.f32 %v1645, %v1646
    %v1648 = vand.u32 %v1647, 4294901760
    %1649 = vmatpush.msra.mxu0 %v1648
    %v1650 = vand.u32 %v195, 4294901760
    %v1651 = vsub.f32 %v195, %v1650
    %v1652 = vand.u32 %v1651, 4294901760
    %v1653 = vsub.f32 %v1651, %v1652
    %v1654 = vand.u32 %v1653, 4294901760
    %1655 = vmatpush.msra.mxu0 %v1654
    %v1656 = vand.u32 %v193, 4294901760
    %v1657 = vsub.f32 %v193, %v1656
    %v1658 = vand.u32 %v1657, 4294901760
    %v1659 = vsub.f32 %v1657, %v1658
    %v1660 = vand.u32 %v1659, 4294901760
    %1661 = vmatpush.msra.mxu0 %v1660
    %v1662 = vand.u32 %v191, 4294901760
    %v1663 = vsub.f32 %v191, %v1662
    %v1664 = vand.u32 %v1663, 4294901760
    %v1665 = vsub.f32 %v1663, %v1664
    %v1666 = vand.u32 %v1665, 4294901760
    %1667 = vmatpush.msra.mxu0 %v1666
    %v1668 = vand.u32 %v189, 4294901760
    %v1669 = vsub.f32 %v189, %v1668
    %v1670 = vand.u32 %v1669, 4294901760
    %v1671 = vsub.f32 %v1669, %v1670
    %v1672 = vand.u32 %v1671, 4294901760
    %1673 = vmatpush.msra.mxu0 %v1672
    %v1674 = vand.u32 %v187, 4294901760
    %v1675 = vsub.f32 %v187, %v1674
    %v1676 = vand.u32 %v1675, 4294901760
    %v1677 = vsub.f32 %v1675, %v1676
    %v1678 = vand.u32 %v1677, 4294901760
    %1679 = vmatpush.msra.mxu0 %v1678
    %v1680 = vand.u32 %v185, 4294901760
    %v1681 = vsub.f32 %v185, %v1680
    %v1682 = vand.u32 %v1681, 4294901760
    %v1683 = vsub.f32 %v1681, %v1682
    %v1684 = vand.u32 %v1683, 4294901760
    %1685 = vmatpush.msra.mxu0 %v1684
    %v1686 = vand.u32 %v183, 4294901760
    %v1687 = vsub.f32 %v183, %v1686
    %v1688 = vand.u32 %v1687, 4294901760
    %v1689 = vsub.f32 %v1687, %v1688
    %v1690 = vand.u32 %v1689, 4294901760
    %1691 = vmatpush.msra.mxu0 %v1690
    %v1692 = vand.u32 %v181, 4294901760
    %v1693 = vsub.f32 %v181, %v1692
    %v1694 = vand.u32 %v1693, 4294901760
    %v1695 = vsub.f32 %v1693, %v1694
    %v1696 = vand.u32 %v1695, 4294901760
    %1697 = vmatpush.msra.mxu0 %v1696
    %v1698 = vand.u32 %v179, 4294901760
    %v1699 = vsub.f32 %v179, %v1698
    %v1700 = vand.u32 %v1699, 4294901760
    %v1701 = vsub.f32 %v1699, %v1700
    %v1702 = vand.u32 %v1701, 4294901760
    %1703 = vmatpush.msra.mxu0 %v1702
    %v1704 = vand.u32 %v177, 4294901760
    %v1705 = vsub.f32 %v177, %v1704
    %v1706 = vand.u32 %v1705, 4294901760
    %v1707 = vsub.f32 %v1705, %v1706
    %v1708 = vand.u32 %v1707, 4294901760
    %1709 = vmatpush.msra.mxu0 %v1708
    %v1710 = vand.u32 %v175, 4294901760
    %v1711 = vsub.f32 %v175, %v1710
    %v1712 = vand.u32 %v1711, 4294901760
    %v1713 = vsub.f32 %v1711, %v1712
    %v1714 = vand.u32 %v1713, 4294901760
    %1715 = vmatpush.msra.mxu0 %v1714
    %v1716 = vand.u32 %v173, 4294901760
    %v1717 = vsub.f32 %v173, %v1716
    %v1718 = vand.u32 %v1717, 4294901760
    %v1719 = vsub.f32 %v1717, %v1718
    %v1720 = vand.u32 %v1719, 4294901760
    %1721 = vmatpush.msra.mxu0 %v1720
    %v1722 = vand.u32 %v171, 4294901760
    %v1723 = vsub.f32 %v171, %v1722
    %v1724 = vand.u32 %v1723, 4294901760
    %v1725 = vsub.f32 %v1723, %v1724
    %v1726 = vand.u32 %v1725, 4294901760
    %1727 = vmatpush.msra.mxu0 %v1726
    %v1728 = vand.u32 %v169, 4294901760
    %v1729 = vsub.f32 %v169, %v1728
    %v1730 = vand.u32 %v1729, 4294901760
    %v1731 = vsub.f32 %v1729, %v1730
    %v1732 = vand.u32 %v1731, 4294901760
    %1733 = vmatpush.msra.mxu0 %v1732
    %v1734 = vand.u32 %v103, 4294901760
    %1735 = vmatmul.f32.gmra.mxu0 %v1734
    %v1736 = vpop.f32.mrf.mxu0
    %v1737 = vadd.f32 %v1636, %v1736
    %1738 = vdwg.mxu0
    %v1739 = vand.u32 %v199, 4294901760
    %v1740 = vsub.f32 %v199, %v1739
    %1741 = vmatpush.msra.mxu0 %v1740
    %v1742 = vand.u32 %v197, 4294901760
    %v1743 = vsub.f32 %v197, %v1742
    %1744 = vmatpush.msra.mxu0 %v1743
    %v1745 = vand.u32 %v195, 4294901760
    %v1746 = vsub.f32 %v195, %v1745
    %1747 = vmatpush.msra.mxu0 %v1746
    %v1748 = vand.u32 %v193, 4294901760
    %v1749 = vsub.f32 %v193, %v1748
    %1750 = vmatpush.msra.mxu0 %v1749
    %v1751 = vand.u32 %v191, 4294901760
    %v1752 = vsub.f32 %v191, %v1751
    %1753 = vmatpush.msra.mxu0 %v1752
    %v1754 = vand.u32 %v189, 4294901760
    %v1755 = vsub.f32 %v189, %v1754
    %1756 = vmatpush.msra.mxu0 %v1755
    %v1757 = vand.u32 %v187, 4294901760
    %v1758 = vsub.f32 %v187, %v1757
    %1759 = vmatpush.msra.mxu0 %v1758
    %v1760 = vand.u32 %v185, 4294901760
    %v1761 = vsub.f32 %v185, %v1760
    %1762 = vmatpush.msra.mxu0 %v1761
    %v1763 = vand.u32 %v183, 4294901760
    %v1764 = vsub.f32 %v183, %v1763
    %1765 = vmatpush.msra.mxu0 %v1764
    %v1766 = vand.u32 %v181, 4294901760
    %v1767 = vsub.f32 %v181, %v1766
    %1768 = vmatpush.msra.mxu0 %v1767
    %v1769 = vand.u32 %v179, 4294901760
    %v1770 = vsub.f32 %v179, %v1769
    %1771 = vmatpush.msra.mxu0 %v1770
    %v1772 = vand.u32 %v177, 4294901760
    %v1773 = vsub.f32 %v177, %v1772
    %1774 = vmatpush.msra.mxu0 %v1773
    %v1775 = vand.u32 %v175, 4294901760
    %v1776 = vsub.f32 %v175, %v1775
    %1777 = vmatpush.msra.mxu0 %v1776
    %v1778 = vand.u32 %v173, 4294901760
    %v1779 = vsub.f32 %v173, %v1778
    %1780 = vmatpush.msra.mxu0 %v1779
    %v1781 = vand.u32 %v171, 4294901760
    %v1782 = vsub.f32 %v171, %v1781
    %1783 = vmatpush.msra.mxu0 %v1782
    %v1784 = vand.u32 %v169, 4294901760
    %v1785 = vsub.f32 %v169, %v1784
    %1786 = vmatpush.msra.mxu0 %v1785
    %v1787 = vand.u32 %v103, 4294901760
    %v1788 = vsub.f32 %v103, %v1787
    %1789 = vmatmul.f32.gmra.mxu0 %v1788
    %v1790 = vpop.f32.mrf.mxu0
    %v1791 = vadd.f32 %v1737, %v1790
    %1792 = vdwg.mxu0
    %v1793 = vand.u32 %v199, 4294901760
    %1794 = vmatpush.msra.mxu0 %v1793
    %v1795 = vand.u32 %v197, 4294901760
    %1796 = vmatpush.msra.mxu0 %v1795
    %v1797 = vand.u32 %v195, 4294901760
    %1798 = vmatpush.msra.mxu0 %v1797
    %v1799 = vand.u32 %v193, 4294901760
    %1800 = vmatpush.msra.mxu0 %v1799
    %v1801 = vand.u32 %v191, 4294901760
    %1802 = vmatpush.msra.mxu0 %v1801
    %v1803 = vand.u32 %v189, 4294901760
    %1804 = vmatpush.msra.mxu0 %v1803
    %v1805 = vand.u32 %v187, 4294901760
    %1806 = vmatpush.msra.mxu0 %v1805
    %v1807 = vand.u32 %v185, 4294901760
    %1808 = vmatpush.msra.mxu0 %v1807
    %v1809 = vand.u32 %v183, 4294901760
    %1810 = vmatpush.msra.mxu0 %v1809
    %v1811 = vand.u32 %v181, 4294901760
    %1812 = vmatpush.msra.mxu0 %v1811
    %v1813 = vand.u32 %v179, 4294901760
    %1814 = vmatpush.msra.mxu0 %v1813
    %v1815 = vand.u32 %v177, 4294901760
    %1816 = vmatpush.msra.mxu0 %v1815
    %v1817 = vand.u32 %v175, 4294901760
    %1818 = vmatpush.msra.mxu0 %v1817
    %v1819 = vand.u32 %v173, 4294901760
    %1820 = vmatpush.msra.mxu0 %v1819
    %v1821 = vand.u32 %v171, 4294901760
    %1822 = vmatpush.msra.mxu0 %v1821
    %v1823 = vand.u32 %v169, 4294901760
    %1824 = vmatpush.msra.mxu0 %v1823
    %v1825 = vand.u32 %v103, 4294901760
    %v1826 = vsub.f32 %v103, %v1825
    %v1827 = vand.u32 %v1826, 4294901760
    %1828 = vmatmul.f32.gmra.mxu0 %v1827
    %v1829 = vpop.f32.mrf.mxu0
    %v1830 = vadd.f32 %v1791, %v1829
    %1831 = vdwg.mxu0
    %v1832 = vand.u32 %v199, 4294901760
    %v1833 = vsub.f32 %v199, %v1832
    %v1834 = vand.u32 %v1833, 4294901760
    %1835 = vmatpush.msra.mxu0 %v1834
    %v1836 = vand.u32 %v197, 4294901760
    %v1837 = vsub.f32 %v197, %v1836
    %v1838 = vand.u32 %v1837, 4294901760
    %1839 = vmatpush.msra.mxu0 %v1838
    %v1840 = vand.u32 %v195, 4294901760
    %v1841 = vsub.f32 %v195, %v1840
    %v1842 = vand.u32 %v1841, 4294901760
    %1843 = vmatpush.msra.mxu0 %v1842
    %v1844 = vand.u32 %v193, 4294901760
    %v1845 = vsub.f32 %v193, %v1844
    %v1846 = vand.u32 %v1845, 4294901760
    %1847 = vmatpush.msra.mxu0 %v1846
    %v1848 = vand.u32 %v191, 4294901760
    %v1849 = vsub.f32 %v191, %v1848
    %v1850 = vand.u32 %v1849, 4294901760
    %1851 = vmatpush.msra.mxu0 %v1850
    %v1852 = vand.u32 %v189, 4294901760
    %v1853 = vsub.f32 %v189, %v1852
    %v1854 = vand.u32 %v1853, 4294901760
    %1855 = vmatpush.msra.mxu0 %v1854
    %v1856 = vand.u32 %v187, 4294901760
    %v1857 = vsub.f32 %v187, %v1856
    %v1858 = vand.u32 %v1857, 4294901760
    %1859 = vmatpush.msra.mxu0 %v1858
    %v1860 = vand.u32 %v185, 4294901760
    %v1861 = vsub.f32 %v185, %v1860
    %v1862 = vand.u32 %v1861, 4294901760
    %1863 = vmatpush.msra.mxu0 %v1862
    %v1864 = vand.u32 %v183, 4294901760
    %v1865 = vsub.f32 %v183, %v1864
    %v1866 = vand.u32 %v1865, 4294901760
    %1867 = vmatpush.msra.mxu0 %v1866
    %v1868 = vand.u32 %v181, 4294901760
    %v1869 = vsub.f32 %v181, %v1868
    %v1870 = vand.u32 %v1869, 4294901760
    %1871 = vmatpush.msra.mxu0 %v1870
    %v1872 = vand.u32 %v179, 4294901760
    %v1873 = vsub.f32 %v179, %v1872
    %v1874 = vand.u32 %v1873, 4294901760
    %1875 = vmatpush.msra.mxu0 %v1874
    %v1876 = vand.u32 %v177, 4294901760
    %v1877 = vsub.f32 %v177, %v1876
    %v1878 = vand.u32 %v1877, 4294901760
    %1879 = vmatpush.msra.mxu0 %v1878
    %v1880 = vand.u32 %v175, 4294901760
    %v1881 = vsub.f32 %v175, %v1880
    %v1882 = vand.u32 %v1881, 4294901760
    %1883 = vmatpush.msra.mxu0 %v1882
    %v1884 = vand.u32 %v173, 4294901760
    %v1885 = vsub.f32 %v173, %v1884
    %v1886 = vand.u32 %v1885, 4294901760
    %1887 = vmatpush.msra.mxu0 %v1886
    %v1888 = vand.u32 %v171, 4294901760
    %v1889 = vsub.f32 %v171, %v1888
    %v1890 = vand.u32 %v1889, 4294901760
    %1891 = vmatpush.msra.mxu0 %v1890
    %v1892 = vand.u32 %v169, 4294901760
    %v1893 = vsub.f32 %v169, %v1892
    %v1894 = vand.u32 %v1893, 4294901760
    %1895 = vmatpush.msra.mxu0 %v1894
    %v1896 = vand.u32 %v103, 4294901760
    %1897 = vmatmul.f32.gmra.mxu0 %v1896
    %v1898 = vpop.f32.mrf.mxu0
    %v1899 = vadd.f32 %v1830, %v1898
    %1900 = vdwg.mxu0
    %v1901 = vand.u32 %v199, 4294901760
    %1902 = vmatpush.msra.mxu0 %v1901
    %v1903 = vand.u32 %v197, 4294901760
    %1904 = vmatpush.msra.mxu0 %v1903
    %v1905 = vand.u32 %v195, 4294901760
    %1906 = vmatpush.msra.mxu0 %v1905
    %v1907 = vand.u32 %v193, 4294901760
    %1908 = vmatpush.msra.mxu0 %v1907
    %v1909 = vand.u32 %v191, 4294901760
    %1910 = vmatpush.msra.mxu0 %v1909
    %v1911 = vand.u32 %v189, 4294901760
    %1912 = vmatpush.msra.mxu0 %v1911
    %v1913 = vand.u32 %v187, 4294901760
    %1914 = vmatpush.msra.mxu0 %v1913
    %v1915 = vand.u32 %v185, 4294901760
    %1916 = vmatpush.msra.mxu0 %v1915
    %v1917 = vand.u32 %v183, 4294901760
    %1918 = vmatpush.msra.mxu0 %v1917
    %v1919 = vand.u32 %v181, 4294901760
    %1920 = vmatpush.msra.mxu0 %v1919
    %v1921 = vand.u32 %v179, 4294901760
    %1922 = vmatpush.msra.mxu0 %v1921
    %v1923 = vand.u32 %v177, 4294901760
    %1924 = vmatpush.msra.mxu0 %v1923
    %v1925 = vand.u32 %v175, 4294901760
    %1926 = vmatpush.msra.mxu0 %v1925
    %v1927 = vand.u32 %v173, 4294901760
    %1928 = vmatpush.msra.mxu0 %v1927
    %v1929 = vand.u32 %v171, 4294901760
    %1930 = vmatpush.msra.mxu0 %v1929
    %v1931 = vand.u32 %v169, 4294901760
    %1932 = vmatpush.msra.mxu0 %v1931
    %v1933 = vand.u32 %v103, 4294901760
    %1934 = vmatmul.f32.gmra.mxu0 %v1933
    %v1935 = vpop.f32.mrf.mxu0
    %v1936 = vadd.f32 %v1899, %v1935
    %1937 = vdwg.mxu0
    %v1938 = vand.u32 %v231, 4294901760
    %1939 = vmatpush.msra.mxu0 %v1938
    %v1940 = vand.u32 %v229, 4294901760
    %1941 = vmatpush.msra.mxu0 %v1940
    %v1942 = vand.u32 %v227, 4294901760
    %1943 = vmatpush.msra.mxu0 %v1942
    %v1944 = vand.u32 %v225, 4294901760
    %1945 = vmatpush.msra.mxu0 %v1944
    %v1946 = vand.u32 %v223, 4294901760
    %1947 = vmatpush.msra.mxu0 %v1946
    %v1948 = vand.u32 %v221, 4294901760
    %1949 = vmatpush.msra.mxu0 %v1948
    %v1950 = vand.u32 %v219, 4294901760
    %1951 = vmatpush.msra.mxu0 %v1950
    %v1952 = vand.u32 %v217, 4294901760
    %1953 = vmatpush.msra.mxu0 %v1952
    %v1954 = vand.u32 %v215, 4294901760
    %1955 = vmatpush.msra.mxu0 %v1954
    %v1956 = vand.u32 %v213, 4294901760
    %1957 = vmatpush.msra.mxu0 %v1956
    %v1958 = vand.u32 %v211, 4294901760
    %1959 = vmatpush.msra.mxu0 %v1958
    %v1960 = vand.u32 %v209, 4294901760
    %1961 = vmatpush.msra.mxu0 %v1960
    %v1962 = vand.u32 %v207, 4294901760
    %1963 = vmatpush.msra.mxu0 %v1962
    %v1964 = vand.u32 %v205, 4294901760
    %1965 = vmatpush.msra.mxu0 %v1964
    %v1966 = vand.u32 %v203, 4294901760
    %1967 = vmatpush.msra.mxu0 %v1966
    %v1968 = vand.u32 %v201, 4294901760
    %1969 = vmatpush.msra.mxu0 %v1968
    %v1970 = vand.u32 %v104, 4294901760
    %v1971 = vsub.f32 %v104, %v1970
    %v1972 = vand.u32 %v1971, 4294901760
    %v1973 = vsub.f32 %v1971, %v1972
    %v1974 = vand.u32 %v1973, 4294901760
    %1975 = vmatmul.f32.gmra.mxu0 %v1974
    %v1976 = vpop.f32.mrf.mxu0
    %v1977 = vadd.f32 %v1936, %v1976
    %1978 = vdwg.mxu0
    %v1979 = vand.u32 %v231, 4294901760
    %v1980 = vsub.f32 %v231, %v1979
    %v1981 = vand.u32 %v1980, 4294901760
    %v1982 = vsub.f32 %v1980, %v1981
    %v1983 = vand.u32 %v1982, 4294901760
    %1984 = vmatpush.msra.mxu0 %v1983
    %v1985 = vand.u32 %v229, 4294901760
    %v1986 = vsub.f32 %v229, %v1985
    %v1987 = vand.u32 %v1986, 4294901760
    %v1988 = vsub.f32 %v1986, %v1987
    %v1989 = vand.u32 %v1988, 4294901760
    %1990 = vmatpush.msra.mxu0 %v1989
    %v1991 = vand.u32 %v227, 4294901760
    %v1992 = vsub.f32 %v227, %v1991
    %v1993 = vand.u32 %v1992, 4294901760
    %v1994 = vsub.f32 %v1992, %v1993
    %v1995 = vand.u32 %v1994, 4294901760
    %1996 = vmatpush.msra.mxu0 %v1995
    %v1997 = vand.u32 %v225, 4294901760
    %v1998 = vsub.f32 %v225, %v1997
    %v1999 = vand.u32 %v1998, 4294901760
    %v2000 = vsub.f32 %v1998, %v1999
    %v2001 = vand.u32 %v2000, 4294901760
    %2002 = vmatpush.msra.mxu0 %v2001
    %v2003 = vand.u32 %v223, 4294901760
    %v2004 = vsub.f32 %v223, %v2003
    %v2005 = vand.u32 %v2004, 4294901760
    %v2006 = vsub.f32 %v2004, %v2005
    %v2007 = vand.u32 %v2006, 4294901760
    %2008 = vmatpush.msra.mxu0 %v2007
    %v2009 = vand.u32 %v221, 4294901760
    %v2010 = vsub.f32 %v221, %v2009
    %v2011 = vand.u32 %v2010, 4294901760
    %v2012 = vsub.f32 %v2010, %v2011
    %v2013 = vand.u32 %v2012, 4294901760
    %2014 = vmatpush.msra.mxu0 %v2013
    %v2015 = vand.u32 %v219, 4294901760
    %v2016 = vsub.f32 %v219, %v2015
    %v2017 = vand.u32 %v2016, 4294901760
    %v2018 = vsub.f32 %v2016, %v2017
    %v2019 = vand.u32 %v2018, 4294901760
    %2020 = vmatpush.msra.mxu0 %v2019
    %v2021 = vand.u32 %v217, 4294901760
    %v2022 = vsub.f32 %v217, %v2021
    %v2023 = vand.u32 %v2022, 4294901760
    %v2024 = vsub.f32 %v2022, %v2023
    %v2025 = vand.u32 %v2024, 4294901760
    %2026 = vmatpush.msra.mxu0 %v2025
    %v2027 = vand.u32 %v215, 4294901760
    %v2028 = vsub.f32 %v215, %v2027
    %v2029 = vand.u32 %v2028, 4294901760
    %v2030 = vsub.f32 %v2028, %v2029
    %v2031 = vand.u32 %v2030, 4294901760
    %2032 = vmatpush.msra.mxu0 %v2031
    %v2033 = vand.u32 %v213, 4294901760
    %v2034 = vsub.f32 %v213, %v2033
    %v2035 = vand.u32 %v2034, 4294901760
    %v2036 = vsub.f32 %v2034, %v2035
    %v2037 = vand.u32 %v2036, 4294901760
    %2038 = vmatpush.msra.mxu0 %v2037
    %v2039 = vand.u32 %v211, 4294901760
    %v2040 = vsub.f32 %v211, %v2039
    %v2041 = vand.u32 %v2040, 4294901760
    %v2042 = vsub.f32 %v2040, %v2041
    %v2043 = vand.u32 %v2042, 4294901760
    %2044 = vmatpush.msra.mxu0 %v2043
    %v2045 = vand.u32 %v209, 4294901760
    %v2046 = vsub.f32 %v209, %v2045
    %v2047 = vand.u32 %v2046, 4294901760
    %v2048 = vsub.f32 %v2046, %v2047
    %v2049 = vand.u32 %v2048, 4294901760
    %2050 = vmatpush.msra.mxu0 %v2049
    %v2051 = vand.u32 %v207, 4294901760
    %v2052 = vsub.f32 %v207, %v2051
    %v2053 = vand.u32 %v2052, 4294901760
    %v2054 = vsub.f32 %v2052, %v2053
    %v2055 = vand.u32 %v2054, 4294901760
    %2056 = vmatpush.msra.mxu0 %v2055
    %v2057 = vand.u32 %v205, 4294901760
    %v2058 = vsub.f32 %v205, %v2057
    %v2059 = vand.u32 %v2058, 4294901760
    %v2060 = vsub.f32 %v2058, %v2059
    %v2061 = vand.u32 %v2060, 4294901760
    %2062 = vmatpush.msra.mxu0 %v2061
    %v2063 = vand.u32 %v203, 4294901760
    %v2064 = vsub.f32 %v203, %v2063
    %v2065 = vand.u32 %v2064, 4294901760
    %v2066 = vsub.f32 %v2064, %v2065
    %v2067 = vand.u32 %v2066, 4294901760
    %2068 = vmatpush.msra.mxu0 %v2067
    %v2069 = vand.u32 %v201, 4294901760
    %v2070 = vsub.f32 %v201, %v2069
    %v2071 = vand.u32 %v2070, 4294901760
    %v2072 = vsub.f32 %v2070, %v2071
    %v2073 = vand.u32 %v2072, 4294901760
    %2074 = vmatpush.msra.mxu0 %v2073
    %v2075 = vand.u32 %v104, 4294901760
    %2076 = vmatmul.f32.gmra.mxu0 %v2075
    %v2077 = vpop.f32.mrf.mxu0
    %v2078 = vadd.f32 %v1977, %v2077
    %2079 = vdwg.mxu0
    %v2080 = vand.u32 %v231, 4294901760
    %v2081 = vsub.f32 %v231, %v2080
    %2082 = vmatpush.msra.mxu0 %v2081
    %v2083 = vand.u32 %v229, 4294901760
    %v2084 = vsub.f32 %v229, %v2083
    %2085 = vmatpush.msra.mxu0 %v2084
    %v2086 = vand.u32 %v227, 4294901760
    %v2087 = vsub.f32 %v227, %v2086
    %2088 = vmatpush.msra.mxu0 %v2087
    %v2089 = vand.u32 %v225, 4294901760
    %v2090 = vsub.f32 %v225, %v2089
    %2091 = vmatpush.msra.mxu0 %v2090
    %v2092 = vand.u32 %v223, 4294901760
    %v2093 = vsub.f32 %v223, %v2092
    %2094 = vmatpush.msra.mxu0 %v2093
    %v2095 = vand.u32 %v221, 4294901760
    %v2096 = vsub.f32 %v221, %v2095
    %2097 = vmatpush.msra.mxu0 %v2096
    %v2098 = vand.u32 %v219, 4294901760
    %v2099 = vsub.f32 %v219, %v2098
    %2100 = vmatpush.msra.mxu0 %v2099
    %v2101 = vand.u32 %v217, 4294901760
    %v2102 = vsub.f32 %v217, %v2101
    %2103 = vmatpush.msra.mxu0 %v2102
    %v2104 = vand.u32 %v215, 4294901760
    %v2105 = vsub.f32 %v215, %v2104
    %2106 = vmatpush.msra.mxu0 %v2105
    %v2107 = vand.u32 %v213, 4294901760
    %v2108 = vsub.f32 %v213, %v2107
    %2109 = vmatpush.msra.mxu0 %v2108
    %v2110 = vand.u32 %v211, 4294901760
    %v2111 = vsub.f32 %v211, %v2110
    %2112 = vmatpush.msra.mxu0 %v2111
    %v2113 = vand.u32 %v209, 4294901760
    %v2114 = vsub.f32 %v209, %v2113
    %2115 = vmatpush.msra.mxu0 %v2114
    %v2116 = vand.u32 %v207, 4294901760
    %v2117 = vsub.f32 %v207, %v2116
    %2118 = vmatpush.msra.mxu0 %v2117
    %v2119 = vand.u32 %v205, 4294901760
    %v2120 = vsub.f32 %v205, %v2119
    %2121 = vmatpush.msra.mxu0 %v2120
    %v2122 = vand.u32 %v203, 4294901760
    %v2123 = vsub.f32 %v203, %v2122
    %2124 = vmatpush.msra.mxu0 %v2123
    %v2125 = vand.u32 %v201, 4294901760
    %v2126 = vsub.f32 %v201, %v2125
    %2127 = vmatpush.msra.mxu0 %v2126
    %v2128 = vand.u32 %v104, 4294901760
    %v2129 = vsub.f32 %v104, %v2128
    %2130 = vmatmul.f32.gmra.mxu0 %v2129
    %v2131 = vpop.f32.mrf.mxu0
    %v2132 = vadd.f32 %v2078, %v2131
    %2133 = vdwg.mxu0
    %v2134 = vand.u32 %v231, 4294901760
    %2135 = vmatpush.msra.mxu0 %v2134
    %v2136 = vand.u32 %v229, 4294901760
    %2137 = vmatpush.msra.mxu0 %v2136
    %v2138 = vand.u32 %v227, 4294901760
    %2139 = vmatpush.msra.mxu0 %v2138
    %v2140 = vand.u32 %v225, 4294901760
    %2141 = vmatpush.msra.mxu0 %v2140
    %v2142 = vand.u32 %v223, 4294901760
    %2143 = vmatpush.msra.mxu0 %v2142
    %v2144 = vand.u32 %v221, 4294901760
    %2145 = vmatpush.msra.mxu0 %v2144
    %v2146 = vand.u32 %v219, 4294901760
    %2147 = vmatpush.msra.mxu0 %v2146
    %v2148 = vand.u32 %v217, 4294901760
    %2149 = vmatpush.msra.mxu0 %v2148
    %v2150 = vand.u32 %v215, 4294901760
    %2151 = vmatpush.msra.mxu0 %v2150
    %v2152 = vand.u32 %v213, 4294901760
    %2153 = vmatpush.msra.mxu0 %v2152
    %v2154 = vand.u32 %v211, 4294901760
    %2155 = vmatpush.msra.mxu0 %v2154
    %v2156 = vand.u32 %v209, 4294901760
    %2157 = vmatpush.msra.mxu0 %v2156
    %v2158 = vand.u32 %v207, 4294901760
    %2159 = vmatpush.msra.mxu0 %v2158
    %v2160 = vand.u32 %v205, 4294901760
    %2161 = vmatpush.msra.mxu0 %v2160
    %v2162 = vand.u32 %v203, 4294901760
    %2163 = vmatpush.msra.mxu0 %v2162
    %v2164 = vand.u32 %v201, 4294901760
    %2165 = vmatpush.msra.mxu0 %v2164
    %v2166 = vand.u32 %v104, 4294901760
    %v2167 = vsub.f32 %v104, %v2166
    %v2168 = vand.u32 %v2167, 4294901760
    %2169 = vmatmul.f32.gmra.mxu0 %v2168
    %v2170 = vpop.f32.mrf.mxu0
    %v2171 = vadd.f32 %v2132, %v2170
    %2172 = vdwg.mxu0
    %v2173 = vand.u32 %v231, 4294901760
    %v2174 = vsub.f32 %v231, %v2173
    %v2175 = vand.u32 %v2174, 4294901760
    %2176 = vmatpush.msra.mxu0 %v2175
    %v2177 = vand.u32 %v229, 4294901760
    %v2178 = vsub.f32 %v229, %v2177
    %v2179 = vand.u32 %v2178, 4294901760
    %2180 = vmatpush.msra.mxu0 %v2179
    %v2181 = vand.u32 %v227, 4294901760
    %v2182 = vsub.f32 %v227, %v2181
    %v2183 = vand.u32 %v2182, 4294901760
    %2184 = vmatpush.msra.mxu0 %v2183
    %v2185 = vand.u32 %v225, 4294901760
    %v2186 = vsub.f32 %v225, %v2185
    %v2187 = vand.u32 %v2186, 4294901760
    %2188 = vmatpush.msra.mxu0 %v2187
    %v2189 = vand.u32 %v223, 4294901760
    %v2190 = vsub.f32 %v223, %v2189
    %v2191 = vand.u32 %v2190, 4294901760
    %2192 = vmatpush.msra.mxu0 %v2191
    %v2193 = vand.u32 %v221, 4294901760
    %v2194 = vsub.f32 %v221, %v2193
    %v2195 = vand.u32 %v2194, 4294901760
    %2196 = vmatpush.msra.mxu0 %v2195
    %v2197 = vand.u32 %v219, 4294901760
    %v2198 = vsub.f32 %v219, %v2197
    %v2199 = vand.u32 %v2198, 4294901760
    %2200 = vmatpush.msra.mxu0 %v2199
    %v2201 = vand.u32 %v217, 4294901760
    %v2202 = vsub.f32 %v217, %v2201
    %v2203 = vand.u32 %v2202, 4294901760
    %2204 = vmatpush.msra.mxu0 %v2203
    %v2205 = vand.u32 %v215, 4294901760
    %v2206 = vsub.f32 %v215, %v2205
    %v2207 = vand.u32 %v2206, 4294901760
    %2208 = vmatpush.msra.mxu0 %v2207
    %v2209 = vand.u32 %v213, 4294901760
    %v2210 = vsub.f32 %v213, %v2209
    %v2211 = vand.u32 %v2210, 4294901760
    %2212 = vmatpush.msra.mxu0 %v2211
    %v2213 = vand.u32 %v211, 4294901760
    %v2214 = vsub.f32 %v211, %v2213
    %v2215 = vand.u32 %v2214, 4294901760
    %2216 = vmatpush.msra.mxu0 %v2215
    %v2217 = vand.u32 %v209, 4294901760
    %v2218 = vsub.f32 %v209, %v2217
    %v2219 = vand.u32 %v2218, 4294901760
    %2220 = vmatpush.msra.mxu0 %v2219
    %v2221 = vand.u32 %v207, 4294901760
    %v2222 = vsub.f32 %v207, %v2221
    %v2223 = vand.u32 %v2222, 4294901760
    %2224 = vmatpush.msra.mxu0 %v2223
    %v2225 = vand.u32 %v205, 4294901760
    %v2226 = vsub.f32 %v205, %v2225
    %v2227 = vand.u32 %v2226, 4294901760
    %2228 = vmatpush.msra.mxu0 %v2227
    %v2229 = vand.u32 %v203, 4294901760
    %v2230 = vsub.f32 %v203, %v2229
    %v2231 = vand.u32 %v2230, 4294901760
    %2232 = vmatpush.msra.mxu0 %v2231
    %v2233 = vand.u32 %v201, 4294901760
    %v2234 = vsub.f32 %v201, %v2233
    %v2235 = vand.u32 %v2234, 4294901760
    %2236 = vmatpush.msra.mxu0 %v2235
    %v2237 = vand.u32 %v104, 4294901760
    %2238 = vmatmul.f32.gmra.mxu0 %v2237
    %v2239 = vpop.f32.mrf.mxu0
    %v2240 = vadd.f32 %v2171, %v2239
    %2241 = vdwg.mxu0
    %v2242 = vand.u32 %v231, 4294901760
    %2243 = vmatpush.msra.mxu0 %v2242
    %v2244 = vand.u32 %v229, 4294901760
    %2245 = vmatpush.msra.mxu0 %v2244
    %v2246 = vand.u32 %v227, 4294901760
    %2247 = vmatpush.msra.mxu0 %v2246
    %v2248 = vand.u32 %v225, 4294901760
    %2249 = vmatpush.msra.mxu0 %v2248
    %v2250 = vand.u32 %v223, 4294901760
    %2251 = vmatpush.msra.mxu0 %v2250
    %v2252 = vand.u32 %v221, 4294901760
    %2253 = vmatpush.msra.mxu0 %v2252
    %v2254 = vand.u32 %v219, 4294901760
    %2255 = vmatpush.msra.mxu0 %v2254
    %v2256 = vand.u32 %v217, 4294901760
    %2257 = vmatpush.msra.mxu0 %v2256
    %v2258 = vand.u32 %v215, 4294901760
    %2259 = vmatpush.msra.mxu0 %v2258
    %v2260 = vand.u32 %v213, 4294901760
    %2261 = vmatpush.msra.mxu0 %v2260
    %v2262 = vand.u32 %v211, 4294901760
    %2263 = vmatpush.msra.mxu0 %v2262
    %v2264 = vand.u32 %v209, 4294901760
    %2265 = vmatpush.msra.mxu0 %v2264
    %v2266 = vand.u32 %v207, 4294901760
    %2267 = vmatpush.msra.mxu0 %v2266
    %v2268 = vand.u32 %v205, 4294901760
    %2269 = vmatpush.msra.mxu0 %v2268
    %v2270 = vand.u32 %v203, 4294901760
    %2271 = vmatpush.msra.mxu0 %v2270
    %v2272 = vand.u32 %v201, 4294901760
    %2273 = vmatpush.msra.mxu0 %v2272
    %v2274 = vand.u32 %v104, 4294901760
    %2275 = vmatmul.f32.gmra.mxu0 %v2274
    %v2276 = vpop.f32.mrf.mxu0
    %v2277 = vadd.f32 %v2240, %v2276
    %2278 = vdwg.mxu0
    %v2279 = vand.u32 %v200, 4294901760
    %2280 = vmatpush.msra.mxu0 %v2279
    %v2281 = vand.u32 %v198, 4294901760
    %2282 = vmatpush.msra.mxu0 %v2281
    %v2283 = vand.u32 %v196, 4294901760
    %2284 = vmatpush.msra.mxu0 %v2283
    %v2285 = vand.u32 %v194, 4294901760
    %2286 = vmatpush.msra.mxu0 %v2285
    %v2287 = vand.u32 %v192, 4294901760
    %2288 = vmatpush.msra.mxu0 %v2287
    %v2289 = vand.u32 %v190, 4294901760
    %2290 = vmatpush.msra.mxu0 %v2289
    %v2291 = vand.u32 %v188, 4294901760
    %2292 = vmatpush.msra.mxu0 %v2291
    %v2293 = vand.u32 %v186, 4294901760
    %2294 = vmatpush.msra.mxu0 %v2293
    %v2295 = vand.u32 %v184, 4294901760
    %2296 = vmatpush.msra.mxu0 %v2295
    %v2297 = vand.u32 %v182, 4294901760
    %2298 = vmatpush.msra.mxu0 %v2297
    %v2299 = vand.u32 %v180, 4294901760
    %2300 = vmatpush.msra.mxu0 %v2299
    %v2301 = vand.u32 %v178, 4294901760
    %2302 = vmatpush.msra.mxu0 %v2301
    %v2303 = vand.u32 %v176, 4294901760
    %2304 = vmatpush.msra.mxu0 %v2303
    %v2305 = vand.u32 %v174, 4294901760
    %2306 = vmatpush.msra.mxu0 %v2305
    %v2307 = vand.u32 %v172, 4294901760
    %2308 = vmatpush.msra.mxu0 %v2307
    %v2309 = vand.u32 %v170, 4294901760
    %2310 = vmatpush.msra.mxu0 %v2309
    %v2311 = vand.u32 %v103, 4294901760
    %v2312 = vsub.f32 %v103, %v2311
    %v2313 = vand.u32 %v2312, 4294901760
    %v2314 = vsub.f32 %v2312, %v2313
    %v2315 = vand.u32 %v2314, 4294901760
    %2316 = vmatmul.f32.gmra.mxu0 %v2315
    %v2317 = vpop.f32.mrf.mxu0
    %v2318 = vadd.f32 0.0, %v2317
    %2319 = vdwg.mxu0
    %v2320 = vand.u32 %v200, 4294901760
    %v2321 = vsub.f32 %v200, %v2320
    %v2322 = vand.u32 %v2321, 4294901760
    %v2323 = vsub.f32 %v2321, %v2322
    %v2324 = vand.u32 %v2323, 4294901760
    %2325 = vmatpush.msra.mxu0 %v2324
    %v2326 = vand.u32 %v198, 4294901760
    %v2327 = vsub.f32 %v198, %v2326
    %v2328 = vand.u32 %v2327, 4294901760
    %v2329 = vsub.f32 %v2327, %v2328
    %v2330 = vand.u32 %v2329, 4294901760
    %2331 = vmatpush.msra.mxu0 %v2330
    %v2332 = vand.u32 %v196, 4294901760
    %v2333 = vsub.f32 %v196, %v2332
    %v2334 = vand.u32 %v2333, 4294901760
    %v2335 = vsub.f32 %v2333, %v2334
    %v2336 = vand.u32 %v2335, 4294901760
    %2337 = vmatpush.msra.mxu0 %v2336
    %v2338 = vand.u32 %v194, 4294901760
    %v2339 = vsub.f32 %v194, %v2338
    %v2340 = vand.u32 %v2339, 4294901760
    %v2341 = vsub.f32 %v2339, %v2340
    %v2342 = vand.u32 %v2341, 4294901760
    %2343 = vmatpush.msra.mxu0 %v2342
    %v2344 = vand.u32 %v192, 4294901760
    %v2345 = vsub.f32 %v192, %v2344
    %v2346 = vand.u32 %v2345, 4294901760
    %v2347 = vsub.f32 %v2345, %v2346
    %v2348 = vand.u32 %v2347, 4294901760
    %2349 = vmatpush.msra.mxu0 %v2348
    %v2350 = vand.u32 %v190, 4294901760
    %v2351 = vsub.f32 %v190, %v2350
    %v2352 = vand.u32 %v2351, 4294901760
    %v2353 = vsub.f32 %v2351, %v2352
    %v2354 = vand.u32 %v2353, 4294901760
    %2355 = vmatpush.msra.mxu0 %v2354
    %v2356 = vand.u32 %v188, 4294901760
    %v2357 = vsub.f32 %v188, %v2356
    %v2358 = vand.u32 %v2357, 4294901760
    %v2359 = vsub.f32 %v2357, %v2358
    %v2360 = vand.u32 %v2359, 4294901760
    %2361 = vmatpush.msra.mxu0 %v2360
    %v2362 = vand.u32 %v186, 4294901760
    %v2363 = vsub.f32 %v186, %v2362
    %v2364 = vand.u32 %v2363, 4294901760
    %v2365 = vsub.f32 %v2363, %v2364
    %v2366 = vand.u32 %v2365, 4294901760
    %2367 = vmatpush.msra.mxu0 %v2366
    %v2368 = vand.u32 %v184, 4294901760
    %v2369 = vsub.f32 %v184, %v2368
    %v2370 = vand.u32 %v2369, 4294901760
    %v2371 = vsub.f32 %v2369, %v2370
    %v2372 = vand.u32 %v2371, 4294901760
    %2373 = vmatpush.msra.mxu0 %v2372
    %v2374 = vand.u32 %v182, 4294901760
    %v2375 = vsub.f32 %v182, %v2374
    %v2376 = vand.u32 %v2375, 4294901760
    %v2377 = vsub.f32 %v2375, %v2376
    %v2378 = vand.u32 %v2377, 4294901760
    %2379 = vmatpush.msra.mxu0 %v2378
    %v2380 = vand.u32 %v180, 4294901760
    %v2381 = vsub.f32 %v180, %v2380
    %v2382 = vand.u32 %v2381, 4294901760
    %v2383 = vsub.f32 %v2381, %v2382
    %v2384 = vand.u32 %v2383, 4294901760
    %2385 = vmatpush.msra.mxu0 %v2384
    %v2386 = vand.u32 %v178, 4294901760
    %v2387 = vsub.f32 %v178, %v2386
    %v2388 = vand.u32 %v2387, 4294901760
    %v2389 = vsub.f32 %v2387, %v2388
    %v2390 = vand.u32 %v2389, 4294901760
    %2391 = vmatpush.msra.mxu0 %v2390
    %v2392 = vand.u32 %v176, 4294901760
    %v2393 = vsub.f32 %v176, %v2392
    %v2394 = vand.u32 %v2393, 4294901760
    %v2395 = vsub.f32 %v2393, %v2394
    %v2396 = vand.u32 %v2395, 4294901760
    %2397 = vmatpush.msra.mxu0 %v2396
    %v2398 = vand.u32 %v174, 4294901760
    %v2399 = vsub.f32 %v174, %v2398
    %v2400 = vand.u32 %v2399, 4294901760
    %v2401 = vsub.f32 %v2399, %v2400
    %v2402 = vand.u32 %v2401, 4294901760
    %2403 = vmatpush.msra.mxu0 %v2402
    %v2404 = vand.u32 %v172, 4294901760
    %v2405 = vsub.f32 %v172, %v2404
    %v2406 = vand.u32 %v2405, 4294901760
    %v2407 = vsub.f32 %v2405, %v2406
    %v2408 = vand.u32 %v2407, 4294901760
    %2409 = vmatpush.msra.mxu0 %v2408
    %v2410 = vand.u32 %v170, 4294901760
    %v2411 = vsub.f32 %v170, %v2410
    %v2412 = vand.u32 %v2411, 4294901760
    %v2413 = vsub.f32 %v2411, %v2412
    %v2414 = vand.u32 %v2413, 4294901760
    %2415 = vmatpush.msra.mxu0 %v2414
    %v2416 = vand.u32 %v103, 4294901760
    %2417 = vmatmul.f32.gmra.mxu0 %v2416
    %v2418 = vpop.f32.mrf.mxu0
    %v2419 = vadd.f32 %v2318, %v2418
    %2420 = vdwg.mxu0
    %v2421 = vand.u32 %v200, 4294901760
    %v2422 = vsub.f32 %v200, %v2421
    %2423 = vmatpush.msra.mxu0 %v2422
    %v2424 = vand.u32 %v198, 4294901760
    %v2425 = vsub.f32 %v198, %v2424
    %2426 = vmatpush.msra.mxu0 %v2425
    %v2427 = vand.u32 %v196, 4294901760
    %v2428 = vsub.f32 %v196, %v2427
    %2429 = vmatpush.msra.mxu0 %v2428
    %v2430 = vand.u32 %v194, 4294901760
    %v2431 = vsub.f32 %v194, %v2430
    %2432 = vmatpush.msra.mxu0 %v2431
    %v2433 = vand.u32 %v192, 4294901760
    %v2434 = vsub.f32 %v192, %v2433
    %2435 = vmatpush.msra.mxu0 %v2434
    %v2436 = vand.u32 %v190, 4294901760
    %v2437 = vsub.f32 %v190, %v2436
    %2438 = vmatpush.msra.mxu0 %v2437
    %v2439 = vand.u32 %v188, 4294901760
    %v2440 = vsub.f32 %v188, %v2439
    %2441 = vmatpush.msra.mxu0 %v2440
    %v2442 = vand.u32 %v186, 4294901760
    %v2443 = vsub.f32 %v186, %v2442
    %2444 = vmatpush.msra.mxu0 %v2443
    %v2445 = vand.u32 %v184, 4294901760
    %v2446 = vsub.f32 %v184, %v2445
    %2447 = vmatpush.msra.mxu0 %v2446
    %v2448 = vand.u32 %v182, 4294901760
    %v2449 = vsub.f32 %v182, %v2448
    %2450 = vmatpush.msra.mxu0 %v2449
    %v2451 = vand.u32 %v180, 4294901760
    %v2452 = vsub.f32 %v180, %v2451
    %2453 = vmatpush.msra.mxu0 %v2452
    %v2454 = vand.u32 %v178, 4294901760
    %v2455 = vsub.f32 %v178, %v2454
    %2456 = vmatpush.msra.mxu0 %v2455
    %v2457 = vand.u32 %v176, 4294901760
    %v2458 = vsub.f32 %v176, %v2457
    %2459 = vmatpush.msra.mxu0 %v2458
    %v2460 = vand.u32 %v174, 4294901760
    %v2461 = vsub.f32 %v174, %v2460
    %2462 = vmatpush.msra.mxu0 %v2461
    %v2463 = vand.u32 %v172, 4294901760
    %v2464 = vsub.f32 %v172, %v2463
    %2465 = vmatpush.msra.mxu0 %v2464
    %v2466 = vand.u32 %v170, 4294901760
    %v2467 = vsub.f32 %v170, %v2466
    %2468 = vmatpush.msra.mxu0 %v2467
    %v2469 = vand.u32 %v103, 4294901760
    %v2470 = vsub.f32 %v103, %v2469
    %2471 = vmatmul.f32.gmra.mxu0 %v2470
    %v2472 = vpop.f32.mrf.mxu0
    %v2473 = vadd.f32 %v2419, %v2472
    %2474 = vdwg.mxu0
    %v2475 = vand.u32 %v200, 4294901760
    %2476 = vmatpush.msra.mxu0 %v2475
    %v2477 = vand.u32 %v198, 4294901760
    %2478 = vmatpush.msra.mxu0 %v2477
    %v2479 = vand.u32 %v196, 4294901760
    %2480 = vmatpush.msra.mxu0 %v2479
    %v2481 = vand.u32 %v194, 4294901760
    %2482 = vmatpush.msra.mxu0 %v2481
    %v2483 = vand.u32 %v192, 4294901760
    %2484 = vmatpush.msra.mxu0 %v2483
    %v2485 = vand.u32 %v190, 4294901760
    %2486 = vmatpush.msra.mxu0 %v2485
    %v2487 = vand.u32 %v188, 4294901760
    %2488 = vmatpush.msra.mxu0 %v2487
    %v2489 = vand.u32 %v186, 4294901760
    %2490 = vmatpush.msra.mxu0 %v2489
    %v2491 = vand.u32 %v184, 4294901760
    %2492 = vmatpush.msra.mxu0 %v2491
    %v2493 = vand.u32 %v182, 4294901760
    %2494 = vmatpush.msra.mxu0 %v2493
    %v2495 = vand.u32 %v180, 4294901760
    %2496 = vmatpush.msra.mxu0 %v2495
    %v2497 = vand.u32 %v178, 4294901760
    %2498 = vmatpush.msra.mxu0 %v2497
    %v2499 = vand.u32 %v176, 4294901760
    %2500 = vmatpush.msra.mxu0 %v2499
    %v2501 = vand.u32 %v174, 4294901760
    %2502 = vmatpush.msra.mxu0 %v2501
    %v2503 = vand.u32 %v172, 4294901760
    %2504 = vmatpush.msra.mxu0 %v2503
    %v2505 = vand.u32 %v170, 4294901760
    %2506 = vmatpush.msra.mxu0 %v2505
    %v2507 = vand.u32 %v103, 4294901760
    %v2508 = vsub.f32 %v103, %v2507
    %v2509 = vand.u32 %v2508, 4294901760
    %2510 = vmatmul.f32.gmra.mxu0 %v2509
    %v2511 = vpop.f32.mrf.mxu0
    %v2512 = vadd.f32 %v2473, %v2511
    %2513 = vdwg.mxu0
    %v2514 = vand.u32 %v200, 4294901760
    %v2515 = vsub.f32 %v200, %v2514
    %v2516 = vand.u32 %v2515, 4294901760
    %2517 = vmatpush.msra.mxu0 %v2516
    %v2518 = vand.u32 %v198, 4294901760
    %v2519 = vsub.f32 %v198, %v2518
    %v2520 = vand.u32 %v2519, 4294901760
    %2521 = vmatpush.msra.mxu0 %v2520
    %v2522 = vand.u32 %v196, 4294901760
    %v2523 = vsub.f32 %v196, %v2522
    %v2524 = vand.u32 %v2523, 4294901760
    %2525 = vmatpush.msra.mxu0 %v2524
    %v2526 = vand.u32 %v194, 4294901760
    %v2527 = vsub.f32 %v194, %v2526
    %v2528 = vand.u32 %v2527, 4294901760
    %2529 = vmatpush.msra.mxu0 %v2528
    %v2530 = vand.u32 %v192, 4294901760
    %v2531 = vsub.f32 %v192, %v2530
    %v2532 = vand.u32 %v2531, 4294901760
    %2533 = vmatpush.msra.mxu0 %v2532
    %v2534 = vand.u32 %v190, 4294901760
    %v2535 = vsub.f32 %v190, %v2534
    %v2536 = vand.u32 %v2535, 4294901760
    %2537 = vmatpush.msra.mxu0 %v2536
    %v2538 = vand.u32 %v188, 4294901760
    %v2539 = vsub.f32 %v188, %v2538
    %v2540 = vand.u32 %v2539, 4294901760
    %2541 = vmatpush.msra.mxu0 %v2540
    %v2542 = vand.u32 %v186, 4294901760
    %v2543 = vsub.f32 %v186, %v2542
    %v2544 = vand.u32 %v2543, 4294901760
    %2545 = vmatpush.msra.mxu0 %v2544
    %v2546 = vand.u32 %v184, 4294901760
    %v2547 = vsub.f32 %v184, %v2546
    %v2548 = vand.u32 %v2547, 4294901760
    %2549 = vmatpush.msra.mxu0 %v2548
    %v2550 = vand.u32 %v182, 4294901760
    %v2551 = vsub.f32 %v182, %v2550
    %v2552 = vand.u32 %v2551, 4294901760
    %2553 = vmatpush.msra.mxu0 %v2552
    %v2554 = vand.u32 %v180, 4294901760
    %v2555 = vsub.f32 %v180, %v2554
    %v2556 = vand.u32 %v2555, 4294901760
    %2557 = vmatpush.msra.mxu0 %v2556
    %v2558 = vand.u32 %v178, 4294901760
    %v2559 = vsub.f32 %v178, %v2558
    %v2560 = vand.u32 %v2559, 4294901760
    %2561 = vmatpush.msra.mxu0 %v2560
    %v2562 = vand.u32 %v176, 4294901760
    %v2563 = vsub.f32 %v176, %v2562
    %v2564 = vand.u32 %v2563, 4294901760
    %2565 = vmatpush.msra.mxu0 %v2564
    %v2566 = vand.u32 %v174, 4294901760
    %v2567 = vsub.f32 %v174, %v2566
    %v2568 = vand.u32 %v2567, 4294901760
    %2569 = vmatpush.msra.mxu0 %v2568
    %v2570 = vand.u32 %v172, 4294901760
    %v2571 = vsub.f32 %v172, %v2570
    %v2572 = vand.u32 %v2571, 4294901760
    %2573 = vmatpush.msra.mxu0 %v2572
    %v2574 = vand.u32 %v170, 4294901760
    %v2575 = vsub.f32 %v170, %v2574
    %v2576 = vand.u32 %v2575, 4294901760
    %2577 = vmatpush.msra.mxu0 %v2576
    %v2578 = vand.u32 %v103, 4294901760
    %2579 = vmatmul.f32.gmra.mxu0 %v2578
    %v2580 = vpop.f32.mrf.mxu0
    %v2581 = vadd.f32 %v2512, %v2580
    %2582 = vdwg.mxu0
    %v2583 = vand.u32 %v200, 4294901760
    %2584 = vmatpush.msra.mxu0 %v2583
    %v2585 = vand.u32 %v198, 4294901760
    %2586 = vmatpush.msra.mxu0 %v2585
    %v2587 = vand.u32 %v196, 4294901760
    %2588 = vmatpush.msra.mxu0 %v2587
    %v2589 = vand.u32 %v194, 4294901760
    %2590 = vmatpush.msra.mxu0 %v2589
    %v2591 = vand.u32 %v192, 4294901760
    %2592 = vmatpush.msra.mxu0 %v2591
    %v2593 = vand.u32 %v190, 4294901760
    %2594 = vmatpush.msra.mxu0 %v2593
    %v2595 = vand.u32 %v188, 4294901760
    %2596 = vmatpush.msra.mxu0 %v2595
    %v2597 = vand.u32 %v186, 4294901760
    %2598 = vmatpush.msra.mxu0 %v2597
    %v2599 = vand.u32 %v184, 4294901760
    %2600 = vmatpush.msra.mxu0 %v2599
    %v2601 = vand.u32 %v182, 4294901760
    %2602 = vmatpush.msra.mxu0 %v2601
    %v2603 = vand.u32 %v180, 4294901760
    %2604 = vmatpush.msra.mxu0 %v2603
    %v2605 = vand.u32 %v178, 4294901760
    %2606 = vmatpush.msra.mxu0 %v2605
    %v2607 = vand.u32 %v176, 4294901760
    %2608 = vmatpush.msra.mxu0 %v2607
    %v2609 = vand.u32 %v174, 4294901760
    %2610 = vmatpush.msra.mxu0 %v2609
    %v2611 = vand.u32 %v172, 4294901760
    %2612 = vmatpush.msra.mxu0 %v2611
    %v2613 = vand.u32 %v170, 4294901760
    %2614 = vmatpush.msra.mxu0 %v2613
    %v2615 = vand.u32 %v103, 4294901760
    %2616 = vmatmul.f32.gmra.mxu0 %v2615
    %v2617 = vpop.f32.mrf.mxu0
    %v2618 = vadd.f32 %v2581, %v2617
    %2619 = vdwg.mxu0
    %v2620 = vand.u32 %v232, 4294901760
    %2621 = vmatpush.msra.mxu0 %v2620
    %v2622 = vand.u32 %v230, 4294901760
    %2623 = vmatpush.msra.mxu0 %v2622
    %v2624 = vand.u32 %v228, 4294901760
    %2625 = vmatpush.msra.mxu0 %v2624
    %v2626 = vand.u32 %v226, 4294901760
    %2627 = vmatpush.msra.mxu0 %v2626
    %v2628 = vand.u32 %v224, 4294901760
    %2629 = vmatpush.msra.mxu0 %v2628
    %v2630 = vand.u32 %v222, 4294901760
    %2631 = vmatpush.msra.mxu0 %v2630
    %v2632 = vand.u32 %v220, 4294901760
    %2633 = vmatpush.msra.mxu0 %v2632
    %v2634 = vand.u32 %v218, 4294901760
    %2635 = vmatpush.msra.mxu0 %v2634
    %v2636 = vand.u32 %v216, 4294901760
    %2637 = vmatpush.msra.mxu0 %v2636
    %v2638 = vand.u32 %v214, 4294901760
    %2639 = vmatpush.msra.mxu0 %v2638
    %v2640 = vand.u32 %v212, 4294901760
    %2641 = vmatpush.msra.mxu0 %v2640
    %v2642 = vand.u32 %v210, 4294901760
    %2643 = vmatpush.msra.mxu0 %v2642
    %v2644 = vand.u32 %v208, 4294901760
    %2645 = vmatpush.msra.mxu0 %v2644
    %v2646 = vand.u32 %v206, 4294901760
    %2647 = vmatpush.msra.mxu0 %v2646
    %v2648 = vand.u32 %v204, 4294901760
    %2649 = vmatpush.msra.mxu0 %v2648
    %v2650 = vand.u32 %v202, 4294901760
    %2651 = vmatpush.msra.mxu0 %v2650
    %v2652 = vand.u32 %v104, 4294901760
    %v2653 = vsub.f32 %v104, %v2652
    %v2654 = vand.u32 %v2653, 4294901760
    %v2655 = vsub.f32 %v2653, %v2654
    %v2656 = vand.u32 %v2655, 4294901760
    %2657 = vmatmul.f32.gmra.mxu0 %v2656
    %v2658 = vpop.f32.mrf.mxu0
    %v2659 = vadd.f32 %v2618, %v2658
    %2660 = vdwg.mxu0
    %v2661 = vand.u32 %v232, 4294901760
    %v2662 = vsub.f32 %v232, %v2661
    %v2663 = vand.u32 %v2662, 4294901760
    %v2664 = vsub.f32 %v2662, %v2663
    %v2665 = vand.u32 %v2664, 4294901760
    %2666 = vmatpush.msra.mxu0 %v2665
    %v2667 = vand.u32 %v230, 4294901760
    %v2668 = vsub.f32 %v230, %v2667
    %v2669 = vand.u32 %v2668, 4294901760
    %v2670 = vsub.f32 %v2668, %v2669
    %v2671 = vand.u32 %v2670, 4294901760
    %2672 = vmatpush.msra.mxu0 %v2671
    %v2673 = vand.u32 %v228, 4294901760
    %v2674 = vsub.f32 %v228, %v2673
    %v2675 = vand.u32 %v2674, 4294901760
    %v2676 = vsub.f32 %v2674, %v2675
    %v2677 = vand.u32 %v2676, 4294901760
    %2678 = vmatpush.msra.mxu0 %v2677
    %v2679 = vand.u32 %v226, 4294901760
    %v2680 = vsub.f32 %v226, %v2679
    %v2681 = vand.u32 %v2680, 4294901760
    %v2682 = vsub.f32 %v2680, %v2681
    %v2683 = vand.u32 %v2682, 4294901760
    %2684 = vmatpush.msra.mxu0 %v2683
    %v2685 = vand.u32 %v224, 4294901760
    %v2686 = vsub.f32 %v224, %v2685
    %v2687 = vand.u32 %v2686, 4294901760
    %v2688 = vsub.f32 %v2686, %v2687
    %v2689 = vand.u32 %v2688, 4294901760
    %2690 = vmatpush.msra.mxu0 %v2689
    %v2691 = vand.u32 %v222, 4294901760
    %v2692 = vsub.f32 %v222, %v2691
    %v2693 = vand.u32 %v2692, 4294901760
    %v2694 = vsub.f32 %v2692, %v2693
    %v2695 = vand.u32 %v2694, 4294901760
    %2696 = vmatpush.msra.mxu0 %v2695
    %v2697 = vand.u32 %v220, 4294901760
    %v2698 = vsub.f32 %v220, %v2697
    %v2699 = vand.u32 %v2698, 4294901760
    %v2700 = vsub.f32 %v2698, %v2699
    %v2701 = vand.u32 %v2700, 4294901760
    %2702 = vmatpush.msra.mxu0 %v2701
    %v2703 = vand.u32 %v218, 4294901760
    %v2704 = vsub.f32 %v218, %v2703
    %v2705 = vand.u32 %v2704, 4294901760
    %v2706 = vsub.f32 %v2704, %v2705
    %v2707 = vand.u32 %v2706, 4294901760
    %2708 = vmatpush.msra.mxu0 %v2707
    %v2709 = vand.u32 %v216, 4294901760
    %v2710 = vsub.f32 %v216, %v2709
    %v2711 = vand.u32 %v2710, 4294901760
    %v2712 = vsub.f32 %v2710, %v2711
    %v2713 = vand.u32 %v2712, 4294901760
    %2714 = vmatpush.msra.mxu0 %v2713
    %v2715 = vand.u32 %v214, 4294901760
    %v2716 = vsub.f32 %v214, %v2715
    %v2717 = vand.u32 %v2716, 4294901760
    %v2718 = vsub.f32 %v2716, %v2717
    %v2719 = vand.u32 %v2718, 4294901760
    %2720 = vmatpush.msra.mxu0 %v2719
    %v2721 = vand.u32 %v212, 4294901760
    %v2722 = vsub.f32 %v212, %v2721
    %v2723 = vand.u32 %v2722, 4294901760
    %v2724 = vsub.f32 %v2722, %v2723
    %v2725 = vand.u32 %v2724, 4294901760
    %2726 = vmatpush.msra.mxu0 %v2725
    %v2727 = vand.u32 %v210, 4294901760
    %v2728 = vsub.f32 %v210, %v2727
    %v2729 = vand.u32 %v2728, 4294901760
    %v2730 = vsub.f32 %v2728, %v2729
    %v2731 = vand.u32 %v2730, 4294901760
    %2732 = vmatpush.msra.mxu0 %v2731
    %v2733 = vand.u32 %v208, 4294901760
    %v2734 = vsub.f32 %v208, %v2733
    %v2735 = vand.u32 %v2734, 4294901760
    %v2736 = vsub.f32 %v2734, %v2735
    %v2737 = vand.u32 %v2736, 4294901760
    %2738 = vmatpush.msra.mxu0 %v2737
    %v2739 = vand.u32 %v206, 4294901760
    %v2740 = vsub.f32 %v206, %v2739
    %v2741 = vand.u32 %v2740, 4294901760
    %v2742 = vsub.f32 %v2740, %v2741
    %v2743 = vand.u32 %v2742, 4294901760
    %2744 = vmatpush.msra.mxu0 %v2743
    %v2745 = vand.u32 %v204, 4294901760
    %v2746 = vsub.f32 %v204, %v2745
    %v2747 = vand.u32 %v2746, 4294901760
    %v2748 = vsub.f32 %v2746, %v2747
    %v2749 = vand.u32 %v2748, 4294901760
    %2750 = vmatpush.msra.mxu0 %v2749
    %v2751 = vand.u32 %v202, 4294901760
    %v2752 = vsub.f32 %v202, %v2751
    %v2753 = vand.u32 %v2752, 4294901760
    %v2754 = vsub.f32 %v2752, %v2753
    %v2755 = vand.u32 %v2754, 4294901760
    %2756 = vmatpush.msra.mxu0 %v2755
    %v2757 = vand.u32 %v104, 4294901760
    %2758 = vmatmul.f32.gmra.mxu0 %v2757
    %v2759 = vpop.f32.mrf.mxu0
    %v2760 = vadd.f32 %v2659, %v2759
    %2761 = vdwg.mxu0
    %v2762 = vand.u32 %v232, 4294901760
    %v2763 = vsub.f32 %v232, %v2762
    %2764 = vmatpush.msra.mxu0 %v2763
    %v2765 = vand.u32 %v230, 4294901760
    %v2766 = vsub.f32 %v230, %v2765
    %2767 = vmatpush.msra.mxu0 %v2766
    %v2768 = vand.u32 %v228, 4294901760
    %v2769 = vsub.f32 %v228, %v2768
    %2770 = vmatpush.msra.mxu0 %v2769
    %v2771 = vand.u32 %v226, 4294901760
    %v2772 = vsub.f32 %v226, %v2771
    %2773 = vmatpush.msra.mxu0 %v2772
    %v2774 = vand.u32 %v224, 4294901760
    %v2775 = vsub.f32 %v224, %v2774
    %2776 = vmatpush.msra.mxu0 %v2775
    %v2777 = vand.u32 %v222, 4294901760
    %v2778 = vsub.f32 %v222, %v2777
    %2779 = vmatpush.msra.mxu0 %v2778
    %v2780 = vand.u32 %v220, 4294901760
    %v2781 = vsub.f32 %v220, %v2780
    %2782 = vmatpush.msra.mxu0 %v2781
    %v2783 = vand.u32 %v218, 4294901760
    %v2784 = vsub.f32 %v218, %v2783
    %2785 = vmatpush.msra.mxu0 %v2784
    %v2786 = vand.u32 %v216, 4294901760
    %v2787 = vsub.f32 %v216, %v2786
    %2788 = vmatpush.msra.mxu0 %v2787
    %v2789 = vand.u32 %v214, 4294901760
    %v2790 = vsub.f32 %v214, %v2789
    %2791 = vmatpush.msra.mxu0 %v2790
    %v2792 = vand.u32 %v212, 4294901760
    %v2793 = vsub.f32 %v212, %v2792
    %2794 = vmatpush.msra.mxu0 %v2793
    %v2795 = vand.u32 %v210, 4294901760
    %v2796 = vsub.f32 %v210, %v2795
    %2797 = vmatpush.msra.mxu0 %v2796
    %v2798 = vand.u32 %v208, 4294901760
    %v2799 = vsub.f32 %v208, %v2798
    %2800 = vmatpush.msra.mxu0 %v2799
    %v2801 = vand.u32 %v206, 4294901760
    %v2802 = vsub.f32 %v206, %v2801
    %2803 = vmatpush.msra.mxu0 %v2802
    %v2804 = vand.u32 %v204, 4294901760
    %v2805 = vsub.f32 %v204, %v2804
    %2806 = vmatpush.msra.mxu0 %v2805
    %v2807 = vand.u32 %v202, 4294901760
    %v2808 = vsub.f32 %v202, %v2807
    %2809 = vmatpush.msra.mxu0 %v2808
    %v2810 = vand.u32 %v104, 4294901760
    %v2811 = vsub.f32 %v104, %v2810
    %2812 = vmatmul.f32.gmra.mxu0 %v2811
    %v2813 = vpop.f32.mrf.mxu0
    %v2814 = vadd.f32 %v2760, %v2813
    %2815 = vdwg.mxu0
    %v2816 = vand.u32 %v232, 4294901760
    %2817 = vmatpush.msra.mxu0 %v2816
    %v2818 = vand.u32 %v230, 4294901760
    %2819 = vmatpush.msra.mxu0 %v2818
    %v2820 = vand.u32 %v228, 4294901760
    %2821 = vmatpush.msra.mxu0 %v2820
    %v2822 = vand.u32 %v226, 4294901760
    %2823 = vmatpush.msra.mxu0 %v2822
    %v2824 = vand.u32 %v224, 4294901760
    %2825 = vmatpush.msra.mxu0 %v2824
    %v2826 = vand.u32 %v222, 4294901760
    %2827 = vmatpush.msra.mxu0 %v2826
    %v2828 = vand.u32 %v220, 4294901760
    %2829 = vmatpush.msra.mxu0 %v2828
    %v2830 = vand.u32 %v218, 4294901760
    %2831 = vmatpush.msra.mxu0 %v2830
    %v2832 = vand.u32 %v216, 4294901760
    %2833 = vmatpush.msra.mxu0 %v2832
    %v2834 = vand.u32 %v214, 4294901760
    %2835 = vmatpush.msra.mxu0 %v2834
    %v2836 = vand.u32 %v212, 4294901760
    %2837 = vmatpush.msra.mxu0 %v2836
    %v2838 = vand.u32 %v210, 4294901760
    %2839 = vmatpush.msra.mxu0 %v2838
    %v2840 = vand.u32 %v208, 4294901760
    %2841 = vmatpush.msra.mxu0 %v2840
    %v2842 = vand.u32 %v206, 4294901760
    %2843 = vmatpush.msra.mxu0 %v2842
    %v2844 = vand.u32 %v204, 4294901760
    %2845 = vmatpush.msra.mxu0 %v2844
    %v2846 = vand.u32 %v202, 4294901760
    %2847 = vmatpush.msra.mxu0 %v2846
    %v2848 = vand.u32 %v104, 4294901760
    %v2849 = vsub.f32 %v104, %v2848
    %v2850 = vand.u32 %v2849, 4294901760
    %2851 = vmatmul.f32.gmra.mxu0 %v2850
    %v2852 = vpop.f32.mrf.mxu0
    %v2853 = vadd.f32 %v2814, %v2852
    %2854 = vdwg.mxu0
    %v2855 = vand.u32 %v232, 4294901760
    %v2856 = vsub.f32 %v232, %v2855
    %v2857 = vand.u32 %v2856, 4294901760
    %2858 = vmatpush.msra.mxu0 %v2857
    %v2859 = vand.u32 %v230, 4294901760
    %v2860 = vsub.f32 %v230, %v2859
    %v2861 = vand.u32 %v2860, 4294901760
    %2862 = vmatpush.msra.mxu0 %v2861
    %v2863 = vand.u32 %v228, 4294901760
    %v2864 = vsub.f32 %v228, %v2863
    %v2865 = vand.u32 %v2864, 4294901760
    %2866 = vmatpush.msra.mxu0 %v2865
    %v2867 = vand.u32 %v226, 4294901760
    %v2868 = vsub.f32 %v226, %v2867
    %v2869 = vand.u32 %v2868, 4294901760
    %2870 = vmatpush.msra.mxu0 %v2869
    %v2871 = vand.u32 %v224, 4294901760
    %v2872 = vsub.f32 %v224, %v2871
    %v2873 = vand.u32 %v2872, 4294901760
    %2874 = vmatpush.msra.mxu0 %v2873
    %v2875 = vand.u32 %v222, 4294901760
    %v2876 = vsub.f32 %v222, %v2875
    %v2877 = vand.u32 %v2876, 4294901760
    %2878 = vmatpush.msra.mxu0 %v2877
    %v2879 = vand.u32 %v220, 4294901760
    %v2880 = vsub.f32 %v220, %v2879
    %v2881 = vand.u32 %v2880, 4294901760
    %2882 = vmatpush.msra.mxu0 %v2881
    %v2883 = vand.u32 %v218, 4294901760
    %v2884 = vsub.f32 %v218, %v2883
    %v2885 = vand.u32 %v2884, 4294901760
    %2886 = vmatpush.msra.mxu0 %v2885
    %v2887 = vand.u32 %v216, 4294901760
    %v2888 = vsub.f32 %v216, %v2887
    %v2889 = vand.u32 %v2888, 4294901760
    %2890 = vmatpush.msra.mxu0 %v2889
    %v2891 = vand.u32 %v214, 4294901760
    %v2892 = vsub.f32 %v214, %v2891
    %v2893 = vand.u32 %v2892, 4294901760
    %2894 = vmatpush.msra.mxu0 %v2893
    %v2895 = vand.u32 %v212, 4294901760
    %v2896 = vsub.f32 %v212, %v2895
    %v2897 = vand.u32 %v2896, 4294901760
    %2898 = vmatpush.msra.mxu0 %v2897
    %v2899 = vand.u32 %v210, 4294901760
    %v2900 = vsub.f32 %v210, %v2899
    %v2901 = vand.u32 %v2900, 4294901760
    %2902 = vmatpush.msra.mxu0 %v2901
    %v2903 = vand.u32 %v208, 4294901760
    %v2904 = vsub.f32 %v208, %v2903
    %v2905 = vand.u32 %v2904, 4294901760
    %2906 = vmatpush.msra.mxu0 %v2905
    %v2907 = vand.u32 %v206, 4294901760
    %v2908 = vsub.f32 %v206, %v2907
    %v2909 = vand.u32 %v2908, 4294901760
    %2910 = vmatpush.msra.mxu0 %v2909
    %v2911 = vand.u32 %v204, 4294901760
    %v2912 = vsub.f32 %v204, %v2911
    %v2913 = vand.u32 %v2912, 4294901760
    %2914 = vmatpush.msra.mxu0 %v2913
    %v2915 = vand.u32 %v202, 4294901760
    %v2916 = vsub.f32 %v202, %v2915
    %v2917 = vand.u32 %v2916, 4294901760
    %2918 = vmatpush.msra.mxu0 %v2917
    %v2919 = vand.u32 %v104, 4294901760
    %2920 = vmatmul.f32.gmra.mxu0 %v2919
    %v2921 = vpop.f32.mrf.mxu0
    %v2922 = vadd.f32 %v2853, %v2921
    %2923 = vdwg.mxu0
    %v2924 = vand.u32 %v232, 4294901760
    %2925 = vmatpush.msra.mxu0 %v2924
    %v2926 = vand.u32 %v230, 4294901760
    %2927 = vmatpush.msra.mxu0 %v2926
    %v2928 = vand.u32 %v228, 4294901760
    %2929 = vmatpush.msra.mxu0 %v2928
    %v2930 = vand.u32 %v226, 4294901760
    %2931 = vmatpush.msra.mxu0 %v2930
    %v2932 = vand.u32 %v224, 4294901760
    %2933 = vmatpush.msra.mxu0 %v2932
    %v2934 = vand.u32 %v222, 4294901760
    %2935 = vmatpush.msra.mxu0 %v2934
    %v2936 = vand.u32 %v220, 4294901760
    %2937 = vmatpush.msra.mxu0 %v2936
    %v2938 = vand.u32 %v218, 4294901760
    %2939 = vmatpush.msra.mxu0 %v2938
    %v2940 = vand.u32 %v216, 4294901760
    %2941 = vmatpush.msra.mxu0 %v2940
    %v2942 = vand.u32 %v214, 4294901760
    %2943 = vmatpush.msra.mxu0 %v2942
    %v2944 = vand.u32 %v212, 4294901760
    %2945 = vmatpush.msra.mxu0 %v2944
    %v2946 = vand.u32 %v210, 4294901760
    %2947 = vmatpush.msra.mxu0 %v2946
    %v2948 = vand.u32 %v208, 4294901760
    %2949 = vmatpush.msra.mxu0 %v2948
    %v2950 = vand.u32 %v206, 4294901760
    %2951 = vmatpush.msra.mxu0 %v2950
    %v2952 = vand.u32 %v204, 4294901760
    %2953 = vmatpush.msra.mxu0 %v2952
    %v2954 = vand.u32 %v202, 4294901760
    %2955 = vmatpush.msra.mxu0 %v2954
    %v2956 = vand.u32 %v104, 4294901760
    %2957 = vmatmul.f32.gmra.mxu0 %v2956
    %v2958 = vpop.f32.mrf.mxu0
    %v2959 = vadd.f32 %v2922, %v2958
    %2960 = vdwg.mxu0
    %v2961 = vmul.f32 %v913, %v913
    %v2962 = vmul.f32 %v1595, %v1595
    %v2963 = vmul.f32 %v2277, %v2277
    %v2964 = vmul.f32 %v2959, %v2959
    %v2965 = vadd.f32 %v2961, %v2963
    %v2966 = vadd.f32 %v2962, %v2964
    %v2967 = vadd.f32 %v2965, 1e-30
    %v2968 = vadd.f32 %v2966, 1e-30
    %v2969 = vrsqrt.pop %v2967
    %v2970 = vmul.f32 %v2969, %v2967
    %v2971 = vmul.f32 %v2970, %v2969
    %v2972 = vmul.f32 0.5, %v2971
    %v2973 = vsub.f32 1.5, %v2972
    %v2974 = vmul.f32 %v2969, %v2973
    %vm2975 = vweird.f32 %v2967
    %vm2976 = vweird.f32 %v2969
    %vm2977 = vmor %vm2975, %vm2976
    %v2978 = vsel %vm2977, %v2969, %v2974
    %v2979 = vrsqrt.pop %v2968
    %v2980 = vmul.f32 %v2979, %v2968
    %v2981 = vmul.f32 %v2980, %v2979
    %v2982 = vmul.f32 0.5, %v2981
    %v2983 = vsub.f32 1.5, %v2982
    %v2984 = vmul.f32 %v2979, %v2983
    %vm2985 = vweird.f32 %v2968
    %vm2986 = vweird.f32 %v2979
    %vm2987 = vmor %vm2985, %vm2986
    %v2988 = vsel %vm2987, %v2979, %v2984
    %v2989 = vmul.f32 %v2965, %v2978
    %v2990 = vmul.f32 %v2966, %v2988
    %v2991 = vld [vmem:[#allocation8] sm:$0xf]
    %v2992 = vld [vmem:[#allocation8 + $0x4] sm:$0xf]
    %v2993 = vld [vmem:[#allocation8 + $0x8] sm:$0xf]
    %v2994 = vld [vmem:[#allocation8 + $0xc] sm:$0xf]
    %v2995 = vld [vmem:[#allocation8 + $0x10] sm:$0xf]
    %v2996 = vld [vmem:[#allocation8 + $0x14] sm:$0xf]
    %v2997 = vld [vmem:[#allocation8 + $0x18] sm:$0xf]
    %v2998 = vld [vmem:[#allocation8 + $0x1c] sm:$0xf]
    %v2999 = vld [vmem:[#allocation8 + $0x20] sm:$0xf]
    %v3000 = vld [vmem:[#allocation8 + $0x24] sm:$0xf]
    %v3001 = vld [vmem:[#allocation8 + $0x28] sm:$0xf]
    %v3002 = vld [vmem:[#allocation8 + $0x2c] sm:$0xf]
    %v3003 = vld [vmem:[#allocation8 + $0x30] sm:$0xf]
    %v3004 = vld [vmem:[#allocation8 + $0x34] sm:$0xf]
    %v3005 = vld [vmem:[#allocation8 + $0x38] sm:$0xf]
    %v3006 = vld [vmem:[#allocation8 + $0x3c] sm:$0xf]
    %v3007 = vld [vmem:[#allocation8 + $0x40] sm:$0xf]
    %v3008 = vld [vmem:[#allocation8 + $0x44] sm:$0xf]
    %v3009 = vld [vmem:[#allocation8 + $0x48] sm:$0xf]
    %v3010 = vld [vmem:[#allocation8 + $0x4c] sm:$0xf]
    %v3011 = vld [vmem:[#allocation8 + $0x50] sm:$0xf]
    %v3012 = vld [vmem:[#allocation8 + $0x54] sm:$0xf]
    %v3013 = vld [vmem:[#allocation8 + $0x58] sm:$0xf]
    %v3014 = vld [vmem:[#allocation8 + $0x5c] sm:$0xf]
    %v3015 = vld [vmem:[#allocation8 + $0x60] sm:$0xf]
    %v3016 = vld [vmem:[#allocation8 + $0x64] sm:$0xf]
    %v3017 = vld [vmem:[#allocation8 + $0x68] sm:$0xf]
    %v3018 = vld [vmem:[#allocation8 + $0x6c] sm:$0xf]
    %v3019 = vld [vmem:[#allocation8 + $0x70] sm:$0xf]
    %v3020 = vld [vmem:[#allocation8 + $0x74] sm:$0xf]
    %v3021 = vld [vmem:[#allocation8 + $0x78] sm:$0xf]
    %v3022 = vld [vmem:[#allocation8 + $0x7c] sm:$0xf]
    %v3023 = vunpack.c.l.bf16 %v2991
    %v3024 = vunpack.c.l.bf16 %v2992
    %v3025 = vunpack.c.l.bf16 %v2993
    %v3026 = vunpack.c.l.bf16 %v2994
    %v3027 = vunpack.c.l.bf16 %v2995
    %v3028 = vunpack.c.l.bf16 %v2996
    %v3029 = vunpack.c.l.bf16 %v2997
    %v3030 = vunpack.c.l.bf16 %v2998
    %v3031 = vunpack.c.l.bf16 %v2999
    %v3032 = vunpack.c.l.bf16 %v3000
    %v3033 = vunpack.c.l.bf16 %v3001
    %v3034 = vunpack.c.l.bf16 %v3002
    %v3035 = vunpack.c.l.bf16 %v3003
    %v3036 = vunpack.c.l.bf16 %v3004
    %v3037 = vunpack.c.l.bf16 %v3005
    %v3038 = vunpack.c.l.bf16 %v3006
    %v3039 = vunpack.c.l.bf16 %v3007
    %v3040 = vunpack.c.l.bf16 %v3008
    %v3041 = vunpack.c.l.bf16 %v3009
    %v3042 = vunpack.c.l.bf16 %v3010
    %v3043 = vunpack.c.l.bf16 %v3011
    %v3044 = vunpack.c.l.bf16 %v3012
    %v3045 = vunpack.c.l.bf16 %v3013
    %v3046 = vunpack.c.l.bf16 %v3014
    %v3047 = vunpack.c.l.bf16 %v3015
    %v3048 = vunpack.c.l.bf16 %v3016
    %v3049 = vunpack.c.l.bf16 %v3017
    %v3050 = vunpack.c.l.bf16 %v3018
    %v3051 = vunpack.c.l.bf16 %v3019
    %v3052 = vunpack.c.l.bf16 %v3020
    %v3053 = vunpack.c.l.bf16 %v3021
    %v3054 = vunpack.c.l.bf16 %v3022
    %3055 = vmatpush.msra.mxu0 %v3038
    %3056 = vmatpush.msra.mxu0 %v3037
    %3057 = vmatpush.msra.mxu0 %v3036
    %3058 = vmatpush.msra.mxu0 %v3035
    %3059 = vmatpush.msra.mxu0 %v3034
    %3060 = vmatpush.msra.mxu0 %v3033
    %3061 = vmatpush.msra.mxu0 %v3032
    %3062 = vmatpush.msra.mxu0 %v3031
    %3063 = vmatpush.msra.mxu0 %v3030
    %3064 = vmatpush.msra.mxu0 %v3029
    %3065 = vmatpush.msra.mxu0 %v3028
    %3066 = vmatpush.msra.mxu0 %v3027
    %3067 = vmatpush.msra.mxu0 %v3026
    %3068 = vmatpush.msra.mxu0 %v3025
    %3069 = vmatpush.msra.mxu0 %v3024
    %3070 = vmatpush.msra.mxu0 %v3023
    %v3071 = vand.u32 %v2989, 4294901760
    %v3072 = vsub.f32 %v2989, %v3071
    %v3073 = vand.u32 %v3072, 4294901760
    %v3074 = vsub.f32 %v3072, %v3073
    %v3075 = vand.u32 %v3074, 4294901760
    %3076 = vmatmul.f32.gmra.mxu0 %v3075
    %v3077 = vpop.f32.mrf.mxu0
    %v3078 = vadd.f32 0.0, %v3077
    %3079 = vdwg.mxu0
    %v3080 = vsub.f32 %v3038, %v3038
    %v3081 = vand.u32 %v3080, 4294901760
    %v3082 = vsub.f32 %v3080, %v3081
    %v3083 = vand.u32 %v3082, 4294901760
    %3084 = vmatpush.msra.mxu0 %v3083
    %v3085 = vsub.f32 %v3037, %v3037
    %v3086 = vand.u32 %v3085, 4294901760
    %v3087 = vsub.f32 %v3085, %v3086
    %v3088 = vand.u32 %v3087, 4294901760
    %3089 = vmatpush.msra.mxu0 %v3088
    %v3090 = vsub.f32 %v3036, %v3036
    %v3091 = vand.u32 %v3090, 4294901760
    %v3092 = vsub.f32 %v3090, %v3091
    %v3093 = vand.u32 %v3092, 4294901760
    %3094 = vmatpush.msra.mxu0 %v3093
    %v3095 = vsub.f32 %v3035, %v3035
    %v3096 = vand.u32 %v3095, 4294901760
    %v3097 = vsub.f32 %v3095, %v3096
    %v3098 = vand.u32 %v3097, 4294901760
    %3099 = vmatpush.msra.mxu0 %v3098
    %v3100 = vsub.f32 %v3034, %v3034
    %v3101 = vand.u32 %v3100, 4294901760
    %v3102 = vsub.f32 %v3100, %v3101
    %v3103 = vand.u32 %v3102, 4294901760
    %3104 = vmatpush.msra.mxu0 %v3103
    %v3105 = vsub.f32 %v3033, %v3033
    %v3106 = vand.u32 %v3105, 4294901760
    %v3107 = vsub.f32 %v3105, %v3106
    %v3108 = vand.u32 %v3107, 4294901760
    %3109 = vmatpush.msra.mxu0 %v3108
    %v3110 = vsub.f32 %v3032, %v3032
    %v3111 = vand.u32 %v3110, 4294901760
    %v3112 = vsub.f32 %v3110, %v3111
    %v3113 = vand.u32 %v3112, 4294901760
    %3114 = vmatpush.msra.mxu0 %v3113
    %v3115 = vsub.f32 %v3031, %v3031
    %v3116 = vand.u32 %v3115, 4294901760
    %v3117 = vsub.f32 %v3115, %v3116
    %v3118 = vand.u32 %v3117, 4294901760
    %3119 = vmatpush.msra.mxu0 %v3118
    %v3120 = vsub.f32 %v3030, %v3030
    %v3121 = vand.u32 %v3120, 4294901760
    %v3122 = vsub.f32 %v3120, %v3121
    %v3123 = vand.u32 %v3122, 4294901760
    %3124 = vmatpush.msra.mxu0 %v3123
    %v3125 = vsub.f32 %v3029, %v3029
    %v3126 = vand.u32 %v3125, 4294901760
    %v3127 = vsub.f32 %v3125, %v3126
    %v3128 = vand.u32 %v3127, 4294901760
    %3129 = vmatpush.msra.mxu0 %v3128
    %v3130 = vsub.f32 %v3028, %v3028
    %v3131 = vand.u32 %v3130, 4294901760
    %v3132 = vsub.f32 %v3130, %v3131
    %v3133 = vand.u32 %v3132, 4294901760
    %3134 = vmatpush.msra.mxu0 %v3133
    %v3135 = vsub.f32 %v3027, %v3027
    %v3136 = vand.u32 %v3135, 4294901760
    %v3137 = vsub.f32 %v3135, %v3136
    %v3138 = vand.u32 %v3137, 4294901760
    %3139 = vmatpush.msra.mxu0 %v3138
    %v3140 = vsub.f32 %v3026, %v3026
    %v3141 = vand.u32 %v3140, 4294901760
    %v3142 = vsub.f32 %v3140, %v3141
    %v3143 = vand.u32 %v3142, 4294901760
    %3144 = vmatpush.msra.mxu0 %v3143
    %v3145 = vsub.f32 %v3025, %v3025
    %v3146 = vand.u32 %v3145, 4294901760
    %v3147 = vsub.f32 %v3145, %v3146
    %v3148 = vand.u32 %v3147, 4294901760
    %3149 = vmatpush.msra.mxu0 %v3148
    %v3150 = vsub.f32 %v3024, %v3024
    %v3151 = vand.u32 %v3150, 4294901760
    %v3152 = vsub.f32 %v3150, %v3151
    %v3153 = vand.u32 %v3152, 4294901760
    %3154 = vmatpush.msra.mxu0 %v3153
    %v3155 = vsub.f32 %v3023, %v3023
    %v3156 = vand.u32 %v3155, 4294901760
    %v3157 = vsub.f32 %v3155, %v3156
    %v3158 = vand.u32 %v3157, 4294901760
    %3159 = vmatpush.msra.mxu0 %v3158
    %v3160 = vand.u32 %v2989, 4294901760
    %3161 = vmatmul.f32.gmra.mxu0 %v3160
    %v3162 = vpop.f32.mrf.mxu0
    %v3163 = vadd.f32 %v3078, %v3162
    %3164 = vdwg.mxu0
    %v3165 = vsub.f32 %v3038, %v3038
    %3166 = vmatpush.msra.mxu0 %v3165
    %v3167 = vsub.f32 %v3037, %v3037
    %3168 = vmatpush.msra.mxu0 %v3167
    %v3169 = vsub.f32 %v3036, %v3036
    %3170 = vmatpush.msra.mxu0 %v3169
    %v3171 = vsub.f32 %v3035, %v3035
    %3172 = vmatpush.msra.mxu0 %v3171
    %v3173 = vsub.f32 %v3034, %v3034
    %3174 = vmatpush.msra.mxu0 %v3173
    %v3175 = vsub.f32 %v3033, %v3033
    %3176 = vmatpush.msra.mxu0 %v3175
    %v3177 = vsub.f32 %v3032, %v3032
    %3178 = vmatpush.msra.mxu0 %v3177
    %v3179 = vsub.f32 %v3031, %v3031
    %3180 = vmatpush.msra.mxu0 %v3179
    %v3181 = vsub.f32 %v3030, %v3030
    %3182 = vmatpush.msra.mxu0 %v3181
    %v3183 = vsub.f32 %v3029, %v3029
    %3184 = vmatpush.msra.mxu0 %v3183
    %v3185 = vsub.f32 %v3028, %v3028
    %3186 = vmatpush.msra.mxu0 %v3185
    %v3187 = vsub.f32 %v3027, %v3027
    %3188 = vmatpush.msra.mxu0 %v3187
    %v3189 = vsub.f32 %v3026, %v3026
    %3190 = vmatpush.msra.mxu0 %v3189
    %v3191 = vsub.f32 %v3025, %v3025
    %3192 = vmatpush.msra.mxu0 %v3191
    %v3193 = vsub.f32 %v3024, %v3024
    %3194 = vmatpush.msra.mxu0 %v3193
    %v3195 = vsub.f32 %v3023, %v3023
    %3196 = vmatpush.msra.mxu0 %v3195
    %v3197 = vand.u32 %v2989, 4294901760
    %v3198 = vsub.f32 %v2989, %v3197
    %3199 = vmatmul.f32.gmra.mxu0 %v3198
    %v3200 = vpop.f32.mrf.mxu0
    %v3201 = vadd.f32 %v3163, %v3200
    %3202 = vdwg.mxu0
    %3203 = vmatpush.msra.mxu0 %v3038
    %3204 = vmatpush.msra.mxu0 %v3037
    %3205 = vmatpush.msra.mxu0 %v3036
    %3206 = vmatpush.msra.mxu0 %v3035
    %3207 = vmatpush.msra.mxu0 %v3034
    %3208 = vmatpush.msra.mxu0 %v3033
    %3209 = vmatpush.msra.mxu0 %v3032
    %3210 = vmatpush.msra.mxu0 %v3031
    %3211 = vmatpush.msra.mxu0 %v3030
    %3212 = vmatpush.msra.mxu0 %v3029
    %3213 = vmatpush.msra.mxu0 %v3028
    %3214 = vmatpush.msra.mxu0 %v3027
    %3215 = vmatpush.msra.mxu0 %v3026
    %3216 = vmatpush.msra.mxu0 %v3025
    %3217 = vmatpush.msra.mxu0 %v3024
    %3218 = vmatpush.msra.mxu0 %v3023
    %v3219 = vand.u32 %v2989, 4294901760
    %v3220 = vsub.f32 %v2989, %v3219
    %v3221 = vand.u32 %v3220, 4294901760
    %3222 = vmatmul.f32.gmra.mxu0 %v3221
    %v3223 = vpop.f32.mrf.mxu0
    %v3224 = vadd.f32 %v3201, %v3223
    %3225 = vdwg.mxu0
    %v3226 = vsub.f32 %v3038, %v3038
    %v3227 = vand.u32 %v3226, 4294901760
    %3228 = vmatpush.msra.mxu0 %v3227
    %v3229 = vsub.f32 %v3037, %v3037
    %v3230 = vand.u32 %v3229, 4294901760
    %3231 = vmatpush.msra.mxu0 %v3230
    %v3232 = vsub.f32 %v3036, %v3036
    %v3233 = vand.u32 %v3232, 4294901760
    %3234 = vmatpush.msra.mxu0 %v3233
    %v3235 = vsub.f32 %v3035, %v3035
    %v3236 = vand.u32 %v3235, 4294901760
    %3237 = vmatpush.msra.mxu0 %v3236
    %v3238 = vsub.f32 %v3034, %v3034
    %v3239 = vand.u32 %v3238, 4294901760
    %3240 = vmatpush.msra.mxu0 %v3239
    %v3241 = vsub.f32 %v3033, %v3033
    %v3242 = vand.u32 %v3241, 4294901760
    %3243 = vmatpush.msra.mxu0 %v3242
    %v3244 = vsub.f32 %v3032, %v3032
    %v3245 = vand.u32 %v3244, 4294901760
    %3246 = vmatpush.msra.mxu0 %v3245
    %v3247 = vsub.f32 %v3031, %v3031
    %v3248 = vand.u32 %v3247, 4294901760
    %3249 = vmatpush.msra.mxu0 %v3248
    %v3250 = vsub.f32 %v3030, %v3030
    %v3251 = vand.u32 %v3250, 4294901760
    %3252 = vmatpush.msra.mxu0 %v3251
    %v3253 = vsub.f32 %v3029, %v3029
    %v3254 = vand.u32 %v3253, 4294901760
    %3255 = vmatpush.msra.mxu0 %v3254
    %v3256 = vsub.f32 %v3028, %v3028
    %v3257 = vand.u32 %v3256, 4294901760
    %3258 = vmatpush.msra.mxu0 %v3257
    %v3259 = vsub.f32 %v3027, %v3027
    %v3260 = vand.u32 %v3259, 4294901760
    %3261 = vmatpush.msra.mxu0 %v3260
    %v3262 = vsub.f32 %v3026, %v3026
    %v3263 = vand.u32 %v3262, 4294901760
    %3264 = vmatpush.msra.mxu0 %v3263
    %v3265 = vsub.f32 %v3025, %v3025
    %v3266 = vand.u32 %v3265, 4294901760
    %3267 = vmatpush.msra.mxu0 %v3266
    %v3268 = vsub.f32 %v3024, %v3024
    %v3269 = vand.u32 %v3268, 4294901760
    %3270 = vmatpush.msra.mxu0 %v3269
    %v3271 = vsub.f32 %v3023, %v3023
    %v3272 = vand.u32 %v3271, 4294901760
    %3273 = vmatpush.msra.mxu0 %v3272
    %v3274 = vand.u32 %v2989, 4294901760
    %3275 = vmatmul.f32.gmra.mxu0 %v3274
    %v3276 = vpop.f32.mrf.mxu0
    %v3277 = vadd.f32 %v3224, %v3276
    %3278 = vdwg.mxu0
    %3279 = vmatpush.msra.mxu0 %v3038
    %3280 = vmatpush.msra.mxu0 %v3037
    %3281 = vmatpush.msra.mxu0 %v3036
    %3282 = vmatpush.msra.mxu0 %v3035
    %3283 = vmatpush.msra.mxu0 %v3034
    %3284 = vmatpush.msra.mxu0 %v3033
    %3285 = vmatpush.msra.mxu0 %v3032
    %3286 = vmatpush.msra.mxu0 %v3031
    %3287 = vmatpush.msra.mxu0 %v3030
    %3288 = vmatpush.msra.mxu0 %v3029
    %3289 = vmatpush.msra.mxu0 %v3028
    %3290 = vmatpush.msra.mxu0 %v3027
    %3291 = vmatpush.msra.mxu0 %v3026
    %3292 = vmatpush.msra.mxu0 %v3025
    %3293 = vmatpush.msra.mxu0 %v3024
    %3294 = vmatpush.msra.mxu0 %v3023
    %v3295 = vand.u32 %v2989, 4294901760
    %3296 = vmatmul.f32.gmra.mxu0 %v3295
    %v3297 = vpop.f32.mrf.mxu0
    %v3298 = vadd.f32 %v3277, %v3297
    %3299 = vdwg.mxu0
    %3300 = vmatpush.msra.mxu0 %v3054
    %3301 = vmatpush.msra.mxu0 %v3053
    %3302 = vmatpush.msra.mxu0 %v3052
    %3303 = vmatpush.msra.mxu0 %v3051
    %3304 = vmatpush.msra.mxu0 %v3050
    %3305 = vmatpush.msra.mxu0 %v3049
    %3306 = vmatpush.msra.mxu0 %v3048
    %3307 = vmatpush.msra.mxu0 %v3047
    %3308 = vmatpush.msra.mxu0 %v3046
    %3309 = vmatpush.msra.mxu0 %v3045
    %3310 = vmatpush.msra.mxu0 %v3044
    %3311 = vmatpush.msra.mxu0 %v3043
    %3312 = vmatpush.msra.mxu0 %v3042
    %3313 = vmatpush.msra.mxu0 %v3041
    %3314 = vmatpush.msra.mxu0 %v3040
    %3315 = vmatpush.msra.mxu0 %v3039
    %v3316 = vand.u32 %v2990, 4294901760
    %v3317 = vsub.f32 %v2990, %v3316
    %v3318 = vand.u32 %v3317, 4294901760
    %v3319 = vsub.f32 %v3317, %v3318
    %v3320 = vand.u32 %v3319, 4294901760
    %3321 = vmatmul.f32.gmra.mxu0 %v3320
    %v3322 = vpop.f32.mrf.mxu0
    %v3323 = vadd.f32 %v3298, %v3322
    %3324 = vdwg.mxu0
    %v3325 = vsub.f32 %v3054, %v3054
    %v3326 = vand.u32 %v3325, 4294901760
    %v3327 = vsub.f32 %v3325, %v3326
    %v3328 = vand.u32 %v3327, 4294901760
    %3329 = vmatpush.msra.mxu0 %v3328
    %v3330 = vsub.f32 %v3053, %v3053
    %v3331 = vand.u32 %v3330, 4294901760
    %v3332 = vsub.f32 %v3330, %v3331
    %v3333 = vand.u32 %v3332, 4294901760
    %3334 = vmatpush.msra.mxu0 %v3333
    %v3335 = vsub.f32 %v3052, %v3052
    %v3336 = vand.u32 %v3335, 4294901760
    %v3337 = vsub.f32 %v3335, %v3336
    %v3338 = vand.u32 %v3337, 4294901760
    %3339 = vmatpush.msra.mxu0 %v3338
    %v3340 = vsub.f32 %v3051, %v3051
    %v3341 = vand.u32 %v3340, 4294901760
    %v3342 = vsub.f32 %v3340, %v3341
    %v3343 = vand.u32 %v3342, 4294901760
    %3344 = vmatpush.msra.mxu0 %v3343
    %v3345 = vsub.f32 %v3050, %v3050
    %v3346 = vand.u32 %v3345, 4294901760
    %v3347 = vsub.f32 %v3345, %v3346
    %v3348 = vand.u32 %v3347, 4294901760
    %3349 = vmatpush.msra.mxu0 %v3348
    %v3350 = vsub.f32 %v3049, %v3049
    %v3351 = vand.u32 %v3350, 4294901760
    %v3352 = vsub.f32 %v3350, %v3351
    %v3353 = vand.u32 %v3352, 4294901760
    %3354 = vmatpush.msra.mxu0 %v3353
    %v3355 = vsub.f32 %v3048, %v3048
    %v3356 = vand.u32 %v3355, 4294901760
    %v3357 = vsub.f32 %v3355, %v3356
    %v3358 = vand.u32 %v3357, 4294901760
    %3359 = vmatpush.msra.mxu0 %v3358
    %v3360 = vsub.f32 %v3047, %v3047
    %v3361 = vand.u32 %v3360, 4294901760
    %v3362 = vsub.f32 %v3360, %v3361
    %v3363 = vand.u32 %v3362, 4294901760
    %3364 = vmatpush.msra.mxu0 %v3363
    %v3365 = vsub.f32 %v3046, %v3046
    %v3366 = vand.u32 %v3365, 4294901760
    %v3367 = vsub.f32 %v3365, %v3366
    %v3368 = vand.u32 %v3367, 4294901760
    %3369 = vmatpush.msra.mxu0 %v3368
    %v3370 = vsub.f32 %v3045, %v3045
    %v3371 = vand.u32 %v3370, 4294901760
    %v3372 = vsub.f32 %v3370, %v3371
    %v3373 = vand.u32 %v3372, 4294901760
    %3374 = vmatpush.msra.mxu0 %v3373
    %v3375 = vsub.f32 %v3044, %v3044
    %v3376 = vand.u32 %v3375, 4294901760
    %v3377 = vsub.f32 %v3375, %v3376
    %v3378 = vand.u32 %v3377, 4294901760
    %3379 = vmatpush.msra.mxu0 %v3378
    %v3380 = vsub.f32 %v3043, %v3043
    %v3381 = vand.u32 %v3380, 4294901760
    %v3382 = vsub.f32 %v3380, %v3381
    %v3383 = vand.u32 %v3382, 4294901760
    %3384 = vmatpush.msra.mxu0 %v3383
    %v3385 = vsub.f32 %v3042, %v3042
    %v3386 = vand.u32 %v3385, 4294901760
    %v3387 = vsub.f32 %v3385, %v3386
    %v3388 = vand.u32 %v3387, 4294901760
    %3389 = vmatpush.msra.mxu0 %v3388
    %v3390 = vsub.f32 %v3041, %v3041
    %v3391 = vand.u32 %v3390, 4294901760
    %v3392 = vsub.f32 %v3390, %v3391
    %v3393 = vand.u32 %v3392, 4294901760
    %3394 = vmatpush.msra.mxu0 %v3393
    %v3395 = vsub.f32 %v3040, %v3040
    %v3396 = vand.u32 %v3395, 4294901760
    %v3397 = vsub.f32 %v3395, %v3396
    %v3398 = vand.u32 %v3397, 4294901760
    %3399 = vmatpush.msra.mxu0 %v3398
    %v3400 = vsub.f32 %v3039, %v3039
    %v3401 = vand.u32 %v3400, 4294901760
    %v3402 = vsub.f32 %v3400, %v3401
    %v3403 = vand.u32 %v3402, 4294901760
    %3404 = vmatpush.msra.mxu0 %v3403
    %v3405 = vand.u32 %v2990, 4294901760
    %3406 = vmatmul.f32.gmra.mxu0 %v3405
    %v3407 = vpop.f32.mrf.mxu0
    %v3408 = vadd.f32 %v3323, %v3407
    %3409 = vdwg.mxu0
    %v3410 = vsub.f32 %v3054, %v3054
    %3411 = vmatpush.msra.mxu0 %v3410
    %v3412 = vsub.f32 %v3053, %v3053
    %3413 = vmatpush.msra.mxu0 %v3412
    %v3414 = vsub.f32 %v3052, %v3052
    %3415 = vmatpush.msra.mxu0 %v3414
    %v3416 = vsub.f32 %v3051, %v3051
    %3417 = vmatpush.msra.mxu0 %v3416
    %v3418 = vsub.f32 %v3050, %v3050
    %3419 = vmatpush.msra.mxu0 %v3418
    %v3420 = vsub.f32 %v3049, %v3049
    %3421 = vmatpush.msra.mxu0 %v3420
    %v3422 = vsub.f32 %v3048, %v3048
    %3423 = vmatpush.msra.mxu0 %v3422
    %v3424 = vsub.f32 %v3047, %v3047
    %3425 = vmatpush.msra.mxu0 %v3424
    %v3426 = vsub.f32 %v3046, %v3046
    %3427 = vmatpush.msra.mxu0 %v3426
    %v3428 = vsub.f32 %v3045, %v3045
    %3429 = vmatpush.msra.mxu0 %v3428
    %v3430 = vsub.f32 %v3044, %v3044
    %3431 = vmatpush.msra.mxu0 %v3430
    %v3432 = vsub.f32 %v3043, %v3043
    %3433 = vmatpush.msra.mxu0 %v3432
    %v3434 = vsub.f32 %v3042, %v3042
    %3435 = vmatpush.msra.mxu0 %v3434
    %v3436 = vsub.f32 %v3041, %v3041
    %3437 = vmatpush.msra.mxu0 %v3436
    %v3438 = vsub.f32 %v3040, %v3040
    %3439 = vmatpush.msra.mxu0 %v3438
    %v3440 = vsub.f32 %v3039, %v3039
    %3441 = vmatpush.msra.mxu0 %v3440
    %v3442 = vand.u32 %v2990, 4294901760
    %v3443 = vsub.f32 %v2990, %v3442
    %3444 = vmatmul.f32.gmra.mxu0 %v3443
    %v3445 = vpop.f32.mrf.mxu0
    %v3446 = vadd.f32 %v3408, %v3445
    %3447 = vdwg.mxu0
    %3448 = vmatpush.msra.mxu0 %v3054
    %3449 = vmatpush.msra.mxu0 %v3053
    %3450 = vmatpush.msra.mxu0 %v3052
    %3451 = vmatpush.msra.mxu0 %v3051
    %3452 = vmatpush.msra.mxu0 %v3050
    %3453 = vmatpush.msra.mxu0 %v3049
    %3454 = vmatpush.msra.mxu0 %v3048
    %3455 = vmatpush.msra.mxu0 %v3047
    %3456 = vmatpush.msra.mxu0 %v3046
    %3457 = vmatpush.msra.mxu0 %v3045
    %3458 = vmatpush.msra.mxu0 %v3044
    %3459 = vmatpush.msra.mxu0 %v3043
    %3460 = vmatpush.msra.mxu0 %v3042
    %3461 = vmatpush.msra.mxu0 %v3041
    %3462 = vmatpush.msra.mxu0 %v3040
    %3463 = vmatpush.msra.mxu0 %v3039
    %v3464 = vand.u32 %v2990, 4294901760
    %v3465 = vsub.f32 %v2990, %v3464
    %v3466 = vand.u32 %v3465, 4294901760
    %3467 = vmatmul.f32.gmra.mxu0 %v3466
    %v3468 = vpop.f32.mrf.mxu0
    %v3469 = vadd.f32 %v3446, %v3468
    %3470 = vdwg.mxu0
    %v3471 = vsub.f32 %v3054, %v3054
    %v3472 = vand.u32 %v3471, 4294901760
    %3473 = vmatpush.msra.mxu0 %v3472
    %v3474 = vsub.f32 %v3053, %v3053
    %v3475 = vand.u32 %v3474, 4294901760
    %3476 = vmatpush.msra.mxu0 %v3475
    %v3477 = vsub.f32 %v3052, %v3052
    %v3478 = vand.u32 %v3477, 4294901760
    %3479 = vmatpush.msra.mxu0 %v3478
    %v3480 = vsub.f32 %v3051, %v3051
    %v3481 = vand.u32 %v3480, 4294901760
    %3482 = vmatpush.msra.mxu0 %v3481
    %v3483 = vsub.f32 %v3050, %v3050
    %v3484 = vand.u32 %v3483, 4294901760
    %3485 = vmatpush.msra.mxu0 %v3484
    %v3486 = vsub.f32 %v3049, %v3049
    %v3487 = vand.u32 %v3486, 4294901760
    %3488 = vmatpush.msra.mxu0 %v3487
    %v3489 = vsub.f32 %v3048, %v3048
    %v3490 = vand.u32 %v3489, 4294901760
    %3491 = vmatpush.msra.mxu0 %v3490
    %v3492 = vsub.f32 %v3047, %v3047
    %v3493 = vand.u32 %v3492, 4294901760
    %3494 = vmatpush.msra.mxu0 %v3493
    %v3495 = vsub.f32 %v3046, %v3046
    %v3496 = vand.u32 %v3495, 4294901760
    %3497 = vmatpush.msra.mxu0 %v3496
    %v3498 = vsub.f32 %v3045, %v3045
    %v3499 = vand.u32 %v3498, 4294901760
    %3500 = vmatpush.msra.mxu0 %v3499
    %v3501 = vsub.f32 %v3044, %v3044
    %v3502 = vand.u32 %v3501, 4294901760
    %3503 = vmatpush.msra.mxu0 %v3502
    %v3504 = vsub.f32 %v3043, %v3043
    %v3505 = vand.u32 %v3504, 4294901760
    %3506 = vmatpush.msra.mxu0 %v3505
    %v3507 = vsub.f32 %v3042, %v3042
    %v3508 = vand.u32 %v3507, 4294901760
    %3509 = vmatpush.msra.mxu0 %v3508
    %v3510 = vsub.f32 %v3041, %v3041
    %v3511 = vand.u32 %v3510, 4294901760
    %3512 = vmatpush.msra.mxu0 %v3511
    %v3513 = vsub.f32 %v3040, %v3040
    %v3514 = vand.u32 %v3513, 4294901760
    %3515 = vmatpush.msra.mxu0 %v3514
    %v3516 = vsub.f32 %v3039, %v3039
    %v3517 = vand.u32 %v3516, 4294901760
    %3518 = vmatpush.msra.mxu0 %v3517
    %v3519 = vand.u32 %v2990, 4294901760
    %3520 = vmatmul.f32.gmra.mxu0 %v3519
    %v3521 = vpop.f32.mrf.mxu0
    %v3522 = vadd.f32 %v3469, %v3521
    %3523 = vdwg.mxu0
    %3524 = vmatpush.msra.mxu0 %v3054
    %3525 = vmatpush.msra.mxu0 %v3053
    %3526 = vmatpush.msra.mxu0 %v3052
    %3527 = vmatpush.msra.mxu0 %v3051
    %3528 = vmatpush.msra.mxu0 %v3050
    %3529 = vmatpush.msra.mxu0 %v3049
    %3530 = vmatpush.msra.mxu0 %v3048
    %3531 = vmatpush.msra.mxu0 %v3047
    %3532 = vmatpush.msra.mxu0 %v3046
    %3533 = vmatpush.msra.mxu0 %v3045
    %3534 = vmatpush.msra.mxu0 %v3044
    %3535 = vmatpush.msra.mxu0 %v3043
    %3536 = vmatpush.msra.mxu0 %v3042
    %3537 = vmatpush.msra.mxu0 %v3041
    %3538 = vmatpush.msra.mxu0 %v3040
    %3539 = vmatpush.msra.mxu0 %v3039
    %v3540 = vand.u32 %v2990, 4294901760
    %3541 = vmatmul.f32.gmra.mxu0 %v3540
    %v3542 = vpop.f32.mrf.mxu0
    %v3543 = vadd.f32 %v3522, %v3542
    %3544 = vdwg.mxu0
    %v3545 = vld [vmem:[%s4] sm:$0x1]
    %v3547 = vperm.slane %v3545, 0
    %v3549 = vmul.f32 %v3543, %v3547
    %3550 = vadd.xlane.f32.xlu0 %v3549
    %v3551 = vpop.xlane.xlu0 %3550
    %v3552 = vmul.f32 %v3551, 0.95
    %v3553 = vadd.f32 %v3551, 1e-06
    %v3554 = vrcp.pop %v3553
    %v3555 = vmul.f32 %v3552, %v3554
    %v3556 = vmul.f32 %v3549, %v3555
    %v3557 = vld [vmem:[%s6] sm:$0x1]
    %v3559 = vperm.slane %v3557, 0
    %v3561 = vmul.f32 %v3559, %v3551
    %v3562 = vadd.f32 %v3556, %v3561
    %v3563 = vld [vmem:[#allocation10] sm:$0xff]
    %v3564 = vld [vmem:[#allocation10 + $0x8] sm:$0xff]
    %v3565 = vld [vmem:[#allocation10 + $0x10] sm:$0xff]
    %v3566 = vld [vmem:[#allocation10 + $0x18] sm:$0xff]
    %v3567 = vld [vmem:[#allocation10 + $0x20] sm:$0xff]
    %v3568 = vld [vmem:[#allocation10 + $0x28] sm:$0xff]
    %v3569 = vld [vmem:[#allocation10 + $0x30] sm:$0xff]
    %v3570 = vld [vmem:[#allocation10 + $0x38] sm:$0xff]
    %v3571 = vld [vmem:[#allocation10 + $0x40] sm:$0xff]
    %v3572 = vld [vmem:[#allocation10 + $0x48] sm:$0xff]
    %v3573 = vld [vmem:[#allocation10 + $0x50] sm:$0xff]
    %v3574 = vld [vmem:[#allocation10 + $0x58] sm:$0xff]
    %v3575 = vld [vmem:[#allocation10 + $0x60] sm:$0xff]
    %v3576 = vld [vmem:[#allocation10 + $0x68] sm:$0xff]
    %v3577 = vld [vmem:[#allocation10 + $0x70] sm:$0xff]
    %v3578 = vld [vmem:[#allocation10 + $0x78] sm:$0xff]
    %v3579 = vunpack.c.l.bf16 %v3563
    %v3580 = vunpack.c.h.bf16 %v3563
    %v3581 = vunpack.c.l.bf16 %v3564
    %v3582 = vunpack.c.h.bf16 %v3564
    %v3583 = vunpack.c.l.bf16 %v3565
    %v3584 = vunpack.c.h.bf16 %v3565
    %v3585 = vunpack.c.l.bf16 %v3566
    %v3586 = vunpack.c.h.bf16 %v3566
    %v3587 = vunpack.c.l.bf16 %v3567
    %v3588 = vunpack.c.h.bf16 %v3567
    %v3589 = vunpack.c.l.bf16 %v3568
    %v3590 = vunpack.c.h.bf16 %v3568
    %v3591 = vunpack.c.l.bf16 %v3569
    %v3592 = vunpack.c.h.bf16 %v3569
    %v3593 = vunpack.c.l.bf16 %v3570
    %v3594 = vunpack.c.h.bf16 %v3570
    %v3595 = vunpack.c.l.bf16 %v3571
    %v3596 = vunpack.c.h.bf16 %v3571
    %v3597 = vunpack.c.l.bf16 %v3572
    %v3598 = vunpack.c.h.bf16 %v3572
    %v3599 = vunpack.c.l.bf16 %v3573
    %v3600 = vunpack.c.h.bf16 %v3573
    %v3601 = vunpack.c.l.bf16 %v3574
    %v3602 = vunpack.c.h.bf16 %v3574
    %v3603 = vunpack.c.l.bf16 %v3575
    %v3604 = vunpack.c.h.bf16 %v3575
    %v3605 = vunpack.c.l.bf16 %v3576
    %v3606 = vunpack.c.h.bf16 %v3576
    %v3607 = vunpack.c.l.bf16 %v3577
    %v3608 = vunpack.c.h.bf16 %v3577
    %v3609 = vunpack.c.l.bf16 %v3578
    %v3610 = vunpack.c.h.bf16 %v3578
    %3611 = vmatpush.msra.mxu0 %v3609
    %3612 = vmatpush.msra.mxu0 %v3607
    %3613 = vmatpush.msra.mxu0 %v3605
    %3614 = vmatpush.msra.mxu0 %v3603
    %3615 = vmatpush.msra.mxu0 %v3601
    %3616 = vmatpush.msra.mxu0 %v3599
    %3617 = vmatpush.msra.mxu0 %v3597
    %3618 = vmatpush.msra.mxu0 %v3595
    %3619 = vmatpush.msra.mxu0 %v3593
    %3620 = vmatpush.msra.mxu0 %v3591
    %3621 = vmatpush.msra.mxu0 %v3589
    %3622 = vmatpush.msra.mxu0 %v3587
    %3623 = vmatpush.msra.mxu0 %v3585
    %3624 = vmatpush.msra.mxu0 %v3583
    %3625 = vmatpush.msra.mxu0 %v3581
    %3626 = vmatpush.msra.mxu0 %v3579
    %v3627 = vand.u32 %v3562, 4294901760
    %v3628 = vsub.f32 %v3562, %v3627
    %v3629 = vand.u32 %v3628, 4294901760
    %v3630 = vsub.f32 %v3628, %v3629
    %v3631 = vand.u32 %v3630, 4294901760
    %3632 = vmatmul.f32.gmra.mxu0 %v3631
    %v3633 = vpop.f32.mrf.mxu0
    %v3634 = vadd.f32 0.0, %v3633
    %3635 = vdwg.mxu0
    %v3636 = vsub.f32 %v3609, %v3609
    %v3637 = vand.u32 %v3636, 4294901760
    %v3638 = vsub.f32 %v3636, %v3637
    %v3639 = vand.u32 %v3638, 4294901760
    %3640 = vmatpush.msra.mxu0 %v3639
    %v3641 = vsub.f32 %v3607, %v3607
    %v3642 = vand.u32 %v3641, 4294901760
    %v3643 = vsub.f32 %v3641, %v3642
    %v3644 = vand.u32 %v3643, 4294901760
    %3645 = vmatpush.msra.mxu0 %v3644
    %v3646 = vsub.f32 %v3605, %v3605
    %v3647 = vand.u32 %v3646, 4294901760
    %v3648 = vsub.f32 %v3646, %v3647
    %v3649 = vand.u32 %v3648, 4294901760
    %3650 = vmatpush.msra.mxu0 %v3649
    %v3651 = vsub.f32 %v3603, %v3603
    %v3652 = vand.u32 %v3651, 4294901760
    %v3653 = vsub.f32 %v3651, %v3652
    %v3654 = vand.u32 %v3653, 4294901760
    %3655 = vmatpush.msra.mxu0 %v3654
    %v3656 = vsub.f32 %v3601, %v3601
    %v3657 = vand.u32 %v3656, 4294901760
    %v3658 = vsub.f32 %v3656, %v3657
    %v3659 = vand.u32 %v3658, 4294901760
    %3660 = vmatpush.msra.mxu0 %v3659
    %v3661 = vsub.f32 %v3599, %v3599
    %v3662 = vand.u32 %v3661, 4294901760
    %v3663 = vsub.f32 %v3661, %v3662
    %v3664 = vand.u32 %v3663, 4294901760
    %3665 = vmatpush.msra.mxu0 %v3664
    %v3666 = vsub.f32 %v3597, %v3597
    %v3667 = vand.u32 %v3666, 4294901760
    %v3668 = vsub.f32 %v3666, %v3667
    %v3669 = vand.u32 %v3668, 4294901760
    %3670 = vmatpush.msra.mxu0 %v3669
    %v3671 = vsub.f32 %v3595, %v3595
    %v3672 = vand.u32 %v3671, 4294901760
    %v3673 = vsub.f32 %v3671, %v3672
    %v3674 = vand.u32 %v3673, 4294901760
    %3675 = vmatpush.msra.mxu0 %v3674
    %v3676 = vsub.f32 %v3593, %v3593
    %v3677 = vand.u32 %v3676, 4294901760
    %v3678 = vsub.f32 %v3676, %v3677
    %v3679 = vand.u32 %v3678, 4294901760
    %3680 = vmatpush.msra.mxu0 %v3679
    %v3681 = vsub.f32 %v3591, %v3591
    %v3682 = vand.u32 %v3681, 4294901760
    %v3683 = vsub.f32 %v3681, %v3682
    %v3684 = vand.u32 %v3683, 4294901760
    %3685 = vmatpush.msra.mxu0 %v3684
    %v3686 = vsub.f32 %v3589, %v3589
    %v3687 = vand.u32 %v3686, 4294901760
    %v3688 = vsub.f32 %v3686, %v3687
    %v3689 = vand.u32 %v3688, 4294901760
    %3690 = vmatpush.msra.mxu0 %v3689
    %v3691 = vsub.f32 %v3587, %v3587
    %v3692 = vand.u32 %v3691, 4294901760
    %v3693 = vsub.f32 %v3691, %v3692
    %v3694 = vand.u32 %v3693, 4294901760
    %3695 = vmatpush.msra.mxu0 %v3694
    %v3696 = vsub.f32 %v3585, %v3585
    %v3697 = vand.u32 %v3696, 4294901760
    %v3698 = vsub.f32 %v3696, %v3697
    %v3699 = vand.u32 %v3698, 4294901760
    %3700 = vmatpush.msra.mxu0 %v3699
    %v3701 = vsub.f32 %v3583, %v3583
    %v3702 = vand.u32 %v3701, 4294901760
    %v3703 = vsub.f32 %v3701, %v3702
    %v3704 = vand.u32 %v3703, 4294901760
    %3705 = vmatpush.msra.mxu0 %v3704
    %v3706 = vsub.f32 %v3581, %v3581
    %v3707 = vand.u32 %v3706, 4294901760
    %v3708 = vsub.f32 %v3706, %v3707
    %v3709 = vand.u32 %v3708, 4294901760
    %3710 = vmatpush.msra.mxu0 %v3709
    %v3711 = vsub.f32 %v3579, %v3579
    %v3712 = vand.u32 %v3711, 4294901760
    %v3713 = vsub.f32 %v3711, %v3712
    %v3714 = vand.u32 %v3713, 4294901760
    %3715 = vmatpush.msra.mxu0 %v3714
    %v3716 = vand.u32 %v3562, 4294901760
    %3717 = vmatmul.f32.gmra.mxu0 %v3716
    %v3718 = vpop.f32.mrf.mxu0
    %v3719 = vadd.f32 %v3634, %v3718
    %3720 = vdwg.mxu0
    %v3721 = vsub.f32 %v3609, %v3609
    %3722 = vmatpush.msra.mxu0 %v3721
    %v3723 = vsub.f32 %v3607, %v3607
    %3724 = vmatpush.msra.mxu0 %v3723
    %v3725 = vsub.f32 %v3605, %v3605
    %3726 = vmatpush.msra.mxu0 %v3725
    %v3727 = vsub.f32 %v3603, %v3603
    %3728 = vmatpush.msra.mxu0 %v3727
    %v3729 = vsub.f32 %v3601, %v3601
    %3730 = vmatpush.msra.mxu0 %v3729
    %v3731 = vsub.f32 %v3599, %v3599
    %3732 = vmatpush.msra.mxu0 %v3731
    %v3733 = vsub.f32 %v3597, %v3597
    %3734 = vmatpush.msra.mxu0 %v3733
    %v3735 = vsub.f32 %v3595, %v3595
    %3736 = vmatpush.msra.mxu0 %v3735
    %v3737 = vsub.f32 %v3593, %v3593
    %3738 = vmatpush.msra.mxu0 %v3737
    %v3739 = vsub.f32 %v3591, %v3591
    %3740 = vmatpush.msra.mxu0 %v3739
    %v3741 = vsub.f32 %v3589, %v3589
    %3742 = vmatpush.msra.mxu0 %v3741
    %v3743 = vsub.f32 %v3587, %v3587
    %3744 = vmatpush.msra.mxu0 %v3743
    %v3745 = vsub.f32 %v3585, %v3585
    %3746 = vmatpush.msra.mxu0 %v3745
    %v3747 = vsub.f32 %v3583, %v3583
    %3748 = vmatpush.msra.mxu0 %v3747
    %v3749 = vsub.f32 %v3581, %v3581
    %3750 = vmatpush.msra.mxu0 %v3749
    %v3751 = vsub.f32 %v3579, %v3579
    %3752 = vmatpush.msra.mxu0 %v3751
    %v3753 = vand.u32 %v3562, 4294901760
    %v3754 = vsub.f32 %v3562, %v3753
    %3755 = vmatmul.f32.gmra.mxu0 %v3754
    %v3756 = vpop.f32.mrf.mxu0
    %v3757 = vadd.f32 %v3719, %v3756
    %3758 = vdwg.mxu0
    %3759 = vmatpush.msra.mxu0 %v3609
    %3760 = vmatpush.msra.mxu0 %v3607
    %3761 = vmatpush.msra.mxu0 %v3605
    %3762 = vmatpush.msra.mxu0 %v3603
    %3763 = vmatpush.msra.mxu0 %v3601
    %3764 = vmatpush.msra.mxu0 %v3599
    %3765 = vmatpush.msra.mxu0 %v3597
    %3766 = vmatpush.msra.mxu0 %v3595
    %3767 = vmatpush.msra.mxu0 %v3593
    %3768 = vmatpush.msra.mxu0 %v3591
    %3769 = vmatpush.msra.mxu0 %v3589
    %3770 = vmatpush.msra.mxu0 %v3587
    %3771 = vmatpush.msra.mxu0 %v3585
    %3772 = vmatpush.msra.mxu0 %v3583
    %3773 = vmatpush.msra.mxu0 %v3581
    %3774 = vmatpush.msra.mxu0 %v3579
    %v3775 = vand.u32 %v3562, 4294901760
    %v3776 = vsub.f32 %v3562, %v3775
    %v3777 = vand.u32 %v3776, 4294901760
    %3778 = vmatmul.f32.gmra.mxu0 %v3777
    %v3779 = vpop.f32.mrf.mxu0
    %v3780 = vadd.f32 %v3757, %v3779
    %3781 = vdwg.mxu0
    %v3782 = vsub.f32 %v3609, %v3609
    %v3783 = vand.u32 %v3782, 4294901760
    %3784 = vmatpush.msra.mxu0 %v3783
    %v3785 = vsub.f32 %v3607, %v3607
    %v3786 = vand.u32 %v3785, 4294901760
    %3787 = vmatpush.msra.mxu0 %v3786
    %v3788 = vsub.f32 %v3605, %v3605
    %v3789 = vand.u32 %v3788, 4294901760
    %3790 = vmatpush.msra.mxu0 %v3789
    %v3791 = vsub.f32 %v3603, %v3603
    %v3792 = vand.u32 %v3791, 4294901760
    %3793 = vmatpush.msra.mxu0 %v3792
    %v3794 = vsub.f32 %v3601, %v3601
    %v3795 = vand.u32 %v3794, 4294901760
    %3796 = vmatpush.msra.mxu0 %v3795
    %v3797 = vsub.f32 %v3599, %v3599
    %v3798 = vand.u32 %v3797, 4294901760
    %3799 = vmatpush.msra.mxu0 %v3798
    %v3800 = vsub.f32 %v3597, %v3597
    %v3801 = vand.u32 %v3800, 4294901760
    %3802 = vmatpush.msra.mxu0 %v3801
    %v3803 = vsub.f32 %v3595, %v3595
    %v3804 = vand.u32 %v3803, 4294901760
    %3805 = vmatpush.msra.mxu0 %v3804
    %v3806 = vsub.f32 %v3593, %v3593
    %v3807 = vand.u32 %v3806, 4294901760
    %3808 = vmatpush.msra.mxu0 %v3807
    %v3809 = vsub.f32 %v3591, %v3591
    %v3810 = vand.u32 %v3809, 4294901760
    %3811 = vmatpush.msra.mxu0 %v3810
    %v3812 = vsub.f32 %v3589, %v3589
    %v3813 = vand.u32 %v3812, 4294901760
    %3814 = vmatpush.msra.mxu0 %v3813
    %v3815 = vsub.f32 %v3587, %v3587
    %v3816 = vand.u32 %v3815, 4294901760
    %3817 = vmatpush.msra.mxu0 %v3816
    %v3818 = vsub.f32 %v3585, %v3585
    %v3819 = vand.u32 %v3818, 4294901760
    %3820 = vmatpush.msra.mxu0 %v3819
    %v3821 = vsub.f32 %v3583, %v3583
    %v3822 = vand.u32 %v3821, 4294901760
    %3823 = vmatpush.msra.mxu0 %v3822
    %v3824 = vsub.f32 %v3581, %v3581
    %v3825 = vand.u32 %v3824, 4294901760
    %3826 = vmatpush.msra.mxu0 %v3825
    %v3827 = vsub.f32 %v3579, %v3579
    %v3828 = vand.u32 %v3827, 4294901760
    %3829 = vmatpush.msra.mxu0 %v3828
    %v3830 = vand.u32 %v3562, 4294901760
    %3831 = vmatmul.f32.gmra.mxu0 %v3830
    %v3832 = vpop.f32.mrf.mxu0
    %v3833 = vadd.f32 %v3780, %v3832
    %3834 = vdwg.mxu0
    %3835 = vmatpush.msra.mxu0 %v3609
    %3836 = vmatpush.msra.mxu0 %v3607
    %3837 = vmatpush.msra.mxu0 %v3605
    %3838 = vmatpush.msra.mxu0 %v3603
    %3839 = vmatpush.msra.mxu0 %v3601
    %3840 = vmatpush.msra.mxu0 %v3599
    %3841 = vmatpush.msra.mxu0 %v3597
    %3842 = vmatpush.msra.mxu0 %v3595
    %3843 = vmatpush.msra.mxu0 %v3593
    %3844 = vmatpush.msra.mxu0 %v3591
    %3845 = vmatpush.msra.mxu0 %v3589
    %3846 = vmatpush.msra.mxu0 %v3587
    %3847 = vmatpush.msra.mxu0 %v3585
    %3848 = vmatpush.msra.mxu0 %v3583
    %3849 = vmatpush.msra.mxu0 %v3581
    %3850 = vmatpush.msra.mxu0 %v3579
    %v3851 = vand.u32 %v3562, 4294901760
    %3852 = vmatmul.f32.gmra.mxu0 %v3851
    %v3853 = vpop.f32.mrf.mxu0
    %v3854 = vadd.f32 %v3833, %v3853
    %3855 = vdwg.mxu0
    %3856 = vmatpush.msra.mxu0 %v3610
    %3857 = vmatpush.msra.mxu0 %v3608
    %3858 = vmatpush.msra.mxu0 %v3606
    %3859 = vmatpush.msra.mxu0 %v3604
    %3860 = vmatpush.msra.mxu0 %v3602
    %3861 = vmatpush.msra.mxu0 %v3600
    %3862 = vmatpush.msra.mxu0 %v3598
    %3863 = vmatpush.msra.mxu0 %v3596
    %3864 = vmatpush.msra.mxu0 %v3594
    %3865 = vmatpush.msra.mxu0 %v3592
    %3866 = vmatpush.msra.mxu0 %v3590
    %3867 = vmatpush.msra.mxu0 %v3588
    %3868 = vmatpush.msra.mxu0 %v3586
    %3869 = vmatpush.msra.mxu0 %v3584
    %3870 = vmatpush.msra.mxu0 %v3582
    %3871 = vmatpush.msra.mxu0 %v3580
    %v3872 = vand.u32 %v3562, 4294901760
    %v3873 = vsub.f32 %v3562, %v3872
    %v3874 = vand.u32 %v3873, 4294901760
    %v3875 = vsub.f32 %v3873, %v3874
    %v3876 = vand.u32 %v3875, 4294901760
    %3877 = vmatmul.f32.gmra.mxu0 %v3876
    %v3878 = vpop.f32.mrf.mxu0
    %v3879 = vadd.f32 0.0, %v3878
    %3880 = vdwg.mxu0
    %v3881 = vsub.f32 %v3610, %v3610
    %v3882 = vand.u32 %v3881, 4294901760
    %v3883 = vsub.f32 %v3881, %v3882
    %v3884 = vand.u32 %v3883, 4294901760
    %3885 = vmatpush.msra.mxu0 %v3884
    %v3886 = vsub.f32 %v3608, %v3608
    %v3887 = vand.u32 %v3886, 4294901760
    %v3888 = vsub.f32 %v3886, %v3887
    %v3889 = vand.u32 %v3888, 4294901760
    %3890 = vmatpush.msra.mxu0 %v3889
    %v3891 = vsub.f32 %v3606, %v3606
    %v3892 = vand.u32 %v3891, 4294901760
    %v3893 = vsub.f32 %v3891, %v3892
    %v3894 = vand.u32 %v3893, 4294901760
    %3895 = vmatpush.msra.mxu0 %v3894
    %v3896 = vsub.f32 %v3604, %v3604
    %v3897 = vand.u32 %v3896, 4294901760
    %v3898 = vsub.f32 %v3896, %v3897
    %v3899 = vand.u32 %v3898, 4294901760
    %3900 = vmatpush.msra.mxu0 %v3899
    %v3901 = vsub.f32 %v3602, %v3602
    %v3902 = vand.u32 %v3901, 4294901760
    %v3903 = vsub.f32 %v3901, %v3902
    %v3904 = vand.u32 %v3903, 4294901760
    %3905 = vmatpush.msra.mxu0 %v3904
    %v3906 = vsub.f32 %v3600, %v3600
    %v3907 = vand.u32 %v3906, 4294901760
    %v3908 = vsub.f32 %v3906, %v3907
    %v3909 = vand.u32 %v3908, 4294901760
    %3910 = vmatpush.msra.mxu0 %v3909
    %v3911 = vsub.f32 %v3598, %v3598
    %v3912 = vand.u32 %v3911, 4294901760
    %v3913 = vsub.f32 %v3911, %v3912
    %v3914 = vand.u32 %v3913, 4294901760
    %3915 = vmatpush.msra.mxu0 %v3914
    %v3916 = vsub.f32 %v3596, %v3596
    %v3917 = vand.u32 %v3916, 4294901760
    %v3918 = vsub.f32 %v3916, %v3917
    %v3919 = vand.u32 %v3918, 4294901760
    %3920 = vmatpush.msra.mxu0 %v3919
    %v3921 = vsub.f32 %v3594, %v3594
    %v3922 = vand.u32 %v3921, 4294901760
    %v3923 = vsub.f32 %v3921, %v3922
    %v3924 = vand.u32 %v3923, 4294901760
    %3925 = vmatpush.msra.mxu0 %v3924
    %v3926 = vsub.f32 %v3592, %v3592
    %v3927 = vand.u32 %v3926, 4294901760
    %v3928 = vsub.f32 %v3926, %v3927
    %v3929 = vand.u32 %v3928, 4294901760
    %3930 = vmatpush.msra.mxu0 %v3929
    %v3931 = vsub.f32 %v3590, %v3590
    %v3932 = vand.u32 %v3931, 4294901760
    %v3933 = vsub.f32 %v3931, %v3932
    %v3934 = vand.u32 %v3933, 4294901760
    %3935 = vmatpush.msra.mxu0 %v3934
    %v3936 = vsub.f32 %v3588, %v3588
    %v3937 = vand.u32 %v3936, 4294901760
    %v3938 = vsub.f32 %v3936, %v3937
    %v3939 = vand.u32 %v3938, 4294901760
    %3940 = vmatpush.msra.mxu0 %v3939
    %v3941 = vsub.f32 %v3586, %v3586
    %v3942 = vand.u32 %v3941, 4294901760
    %v3943 = vsub.f32 %v3941, %v3942
    %v3944 = vand.u32 %v3943, 4294901760
    %3945 = vmatpush.msra.mxu0 %v3944
    %v3946 = vsub.f32 %v3584, %v3584
    %v3947 = vand.u32 %v3946, 4294901760
    %v3948 = vsub.f32 %v3946, %v3947
    %v3949 = vand.u32 %v3948, 4294901760
    %3950 = vmatpush.msra.mxu0 %v3949
    %v3951 = vsub.f32 %v3582, %v3582
    %v3952 = vand.u32 %v3951, 4294901760
    %v3953 = vsub.f32 %v3951, %v3952
    %v3954 = vand.u32 %v3953, 4294901760
    %3955 = vmatpush.msra.mxu0 %v3954
    %v3956 = vsub.f32 %v3580, %v3580
    %v3957 = vand.u32 %v3956, 4294901760
    %v3958 = vsub.f32 %v3956, %v3957
    %v3959 = vand.u32 %v3958, 4294901760
    %3960 = vmatpush.msra.mxu0 %v3959
    %v3961 = vand.u32 %v3562, 4294901760
    %3962 = vmatmul.f32.gmra.mxu0 %v3961
    %v3963 = vpop.f32.mrf.mxu0
    %v3964 = vadd.f32 %v3879, %v3963
    %3965 = vdwg.mxu0
    %v3966 = vsub.f32 %v3610, %v3610
    %3967 = vmatpush.msra.mxu0 %v3966
    %v3968 = vsub.f32 %v3608, %v3608
    %3969 = vmatpush.msra.mxu0 %v3968
    %v3970 = vsub.f32 %v3606, %v3606
    %3971 = vmatpush.msra.mxu0 %v3970
    %v3972 = vsub.f32 %v3604, %v3604
    %3973 = vmatpush.msra.mxu0 %v3972
    %v3974 = vsub.f32 %v3602, %v3602
    %3975 = vmatpush.msra.mxu0 %v3974
    %v3976 = vsub.f32 %v3600, %v3600
    %3977 = vmatpush.msra.mxu0 %v3976
    %v3978 = vsub.f32 %v3598, %v3598
    %3979 = vmatpush.msra.mxu0 %v3978
    %v3980 = vsub.f32 %v3596, %v3596
    %3981 = vmatpush.msra.mxu0 %v3980
    %v3982 = vsub.f32 %v3594, %v3594
    %3983 = vmatpush.msra.mxu0 %v3982
    %v3984 = vsub.f32 %v3592, %v3592
    %3985 = vmatpush.msra.mxu0 %v3984
    %v3986 = vsub.f32 %v3590, %v3590
    %3987 = vmatpush.msra.mxu0 %v3986
    %v3988 = vsub.f32 %v3588, %v3588
    %3989 = vmatpush.msra.mxu0 %v3988
    %v3990 = vsub.f32 %v3586, %v3586
    %3991 = vmatpush.msra.mxu0 %v3990
    %v3992 = vsub.f32 %v3584, %v3584
    %3993 = vmatpush.msra.mxu0 %v3992
    %v3994 = vsub.f32 %v3582, %v3582
    %3995 = vmatpush.msra.mxu0 %v3994
    %v3996 = vsub.f32 %v3580, %v3580
    %3997 = vmatpush.msra.mxu0 %v3996
    %v3998 = vand.u32 %v3562, 4294901760
    %v3999 = vsub.f32 %v3562, %v3998
    %4000 = vmatmul.f32.gmra.mxu0 %v3999
    %v4001 = vpop.f32.mrf.mxu0
    %v4002 = vadd.f32 %v3964, %v4001
    %4003 = vdwg.mxu0
    %4004 = vmatpush.msra.mxu0 %v3610
    %4005 = vmatpush.msra.mxu0 %v3608
    %4006 = vmatpush.msra.mxu0 %v3606
    %4007 = vmatpush.msra.mxu0 %v3604
    %4008 = vmatpush.msra.mxu0 %v3602
    %4009 = vmatpush.msra.mxu0 %v3600
    %4010 = vmatpush.msra.mxu0 %v3598
    %4011 = vmatpush.msra.mxu0 %v3596
    %4012 = vmatpush.msra.mxu0 %v3594
    %4013 = vmatpush.msra.mxu0 %v3592
    %4014 = vmatpush.msra.mxu0 %v3590
    %4015 = vmatpush.msra.mxu0 %v3588
    %4016 = vmatpush.msra.mxu0 %v3586
    %4017 = vmatpush.msra.mxu0 %v3584
    %4018 = vmatpush.msra.mxu0 %v3582
    %4019 = vmatpush.msra.mxu0 %v3580
    %v4020 = vand.u32 %v3562, 4294901760
    %v4021 = vsub.f32 %v3562, %v4020
    %v4022 = vand.u32 %v4021, 4294901760
    %4023 = vmatmul.f32.gmra.mxu0 %v4022
    %v4024 = vpop.f32.mrf.mxu0
    %v4025 = vadd.f32 %v4002, %v4024
    %4026 = vdwg.mxu0
    %v4027 = vsub.f32 %v3610, %v3610
    %v4028 = vand.u32 %v4027, 4294901760
    %4029 = vmatpush.msra.mxu0 %v4028
    %v4030 = vsub.f32 %v3608, %v3608
    %v4031 = vand.u32 %v4030, 4294901760
    %4032 = vmatpush.msra.mxu0 %v4031
    %v4033 = vsub.f32 %v3606, %v3606
    %v4034 = vand.u32 %v4033, 4294901760
    %4035 = vmatpush.msra.mxu0 %v4034
    %v4036 = vsub.f32 %v3604, %v3604
    %v4037 = vand.u32 %v4036, 4294901760
    %4038 = vmatpush.msra.mxu0 %v4037
    %v4039 = vsub.f32 %v3602, %v3602
    %v4040 = vand.u32 %v4039, 4294901760
    %4041 = vmatpush.msra.mxu0 %v4040
    %v4042 = vsub.f32 %v3600, %v3600
    %v4043 = vand.u32 %v4042, 4294901760
    %4044 = vmatpush.msra.mxu0 %v4043
    %v4045 = vsub.f32 %v3598, %v3598
    %v4046 = vand.u32 %v4045, 4294901760
    %4047 = vmatpush.msra.mxu0 %v4046
    %v4048 = vsub.f32 %v3596, %v3596
    %v4049 = vand.u32 %v4048, 4294901760
    %4050 = vmatpush.msra.mxu0 %v4049
    %v4051 = vsub.f32 %v3594, %v3594
    %v4052 = vand.u32 %v4051, 4294901760
    %4053 = vmatpush.msra.mxu0 %v4052
    %v4054 = vsub.f32 %v3592, %v3592
    %v4055 = vand.u32 %v4054, 4294901760
    %4056 = vmatpush.msra.mxu0 %v4055
    %v4057 = vsub.f32 %v3590, %v3590
    %v4058 = vand.u32 %v4057, 4294901760
    %4059 = vmatpush.msra.mxu0 %v4058
    %v4060 = vsub.f32 %v3588, %v3588
    %v4061 = vand.u32 %v4060, 4294901760
    %4062 = vmatpush.msra.mxu0 %v4061
    %v4063 = vsub.f32 %v3586, %v3586
    %v4064 = vand.u32 %v4063, 4294901760
    %4065 = vmatpush.msra.mxu0 %v4064
    %v4066 = vsub.f32 %v3584, %v3584
    %v4067 = vand.u32 %v4066, 4294901760
    %4068 = vmatpush.msra.mxu0 %v4067
    %v4069 = vsub.f32 %v3582, %v3582
    %v4070 = vand.u32 %v4069, 4294901760
    %4071 = vmatpush.msra.mxu0 %v4070
    %v4072 = vsub.f32 %v3580, %v3580
    %v4073 = vand.u32 %v4072, 4294901760
    %4074 = vmatpush.msra.mxu0 %v4073
    %v4075 = vand.u32 %v3562, 4294901760
    %4076 = vmatmul.f32.gmra.mxu0 %v4075
    %v4077 = vpop.f32.mrf.mxu0
    %v4078 = vadd.f32 %v4025, %v4077
    %4079 = vdwg.mxu0
    %4080 = vmatpush.msra.mxu0 %v3610
    %4081 = vmatpush.msra.mxu0 %v3608
    %4082 = vmatpush.msra.mxu0 %v3606
    %4083 = vmatpush.msra.mxu0 %v3604
    %4084 = vmatpush.msra.mxu0 %v3602
    %4085 = vmatpush.msra.mxu0 %v3600
    %4086 = vmatpush.msra.mxu0 %v3598
    %4087 = vmatpush.msra.mxu0 %v3596
    %4088 = vmatpush.msra.mxu0 %v3594
    %4089 = vmatpush.msra.mxu0 %v3592
    %4090 = vmatpush.msra.mxu0 %v3590
    %4091 = vmatpush.msra.mxu0 %v3588
    %4092 = vmatpush.msra.mxu0 %v3586
    %4093 = vmatpush.msra.mxu0 %v3584
    %4094 = vmatpush.msra.mxu0 %v3582
    %4095 = vmatpush.msra.mxu0 %v3580
    %v4096 = vand.u32 %v3562, 4294901760
    %4097 = vmatmul.f32.gmra.mxu0 %v4096
    %v4098 = vpop.f32.mrf.mxu0
    %v4099 = vadd.f32 %v4078, %v4098
    %4100 = vdwg.mxu0
    %v4101 = vmul.f32 %v3854, %v2978
    %v4102 = vmul.f32 %v4099, %v2988
    %vm4103 = vcmp.eq.f32.partialorder %v2965, 0.0
    %vm4104 = vcmp.eq.f32.partialorder %v2966, 0.0
    %v4105 = vmul.f32 %v913, %v4101
    %v4106 = vmul.f32 %v1595, %v4102
    %v4107 = vsel %vm4103, %v3854, %v4105
    %v4108 = vsel %vm4104, %v4099, %v4106
    %v4109 = vmul.f32 %v2277, %v4101
    %v4110 = vmul.f32 %v2959, %v4102
    %v4111 = vsel %vm4103, 0.0, %v4109
    %v4112 = vsel %vm4104, 0.0, %v4110
    %v4113 = vand.u32 %v199, 4294901760
    %4114 = vmatpush.msra.mxu0 %v4113
    %v4115 = vand.u32 %v197, 4294901760
    %4116 = vmatpush.msra.mxu0 %v4115
    %v4117 = vand.u32 %v195, 4294901760
    %4118 = vmatpush.msra.mxu0 %v4117
    %v4119 = vand.u32 %v193, 4294901760
    %4120 = vmatpush.msra.mxu0 %v4119
    %v4121 = vand.u32 %v191, 4294901760
    %4122 = vmatpush.msra.mxu0 %v4121
    %v4123 = vand.u32 %v189, 4294901760
    %4124 = vmatpush.msra.mxu0 %v4123
    %v4125 = vand.u32 %v187, 4294901760
    %4126 = vmatpush.msra.mxu0 %v4125
    %v4127 = vand.u32 %v185, 4294901760
    %4128 = vmatpush.msra.mxu0 %v4127
    %v4129 = vand.u32 %v183, 4294901760
    %4130 = vmatpush.msra.mxu0 %v4129
    %v4131 = vand.u32 %v181, 4294901760
    %4132 = vmatpush.msra.mxu0 %v4131
    %v4133 = vand.u32 %v179, 4294901760
    %4134 = vmatpush.msra.mxu0 %v4133
    %v4135 = vand.u32 %v177, 4294901760
    %4136 = vmatpush.msra.mxu0 %v4135
    %v4137 = vand.u32 %v175, 4294901760
    %4138 = vmatpush.msra.mxu0 %v4137
    %v4139 = vand.u32 %v173, 4294901760
    %4140 = vmatpush.msra.mxu0 %v4139
    %v4141 = vand.u32 %v171, 4294901760
    %4142 = vmatpush.msra.mxu0 %v4141
    %v4143 = vand.u32 %v169, 4294901760
    %4144 = vmatpush.msra.mxu0 %v4143
    %v4145 = vand.u32 %v4111, 4294901760
    %v4146 = vsub.f32 %v4111, %v4145
    %v4147 = vand.u32 %v4146, 4294901760
    %v4148 = vsub.f32 %v4146, %v4147
    %v4149 = vand.u32 %v4148, 4294901760
    %4150 = vmatmul.f32.gmra.mxu0 %v4149
    %v4151 = vpop.f32.mrf.mxu0
    %v4152 = vadd.f32 0.0, %v4151
    %4153 = vdwg.mxu0
    %v4154 = vand.u32 %v199, 4294901760
    %v4155 = vsub.f32 %v199, %v4154
    %v4156 = vand.u32 %v4155, 4294901760
    %v4157 = vsub.f32 %v4155, %v4156
    %v4158 = vand.u32 %v4157, 4294901760
    %4159 = vmatpush.msra.mxu0 %v4158
    %v4160 = vand.u32 %v197, 4294901760
    %v4161 = vsub.f32 %v197, %v4160
    %v4162 = vand.u32 %v4161, 4294901760
    %v4163 = vsub.f32 %v4161, %v4162
    %v4164 = vand.u32 %v4163, 4294901760
    %4165 = vmatpush.msra.mxu0 %v4164
    %v4166 = vand.u32 %v195, 4294901760
    %v4167 = vsub.f32 %v195, %v4166
    %v4168 = vand.u32 %v4167, 4294901760
    %v4169 = vsub.f32 %v4167, %v4168
    %v4170 = vand.u32 %v4169, 4294901760
    %4171 = vmatpush.msra.mxu0 %v4170
    %v4172 = vand.u32 %v193, 4294901760
    %v4173 = vsub.f32 %v193, %v4172
    %v4174 = vand.u32 %v4173, 4294901760
    %v4175 = vsub.f32 %v4173, %v4174
    %v4176 = vand.u32 %v4175, 4294901760
    %4177 = vmatpush.msra.mxu0 %v4176
    %v4178 = vand.u32 %v191, 4294901760
    %v4179 = vsub.f32 %v191, %v4178
    %v4180 = vand.u32 %v4179, 4294901760
    %v4181 = vsub.f32 %v4179, %v4180
    %v4182 = vand.u32 %v4181, 4294901760
    %4183 = vmatpush.msra.mxu0 %v4182
    %v4184 = vand.u32 %v189, 4294901760
    %v4185 = vsub.f32 %v189, %v4184
    %v4186 = vand.u32 %v4185, 4294901760
    %v4187 = vsub.f32 %v4185, %v4186
    %v4188 = vand.u32 %v4187, 4294901760
    %4189 = vmatpush.msra.mxu0 %v4188
    %v4190 = vand.u32 %v187, 4294901760
    %v4191 = vsub.f32 %v187, %v4190
    %v4192 = vand.u32 %v4191, 4294901760
    %v4193 = vsub.f32 %v4191, %v4192
    %v4194 = vand.u32 %v4193, 4294901760
    %4195 = vmatpush.msra.mxu0 %v4194
    %v4196 = vand.u32 %v185, 4294901760
    %v4197 = vsub.f32 %v185, %v4196
    %v4198 = vand.u32 %v4197, 4294901760
    %v4199 = vsub.f32 %v4197, %v4198
    %v4200 = vand.u32 %v4199, 4294901760
    %4201 = vmatpush.msra.mxu0 %v4200
    %v4202 = vand.u32 %v183, 4294901760
    %v4203 = vsub.f32 %v183, %v4202
    %v4204 = vand.u32 %v4203, 4294901760
    %v4205 = vsub.f32 %v4203, %v4204
    %v4206 = vand.u32 %v4205, 4294901760
    %4207 = vmatpush.msra.mxu0 %v4206
    %v4208 = vand.u32 %v181, 4294901760
    %v4209 = vsub.f32 %v181, %v4208
    %v4210 = vand.u32 %v4209, 4294901760
    %v4211 = vsub.f32 %v4209, %v4210
    %v4212 = vand.u32 %v4211, 4294901760
    %4213 = vmatpush.msra.mxu0 %v4212
    %v4214 = vand.u32 %v179, 4294901760
    %v4215 = vsub.f32 %v179, %v4214
    %v4216 = vand.u32 %v4215, 4294901760
    %v4217 = vsub.f32 %v4215, %v4216
    %v4218 = vand.u32 %v4217, 4294901760
    %4219 = vmatpush.msra.mxu0 %v4218
    %v4220 = vand.u32 %v177, 4294901760
    %v4221 = vsub.f32 %v177, %v4220
    %v4222 = vand.u32 %v4221, 4294901760
    %v4223 = vsub.f32 %v4221, %v4222
    %v4224 = vand.u32 %v4223, 4294901760
    %4225 = vmatpush.msra.mxu0 %v4224
    %v4226 = vand.u32 %v175, 4294901760
    %v4227 = vsub.f32 %v175, %v4226
    %v4228 = vand.u32 %v4227, 4294901760
    %v4229 = vsub.f32 %v4227, %v4228
    %v4230 = vand.u32 %v4229, 4294901760
    %4231 = vmatpush.msra.mxu0 %v4230
    %v4232 = vand.u32 %v173, 4294901760
    %v4233 = vsub.f32 %v173, %v4232
    %v4234 = vand.u32 %v4233, 4294901760
    %v4235 = vsub.f32 %v4233, %v4234
    %v4236 = vand.u32 %v4235, 4294901760
    %4237 = vmatpush.msra.mxu0 %v4236
    %v4238 = vand.u32 %v171, 4294901760
    %v4239 = vsub.f32 %v171, %v4238
    %v4240 = vand.u32 %v4239, 4294901760
    %v4241 = vsub.f32 %v4239, %v4240
    %v4242 = vand.u32 %v4241, 4294901760
    %4243 = vmatpush.msra.mxu0 %v4242
    %v4244 = vand.u32 %v169, 4294901760
    %v4245 = vsub.f32 %v169, %v4244
    %v4246 = vand.u32 %v4245, 4294901760
    %v4247 = vsub.f32 %v4245, %v4246
    %v4248 = vand.u32 %v4247, 4294901760
    %4249 = vmatpush.msra.mxu0 %v4248
    %v4250 = vand.u32 %v4111, 4294901760
    %4251 = vmatmul.f32.gmra.mxu0 %v4250
    %v4252 = vpop.f32.mrf.mxu0
    %v4253 = vadd.f32 %v4152, %v4252
    %4254 = vdwg.mxu0
    %v4255 = vand.u32 %v199, 4294901760
    %v4256 = vsub.f32 %v199, %v4255
    %4257 = vmatpush.msra.mxu0 %v4256
    %v4258 = vand.u32 %v197, 4294901760
    %v4259 = vsub.f32 %v197, %v4258
    %4260 = vmatpush.msra.mxu0 %v4259
    %v4261 = vand.u32 %v195, 4294901760
    %v4262 = vsub.f32 %v195, %v4261
    %4263 = vmatpush.msra.mxu0 %v4262
    %v4264 = vand.u32 %v193, 4294901760
    %v4265 = vsub.f32 %v193, %v4264
    %4266 = vmatpush.msra.mxu0 %v4265
    %v4267 = vand.u32 %v191, 4294901760
    %v4268 = vsub.f32 %v191, %v4267
    %4269 = vmatpush.msra.mxu0 %v4268
    %v4270 = vand.u32 %v189, 4294901760
    %v4271 = vsub.f32 %v189, %v4270
    %4272 = vmatpush.msra.mxu0 %v4271
    %v4273 = vand.u32 %v187, 4294901760
    %v4274 = vsub.f32 %v187, %v4273
    %4275 = vmatpush.msra.mxu0 %v4274
    %v4276 = vand.u32 %v185, 4294901760
    %v4277 = vsub.f32 %v185, %v4276
    %4278 = vmatpush.msra.mxu0 %v4277
    %v4279 = vand.u32 %v183, 4294901760
    %v4280 = vsub.f32 %v183, %v4279
    %4281 = vmatpush.msra.mxu0 %v4280
    %v4282 = vand.u32 %v181, 4294901760
    %v4283 = vsub.f32 %v181, %v4282
    %4284 = vmatpush.msra.mxu0 %v4283
    %v4285 = vand.u32 %v179, 4294901760
    %v4286 = vsub.f32 %v179, %v4285
    %4287 = vmatpush.msra.mxu0 %v4286
    %v4288 = vand.u32 %v177, 4294901760
    %v4289 = vsub.f32 %v177, %v4288
    %4290 = vmatpush.msra.mxu0 %v4289
    %v4291 = vand.u32 %v175, 4294901760
    %v4292 = vsub.f32 %v175, %v4291
    %4293 = vmatpush.msra.mxu0 %v4292
    %v4294 = vand.u32 %v173, 4294901760
    %v4295 = vsub.f32 %v173, %v4294
    %4296 = vmatpush.msra.mxu0 %v4295
    %v4297 = vand.u32 %v171, 4294901760
    %v4298 = vsub.f32 %v171, %v4297
    %4299 = vmatpush.msra.mxu0 %v4298
    %v4300 = vand.u32 %v169, 4294901760
    %v4301 = vsub.f32 %v169, %v4300
    %4302 = vmatpush.msra.mxu0 %v4301
    %v4303 = vand.u32 %v4111, 4294901760
    %v4304 = vsub.f32 %v4111, %v4303
    %4305 = vmatmul.f32.gmra.mxu0 %v4304
    %v4306 = vpop.f32.mrf.mxu0
    %v4307 = vadd.f32 %v4253, %v4306
    %4308 = vdwg.mxu0
    %v4309 = vand.u32 %v199, 4294901760
    %4310 = vmatpush.msra.mxu0 %v4309
    %v4311 = vand.u32 %v197, 4294901760
    %4312 = vmatpush.msra.mxu0 %v4311
    %v4313 = vand.u32 %v195, 4294901760
    %4314 = vmatpush.msra.mxu0 %v4313
    %v4315 = vand.u32 %v193, 4294901760
    %4316 = vmatpush.msra.mxu0 %v4315
    %v4317 = vand.u32 %v191, 4294901760
    %4318 = vmatpush.msra.mxu0 %v4317
    %v4319 = vand.u32 %v189, 4294901760
    %4320 = vmatpush.msra.mxu0 %v4319
    %v4321 = vand.u32 %v187, 4294901760
    %4322 = vmatpush.msra.mxu0 %v4321
    %v4323 = vand.u32 %v185, 4294901760
    %4324 = vmatpush.msra.mxu0 %v4323
    %v4325 = vand.u32 %v183, 4294901760
    %4326 = vmatpush.msra.mxu0 %v4325
    %v4327 = vand.u32 %v181, 4294901760
    %4328 = vmatpush.msra.mxu0 %v4327
    %v4329 = vand.u32 %v179, 4294901760
    %4330 = vmatpush.msra.mxu0 %v4329
    %v4331 = vand.u32 %v177, 4294901760
    %4332 = vmatpush.msra.mxu0 %v4331
    %v4333 = vand.u32 %v175, 4294901760
    %4334 = vmatpush.msra.mxu0 %v4333
    %v4335 = vand.u32 %v173, 4294901760
    %4336 = vmatpush.msra.mxu0 %v4335
    %v4337 = vand.u32 %v171, 4294901760
    %4338 = vmatpush.msra.mxu0 %v4337
    %v4339 = vand.u32 %v169, 4294901760
    %4340 = vmatpush.msra.mxu0 %v4339
    %v4341 = vand.u32 %v4111, 4294901760
    %v4342 = vsub.f32 %v4111, %v4341
    %v4343 = vand.u32 %v4342, 4294901760
    %4344 = vmatmul.f32.gmra.mxu0 %v4343
    %v4345 = vpop.f32.mrf.mxu0
    %v4346 = vadd.f32 %v4307, %v4345
    %4347 = vdwg.mxu0
    %v4348 = vand.u32 %v199, 4294901760
    %v4349 = vsub.f32 %v199, %v4348
    %v4350 = vand.u32 %v4349, 4294901760
    %4351 = vmatpush.msra.mxu0 %v4350
    %v4352 = vand.u32 %v197, 4294901760
    %v4353 = vsub.f32 %v197, %v4352
    %v4354 = vand.u32 %v4353, 4294901760
    %4355 = vmatpush.msra.mxu0 %v4354
    %v4356 = vand.u32 %v195, 4294901760
    %v4357 = vsub.f32 %v195, %v4356
    %v4358 = vand.u32 %v4357, 4294901760
    %4359 = vmatpush.msra.mxu0 %v4358
    %v4360 = vand.u32 %v193, 4294901760
    %v4361 = vsub.f32 %v193, %v4360
    %v4362 = vand.u32 %v4361, 4294901760
    %4363 = vmatpush.msra.mxu0 %v4362
    %v4364 = vand.u32 %v191, 4294901760
    %v4365 = vsub.f32 %v191, %v4364
    %v4366 = vand.u32 %v4365, 4294901760
    %4367 = vmatpush.msra.mxu0 %v4366
    %v4368 = vand.u32 %v189, 4294901760
    %v4369 = vsub.f32 %v189, %v4368
    %v4370 = vand.u32 %v4369, 4294901760
    %4371 = vmatpush.msra.mxu0 %v4370
    %v4372 = vand.u32 %v187, 4294901760
    %v4373 = vsub.f32 %v187, %v4372
    %v4374 = vand.u32 %v4373, 4294901760
    %4375 = vmatpush.msra.mxu0 %v4374
    %v4376 = vand.u32 %v185, 4294901760
    %v4377 = vsub.f32 %v185, %v4376
    %v4378 = vand.u32 %v4377, 4294901760
    %4379 = vmatpush.msra.mxu0 %v4378
    %v4380 = vand.u32 %v183, 4294901760
    %v4381 = vsub.f32 %v183, %v4380
    %v4382 = vand.u32 %v4381, 4294901760
    %4383 = vmatpush.msra.mxu0 %v4382
    %v4384 = vand.u32 %v181, 4294901760
    %v4385 = vsub.f32 %v181, %v4384
    %v4386 = vand.u32 %v4385, 4294901760
    %4387 = vmatpush.msra.mxu0 %v4386
    %v4388 = vand.u32 %v179, 4294901760
    %v4389 = vsub.f32 %v179, %v4388
    %v4390 = vand.u32 %v4389, 4294901760
    %4391 = vmatpush.msra.mxu0 %v4390
    %v4392 = vand.u32 %v177, 4294901760
    %v4393 = vsub.f32 %v177, %v4392
    %v4394 = vand.u32 %v4393, 4294901760
    %4395 = vmatpush.msra.mxu0 %v4394
    %v4396 = vand.u32 %v175, 4294901760
    %v4397 = vsub.f32 %v175, %v4396
    %v4398 = vand.u32 %v4397, 4294901760
    %4399 = vmatpush.msra.mxu0 %v4398
    %v4400 = vand.u32 %v173, 4294901760
    %v4401 = vsub.f32 %v173, %v4400
    %v4402 = vand.u32 %v4401, 4294901760
    %4403 = vmatpush.msra.mxu0 %v4402
    %v4404 = vand.u32 %v171, 4294901760
    %v4405 = vsub.f32 %v171, %v4404
    %v4406 = vand.u32 %v4405, 4294901760
    %4407 = vmatpush.msra.mxu0 %v4406
    %v4408 = vand.u32 %v169, 4294901760
    %v4409 = vsub.f32 %v169, %v4408
    %v4410 = vand.u32 %v4409, 4294901760
    %4411 = vmatpush.msra.mxu0 %v4410
    %v4412 = vand.u32 %v4111, 4294901760
    %4413 = vmatmul.f32.gmra.mxu0 %v4412
    %v4414 = vpop.f32.mrf.mxu0
    %v4415 = vadd.f32 %v4346, %v4414
    %4416 = vdwg.mxu0
    %v4417 = vand.u32 %v199, 4294901760
    %4418 = vmatpush.msra.mxu0 %v4417
    %v4419 = vand.u32 %v197, 4294901760
    %4420 = vmatpush.msra.mxu0 %v4419
    %v4421 = vand.u32 %v195, 4294901760
    %4422 = vmatpush.msra.mxu0 %v4421
    %v4423 = vand.u32 %v193, 4294901760
    %4424 = vmatpush.msra.mxu0 %v4423
    %v4425 = vand.u32 %v191, 4294901760
    %4426 = vmatpush.msra.mxu0 %v4425
    %v4427 = vand.u32 %v189, 4294901760
    %4428 = vmatpush.msra.mxu0 %v4427
    %v4429 = vand.u32 %v187, 4294901760
    %4430 = vmatpush.msra.mxu0 %v4429
    %v4431 = vand.u32 %v185, 4294901760
    %4432 = vmatpush.msra.mxu0 %v4431
    %v4433 = vand.u32 %v183, 4294901760
    %4434 = vmatpush.msra.mxu0 %v4433
    %v4435 = vand.u32 %v181, 4294901760
    %4436 = vmatpush.msra.mxu0 %v4435
    %v4437 = vand.u32 %v179, 4294901760
    %4438 = vmatpush.msra.mxu0 %v4437
    %v4439 = vand.u32 %v177, 4294901760
    %4440 = vmatpush.msra.mxu0 %v4439
    %v4441 = vand.u32 %v175, 4294901760
    %4442 = vmatpush.msra.mxu0 %v4441
    %v4443 = vand.u32 %v173, 4294901760
    %4444 = vmatpush.msra.mxu0 %v4443
    %v4445 = vand.u32 %v171, 4294901760
    %4446 = vmatpush.msra.mxu0 %v4445
    %v4447 = vand.u32 %v169, 4294901760
    %4448 = vmatpush.msra.mxu0 %v4447
    %v4449 = vand.u32 %v4111, 4294901760
    %4450 = vmatmul.f32.gmra.mxu0 %v4449
    %v4451 = vpop.f32.mrf.mxu0
    %v4452 = vadd.f32 %v4415, %v4451
    %4453 = vdwg.mxu0
    %v4454 = vand.u32 %v231, 4294901760
    %4455 = vmatpush.msra.mxu0 %v4454
    %v4456 = vand.u32 %v229, 4294901760
    %4457 = vmatpush.msra.mxu0 %v4456
    %v4458 = vand.u32 %v227, 4294901760
    %4459 = vmatpush.msra.mxu0 %v4458
    %v4460 = vand.u32 %v225, 4294901760
    %4461 = vmatpush.msra.mxu0 %v4460
    %v4462 = vand.u32 %v223, 4294901760
    %4463 = vmatpush.msra.mxu0 %v4462
    %v4464 = vand.u32 %v221, 4294901760
    %4465 = vmatpush.msra.mxu0 %v4464
    %v4466 = vand.u32 %v219, 4294901760
    %4467 = vmatpush.msra.mxu0 %v4466
    %v4468 = vand.u32 %v217, 4294901760
    %4469 = vmatpush.msra.mxu0 %v4468
    %v4470 = vand.u32 %v215, 4294901760
    %4471 = vmatpush.msra.mxu0 %v4470
    %v4472 = vand.u32 %v213, 4294901760
    %4473 = vmatpush.msra.mxu0 %v4472
    %v4474 = vand.u32 %v211, 4294901760
    %4475 = vmatpush.msra.mxu0 %v4474
    %v4476 = vand.u32 %v209, 4294901760
    %4477 = vmatpush.msra.mxu0 %v4476
    %v4478 = vand.u32 %v207, 4294901760
    %4479 = vmatpush.msra.mxu0 %v4478
    %v4480 = vand.u32 %v205, 4294901760
    %4481 = vmatpush.msra.mxu0 %v4480
    %v4482 = vand.u32 %v203, 4294901760
    %4483 = vmatpush.msra.mxu0 %v4482
    %v4484 = vand.u32 %v201, 4294901760
    %4485 = vmatpush.msra.mxu0 %v4484
    %v4486 = vand.u32 %v4112, 4294901760
    %v4487 = vsub.f32 %v4112, %v4486
    %v4488 = vand.u32 %v4487, 4294901760
    %v4489 = vsub.f32 %v4487, %v4488
    %v4490 = vand.u32 %v4489, 4294901760
    %4491 = vmatmul.f32.gmra.mxu0 %v4490
    %v4492 = vpop.f32.mrf.mxu0
    %v4493 = vadd.f32 %v4452, %v4492
    %4494 = vdwg.mxu0
    %v4495 = vand.u32 %v231, 4294901760
    %v4496 = vsub.f32 %v231, %v4495
    %v4497 = vand.u32 %v4496, 4294901760
    %v4498 = vsub.f32 %v4496, %v4497
    %v4499 = vand.u32 %v4498, 4294901760
    %4500 = vmatpush.msra.mxu0 %v4499
    %v4501 = vand.u32 %v229, 4294901760
    %v4502 = vsub.f32 %v229, %v4501
    %v4503 = vand.u32 %v4502, 4294901760
    %v4504 = vsub.f32 %v4502, %v4503
    %v4505 = vand.u32 %v4504, 4294901760
    %4506 = vmatpush.msra.mxu0 %v4505
    %v4507 = vand.u32 %v227, 4294901760
    %v4508 = vsub.f32 %v227, %v4507
    %v4509 = vand.u32 %v4508, 4294901760
    %v4510 = vsub.f32 %v4508, %v4509
    %v4511 = vand.u32 %v4510, 4294901760
    %4512 = vmatpush.msra.mxu0 %v4511
    %v4513 = vand.u32 %v225, 4294901760
    %v4514 = vsub.f32 %v225, %v4513
    %v4515 = vand.u32 %v4514, 4294901760
    %v4516 = vsub.f32 %v4514, %v4515
    %v4517 = vand.u32 %v4516, 4294901760
    %4518 = vmatpush.msra.mxu0 %v4517
    %v4519 = vand.u32 %v223, 4294901760
    %v4520 = vsub.f32 %v223, %v4519
    %v4521 = vand.u32 %v4520, 4294901760
    %v4522 = vsub.f32 %v4520, %v4521
    %v4523 = vand.u32 %v4522, 4294901760
    %4524 = vmatpush.msra.mxu0 %v4523
    %v4525 = vand.u32 %v221, 4294901760
    %v4526 = vsub.f32 %v221, %v4525
    %v4527 = vand.u32 %v4526, 4294901760
    %v4528 = vsub.f32 %v4526, %v4527
    %v4529 = vand.u32 %v4528, 4294901760
    %4530 = vmatpush.msra.mxu0 %v4529
    %v4531 = vand.u32 %v219, 4294901760
    %v4532 = vsub.f32 %v219, %v4531
    %v4533 = vand.u32 %v4532, 4294901760
    %v4534 = vsub.f32 %v4532, %v4533
    %v4535 = vand.u32 %v4534, 4294901760
    %4536 = vmatpush.msra.mxu0 %v4535
    %v4537 = vand.u32 %v217, 4294901760
    %v4538 = vsub.f32 %v217, %v4537
    %v4539 = vand.u32 %v4538, 4294901760
    %v4540 = vsub.f32 %v4538, %v4539
    %v4541 = vand.u32 %v4540, 4294901760
    %4542 = vmatpush.msra.mxu0 %v4541
    %v4543 = vand.u32 %v215, 4294901760
    %v4544 = vsub.f32 %v215, %v4543
    %v4545 = vand.u32 %v4544, 4294901760
    %v4546 = vsub.f32 %v4544, %v4545
    %v4547 = vand.u32 %v4546, 4294901760
    %4548 = vmatpush.msra.mxu0 %v4547
    %v4549 = vand.u32 %v213, 4294901760
    %v4550 = vsub.f32 %v213, %v4549
    %v4551 = vand.u32 %v4550, 4294901760
    %v4552 = vsub.f32 %v4550, %v4551
    %v4553 = vand.u32 %v4552, 4294901760
    %4554 = vmatpush.msra.mxu0 %v4553
    %v4555 = vand.u32 %v211, 4294901760
    %v4556 = vsub.f32 %v211, %v4555
    %v4557 = vand.u32 %v4556, 4294901760
    %v4558 = vsub.f32 %v4556, %v4557
    %v4559 = vand.u32 %v4558, 4294901760
    %4560 = vmatpush.msra.mxu0 %v4559
    %v4561 = vand.u32 %v209, 4294901760
    %v4562 = vsub.f32 %v209, %v4561
    %v4563 = vand.u32 %v4562, 4294901760
    %v4564 = vsub.f32 %v4562, %v4563
    %v4565 = vand.u32 %v4564, 4294901760
    %4566 = vmatpush.msra.mxu0 %v4565
    %v4567 = vand.u32 %v207, 4294901760
    %v4568 = vsub.f32 %v207, %v4567
    %v4569 = vand.u32 %v4568, 4294901760
    %v4570 = vsub.f32 %v4568, %v4569
    %v4571 = vand.u32 %v4570, 4294901760
    %4572 = vmatpush.msra.mxu0 %v4571
    %v4573 = vand.u32 %v205, 4294901760
    %v4574 = vsub.f32 %v205, %v4573
    %v4575 = vand.u32 %v4574, 4294901760
    %v4576 = vsub.f32 %v4574, %v4575
    %v4577 = vand.u32 %v4576, 4294901760
    %4578 = vmatpush.msra.mxu0 %v4577
    %v4579 = vand.u32 %v203, 4294901760
    %v4580 = vsub.f32 %v203, %v4579
    %v4581 = vand.u32 %v4580, 4294901760
    %v4582 = vsub.f32 %v4580, %v4581
    %v4583 = vand.u32 %v4582, 4294901760
    %4584 = vmatpush.msra.mxu0 %v4583
    %v4585 = vand.u32 %v201, 4294901760
    %v4586 = vsub.f32 %v201, %v4585
    %v4587 = vand.u32 %v4586, 4294901760
    %v4588 = vsub.f32 %v4586, %v4587
    %v4589 = vand.u32 %v4588, 4294901760
    %4590 = vmatpush.msra.mxu0 %v4589
    %v4591 = vand.u32 %v4112, 4294901760
    %4592 = vmatmul.f32.gmra.mxu0 %v4591
    %v4593 = vpop.f32.mrf.mxu0
    %v4594 = vadd.f32 %v4493, %v4593
    %4595 = vdwg.mxu0
    %v4596 = vand.u32 %v231, 4294901760
    %v4597 = vsub.f32 %v231, %v4596
    %4598 = vmatpush.msra.mxu0 %v4597
    %v4599 = vand.u32 %v229, 4294901760
    %v4600 = vsub.f32 %v229, %v4599
    %4601 = vmatpush.msra.mxu0 %v4600
    %v4602 = vand.u32 %v227, 4294901760
    %v4603 = vsub.f32 %v227, %v4602
    %4604 = vmatpush.msra.mxu0 %v4603
    %v4605 = vand.u32 %v225, 4294901760
    %v4606 = vsub.f32 %v225, %v4605
    %4607 = vmatpush.msra.mxu0 %v4606
    %v4608 = vand.u32 %v223, 4294901760
    %v4609 = vsub.f32 %v223, %v4608
    %4610 = vmatpush.msra.mxu0 %v4609
    %v4611 = vand.u32 %v221, 4294901760
    %v4612 = vsub.f32 %v221, %v4611
    %4613 = vmatpush.msra.mxu0 %v4612
    %v4614 = vand.u32 %v219, 4294901760
    %v4615 = vsub.f32 %v219, %v4614
    %4616 = vmatpush.msra.mxu0 %v4615
    %v4617 = vand.u32 %v217, 4294901760
    %v4618 = vsub.f32 %v217, %v4617
    %4619 = vmatpush.msra.mxu0 %v4618
    %v4620 = vand.u32 %v215, 4294901760
    %v4621 = vsub.f32 %v215, %v4620
    %4622 = vmatpush.msra.mxu0 %v4621
    %v4623 = vand.u32 %v213, 4294901760
    %v4624 = vsub.f32 %v213, %v4623
    %4625 = vmatpush.msra.mxu0 %v4624
    %v4626 = vand.u32 %v211, 4294901760
    %v4627 = vsub.f32 %v211, %v4626
    %4628 = vmatpush.msra.mxu0 %v4627
    %v4629 = vand.u32 %v209, 4294901760
    %v4630 = vsub.f32 %v209, %v4629
    %4631 = vmatpush.msra.mxu0 %v4630
    %v4632 = vand.u32 %v207, 4294901760
    %v4633 = vsub.f32 %v207, %v4632
    %4634 = vmatpush.msra.mxu0 %v4633
    %v4635 = vand.u32 %v205, 4294901760
    %v4636 = vsub.f32 %v205, %v4635
    %4637 = vmatpush.msra.mxu0 %v4636
    %v4638 = vand.u32 %v203, 4294901760
    %v4639 = vsub.f32 %v203, %v4638
    %4640 = vmatpush.msra.mxu0 %v4639
    %v4641 = vand.u32 %v201, 4294901760
    %v4642 = vsub.f32 %v201, %v4641
    %4643 = vmatpush.msra.mxu0 %v4642
    %v4644 = vand.u32 %v4112, 4294901760
    %v4645 = vsub.f32 %v4112, %v4644
    %4646 = vmatmul.f32.gmra.mxu0 %v4645
    %v4647 = vpop.f32.mrf.mxu0
    %v4648 = vadd.f32 %v4594, %v4647
    %4649 = vdwg.mxu0
    %v4650 = vand.u32 %v231, 4294901760
    %4651 = vmatpush.msra.mxu0 %v4650
    %v4652 = vand.u32 %v229, 4294901760
    %4653 = vmatpush.msra.mxu0 %v4652
    %v4654 = vand.u32 %v227, 4294901760
    %4655 = vmatpush.msra.mxu0 %v4654
    %v4656 = vand.u32 %v225, 4294901760
    %4657 = vmatpush.msra.mxu0 %v4656
    %v4658 = vand.u32 %v223, 4294901760
    %4659 = vmatpush.msra.mxu0 %v4658
    %v4660 = vand.u32 %v221, 4294901760
    %4661 = vmatpush.msra.mxu0 %v4660
    %v4662 = vand.u32 %v219, 4294901760
    %4663 = vmatpush.msra.mxu0 %v4662
    %v4664 = vand.u32 %v217, 4294901760
    %4665 = vmatpush.msra.mxu0 %v4664
    %v4666 = vand.u32 %v215, 4294901760
    %4667 = vmatpush.msra.mxu0 %v4666
    %v4668 = vand.u32 %v213, 4294901760
    %4669 = vmatpush.msra.mxu0 %v4668
    %v4670 = vand.u32 %v211, 4294901760
    %4671 = vmatpush.msra.mxu0 %v4670
    %v4672 = vand.u32 %v209, 4294901760
    %4673 = vmatpush.msra.mxu0 %v4672
    %v4674 = vand.u32 %v207, 4294901760
    %4675 = vmatpush.msra.mxu0 %v4674
    %v4676 = vand.u32 %v205, 4294901760
    %4677 = vmatpush.msra.mxu0 %v4676
    %v4678 = vand.u32 %v203, 4294901760
    %4679 = vmatpush.msra.mxu0 %v4678
    %v4680 = vand.u32 %v201, 4294901760
    %4681 = vmatpush.msra.mxu0 %v4680
    %v4682 = vand.u32 %v4112, 4294901760
    %v4683 = vsub.f32 %v4112, %v4682
    %v4684 = vand.u32 %v4683, 4294901760
    %4685 = vmatmul.f32.gmra.mxu0 %v4684
    %v4686 = vpop.f32.mrf.mxu0
    %v4687 = vadd.f32 %v4648, %v4686
    %4688 = vdwg.mxu0
    %v4689 = vand.u32 %v231, 4294901760
    %v4690 = vsub.f32 %v231, %v4689
    %v4691 = vand.u32 %v4690, 4294901760
    %4692 = vmatpush.msra.mxu0 %v4691
    %v4693 = vand.u32 %v229, 4294901760
    %v4694 = vsub.f32 %v229, %v4693
    %v4695 = vand.u32 %v4694, 4294901760
    %4696 = vmatpush.msra.mxu0 %v4695
    %v4697 = vand.u32 %v227, 4294901760
    %v4698 = vsub.f32 %v227, %v4697
    %v4699 = vand.u32 %v4698, 4294901760
    %4700 = vmatpush.msra.mxu0 %v4699
    %v4701 = vand.u32 %v225, 4294901760
    %v4702 = vsub.f32 %v225, %v4701
    %v4703 = vand.u32 %v4702, 4294901760
    %4704 = vmatpush.msra.mxu0 %v4703
    %v4705 = vand.u32 %v223, 4294901760
    %v4706 = vsub.f32 %v223, %v4705
    %v4707 = vand.u32 %v4706, 4294901760
    %4708 = vmatpush.msra.mxu0 %v4707
    %v4709 = vand.u32 %v221, 4294901760
    %v4710 = vsub.f32 %v221, %v4709
    %v4711 = vand.u32 %v4710, 4294901760
    %4712 = vmatpush.msra.mxu0 %v4711
    %v4713 = vand.u32 %v219, 4294901760
    %v4714 = vsub.f32 %v219, %v4713
    %v4715 = vand.u32 %v4714, 4294901760
    %4716 = vmatpush.msra.mxu0 %v4715
    %v4717 = vand.u32 %v217, 4294901760
    %v4718 = vsub.f32 %v217, %v4717
    %v4719 = vand.u32 %v4718, 4294901760
    %4720 = vmatpush.msra.mxu0 %v4719
    %v4721 = vand.u32 %v215, 4294901760
    %v4722 = vsub.f32 %v215, %v4721
    %v4723 = vand.u32 %v4722, 4294901760
    %4724 = vmatpush.msra.mxu0 %v4723
    %v4725 = vand.u32 %v213, 4294901760
    %v4726 = vsub.f32 %v213, %v4725
    %v4727 = vand.u32 %v4726, 4294901760
    %4728 = vmatpush.msra.mxu0 %v4727
    %v4729 = vand.u32 %v211, 4294901760
    %v4730 = vsub.f32 %v211, %v4729
    %v4731 = vand.u32 %v4730, 4294901760
    %4732 = vmatpush.msra.mxu0 %v4731
    %v4733 = vand.u32 %v209, 4294901760
    %v4734 = vsub.f32 %v209, %v4733
    %v4735 = vand.u32 %v4734, 4294901760
    %4736 = vmatpush.msra.mxu0 %v4735
    %v4737 = vand.u32 %v207, 4294901760
    %v4738 = vsub.f32 %v207, %v4737
    %v4739 = vand.u32 %v4738, 4294901760
    %4740 = vmatpush.msra.mxu0 %v4739
    %v4741 = vand.u32 %v205, 4294901760
    %v4742 = vsub.f32 %v205, %v4741
    %v4743 = vand.u32 %v4742, 4294901760
    %4744 = vmatpush.msra.mxu0 %v4743
    %v4745 = vand.u32 %v203, 4294901760
    %v4746 = vsub.f32 %v203, %v4745
    %v4747 = vand.u32 %v4746, 4294901760
    %4748 = vmatpush.msra.mxu0 %v4747
    %v4749 = vand.u32 %v201, 4294901760
    %v4750 = vsub.f32 %v201, %v4749
    %v4751 = vand.u32 %v4750, 4294901760
    %4752 = vmatpush.msra.mxu0 %v4751
    %v4753 = vand.u32 %v4112, 4294901760
    %4754 = vmatmul.f32.gmra.mxu0 %v4753
    %v4755 = vpop.f32.mrf.mxu0
    %v4756 = vadd.f32 %v4687, %v4755
    %4757 = vdwg.mxu0
    %v4758 = vand.u32 %v231, 4294901760
    %4759 = vmatpush.msra.mxu0 %v4758
    %v4760 = vand.u32 %v229, 4294901760
    %4761 = vmatpush.msra.mxu0 %v4760
    %v4762 = vand.u32 %v227, 4294901760
    %4763 = vmatpush.msra.mxu0 %v4762
    %v4764 = vand.u32 %v225, 4294901760
    %4765 = vmatpush.msra.mxu0 %v4764
    %v4766 = vand.u32 %v223, 4294901760
    %4767 = vmatpush.msra.mxu0 %v4766
    %v4768 = vand.u32 %v221, 4294901760
    %4769 = vmatpush.msra.mxu0 %v4768
    %v4770 = vand.u32 %v219, 4294901760
    %4771 = vmatpush.msra.mxu0 %v4770
    %v4772 = vand.u32 %v217, 4294901760
    %4773 = vmatpush.msra.mxu0 %v4772
    %v4774 = vand.u32 %v215, 4294901760
    %4775 = vmatpush.msra.mxu0 %v4774
    %v4776 = vand.u32 %v213, 4294901760
    %4777 = vmatpush.msra.mxu0 %v4776
    %v4778 = vand.u32 %v211, 4294901760
    %4779 = vmatpush.msra.mxu0 %v4778
    %v4780 = vand.u32 %v209, 4294901760
    %4781 = vmatpush.msra.mxu0 %v4780
    %v4782 = vand.u32 %v207, 4294901760
    %4783 = vmatpush.msra.mxu0 %v4782
    %v4784 = vand.u32 %v205, 4294901760
    %4785 = vmatpush.msra.mxu0 %v4784
    %v4786 = vand.u32 %v203, 4294901760
    %4787 = vmatpush.msra.mxu0 %v4786
    %v4788 = vand.u32 %v201, 4294901760
    %4789 = vmatpush.msra.mxu0 %v4788
    %v4790 = vand.u32 %v4112, 4294901760
    %4791 = vmatmul.f32.gmra.mxu0 %v4790
    %v4792 = vpop.f32.mrf.mxu0
    %v4793 = vadd.f32 %v4756, %v4792
    %4794 = vdwg.mxu0
    %v4795 = vand.u32 %v200, 4294901760
    %4796 = vmatpush.msra.mxu0 %v4795
    %v4797 = vand.u32 %v198, 4294901760
    %4798 = vmatpush.msra.mxu0 %v4797
    %v4799 = vand.u32 %v196, 4294901760
    %4800 = vmatpush.msra.mxu0 %v4799
    %v4801 = vand.u32 %v194, 4294901760
    %4802 = vmatpush.msra.mxu0 %v4801
    %v4803 = vand.u32 %v192, 4294901760
    %4804 = vmatpush.msra.mxu0 %v4803
    %v4805 = vand.u32 %v190, 4294901760
    %4806 = vmatpush.msra.mxu0 %v4805
    %v4807 = vand.u32 %v188, 4294901760
    %4808 = vmatpush.msra.mxu0 %v4807
    %v4809 = vand.u32 %v186, 4294901760
    %4810 = vmatpush.msra.mxu0 %v4809
    %v4811 = vand.u32 %v184, 4294901760
    %4812 = vmatpush.msra.mxu0 %v4811
    %v4813 = vand.u32 %v182, 4294901760
    %4814 = vmatpush.msra.mxu0 %v4813
    %v4815 = vand.u32 %v180, 4294901760
    %4816 = vmatpush.msra.mxu0 %v4815
    %v4817 = vand.u32 %v178, 4294901760
    %4818 = vmatpush.msra.mxu0 %v4817
    %v4819 = vand.u32 %v176, 4294901760
    %4820 = vmatpush.msra.mxu0 %v4819
    %v4821 = vand.u32 %v174, 4294901760
    %4822 = vmatpush.msra.mxu0 %v4821
    %v4823 = vand.u32 %v172, 4294901760
    %4824 = vmatpush.msra.mxu0 %v4823
    %v4825 = vand.u32 %v170, 4294901760
    %4826 = vmatpush.msra.mxu0 %v4825
    %v4827 = vand.u32 %v4111, 4294901760
    %v4828 = vsub.f32 %v4111, %v4827
    %v4829 = vand.u32 %v4828, 4294901760
    %v4830 = vsub.f32 %v4828, %v4829
    %v4831 = vand.u32 %v4830, 4294901760
    %4832 = vmatmul.f32.gmra.mxu0 %v4831
    %v4833 = vpop.f32.mrf.mxu0
    %v4834 = vadd.f32 0.0, %v4833
    %4835 = vdwg.mxu0
    %v4836 = vand.u32 %v200, 4294901760
    %v4837 = vsub.f32 %v200, %v4836
    %v4838 = vand.u32 %v4837, 4294901760
    %v4839 = vsub.f32 %v4837, %v4838
    %v4840 = vand.u32 %v4839, 4294901760
    %4841 = vmatpush.msra.mxu0 %v4840
    %v4842 = vand.u32 %v198, 4294901760
    %v4843 = vsub.f32 %v198, %v4842
    %v4844 = vand.u32 %v4843, 4294901760
    %v4845 = vsub.f32 %v4843, %v4844
    %v4846 = vand.u32 %v4845, 4294901760
    %4847 = vmatpush.msra.mxu0 %v4846
    %v4848 = vand.u32 %v196, 4294901760
    %v4849 = vsub.f32 %v196, %v4848
    %v4850 = vand.u32 %v4849, 4294901760
    %v4851 = vsub.f32 %v4849, %v4850
    %v4852 = vand.u32 %v4851, 4294901760
    %4853 = vmatpush.msra.mxu0 %v4852
    %v4854 = vand.u32 %v194, 4294901760
    %v4855 = vsub.f32 %v194, %v4854
    %v4856 = vand.u32 %v4855, 4294901760
    %v4857 = vsub.f32 %v4855, %v4856
    %v4858 = vand.u32 %v4857, 4294901760
    %4859 = vmatpush.msra.mxu0 %v4858
    %v4860 = vand.u32 %v192, 4294901760
    %v4861 = vsub.f32 %v192, %v4860
    %v4862 = vand.u32 %v4861, 4294901760
    %v4863 = vsub.f32 %v4861, %v4862
    %v4864 = vand.u32 %v4863, 4294901760
    %4865 = vmatpush.msra.mxu0 %v4864
    %v4866 = vand.u32 %v190, 4294901760
    %v4867 = vsub.f32 %v190, %v4866
    %v4868 = vand.u32 %v4867, 4294901760
    %v4869 = vsub.f32 %v4867, %v4868
    %v4870 = vand.u32 %v4869, 4294901760
    %4871 = vmatpush.msra.mxu0 %v4870
    %v4872 = vand.u32 %v188, 4294901760
    %v4873 = vsub.f32 %v188, %v4872
    %v4874 = vand.u32 %v4873, 4294901760
    %v4875 = vsub.f32 %v4873, %v4874
    %v4876 = vand.u32 %v4875, 4294901760
    %4877 = vmatpush.msra.mxu0 %v4876
    %v4878 = vand.u32 %v186, 4294901760
    %v4879 = vsub.f32 %v186, %v4878
    %v4880 = vand.u32 %v4879, 4294901760
    %v4881 = vsub.f32 %v4879, %v4880
    %v4882 = vand.u32 %v4881, 4294901760
    %4883 = vmatpush.msra.mxu0 %v4882
    %v4884 = vand.u32 %v184, 4294901760
    %v4885 = vsub.f32 %v184, %v4884
    %v4886 = vand.u32 %v4885, 4294901760
    %v4887 = vsub.f32 %v4885, %v4886
    %v4888 = vand.u32 %v4887, 4294901760
    %4889 = vmatpush.msra.mxu0 %v4888
    %v4890 = vand.u32 %v182, 4294901760
    %v4891 = vsub.f32 %v182, %v4890
    %v4892 = vand.u32 %v4891, 4294901760
    %v4893 = vsub.f32 %v4891, %v4892
    %v4894 = vand.u32 %v4893, 4294901760
    %4895 = vmatpush.msra.mxu0 %v4894
    %v4896 = vand.u32 %v180, 4294901760
    %v4897 = vsub.f32 %v180, %v4896
    %v4898 = vand.u32 %v4897, 4294901760
    %v4899 = vsub.f32 %v4897, %v4898
    %v4900 = vand.u32 %v4899, 4294901760
    %4901 = vmatpush.msra.mxu0 %v4900
    %v4902 = vand.u32 %v178, 4294901760
    %v4903 = vsub.f32 %v178, %v4902
    %v4904 = vand.u32 %v4903, 4294901760
    %v4905 = vsub.f32 %v4903, %v4904
    %v4906 = vand.u32 %v4905, 4294901760
    %4907 = vmatpush.msra.mxu0 %v4906
    %v4908 = vand.u32 %v176, 4294901760
    %v4909 = vsub.f32 %v176, %v4908
    %v4910 = vand.u32 %v4909, 4294901760
    %v4911 = vsub.f32 %v4909, %v4910
    %v4912 = vand.u32 %v4911, 4294901760
    %4913 = vmatpush.msra.mxu0 %v4912
    %v4914 = vand.u32 %v174, 4294901760
    %v4915 = vsub.f32 %v174, %v4914
    %v4916 = vand.u32 %v4915, 4294901760
    %v4917 = vsub.f32 %v4915, %v4916
    %v4918 = vand.u32 %v4917, 4294901760
    %4919 = vmatpush.msra.mxu0 %v4918
    %v4920 = vand.u32 %v172, 4294901760
    %v4921 = vsub.f32 %v172, %v4920
    %v4922 = vand.u32 %v4921, 4294901760
    %v4923 = vsub.f32 %v4921, %v4922
    %v4924 = vand.u32 %v4923, 4294901760
    %4925 = vmatpush.msra.mxu0 %v4924
    %v4926 = vand.u32 %v170, 4294901760
    %v4927 = vsub.f32 %v170, %v4926
    %v4928 = vand.u32 %v4927, 4294901760
    %v4929 = vsub.f32 %v4927, %v4928
    %v4930 = vand.u32 %v4929, 4294901760
    %4931 = vmatpush.msra.mxu0 %v4930
    %v4932 = vand.u32 %v4111, 4294901760
    %4933 = vmatmul.f32.gmra.mxu0 %v4932
    %v4934 = vpop.f32.mrf.mxu0
    %v4935 = vadd.f32 %v4834, %v4934
    %4936 = vdwg.mxu0
    %v4937 = vand.u32 %v200, 4294901760
    %v4938 = vsub.f32 %v200, %v4937
    %4939 = vmatpush.msra.mxu0 %v4938
    %v4940 = vand.u32 %v198, 4294901760
    %v4941 = vsub.f32 %v198, %v4940
    %4942 = vmatpush.msra.mxu0 %v4941
    %v4943 = vand.u32 %v196, 4294901760
    %v4944 = vsub.f32 %v196, %v4943
    %4945 = vmatpush.msra.mxu0 %v4944
    %v4946 = vand.u32 %v194, 4294901760
    %v4947 = vsub.f32 %v194, %v4946
    %4948 = vmatpush.msra.mxu0 %v4947
    %v4949 = vand.u32 %v192, 4294901760
    %v4950 = vsub.f32 %v192, %v4949
    %4951 = vmatpush.msra.mxu0 %v4950
    %v4952 = vand.u32 %v190, 4294901760
    %v4953 = vsub.f32 %v190, %v4952
    %4954 = vmatpush.msra.mxu0 %v4953
    %v4955 = vand.u32 %v188, 4294901760
    %v4956 = vsub.f32 %v188, %v4955
    %4957 = vmatpush.msra.mxu0 %v4956
    %v4958 = vand.u32 %v186, 4294901760
    %v4959 = vsub.f32 %v186, %v4958
    %4960 = vmatpush.msra.mxu0 %v4959
    %v4961 = vand.u32 %v184, 4294901760
    %v4962 = vsub.f32 %v184, %v4961
    %4963 = vmatpush.msra.mxu0 %v4962
    %v4964 = vand.u32 %v182, 4294901760
    %v4965 = vsub.f32 %v182, %v4964
    %4966 = vmatpush.msra.mxu0 %v4965
    %v4967 = vand.u32 %v180, 4294901760
    %v4968 = vsub.f32 %v180, %v4967
    %4969 = vmatpush.msra.mxu0 %v4968
    %v4970 = vand.u32 %v178, 4294901760
    %v4971 = vsub.f32 %v178, %v4970
    %4972 = vmatpush.msra.mxu0 %v4971
    %v4973 = vand.u32 %v176, 4294901760
    %v4974 = vsub.f32 %v176, %v4973
    %4975 = vmatpush.msra.mxu0 %v4974
    %v4976 = vand.u32 %v174, 4294901760
    %v4977 = vsub.f32 %v174, %v4976
    %4978 = vmatpush.msra.mxu0 %v4977
    %v4979 = vand.u32 %v172, 4294901760
    %v4980 = vsub.f32 %v172, %v4979
    %4981 = vmatpush.msra.mxu0 %v4980
    %v4982 = vand.u32 %v170, 4294901760
    %v4983 = vsub.f32 %v170, %v4982
    %4984 = vmatpush.msra.mxu0 %v4983
    %v4985 = vand.u32 %v4111, 4294901760
    %v4986 = vsub.f32 %v4111, %v4985
    %4987 = vmatmul.f32.gmra.mxu0 %v4986
    %v4988 = vpop.f32.mrf.mxu0
    %v4989 = vadd.f32 %v4935, %v4988
    %4990 = vdwg.mxu0
    %v4991 = vand.u32 %v200, 4294901760
    %4992 = vmatpush.msra.mxu0 %v4991
    %v4993 = vand.u32 %v198, 4294901760
    %4994 = vmatpush.msra.mxu0 %v4993
    %v4995 = vand.u32 %v196, 4294901760
    %4996 = vmatpush.msra.mxu0 %v4995
    %v4997 = vand.u32 %v194, 4294901760
    %4998 = vmatpush.msra.mxu0 %v4997
    %v4999 = vand.u32 %v192, 4294901760
    %5000 = vmatpush.msra.mxu0 %v4999
    %v5001 = vand.u32 %v190, 4294901760
    %5002 = vmatpush.msra.mxu0 %v5001
    %v5003 = vand.u32 %v188, 4294901760
    %5004 = vmatpush.msra.mxu0 %v5003
    %v5005 = vand.u32 %v186, 4294901760
    %5006 = vmatpush.msra.mxu0 %v5005
    %v5007 = vand.u32 %v184, 4294901760
    %5008 = vmatpush.msra.mxu0 %v5007
    %v5009 = vand.u32 %v182, 4294901760
    %5010 = vmatpush.msra.mxu0 %v5009
    %v5011 = vand.u32 %v180, 4294901760
    %5012 = vmatpush.msra.mxu0 %v5011
    %v5013 = vand.u32 %v178, 4294901760
    %5014 = vmatpush.msra.mxu0 %v5013
    %v5015 = vand.u32 %v176, 4294901760
    %5016 = vmatpush.msra.mxu0 %v5015
    %v5017 = vand.u32 %v174, 4294901760
    %5018 = vmatpush.msra.mxu0 %v5017
    %v5019 = vand.u32 %v172, 4294901760
    %5020 = vmatpush.msra.mxu0 %v5019
    %v5021 = vand.u32 %v170, 4294901760
    %5022 = vmatpush.msra.mxu0 %v5021
    %v5023 = vand.u32 %v4111, 4294901760
    %v5024 = vsub.f32 %v4111, %v5023
    %v5025 = vand.u32 %v5024, 4294901760
    %5026 = vmatmul.f32.gmra.mxu0 %v5025
    %v5027 = vpop.f32.mrf.mxu0
    %v5028 = vadd.f32 %v4989, %v5027
    %5029 = vdwg.mxu0
    %v5030 = vand.u32 %v200, 4294901760
    %v5031 = vsub.f32 %v200, %v5030
    %v5032 = vand.u32 %v5031, 4294901760
    %5033 = vmatpush.msra.mxu0 %v5032
    %v5034 = vand.u32 %v198, 4294901760
    %v5035 = vsub.f32 %v198, %v5034
    %v5036 = vand.u32 %v5035, 4294901760
    %5037 = vmatpush.msra.mxu0 %v5036
    %v5038 = vand.u32 %v196, 4294901760
    %v5039 = vsub.f32 %v196, %v5038
    %v5040 = vand.u32 %v5039, 4294901760
    %5041 = vmatpush.msra.mxu0 %v5040
    %v5042 = vand.u32 %v194, 4294901760
    %v5043 = vsub.f32 %v194, %v5042
    %v5044 = vand.u32 %v5043, 4294901760
    %5045 = vmatpush.msra.mxu0 %v5044
    %v5046 = vand.u32 %v192, 4294901760
    %v5047 = vsub.f32 %v192, %v5046
    %v5048 = vand.u32 %v5047, 4294901760
    %5049 = vmatpush.msra.mxu0 %v5048
    %v5050 = vand.u32 %v190, 4294901760
    %v5051 = vsub.f32 %v190, %v5050
    %v5052 = vand.u32 %v5051, 4294901760
    %5053 = vmatpush.msra.mxu0 %v5052
    %v5054 = vand.u32 %v188, 4294901760
    %v5055 = vsub.f32 %v188, %v5054
    %v5056 = vand.u32 %v5055, 4294901760
    %5057 = vmatpush.msra.mxu0 %v5056
    %v5058 = vand.u32 %v186, 4294901760
    %v5059 = vsub.f32 %v186, %v5058
    %v5060 = vand.u32 %v5059, 4294901760
    %5061 = vmatpush.msra.mxu0 %v5060
    %v5062 = vand.u32 %v184, 4294901760
    %v5063 = vsub.f32 %v184, %v5062
    %v5064 = vand.u32 %v5063, 4294901760
    %5065 = vmatpush.msra.mxu0 %v5064
    %v5066 = vand.u32 %v182, 4294901760
    %v5067 = vsub.f32 %v182, %v5066
    %v5068 = vand.u32 %v5067, 4294901760
    %5069 = vmatpush.msra.mxu0 %v5068
    %v5070 = vand.u32 %v180, 4294901760
    %v5071 = vsub.f32 %v180, %v5070
    %v5072 = vand.u32 %v5071, 4294901760
    %5073 = vmatpush.msra.mxu0 %v5072
    %v5074 = vand.u32 %v178, 4294901760
    %v5075 = vsub.f32 %v178, %v5074
    %v5076 = vand.u32 %v5075, 4294901760
    %5077 = vmatpush.msra.mxu0 %v5076
    %v5078 = vand.u32 %v176, 4294901760
    %v5079 = vsub.f32 %v176, %v5078
    %v5080 = vand.u32 %v5079, 4294901760
    %5081 = vmatpush.msra.mxu0 %v5080
    %v5082 = vand.u32 %v174, 4294901760
    %v5083 = vsub.f32 %v174, %v5082
    %v5084 = vand.u32 %v5083, 4294901760
    %5085 = vmatpush.msra.mxu0 %v5084
    %v5086 = vand.u32 %v172, 4294901760
    %v5087 = vsub.f32 %v172, %v5086
    %v5088 = vand.u32 %v5087, 4294901760
    %5089 = vmatpush.msra.mxu0 %v5088
    %v5090 = vand.u32 %v170, 4294901760
    %v5091 = vsub.f32 %v170, %v5090
    %v5092 = vand.u32 %v5091, 4294901760
    %5093 = vmatpush.msra.mxu0 %v5092
    %v5094 = vand.u32 %v4111, 4294901760
    %5095 = vmatmul.f32.gmra.mxu0 %v5094
    %v5096 = vpop.f32.mrf.mxu0
    %v5097 = vadd.f32 %v5028, %v5096
    %5098 = vdwg.mxu0
    %v5099 = vand.u32 %v200, 4294901760
    %5100 = vmatpush.msra.mxu0 %v5099
    %v5101 = vand.u32 %v198, 4294901760
    %5102 = vmatpush.msra.mxu0 %v5101
    %v5103 = vand.u32 %v196, 4294901760
    %5104 = vmatpush.msra.mxu0 %v5103
    %v5105 = vand.u32 %v194, 4294901760
    %5106 = vmatpush.msra.mxu0 %v5105
    %v5107 = vand.u32 %v192, 4294901760
    %5108 = vmatpush.msra.mxu0 %v5107
    %v5109 = vand.u32 %v190, 4294901760
    %5110 = vmatpush.msra.mxu0 %v5109
    %v5111 = vand.u32 %v188, 4294901760
    %5112 = vmatpush.msra.mxu0 %v5111
    %v5113 = vand.u32 %v186, 4294901760
    %5114 = vmatpush.msra.mxu0 %v5113
    %v5115 = vand.u32 %v184, 4294901760
    %5116 = vmatpush.msra.mxu0 %v5115
    %v5117 = vand.u32 %v182, 4294901760
    %5118 = vmatpush.msra.mxu0 %v5117
    %v5119 = vand.u32 %v180, 4294901760
    %5120 = vmatpush.msra.mxu0 %v5119
    %v5121 = vand.u32 %v178, 4294901760
    %5122 = vmatpush.msra.mxu0 %v5121
    %v5123 = vand.u32 %v176, 4294901760
    %5124 = vmatpush.msra.mxu0 %v5123
    %v5125 = vand.u32 %v174, 4294901760
    %5126 = vmatpush.msra.mxu0 %v5125
    %v5127 = vand.u32 %v172, 4294901760
    %5128 = vmatpush.msra.mxu0 %v5127
    %v5129 = vand.u32 %v170, 4294901760
    %5130 = vmatpush.msra.mxu0 %v5129
    %v5131 = vand.u32 %v4111, 4294901760
    %5132 = vmatmul.f32.gmra.mxu0 %v5131
    %v5133 = vpop.f32.mrf.mxu0
    %v5134 = vadd.f32 %v5097, %v5133
    %5135 = vdwg.mxu0
    %v5136 = vand.u32 %v232, 4294901760
    %5137 = vmatpush.msra.mxu0 %v5136
    %v5138 = vand.u32 %v230, 4294901760
    %5139 = vmatpush.msra.mxu0 %v5138
    %v5140 = vand.u32 %v228, 4294901760
    %5141 = vmatpush.msra.mxu0 %v5140
    %v5142 = vand.u32 %v226, 4294901760
    %5143 = vmatpush.msra.mxu0 %v5142
    %v5144 = vand.u32 %v224, 4294901760
    %5145 = vmatpush.msra.mxu0 %v5144
    %v5146 = vand.u32 %v222, 4294901760
    %5147 = vmatpush.msra.mxu0 %v5146
    %v5148 = vand.u32 %v220, 4294901760
    %5149 = vmatpush.msra.mxu0 %v5148
    %v5150 = vand.u32 %v218, 4294901760
    %5151 = vmatpush.msra.mxu0 %v5150
    %v5152 = vand.u32 %v216, 4294901760
    %5153 = vmatpush.msra.mxu0 %v5152
    %v5154 = vand.u32 %v214, 4294901760
    %5155 = vmatpush.msra.mxu0 %v5154
    %v5156 = vand.u32 %v212, 4294901760
    %5157 = vmatpush.msra.mxu0 %v5156
    %v5158 = vand.u32 %v210, 4294901760
    %5159 = vmatpush.msra.mxu0 %v5158
    %v5160 = vand.u32 %v208, 4294901760
    %5161 = vmatpush.msra.mxu0 %v5160
    %v5162 = vand.u32 %v206, 4294901760
    %5163 = vmatpush.msra.mxu0 %v5162
    %v5164 = vand.u32 %v204, 4294901760
    %5165 = vmatpush.msra.mxu0 %v5164
    %v5166 = vand.u32 %v202, 4294901760
    %5167 = vmatpush.msra.mxu0 %v5166
    %v5168 = vand.u32 %v4112, 4294901760
    %v5169 = vsub.f32 %v4112, %v5168
    %v5170 = vand.u32 %v5169, 4294901760
    %v5171 = vsub.f32 %v5169, %v5170
    %v5172 = vand.u32 %v5171, 4294901760
    %5173 = vmatmul.f32.gmra.mxu0 %v5172
    %v5174 = vpop.f32.mrf.mxu0
    %v5175 = vadd.f32 %v5134, %v5174
    %5176 = vdwg.mxu0
    %v5177 = vand.u32 %v232, 4294901760
    %v5178 = vsub.f32 %v232, %v5177
    %v5179 = vand.u32 %v5178, 4294901760
    %v5180 = vsub.f32 %v5178, %v5179
    %v5181 = vand.u32 %v5180, 4294901760
    %5182 = vmatpush.msra.mxu0 %v5181
    %v5183 = vand.u32 %v230, 4294901760
    %v5184 = vsub.f32 %v230, %v5183
    %v5185 = vand.u32 %v5184, 4294901760
    %v5186 = vsub.f32 %v5184, %v5185
    %v5187 = vand.u32 %v5186, 4294901760
    %5188 = vmatpush.msra.mxu0 %v5187
    %v5189 = vand.u32 %v228, 4294901760
    %v5190 = vsub.f32 %v228, %v5189
    %v5191 = vand.u32 %v5190, 4294901760
    %v5192 = vsub.f32 %v5190, %v5191
    %v5193 = vand.u32 %v5192, 4294901760
    %5194 = vmatpush.msra.mxu0 %v5193
    %v5195 = vand.u32 %v226, 4294901760
    %v5196 = vsub.f32 %v226, %v5195
    %v5197 = vand.u32 %v5196, 4294901760
    %v5198 = vsub.f32 %v5196, %v5197
    %v5199 = vand.u32 %v5198, 4294901760
    %5200 = vmatpush.msra.mxu0 %v5199
    %v5201 = vand.u32 %v224, 4294901760
    %v5202 = vsub.f32 %v224, %v5201
    %v5203 = vand.u32 %v5202, 4294901760
    %v5204 = vsub.f32 %v5202, %v5203
    %v5205 = vand.u32 %v5204, 4294901760
    %5206 = vmatpush.msra.mxu0 %v5205
    %v5207 = vand.u32 %v222, 4294901760
    %v5208 = vsub.f32 %v222, %v5207
    %v5209 = vand.u32 %v5208, 4294901760
    %v5210 = vsub.f32 %v5208, %v5209
    %v5211 = vand.u32 %v5210, 4294901760
    %5212 = vmatpush.msra.mxu0 %v5211
    %v5213 = vand.u32 %v220, 4294901760
    %v5214 = vsub.f32 %v220, %v5213
    %v5215 = vand.u32 %v5214, 4294901760
    %v5216 = vsub.f32 %v5214, %v5215
    %v5217 = vand.u32 %v5216, 4294901760
    %5218 = vmatpush.msra.mxu0 %v5217
    %v5219 = vand.u32 %v218, 4294901760
    %v5220 = vsub.f32 %v218, %v5219
    %v5221 = vand.u32 %v5220, 4294901760
    %v5222 = vsub.f32 %v5220, %v5221
    %v5223 = vand.u32 %v5222, 4294901760
    %5224 = vmatpush.msra.mxu0 %v5223
    %v5225 = vand.u32 %v216, 4294901760
    %v5226 = vsub.f32 %v216, %v5225
    %v5227 = vand.u32 %v5226, 4294901760
    %v5228 = vsub.f32 %v5226, %v5227
    %v5229 = vand.u32 %v5228, 4294901760
    %5230 = vmatpush.msra.mxu0 %v5229
    %v5231 = vand.u32 %v214, 4294901760
    %v5232 = vsub.f32 %v214, %v5231
    %v5233 = vand.u32 %v5232, 4294901760
    %v5234 = vsub.f32 %v5232, %v5233
    %v5235 = vand.u32 %v5234, 4294901760
    %5236 = vmatpush.msra.mxu0 %v5235
    %v5237 = vand.u32 %v212, 4294901760
    %v5238 = vsub.f32 %v212, %v5237
    %v5239 = vand.u32 %v5238, 4294901760
    %v5240 = vsub.f32 %v5238, %v5239
    %v5241 = vand.u32 %v5240, 4294901760
    %5242 = vmatpush.msra.mxu0 %v5241
    %v5243 = vand.u32 %v210, 4294901760
    %v5244 = vsub.f32 %v210, %v5243
    %v5245 = vand.u32 %v5244, 4294901760
    %v5246 = vsub.f32 %v5244, %v5245
    %v5247 = vand.u32 %v5246, 4294901760
    %5248 = vmatpush.msra.mxu0 %v5247
    %v5249 = vand.u32 %v208, 4294901760
    %v5250 = vsub.f32 %v208, %v5249
    %v5251 = vand.u32 %v5250, 4294901760
    %v5252 = vsub.f32 %v5250, %v5251
    %v5253 = vand.u32 %v5252, 4294901760
    %5254 = vmatpush.msra.mxu0 %v5253
    %v5255 = vand.u32 %v206, 4294901760
    %v5256 = vsub.f32 %v206, %v5255
    %v5257 = vand.u32 %v5256, 4294901760
    %v5258 = vsub.f32 %v5256, %v5257
    %v5259 = vand.u32 %v5258, 4294901760
    %5260 = vmatpush.msra.mxu0 %v5259
    %v5261 = vand.u32 %v204, 4294901760
    %v5262 = vsub.f32 %v204, %v5261
    %v5263 = vand.u32 %v5262, 4294901760
    %v5264 = vsub.f32 %v5262, %v5263
    %v5265 = vand.u32 %v5264, 4294901760
    %5266 = vmatpush.msra.mxu0 %v5265
    %v5267 = vand.u32 %v202, 4294901760
    %v5268 = vsub.f32 %v202, %v5267
    %v5269 = vand.u32 %v5268, 4294901760
    %v5270 = vsub.f32 %v5268, %v5269
    %v5271 = vand.u32 %v5270, 4294901760
    %5272 = vmatpush.msra.mxu0 %v5271
    %v5273 = vand.u32 %v4112, 4294901760
    %5274 = vmatmul.f32.gmra.mxu0 %v5273
    %v5275 = vpop.f32.mrf.mxu0
    %v5276 = vadd.f32 %v5175, %v5275
    %5277 = vdwg.mxu0
    %v5278 = vand.u32 %v232, 4294901760
    %v5279 = vsub.f32 %v232, %v5278
    %5280 = vmatpush.msra.mxu0 %v5279
    %v5281 = vand.u32 %v230, 4294901760
    %v5282 = vsub.f32 %v230, %v5281
    %5283 = vmatpush.msra.mxu0 %v5282
    %v5284 = vand.u32 %v228, 4294901760
    %v5285 = vsub.f32 %v228, %v5284
    %5286 = vmatpush.msra.mxu0 %v5285
    %v5287 = vand.u32 %v226, 4294901760
    %v5288 = vsub.f32 %v226, %v5287
    %5289 = vmatpush.msra.mxu0 %v5288
    %v5290 = vand.u32 %v224, 4294901760
    %v5291 = vsub.f32 %v224, %v5290
    %5292 = vmatpush.msra.mxu0 %v5291
    %v5293 = vand.u32 %v222, 4294901760
    %v5294 = vsub.f32 %v222, %v5293
    %5295 = vmatpush.msra.mxu0 %v5294
    %v5296 = vand.u32 %v220, 4294901760
    %v5297 = vsub.f32 %v220, %v5296
    %5298 = vmatpush.msra.mxu0 %v5297
    %v5299 = vand.u32 %v218, 4294901760
    %v5300 = vsub.f32 %v218, %v5299
    %5301 = vmatpush.msra.mxu0 %v5300
    %v5302 = vand.u32 %v216, 4294901760
    %v5303 = vsub.f32 %v216, %v5302
    %5304 = vmatpush.msra.mxu0 %v5303
    %v5305 = vand.u32 %v214, 4294901760
    %v5306 = vsub.f32 %v214, %v5305
    %5307 = vmatpush.msra.mxu0 %v5306
    %v5308 = vand.u32 %v212, 4294901760
    %v5309 = vsub.f32 %v212, %v5308
    %5310 = vmatpush.msra.mxu0 %v5309
    %v5311 = vand.u32 %v210, 4294901760
    %v5312 = vsub.f32 %v210, %v5311
    %5313 = vmatpush.msra.mxu0 %v5312
    %v5314 = vand.u32 %v208, 4294901760
    %v5315 = vsub.f32 %v208, %v5314
    %5316 = vmatpush.msra.mxu0 %v5315
    %v5317 = vand.u32 %v206, 4294901760
    %v5318 = vsub.f32 %v206, %v5317
    %5319 = vmatpush.msra.mxu0 %v5318
    %v5320 = vand.u32 %v204, 4294901760
    %v5321 = vsub.f32 %v204, %v5320
    %5322 = vmatpush.msra.mxu0 %v5321
    %v5323 = vand.u32 %v202, 4294901760
    %v5324 = vsub.f32 %v202, %v5323
    %5325 = vmatpush.msra.mxu0 %v5324
    %v5326 = vand.u32 %v4112, 4294901760
    %v5327 = vsub.f32 %v4112, %v5326
    %5328 = vmatmul.f32.gmra.mxu0 %v5327
    %v5329 = vpop.f32.mrf.mxu0
    %v5330 = vadd.f32 %v5276, %v5329
    %5331 = vdwg.mxu0
    %v5332 = vand.u32 %v232, 4294901760
    %5333 = vmatpush.msra.mxu0 %v5332
    %v5334 = vand.u32 %v230, 4294901760
    %5335 = vmatpush.msra.mxu0 %v5334
    %v5336 = vand.u32 %v228, 4294901760
    %5337 = vmatpush.msra.mxu0 %v5336
    %v5338 = vand.u32 %v226, 4294901760
    %5339 = vmatpush.msra.mxu0 %v5338
    %v5340 = vand.u32 %v224, 4294901760
    %5341 = vmatpush.msra.mxu0 %v5340
    %v5342 = vand.u32 %v222, 4294901760
    %5343 = vmatpush.msra.mxu0 %v5342
    %v5344 = vand.u32 %v220, 4294901760
    %5345 = vmatpush.msra.mxu0 %v5344
    %v5346 = vand.u32 %v218, 4294901760
    %5347 = vmatpush.msra.mxu0 %v5346
    %v5348 = vand.u32 %v216, 4294901760
    %5349 = vmatpush.msra.mxu0 %v5348
    %v5350 = vand.u32 %v214, 4294901760
    %5351 = vmatpush.msra.mxu0 %v5350
    %v5352 = vand.u32 %v212, 4294901760
    %5353 = vmatpush.msra.mxu0 %v5352
    %v5354 = vand.u32 %v210, 4294901760
    %5355 = vmatpush.msra.mxu0 %v5354
    %v5356 = vand.u32 %v208, 4294901760
    %5357 = vmatpush.msra.mxu0 %v5356
    %v5358 = vand.u32 %v206, 4294901760
    %5359 = vmatpush.msra.mxu0 %v5358
    %v5360 = vand.u32 %v204, 4294901760
    %5361 = vmatpush.msra.mxu0 %v5360
    %v5362 = vand.u32 %v202, 4294901760
    %5363 = vmatpush.msra.mxu0 %v5362
    %v5364 = vand.u32 %v4112, 4294901760
    %v5365 = vsub.f32 %v4112, %v5364
    %v5366 = vand.u32 %v5365, 4294901760
    %5367 = vmatmul.f32.gmra.mxu0 %v5366
    %v5368 = vpop.f32.mrf.mxu0
    %v5369 = vadd.f32 %v5330, %v5368
    %5370 = vdwg.mxu0
    %v5371 = vand.u32 %v232, 4294901760
    %v5372 = vsub.f32 %v232, %v5371
    %v5373 = vand.u32 %v5372, 4294901760
    %5374 = vmatpush.msra.mxu0 %v5373
    %v5375 = vand.u32 %v230, 4294901760
    %v5376 = vsub.f32 %v230, %v5375
    %v5377 = vand.u32 %v5376, 4294901760
    %5378 = vmatpush.msra.mxu0 %v5377
    %v5379 = vand.u32 %v228, 4294901760
    %v5380 = vsub.f32 %v228, %v5379
    %v5381 = vand.u32 %v5380, 4294901760
    %5382 = vmatpush.msra.mxu0 %v5381
    %v5383 = vand.u32 %v226, 4294901760
    %v5384 = vsub.f32 %v226, %v5383
    %v5385 = vand.u32 %v5384, 4294901760
    %5386 = vmatpush.msra.mxu0 %v5385
    %v5387 = vand.u32 %v224, 4294901760
    %v5388 = vsub.f32 %v224, %v5387
    %v5389 = vand.u32 %v5388, 4294901760
    %5390 = vmatpush.msra.mxu0 %v5389
    %v5391 = vand.u32 %v222, 4294901760
    %v5392 = vsub.f32 %v222, %v5391
    %v5393 = vand.u32 %v5392, 4294901760
    %5394 = vmatpush.msra.mxu0 %v5393
    %v5395 = vand.u32 %v220, 4294901760
    %v5396 = vsub.f32 %v220, %v5395
    %v5397 = vand.u32 %v5396, 4294901760
    %5398 = vmatpush.msra.mxu0 %v5397
    %v5399 = vand.u32 %v218, 4294901760
    %v5400 = vsub.f32 %v218, %v5399
    %v5401 = vand.u32 %v5400, 4294901760
    %5402 = vmatpush.msra.mxu0 %v5401
    %v5403 = vand.u32 %v216, 4294901760
    %v5404 = vsub.f32 %v216, %v5403
    %v5405 = vand.u32 %v5404, 4294901760
    %5406 = vmatpush.msra.mxu0 %v5405
    %v5407 = vand.u32 %v214, 4294901760
    %v5408 = vsub.f32 %v214, %v5407
    %v5409 = vand.u32 %v5408, 4294901760
    %5410 = vmatpush.msra.mxu0 %v5409
    %v5411 = vand.u32 %v212, 4294901760
    %v5412 = vsub.f32 %v212, %v5411
    %v5413 = vand.u32 %v5412, 4294901760
    %5414 = vmatpush.msra.mxu0 %v5413
    %v5415 = vand.u32 %v210, 4294901760
    %v5416 = vsub.f32 %v210, %v5415
    %v5417 = vand.u32 %v5416, 4294901760
    %5418 = vmatpush.msra.mxu0 %v5417
    %v5419 = vand.u32 %v208, 4294901760
    %v5420 = vsub.f32 %v208, %v5419
    %v5421 = vand.u32 %v5420, 4294901760
    %5422 = vmatpush.msra.mxu0 %v5421
    %v5423 = vand.u32 %v206, 4294901760
    %v5424 = vsub.f32 %v206, %v5423
    %v5425 = vand.u32 %v5424, 4294901760
    %5426 = vmatpush.msra.mxu0 %v5425
    %v5427 = vand.u32 %v204, 4294901760
    %v5428 = vsub.f32 %v204, %v5427
    %v5429 = vand.u32 %v5428, 4294901760
    %5430 = vmatpush.msra.mxu0 %v5429
    %v5431 = vand.u32 %v202, 4294901760
    %v5432 = vsub.f32 %v202, %v5431
    %v5433 = vand.u32 %v5432, 4294901760
    %5434 = vmatpush.msra.mxu0 %v5433
    %v5435 = vand.u32 %v4112, 4294901760
    %5436 = vmatmul.f32.gmra.mxu0 %v5435
    %v5437 = vpop.f32.mrf.mxu0
    %v5438 = vadd.f32 %v5369, %v5437
    %5439 = vdwg.mxu0
    %v5440 = vand.u32 %v232, 4294901760
    %5441 = vmatpush.msra.mxu0 %v5440
    %v5442 = vand.u32 %v230, 4294901760
    %5443 = vmatpush.msra.mxu0 %v5442
    %v5444 = vand.u32 %v228, 4294901760
    %5445 = vmatpush.msra.mxu0 %v5444
    %v5446 = vand.u32 %v226, 4294901760
    %5447 = vmatpush.msra.mxu0 %v5446
    %v5448 = vand.u32 %v224, 4294901760
    %5449 = vmatpush.msra.mxu0 %v5448
    %v5450 = vand.u32 %v222, 4294901760
    %5451 = vmatpush.msra.mxu0 %v5450
    %v5452 = vand.u32 %v220, 4294901760
    %5453 = vmatpush.msra.mxu0 %v5452
    %v5454 = vand.u32 %v218, 4294901760
    %5455 = vmatpush.msra.mxu0 %v5454
    %v5456 = vand.u32 %v216, 4294901760
    %5457 = vmatpush.msra.mxu0 %v5456
    %v5458 = vand.u32 %v214, 4294901760
    %5459 = vmatpush.msra.mxu0 %v5458
    %v5460 = vand.u32 %v212, 4294901760
    %5461 = vmatpush.msra.mxu0 %v5460
    %v5462 = vand.u32 %v210, 4294901760
    %5463 = vmatpush.msra.mxu0 %v5462
    %v5464 = vand.u32 %v208, 4294901760
    %5465 = vmatpush.msra.mxu0 %v5464
    %v5466 = vand.u32 %v206, 4294901760
    %5467 = vmatpush.msra.mxu0 %v5466
    %v5468 = vand.u32 %v204, 4294901760
    %5469 = vmatpush.msra.mxu0 %v5468
    %v5470 = vand.u32 %v202, 4294901760
    %5471 = vmatpush.msra.mxu0 %v5470
    %v5472 = vand.u32 %v4112, 4294901760
    %5473 = vmatmul.f32.gmra.mxu0 %v5472
    %v5474 = vpop.f32.mrf.mxu0
    %v5475 = vadd.f32 %v5438, %v5474
    %5476 = vdwg.mxu0
    %v5477 = vand.u32 %v135, 4294901760
    %5478 = vmatpush.msra.mxu0 %v5477
    %v5479 = vand.u32 %v133, 4294901760
    %5480 = vmatpush.msra.mxu0 %v5479
    %v5481 = vand.u32 %v131, 4294901760
    %5482 = vmatpush.msra.mxu0 %v5481
    %v5483 = vand.u32 %v129, 4294901760
    %5484 = vmatpush.msra.mxu0 %v5483
    %v5485 = vand.u32 %v127, 4294901760
    %5486 = vmatpush.msra.mxu0 %v5485
    %v5487 = vand.u32 %v125, 4294901760
    %5488 = vmatpush.msra.mxu0 %v5487
    %v5489 = vand.u32 %v123, 4294901760
    %5490 = vmatpush.msra.mxu0 %v5489
    %v5491 = vand.u32 %v121, 4294901760
    %5492 = vmatpush.msra.mxu0 %v5491
    %v5493 = vand.u32 %v119, 4294901760
    %5494 = vmatpush.msra.mxu0 %v5493
    %v5495 = vand.u32 %v117, 4294901760
    %5496 = vmatpush.msra.mxu0 %v5495
    %v5497 = vand.u32 %v115, 4294901760
    %5498 = vmatpush.msra.mxu0 %v5497
    %v5499 = vand.u32 %v113, 4294901760
    %5500 = vmatpush.msra.mxu0 %v5499
    %v5501 = vand.u32 %v111, 4294901760
    %5502 = vmatpush.msra.mxu0 %v5501
    %v5503 = vand.u32 %v109, 4294901760
    %5504 = vmatpush.msra.mxu0 %v5503
    %v5505 = vand.u32 %v107, 4294901760
    %5506 = vmatpush.msra.mxu0 %v5505
    %v5507 = vand.u32 %v105, 4294901760
    %5508 = vmatpush.msra.mxu0 %v5507
    %v5509 = vand.u32 %v4107, 4294901760
    %v5510 = vsub.f32 %v4107, %v5509
    %v5511 = vand.u32 %v5510, 4294901760
    %v5512 = vsub.f32 %v5510, %v5511
    %v5513 = vand.u32 %v5512, 4294901760
    %5514 = vmatmul.f32.gmra.mxu0 %v5513
    %v5515 = vpop.f32.mrf.mxu0
    %v5516 = vadd.f32 %v4793, %v5515
    %5517 = vdwg.mxu0
    %v5518 = vand.u32 %v135, 4294901760
    %v5519 = vsub.f32 %v135, %v5518
    %v5520 = vand.u32 %v5519, 4294901760
    %v5521 = vsub.f32 %v5519, %v5520
    %v5522 = vand.u32 %v5521, 4294901760
    %5523 = vmatpush.msra.mxu0 %v5522
    %v5524 = vand.u32 %v133, 4294901760
    %v5525 = vsub.f32 %v133, %v5524
    %v5526 = vand.u32 %v5525, 4294901760
    %v5527 = vsub.f32 %v5525, %v5526
    %v5528 = vand.u32 %v5527, 4294901760
    %5529 = vmatpush.msra.mxu0 %v5528
    %v5530 = vand.u32 %v131, 4294901760
    %v5531 = vsub.f32 %v131, %v5530
    %v5532 = vand.u32 %v5531, 4294901760
    %v5533 = vsub.f32 %v5531, %v5532
    %v5534 = vand.u32 %v5533, 4294901760
    %5535 = vmatpush.msra.mxu0 %v5534
    %v5536 = vand.u32 %v129, 4294901760
    %v5537 = vsub.f32 %v129, %v5536
    %v5538 = vand.u32 %v5537, 4294901760
    %v5539 = vsub.f32 %v5537, %v5538
    %v5540 = vand.u32 %v5539, 4294901760
    %5541 = vmatpush.msra.mxu0 %v5540
    %v5542 = vand.u32 %v127, 4294901760
    %v5543 = vsub.f32 %v127, %v5542
    %v5544 = vand.u32 %v5543, 4294901760
    %v5545 = vsub.f32 %v5543, %v5544
    %v5546 = vand.u32 %v5545, 4294901760
    %5547 = vmatpush.msra.mxu0 %v5546
    %v5548 = vand.u32 %v125, 4294901760
    %v5549 = vsub.f32 %v125, %v5548
    %v5550 = vand.u32 %v5549, 4294901760
    %v5551 = vsub.f32 %v5549, %v5550
    %v5552 = vand.u32 %v5551, 4294901760
    %5553 = vmatpush.msra.mxu0 %v5552
    %v5554 = vand.u32 %v123, 4294901760
    %v5555 = vsub.f32 %v123, %v5554
    %v5556 = vand.u32 %v5555, 4294901760
    %v5557 = vsub.f32 %v5555, %v5556
    %v5558 = vand.u32 %v5557, 4294901760
    %5559 = vmatpush.msra.mxu0 %v5558
    %v5560 = vand.u32 %v121, 4294901760
    %v5561 = vsub.f32 %v121, %v5560
    %v5562 = vand.u32 %v5561, 4294901760
    %v5563 = vsub.f32 %v5561, %v5562
    %v5564 = vand.u32 %v5563, 4294901760
    %5565 = vmatpush.msra.mxu0 %v5564
    %v5566 = vand.u32 %v119, 4294901760
    %v5567 = vsub.f32 %v119, %v5566
    %v5568 = vand.u32 %v5567, 4294901760
    %v5569 = vsub.f32 %v5567, %v5568
    %v5570 = vand.u32 %v5569, 4294901760
    %5571 = vmatpush.msra.mxu0 %v5570
    %v5572 = vand.u32 %v117, 4294901760
    %v5573 = vsub.f32 %v117, %v5572
    %v5574 = vand.u32 %v5573, 4294901760
    %v5575 = vsub.f32 %v5573, %v5574
    %v5576 = vand.u32 %v5575, 4294901760
    %5577 = vmatpush.msra.mxu0 %v5576
    %v5578 = vand.u32 %v115, 4294901760
    %v5579 = vsub.f32 %v115, %v5578
    %v5580 = vand.u32 %v5579, 4294901760
    %v5581 = vsub.f32 %v5579, %v5580
    %v5582 = vand.u32 %v5581, 4294901760
    %5583 = vmatpush.msra.mxu0 %v5582
    %v5584 = vand.u32 %v113, 4294901760
    %v5585 = vsub.f32 %v113, %v5584
    %v5586 = vand.u32 %v5585, 4294901760
    %v5587 = vsub.f32 %v5585, %v5586
    %v5588 = vand.u32 %v5587, 4294901760
    %5589 = vmatpush.msra.mxu0 %v5588
    %v5590 = vand.u32 %v111, 4294901760
    %v5591 = vsub.f32 %v111, %v5590
    %v5592 = vand.u32 %v5591, 4294901760
    %v5593 = vsub.f32 %v5591, %v5592
    %v5594 = vand.u32 %v5593, 4294901760
    %5595 = vmatpush.msra.mxu0 %v5594
    %v5596 = vand.u32 %v109, 4294901760
    %v5597 = vsub.f32 %v109, %v5596
    %v5598 = vand.u32 %v5597, 4294901760
    %v5599 = vsub.f32 %v5597, %v5598
    %v5600 = vand.u32 %v5599, 4294901760
    %5601 = vmatpush.msra.mxu0 %v5600
    %v5602 = vand.u32 %v107, 4294901760
    %v5603 = vsub.f32 %v107, %v5602
    %v5604 = vand.u32 %v5603, 4294901760
    %v5605 = vsub.f32 %v5603, %v5604
    %v5606 = vand.u32 %v5605, 4294901760
    %5607 = vmatpush.msra.mxu0 %v5606
    %v5608 = vand.u32 %v105, 4294901760
    %v5609 = vsub.f32 %v105, %v5608
    %v5610 = vand.u32 %v5609, 4294901760
    %v5611 = vsub.f32 %v5609, %v5610
    %v5612 = vand.u32 %v5611, 4294901760
    %5613 = vmatpush.msra.mxu0 %v5612
    %v5614 = vand.u32 %v4107, 4294901760
    %5615 = vmatmul.f32.gmra.mxu0 %v5614
    %v5616 = vpop.f32.mrf.mxu0
    %v5617 = vadd.f32 %v5516, %v5616
    %5618 = vdwg.mxu0
    %v5619 = vand.u32 %v135, 4294901760
    %v5620 = vsub.f32 %v135, %v5619
    %5621 = vmatpush.msra.mxu0 %v5620
    %v5622 = vand.u32 %v133, 4294901760
    %v5623 = vsub.f32 %v133, %v5622
    %5624 = vmatpush.msra.mxu0 %v5623
    %v5625 = vand.u32 %v131, 4294901760
    %v5626 = vsub.f32 %v131, %v5625
    %5627 = vmatpush.msra.mxu0 %v5626
    %v5628 = vand.u32 %v129, 4294901760
    %v5629 = vsub.f32 %v129, %v5628
    %5630 = vmatpush.msra.mxu0 %v5629
    %v5631 = vand.u32 %v127, 4294901760
    %v5632 = vsub.f32 %v127, %v5631
    %5633 = vmatpush.msra.mxu0 %v5632
    %v5634 = vand.u32 %v125, 4294901760
    %v5635 = vsub.f32 %v125, %v5634
    %5636 = vmatpush.msra.mxu0 %v5635
    %v5637 = vand.u32 %v123, 4294901760
    %v5638 = vsub.f32 %v123, %v5637
    %5639 = vmatpush.msra.mxu0 %v5638
    %v5640 = vand.u32 %v121, 4294901760
    %v5641 = vsub.f32 %v121, %v5640
    %5642 = vmatpush.msra.mxu0 %v5641
    %v5643 = vand.u32 %v119, 4294901760
    %v5644 = vsub.f32 %v119, %v5643
    %5645 = vmatpush.msra.mxu0 %v5644
    %v5646 = vand.u32 %v117, 4294901760
    %v5647 = vsub.f32 %v117, %v5646
    %5648 = vmatpush.msra.mxu0 %v5647
    %v5649 = vand.u32 %v115, 4294901760
    %v5650 = vsub.f32 %v115, %v5649
    %5651 = vmatpush.msra.mxu0 %v5650
    %v5652 = vand.u32 %v113, 4294901760
    %v5653 = vsub.f32 %v113, %v5652
    %5654 = vmatpush.msra.mxu0 %v5653
    %v5655 = vand.u32 %v111, 4294901760
    %v5656 = vsub.f32 %v111, %v5655
    %5657 = vmatpush.msra.mxu0 %v5656
    %v5658 = vand.u32 %v109, 4294901760
    %v5659 = vsub.f32 %v109, %v5658
    %5660 = vmatpush.msra.mxu0 %v5659
    %v5661 = vand.u32 %v107, 4294901760
    %v5662 = vsub.f32 %v107, %v5661
    %5663 = vmatpush.msra.mxu0 %v5662
    %v5664 = vand.u32 %v105, 4294901760
    %v5665 = vsub.f32 %v105, %v5664
    %5666 = vmatpush.msra.mxu0 %v5665
    %v5667 = vand.u32 %v4107, 4294901760
    %v5668 = vsub.f32 %v4107, %v5667
    %5669 = vmatmul.f32.gmra.mxu0 %v5668
    %v5670 = vpop.f32.mrf.mxu0
    %v5671 = vadd.f32 %v5617, %v5670
    %5672 = vdwg.mxu0
    %v5673 = vand.u32 %v135, 4294901760
    %5674 = vmatpush.msra.mxu0 %v5673
    %v5675 = vand.u32 %v133, 4294901760
    %5676 = vmatpush.msra.mxu0 %v5675
    %v5677 = vand.u32 %v131, 4294901760
    %5678 = vmatpush.msra.mxu0 %v5677
    %v5679 = vand.u32 %v129, 4294901760
    %5680 = vmatpush.msra.mxu0 %v5679
    %v5681 = vand.u32 %v127, 4294901760
    %5682 = vmatpush.msra.mxu0 %v5681
    %v5683 = vand.u32 %v125, 4294901760
    %5684 = vmatpush.msra.mxu0 %v5683
    %v5685 = vand.u32 %v123, 4294901760
    %5686 = vmatpush.msra.mxu0 %v5685
    %v5687 = vand.u32 %v121, 4294901760
    %5688 = vmatpush.msra.mxu0 %v5687
    %v5689 = vand.u32 %v119, 4294901760
    %5690 = vmatpush.msra.mxu0 %v5689
    %v5691 = vand.u32 %v117, 4294901760
    %5692 = vmatpush.msra.mxu0 %v5691
    %v5693 = vand.u32 %v115, 4294901760
    %5694 = vmatpush.msra.mxu0 %v5693
    %v5695 = vand.u32 %v113, 4294901760
    %5696 = vmatpush.msra.mxu0 %v5695
    %v5697 = vand.u32 %v111, 4294901760
    %5698 = vmatpush.msra.mxu0 %v5697
    %v5699 = vand.u32 %v109, 4294901760
    %5700 = vmatpush.msra.mxu0 %v5699
    %v5701 = vand.u32 %v107, 4294901760
    %5702 = vmatpush.msra.mxu0 %v5701
    %v5703 = vand.u32 %v105, 4294901760
    %5704 = vmatpush.msra.mxu0 %v5703
    %v5705 = vand.u32 %v4107, 4294901760
    %v5706 = vsub.f32 %v4107, %v5705
    %v5707 = vand.u32 %v5706, 4294901760
    %5708 = vmatmul.f32.gmra.mxu0 %v5707
    %v5709 = vpop.f32.mrf.mxu0
    %v5710 = vadd.f32 %v5671, %v5709
    %5711 = vdwg.mxu0
    %v5712 = vand.u32 %v135, 4294901760
    %v5713 = vsub.f32 %v135, %v5712
    %v5714 = vand.u32 %v5713, 4294901760
    %5715 = vmatpush.msra.mxu0 %v5714
    %v5716 = vand.u32 %v133, 4294901760
    %v5717 = vsub.f32 %v133, %v5716
    %v5718 = vand.u32 %v5717, 4294901760
    %5719 = vmatpush.msra.mxu0 %v5718
    %v5720 = vand.u32 %v131, 4294901760
    %v5721 = vsub.f32 %v131, %v5720
    %v5722 = vand.u32 %v5721, 4294901760
    %5723 = vmatpush.msra.mxu0 %v5722
    %v5724 = vand.u32 %v129, 4294901760
    %v5725 = vsub.f32 %v129, %v5724
    %v5726 = vand.u32 %v5725, 4294901760
    %5727 = vmatpush.msra.mxu0 %v5726
    %v5728 = vand.u32 %v127, 4294901760
    %v5729 = vsub.f32 %v127, %v5728
    %v5730 = vand.u32 %v5729, 4294901760
    %5731 = vmatpush.msra.mxu0 %v5730
    %v5732 = vand.u32 %v125, 4294901760
    %v5733 = vsub.f32 %v125, %v5732
    %v5734 = vand.u32 %v5733, 4294901760
    %5735 = vmatpush.msra.mxu0 %v5734
    %v5736 = vand.u32 %v123, 4294901760
    %v5737 = vsub.f32 %v123, %v5736
    %v5738 = vand.u32 %v5737, 4294901760
    %5739 = vmatpush.msra.mxu0 %v5738
    %v5740 = vand.u32 %v121, 4294901760
    %v5741 = vsub.f32 %v121, %v5740
    %v5742 = vand.u32 %v5741, 4294901760
    %5743 = vmatpush.msra.mxu0 %v5742
    %v5744 = vand.u32 %v119, 4294901760
    %v5745 = vsub.f32 %v119, %v5744
    %v5746 = vand.u32 %v5745, 4294901760
    %5747 = vmatpush.msra.mxu0 %v5746
    %v5748 = vand.u32 %v117, 4294901760
    %v5749 = vsub.f32 %v117, %v5748
    %v5750 = vand.u32 %v5749, 4294901760
    %5751 = vmatpush.msra.mxu0 %v5750
    %v5752 = vand.u32 %v115, 4294901760
    %v5753 = vsub.f32 %v115, %v5752
    %v5754 = vand.u32 %v5753, 4294901760
    %5755 = vmatpush.msra.mxu0 %v5754
    %v5756 = vand.u32 %v113, 4294901760
    %v5757 = vsub.f32 %v113, %v5756
    %v5758 = vand.u32 %v5757, 4294901760
    %5759 = vmatpush.msra.mxu0 %v5758
    %v5760 = vand.u32 %v111, 4294901760
    %v5761 = vsub.f32 %v111, %v5760
    %v5762 = vand.u32 %v5761, 4294901760
    %5763 = vmatpush.msra.mxu0 %v5762
    %v5764 = vand.u32 %v109, 4294901760
    %v5765 = vsub.f32 %v109, %v5764
    %v5766 = vand.u32 %v5765, 4294901760
    %5767 = vmatpush.msra.mxu0 %v5766
    %v5768 = vand.u32 %v107, 4294901760
    %v5769 = vsub.f32 %v107, %v5768
    %v5770 = vand.u32 %v5769, 4294901760
    %5771 = vmatpush.msra.mxu0 %v5770
    %v5772 = vand.u32 %v105, 4294901760
    %v5773 = vsub.f32 %v105, %v5772
    %v5774 = vand.u32 %v5773, 4294901760
    %5775 = vmatpush.msra.mxu0 %v5774
    %v5776 = vand.u32 %v4107, 4294901760
    %5777 = vmatmul.f32.gmra.mxu0 %v5776
    %v5778 = vpop.f32.mrf.mxu0
    %v5779 = vadd.f32 %v5710, %v5778
    %5780 = vdwg.mxu0
    %v5781 = vand.u32 %v135, 4294901760
    %5782 = vmatpush.msra.mxu0 %v5781
    %v5783 = vand.u32 %v133, 4294901760
    %5784 = vmatpush.msra.mxu0 %v5783
    %v5785 = vand.u32 %v131, 4294901760
    %5786 = vmatpush.msra.mxu0 %v5785
    %v5787 = vand.u32 %v129, 4294901760
    %5788 = vmatpush.msra.mxu0 %v5787
    %v5789 = vand.u32 %v127, 4294901760
    %5790 = vmatpush.msra.mxu0 %v5789
    %v5791 = vand.u32 %v125, 4294901760
    %5792 = vmatpush.msra.mxu0 %v5791
    %v5793 = vand.u32 %v123, 4294901760
    %5794 = vmatpush.msra.mxu0 %v5793
    %v5795 = vand.u32 %v121, 4294901760
    %5796 = vmatpush.msra.mxu0 %v5795
    %v5797 = vand.u32 %v119, 4294901760
    %5798 = vmatpush.msra.mxu0 %v5797
    %v5799 = vand.u32 %v117, 4294901760
    %5800 = vmatpush.msra.mxu0 %v5799
    %v5801 = vand.u32 %v115, 4294901760
    %5802 = vmatpush.msra.mxu0 %v5801
    %v5803 = vand.u32 %v113, 4294901760
    %5804 = vmatpush.msra.mxu0 %v5803
    %v5805 = vand.u32 %v111, 4294901760
    %5806 = vmatpush.msra.mxu0 %v5805
    %v5807 = vand.u32 %v109, 4294901760
    %5808 = vmatpush.msra.mxu0 %v5807
    %v5809 = vand.u32 %v107, 4294901760
    %5810 = vmatpush.msra.mxu0 %v5809
    %v5811 = vand.u32 %v105, 4294901760
    %5812 = vmatpush.msra.mxu0 %v5811
    %v5813 = vand.u32 %v4107, 4294901760
    %5814 = vmatmul.f32.gmra.mxu0 %v5813
    %v5815 = vpop.f32.mrf.mxu0
    %v5816 = vadd.f32 %v5779, %v5815
    %5817 = vdwg.mxu0
    %v5818 = vand.u32 %v167, 4294901760
    %5819 = vmatpush.msra.mxu0 %v5818
    %v5820 = vand.u32 %v165, 4294901760
    %5821 = vmatpush.msra.mxu0 %v5820
    %v5822 = vand.u32 %v163, 4294901760
    %5823 = vmatpush.msra.mxu0 %v5822
    %v5824 = vand.u32 %v161, 4294901760
    %5825 = vmatpush.msra.mxu0 %v5824
    %v5826 = vand.u32 %v159, 4294901760
    %5827 = vmatpush.msra.mxu0 %v5826
    %v5828 = vand.u32 %v157, 4294901760
    %5829 = vmatpush.msra.mxu0 %v5828
    %v5830 = vand.u32 %v155, 4294901760
    %5831 = vmatpush.msra.mxu0 %v5830
    %v5832 = vand.u32 %v153, 4294901760
    %5833 = vmatpush.msra.mxu0 %v5832
    %v5834 = vand.u32 %v151, 4294901760
    %5835 = vmatpush.msra.mxu0 %v5834
    %v5836 = vand.u32 %v149, 4294901760
    %5837 = vmatpush.msra.mxu0 %v5836
    %v5838 = vand.u32 %v147, 4294901760
    %5839 = vmatpush.msra.mxu0 %v5838
    %v5840 = vand.u32 %v145, 4294901760
    %5841 = vmatpush.msra.mxu0 %v5840
    %v5842 = vand.u32 %v143, 4294901760
    %5843 = vmatpush.msra.mxu0 %v5842
    %v5844 = vand.u32 %v141, 4294901760
    %5845 = vmatpush.msra.mxu0 %v5844
    %v5846 = vand.u32 %v139, 4294901760
    %5847 = vmatpush.msra.mxu0 %v5846
    %v5848 = vand.u32 %v137, 4294901760
    %5849 = vmatpush.msra.mxu0 %v5848
    %v5850 = vand.u32 %v4108, 4294901760
    %v5851 = vsub.f32 %v4108, %v5850
    %v5852 = vand.u32 %v5851, 4294901760
    %v5853 = vsub.f32 %v5851, %v5852
    %v5854 = vand.u32 %v5853, 4294901760
    %5855 = vmatmul.f32.gmra.mxu0 %v5854
    %v5856 = vpop.f32.mrf.mxu0
    %v5857 = vadd.f32 %v5816, %v5856
    %5858 = vdwg.mxu0
    %v5859 = vand.u32 %v167, 4294901760
    %v5860 = vsub.f32 %v167, %v5859
    %v5861 = vand.u32 %v5860, 4294901760
    %v5862 = vsub.f32 %v5860, %v5861
    %v5863 = vand.u32 %v5862, 4294901760
    %5864 = vmatpush.msra.mxu0 %v5863
    %v5865 = vand.u32 %v165, 4294901760
    %v5866 = vsub.f32 %v165, %v5865
    %v5867 = vand.u32 %v5866, 4294901760
    %v5868 = vsub.f32 %v5866, %v5867
    %v5869 = vand.u32 %v5868, 4294901760
    %5870 = vmatpush.msra.mxu0 %v5869
    %v5871 = vand.u32 %v163, 4294901760
    %v5872 = vsub.f32 %v163, %v5871
    %v5873 = vand.u32 %v5872, 4294901760
    %v5874 = vsub.f32 %v5872, %v5873
    %v5875 = vand.u32 %v5874, 4294901760
    %5876 = vmatpush.msra.mxu0 %v5875
    %v5877 = vand.u32 %v161, 4294901760
    %v5878 = vsub.f32 %v161, %v5877
    %v5879 = vand.u32 %v5878, 4294901760
    %v5880 = vsub.f32 %v5878, %v5879
    %v5881 = vand.u32 %v5880, 4294901760
    %5882 = vmatpush.msra.mxu0 %v5881
    %v5883 = vand.u32 %v159, 4294901760
    %v5884 = vsub.f32 %v159, %v5883
    %v5885 = vand.u32 %v5884, 4294901760
    %v5886 = vsub.f32 %v5884, %v5885
    %v5887 = vand.u32 %v5886, 4294901760
    %5888 = vmatpush.msra.mxu0 %v5887
    %v5889 = vand.u32 %v157, 4294901760
    %v5890 = vsub.f32 %v157, %v5889
    %v5891 = vand.u32 %v5890, 4294901760
    %v5892 = vsub.f32 %v5890, %v5891
    %v5893 = vand.u32 %v5892, 4294901760
    %5894 = vmatpush.msra.mxu0 %v5893
    %v5895 = vand.u32 %v155, 4294901760
    %v5896 = vsub.f32 %v155, %v5895
    %v5897 = vand.u32 %v5896, 4294901760
    %v5898 = vsub.f32 %v5896, %v5897
    %v5899 = vand.u32 %v5898, 4294901760
    %5900 = vmatpush.msra.mxu0 %v5899
    %v5901 = vand.u32 %v153, 4294901760
    %v5902 = vsub.f32 %v153, %v5901
    %v5903 = vand.u32 %v5902, 4294901760
    %v5904 = vsub.f32 %v5902, %v5903
    %v5905 = vand.u32 %v5904, 4294901760
    %5906 = vmatpush.msra.mxu0 %v5905
    %v5907 = vand.u32 %v151, 4294901760
    %v5908 = vsub.f32 %v151, %v5907
    %v5909 = vand.u32 %v5908, 4294901760
    %v5910 = vsub.f32 %v5908, %v5909
    %v5911 = vand.u32 %v5910, 4294901760
    %5912 = vmatpush.msra.mxu0 %v5911
    %v5913 = vand.u32 %v149, 4294901760
    %v5914 = vsub.f32 %v149, %v5913
    %v5915 = vand.u32 %v5914, 4294901760
    %v5916 = vsub.f32 %v5914, %v5915
    %v5917 = vand.u32 %v5916, 4294901760
    %5918 = vmatpush.msra.mxu0 %v5917
    %v5919 = vand.u32 %v147, 4294901760
    %v5920 = vsub.f32 %v147, %v5919
    %v5921 = vand.u32 %v5920, 4294901760
    %v5922 = vsub.f32 %v5920, %v5921
    %v5923 = vand.u32 %v5922, 4294901760
    %5924 = vmatpush.msra.mxu0 %v5923
    %v5925 = vand.u32 %v145, 4294901760
    %v5926 = vsub.f32 %v145, %v5925
    %v5927 = vand.u32 %v5926, 4294901760
    %v5928 = vsub.f32 %v5926, %v5927
    %v5929 = vand.u32 %v5928, 4294901760
    %5930 = vmatpush.msra.mxu0 %v5929
    %v5931 = vand.u32 %v143, 4294901760
    %v5932 = vsub.f32 %v143, %v5931
    %v5933 = vand.u32 %v5932, 4294901760
    %v5934 = vsub.f32 %v5932, %v5933
    %v5935 = vand.u32 %v5934, 4294901760
    %5936 = vmatpush.msra.mxu0 %v5935
    %v5937 = vand.u32 %v141, 4294901760
    %v5938 = vsub.f32 %v141, %v5937
    %v5939 = vand.u32 %v5938, 4294901760
    %v5940 = vsub.f32 %v5938, %v5939
    %v5941 = vand.u32 %v5940, 4294901760
    %5942 = vmatpush.msra.mxu0 %v5941
    %v5943 = vand.u32 %v139, 4294901760
    %v5944 = vsub.f32 %v139, %v5943
    %v5945 = vand.u32 %v5944, 4294901760
    %v5946 = vsub.f32 %v5944, %v5945
    %v5947 = vand.u32 %v5946, 4294901760
    %5948 = vmatpush.msra.mxu0 %v5947
    %v5949 = vand.u32 %v137, 4294901760
    %v5950 = vsub.f32 %v137, %v5949
    %v5951 = vand.u32 %v5950, 4294901760
    %v5952 = vsub.f32 %v5950, %v5951
    %v5953 = vand.u32 %v5952, 4294901760
    %5954 = vmatpush.msra.mxu0 %v5953
    %v5955 = vand.u32 %v4108, 4294901760
    %5956 = vmatmul.f32.gmra.mxu0 %v5955
    %v5957 = vpop.f32.mrf.mxu0
    %v5958 = vadd.f32 %v5857, %v5957
    %5959 = vdwg.mxu0
    %v5960 = vand.u32 %v167, 4294901760
    %v5961 = vsub.f32 %v167, %v5960
    %5962 = vmatpush.msra.mxu0 %v5961
    %v5963 = vand.u32 %v165, 4294901760
    %v5964 = vsub.f32 %v165, %v5963
    %5965 = vmatpush.msra.mxu0 %v5964
    %v5966 = vand.u32 %v163, 4294901760
    %v5967 = vsub.f32 %v163, %v5966
    %5968 = vmatpush.msra.mxu0 %v5967
    %v5969 = vand.u32 %v161, 4294901760
    %v5970 = vsub.f32 %v161, %v5969
    %5971 = vmatpush.msra.mxu0 %v5970
    %v5972 = vand.u32 %v159, 4294901760
    %v5973 = vsub.f32 %v159, %v5972
    %5974 = vmatpush.msra.mxu0 %v5973
    %v5975 = vand.u32 %v157, 4294901760
    %v5976 = vsub.f32 %v157, %v5975
    %5977 = vmatpush.msra.mxu0 %v5976
    %v5978 = vand.u32 %v155, 4294901760
    %v5979 = vsub.f32 %v155, %v5978
    %5980 = vmatpush.msra.mxu0 %v5979
    %v5981 = vand.u32 %v153, 4294901760
    %v5982 = vsub.f32 %v153, %v5981
    %5983 = vmatpush.msra.mxu0 %v5982
    %v5984 = vand.u32 %v151, 4294901760
    %v5985 = vsub.f32 %v151, %v5984
    %5986 = vmatpush.msra.mxu0 %v5985
    %v5987 = vand.u32 %v149, 4294901760
    %v5988 = vsub.f32 %v149, %v5987
    %5989 = vmatpush.msra.mxu0 %v5988
    %v5990 = vand.u32 %v147, 4294901760
    %v5991 = vsub.f32 %v147, %v5990
    %5992 = vmatpush.msra.mxu0 %v5991
    %v5993 = vand.u32 %v145, 4294901760
    %v5994 = vsub.f32 %v145, %v5993
    %5995 = vmatpush.msra.mxu0 %v5994
    %v5996 = vand.u32 %v143, 4294901760
    %v5997 = vsub.f32 %v143, %v5996
    %5998 = vmatpush.msra.mxu0 %v5997
    %v5999 = vand.u32 %v141, 4294901760
    %v6000 = vsub.f32 %v141, %v5999
    %6001 = vmatpush.msra.mxu0 %v6000
    %v6002 = vand.u32 %v139, 4294901760
    %v6003 = vsub.f32 %v139, %v6002
    %6004 = vmatpush.msra.mxu0 %v6003
    %v6005 = vand.u32 %v137, 4294901760
    %v6006 = vsub.f32 %v137, %v6005
    %6007 = vmatpush.msra.mxu0 %v6006
    %v6008 = vand.u32 %v4108, 4294901760
    %v6009 = vsub.f32 %v4108, %v6008
    %6010 = vmatmul.f32.gmra.mxu0 %v6009
    %v6011 = vpop.f32.mrf.mxu0
    %v6012 = vadd.f32 %v5958, %v6011
    %6013 = vdwg.mxu0
    %v6014 = vand.u32 %v167, 4294901760
    %6015 = vmatpush.msra.mxu0 %v6014
    %v6016 = vand.u32 %v165, 4294901760
    %6017 = vmatpush.msra.mxu0 %v6016
    %v6018 = vand.u32 %v163, 4294901760
    %6019 = vmatpush.msra.mxu0 %v6018
    %v6020 = vand.u32 %v161, 4294901760
    %6021 = vmatpush.msra.mxu0 %v6020
    %v6022 = vand.u32 %v159, 4294901760
    %6023 = vmatpush.msra.mxu0 %v6022
    %v6024 = vand.u32 %v157, 4294901760
    %6025 = vmatpush.msra.mxu0 %v6024
    %v6026 = vand.u32 %v155, 4294901760
    %6027 = vmatpush.msra.mxu0 %v6026
    %v6028 = vand.u32 %v153, 4294901760
    %6029 = vmatpush.msra.mxu0 %v6028
    %v6030 = vand.u32 %v151, 4294901760
    %6031 = vmatpush.msra.mxu0 %v6030
    %v6032 = vand.u32 %v149, 4294901760
    %6033 = vmatpush.msra.mxu0 %v6032
    %v6034 = vand.u32 %v147, 4294901760
    %6035 = vmatpush.msra.mxu0 %v6034
    %v6036 = vand.u32 %v145, 4294901760
    %6037 = vmatpush.msra.mxu0 %v6036
    %v6038 = vand.u32 %v143, 4294901760
    %6039 = vmatpush.msra.mxu0 %v6038
    %v6040 = vand.u32 %v141, 4294901760
    %6041 = vmatpush.msra.mxu0 %v6040
    %v6042 = vand.u32 %v139, 4294901760
    %6043 = vmatpush.msra.mxu0 %v6042
    %v6044 = vand.u32 %v137, 4294901760
    %6045 = vmatpush.msra.mxu0 %v6044
    %v6046 = vand.u32 %v4108, 4294901760
    %v6047 = vsub.f32 %v4108, %v6046
    %v6048 = vand.u32 %v6047, 4294901760
    %6049 = vmatmul.f32.gmra.mxu0 %v6048
    %v6050 = vpop.f32.mrf.mxu0
    %v6051 = vadd.f32 %v6012, %v6050
    %6052 = vdwg.mxu0
    %v6053 = vand.u32 %v167, 4294901760
    %v6054 = vsub.f32 %v167, %v6053
    %v6055 = vand.u32 %v6054, 4294901760
    %6056 = vmatpush.msra.mxu0 %v6055
    %v6057 = vand.u32 %v165, 4294901760
    %v6058 = vsub.f32 %v165, %v6057
    %v6059 = vand.u32 %v6058, 4294901760
    %6060 = vmatpush.msra.mxu0 %v6059
    %v6061 = vand.u32 %v163, 4294901760
    %v6062 = vsub.f32 %v163, %v6061
    %v6063 = vand.u32 %v6062, 4294901760
    %6064 = vmatpush.msra.mxu0 %v6063
    %v6065 = vand.u32 %v161, 4294901760
    %v6066 = vsub.f32 %v161, %v6065
    %v6067 = vand.u32 %v6066, 4294901760
    %6068 = vmatpush.msra.mxu0 %v6067
    %v6069 = vand.u32 %v159, 4294901760
    %v6070 = vsub.f32 %v159, %v6069
    %v6071 = vand.u32 %v6070, 4294901760
    %6072 = vmatpush.msra.mxu0 %v6071
    %v6073 = vand.u32 %v157, 4294901760
    %v6074 = vsub.f32 %v157, %v6073
    %v6075 = vand.u32 %v6074, 4294901760
    %6076 = vmatpush.msra.mxu0 %v6075
    %v6077 = vand.u32 %v155, 4294901760
    %v6078 = vsub.f32 %v155, %v6077
    %v6079 = vand.u32 %v6078, 4294901760
    %6080 = vmatpush.msra.mxu0 %v6079
    %v6081 = vand.u32 %v153, 4294901760
    %v6082 = vsub.f32 %v153, %v6081
    %v6083 = vand.u32 %v6082, 4294901760
    %6084 = vmatpush.msra.mxu0 %v6083
    %v6085 = vand.u32 %v151, 4294901760
    %v6086 = vsub.f32 %v151, %v6085
    %v6087 = vand.u32 %v6086, 4294901760
    %6088 = vmatpush.msra.mxu0 %v6087
    %v6089 = vand.u32 %v149, 4294901760
    %v6090 = vsub.f32 %v149, %v6089
    %v6091 = vand.u32 %v6090, 4294901760
    %6092 = vmatpush.msra.mxu0 %v6091
    %v6093 = vand.u32 %v147, 4294901760
    %v6094 = vsub.f32 %v147, %v6093
    %v6095 = vand.u32 %v6094, 4294901760
    %6096 = vmatpush.msra.mxu0 %v6095
    %v6097 = vand.u32 %v145, 4294901760
    %v6098 = vsub.f32 %v145, %v6097
    %v6099 = vand.u32 %v6098, 4294901760
    %6100 = vmatpush.msra.mxu0 %v6099
    %v6101 = vand.u32 %v143, 4294901760
    %v6102 = vsub.f32 %v143, %v6101
    %v6103 = vand.u32 %v6102, 4294901760
    %6104 = vmatpush.msra.mxu0 %v6103
    %v6105 = vand.u32 %v141, 4294901760
    %v6106 = vsub.f32 %v141, %v6105
    %v6107 = vand.u32 %v6106, 4294901760
    %6108 = vmatpush.msra.mxu0 %v6107
    %v6109 = vand.u32 %v139, 4294901760
    %v6110 = vsub.f32 %v139, %v6109
    %v6111 = vand.u32 %v6110, 4294901760
    %6112 = vmatpush.msra.mxu0 %v6111
    %v6113 = vand.u32 %v137, 4294901760
    %v6114 = vsub.f32 %v137, %v6113
    %v6115 = vand.u32 %v6114, 4294901760
    %6116 = vmatpush.msra.mxu0 %v6115
    %v6117 = vand.u32 %v4108, 4294901760
    %6118 = vmatmul.f32.gmra.mxu0 %v6117
    %v6119 = vpop.f32.mrf.mxu0
    %v6120 = vadd.f32 %v6051, %v6119
    %6121 = vdwg.mxu0
    %v6122 = vand.u32 %v167, 4294901760
    %6123 = vmatpush.msra.mxu0 %v6122
    %v6124 = vand.u32 %v165, 4294901760
    %6125 = vmatpush.msra.mxu0 %v6124
    %v6126 = vand.u32 %v163, 4294901760
    %6127 = vmatpush.msra.mxu0 %v6126
    %v6128 = vand.u32 %v161, 4294901760
    %6129 = vmatpush.msra.mxu0 %v6128
    %v6130 = vand.u32 %v159, 4294901760
    %6131 = vmatpush.msra.mxu0 %v6130
    %v6132 = vand.u32 %v157, 4294901760
    %6133 = vmatpush.msra.mxu0 %v6132
    %v6134 = vand.u32 %v155, 4294901760
    %6135 = vmatpush.msra.mxu0 %v6134
    %v6136 = vand.u32 %v153, 4294901760
    %6137 = vmatpush.msra.mxu0 %v6136
    %v6138 = vand.u32 %v151, 4294901760
    %6139 = vmatpush.msra.mxu0 %v6138
    %v6140 = vand.u32 %v149, 4294901760
    %6141 = vmatpush.msra.mxu0 %v6140
    %v6142 = vand.u32 %v147, 4294901760
    %6143 = vmatpush.msra.mxu0 %v6142
    %v6144 = vand.u32 %v145, 4294901760
    %6145 = vmatpush.msra.mxu0 %v6144
    %v6146 = vand.u32 %v143, 4294901760
    %6147 = vmatpush.msra.mxu0 %v6146
    %v6148 = vand.u32 %v141, 4294901760
    %6149 = vmatpush.msra.mxu0 %v6148
    %v6150 = vand.u32 %v139, 4294901760
    %6151 = vmatpush.msra.mxu0 %v6150
    %v6152 = vand.u32 %v137, 4294901760
    %6153 = vmatpush.msra.mxu0 %v6152
    %v6154 = vand.u32 %v4108, 4294901760
    %6155 = vmatmul.f32.gmra.mxu0 %v6154
    %v6156 = vpop.f32.mrf.mxu0
    %v6157 = vadd.f32 %v6120, %v6156
    %6158 = vdwg.mxu0
    %v6159 = vand.u32 %v136, 4294901760
    %6160 = vmatpush.msra.mxu0 %v6159
    %v6161 = vand.u32 %v134, 4294901760
    %6162 = vmatpush.msra.mxu0 %v6161
    %v6163 = vand.u32 %v132, 4294901760
    %6164 = vmatpush.msra.mxu0 %v6163
    %v6165 = vand.u32 %v130, 4294901760
    %6166 = vmatpush.msra.mxu0 %v6165
    %v6167 = vand.u32 %v128, 4294901760
    %6168 = vmatpush.msra.mxu0 %v6167
    %v6169 = vand.u32 %v126, 4294901760
    %6170 = vmatpush.msra.mxu0 %v6169
    %v6171 = vand.u32 %v124, 4294901760
    %6172 = vmatpush.msra.mxu0 %v6171
    %v6173 = vand.u32 %v122, 4294901760
    %6174 = vmatpush.msra.mxu0 %v6173
    %v6175 = vand.u32 %v120, 4294901760
    %6176 = vmatpush.msra.mxu0 %v6175
    %v6177 = vand.u32 %v118, 4294901760
    %6178 = vmatpush.msra.mxu0 %v6177
    %v6179 = vand.u32 %v116, 4294901760
    %6180 = vmatpush.msra.mxu0 %v6179
    %v6181 = vand.u32 %v114, 4294901760
    %6182 = vmatpush.msra.mxu0 %v6181
    %v6183 = vand.u32 %v112, 4294901760
    %6184 = vmatpush.msra.mxu0 %v6183
    %v6185 = vand.u32 %v110, 4294901760
    %6186 = vmatpush.msra.mxu0 %v6185
    %v6187 = vand.u32 %v108, 4294901760
    %6188 = vmatpush.msra.mxu0 %v6187
    %v6189 = vand.u32 %v106, 4294901760
    %6190 = vmatpush.msra.mxu0 %v6189
    %v6191 = vand.u32 %v4107, 4294901760
    %v6192 = vsub.f32 %v4107, %v6191
    %v6193 = vand.u32 %v6192, 4294901760
    %v6194 = vsub.f32 %v6192, %v6193
    %v6195 = vand.u32 %v6194, 4294901760
    %6196 = vmatmul.f32.gmra.mxu0 %v6195
    %v6197 = vpop.f32.mrf.mxu0
    %v6198 = vadd.f32 %v5475, %v6197
    %6199 = vdwg.mxu0
    %v6200 = vand.u32 %v136, 4294901760
    %v6201 = vsub.f32 %v136, %v6200
    %v6202 = vand.u32 %v6201, 4294901760
    %v6203 = vsub.f32 %v6201, %v6202
    %v6204 = vand.u32 %v6203, 4294901760
    %6205 = vmatpush.msra.mxu0 %v6204
    %v6206 = vand.u32 %v134, 4294901760
    %v6207 = vsub.f32 %v134, %v6206
    %v6208 = vand.u32 %v6207, 4294901760
    %v6209 = vsub.f32 %v6207, %v6208
    %v6210 = vand.u32 %v6209, 4294901760
    %6211 = vmatpush.msra.mxu0 %v6210
    %v6212 = vand.u32 %v132, 4294901760
    %v6213 = vsub.f32 %v132, %v6212
    %v6214 = vand.u32 %v6213, 4294901760
    %v6215 = vsub.f32 %v6213, %v6214
    %v6216 = vand.u32 %v6215, 4294901760
    %6217 = vmatpush.msra.mxu0 %v6216
    %v6218 = vand.u32 %v130, 4294901760
    %v6219 = vsub.f32 %v130, %v6218
    %v6220 = vand.u32 %v6219, 4294901760
    %v6221 = vsub.f32 %v6219, %v6220
    %v6222 = vand.u32 %v6221, 4294901760
    %6223 = vmatpush.msra.mxu0 %v6222
    %v6224 = vand.u32 %v128, 4294901760
    %v6225 = vsub.f32 %v128, %v6224
    %v6226 = vand.u32 %v6225, 4294901760
    %v6227 = vsub.f32 %v6225, %v6226
    %v6228 = vand.u32 %v6227, 4294901760
    %6229 = vmatpush.msra.mxu0 %v6228
    %v6230 = vand.u32 %v126, 4294901760
    %v6231 = vsub.f32 %v126, %v6230
    %v6232 = vand.u32 %v6231, 4294901760
    %v6233 = vsub.f32 %v6231, %v6232
    %v6234 = vand.u32 %v6233, 4294901760
    %6235 = vmatpush.msra.mxu0 %v6234
    %v6236 = vand.u32 %v124, 4294901760
    %v6237 = vsub.f32 %v124, %v6236
    %v6238 = vand.u32 %v6237, 4294901760
    %v6239 = vsub.f32 %v6237, %v6238
    %v6240 = vand.u32 %v6239, 4294901760
    %6241 = vmatpush.msra.mxu0 %v6240
    %v6242 = vand.u32 %v122, 4294901760
    %v6243 = vsub.f32 %v122, %v6242
    %v6244 = vand.u32 %v6243, 4294901760
    %v6245 = vsub.f32 %v6243, %v6244
    %v6246 = vand.u32 %v6245, 4294901760
    %6247 = vmatpush.msra.mxu0 %v6246
    %v6248 = vand.u32 %v120, 4294901760
    %v6249 = vsub.f32 %v120, %v6248
    %v6250 = vand.u32 %v6249, 4294901760
    %v6251 = vsub.f32 %v6249, %v6250
    %v6252 = vand.u32 %v6251, 4294901760
    %6253 = vmatpush.msra.mxu0 %v6252
    %v6254 = vand.u32 %v118, 4294901760
    %v6255 = vsub.f32 %v118, %v6254
    %v6256 = vand.u32 %v6255, 4294901760
    %v6257 = vsub.f32 %v6255, %v6256
    %v6258 = vand.u32 %v6257, 4294901760
    %6259 = vmatpush.msra.mxu0 %v6258
    %v6260 = vand.u32 %v116, 4294901760
    %v6261 = vsub.f32 %v116, %v6260
    %v6262 = vand.u32 %v6261, 4294901760
    %v6263 = vsub.f32 %v6261, %v6262
    %v6264 = vand.u32 %v6263, 4294901760
    %6265 = vmatpush.msra.mxu0 %v6264
    %v6266 = vand.u32 %v114, 4294901760
    %v6267 = vsub.f32 %v114, %v6266
    %v6268 = vand.u32 %v6267, 4294901760
    %v6269 = vsub.f32 %v6267, %v6268
    %v6270 = vand.u32 %v6269, 4294901760
    %6271 = vmatpush.msra.mxu0 %v6270
    %v6272 = vand.u32 %v112, 4294901760
    %v6273 = vsub.f32 %v112, %v6272
    %v6274 = vand.u32 %v6273, 4294901760
    %v6275 = vsub.f32 %v6273, %v6274
    %v6276 = vand.u32 %v6275, 4294901760
    %6277 = vmatpush.msra.mxu0 %v6276
    %v6278 = vand.u32 %v110, 4294901760
    %v6279 = vsub.f32 %v110, %v6278
    %v6280 = vand.u32 %v6279, 4294901760
    %v6281 = vsub.f32 %v6279, %v6280
    %v6282 = vand.u32 %v6281, 4294901760
    %6283 = vmatpush.msra.mxu0 %v6282
    %v6284 = vand.u32 %v108, 4294901760
    %v6285 = vsub.f32 %v108, %v6284
    %v6286 = vand.u32 %v6285, 4294901760
    %v6287 = vsub.f32 %v6285, %v6286
    %v6288 = vand.u32 %v6287, 4294901760
    %6289 = vmatpush.msra.mxu0 %v6288
    %v6290 = vand.u32 %v106, 4294901760
    %v6291 = vsub.f32 %v106, %v6290
    %v6292 = vand.u32 %v6291, 4294901760
    %v6293 = vsub.f32 %v6291, %v6292
    %v6294 = vand.u32 %v6293, 4294901760
    %6295 = vmatpush.msra.mxu0 %v6294
    %v6296 = vand.u32 %v4107, 4294901760
    %6297 = vmatmul.f32.gmra.mxu0 %v6296
    %v6298 = vpop.f32.mrf.mxu0
    %v6299 = vadd.f32 %v6198, %v6298
    %6300 = vdwg.mxu0
    %v6301 = vand.u32 %v136, 4294901760
    %v6302 = vsub.f32 %v136, %v6301
    %6303 = vmatpush.msra.mxu0 %v6302
    %v6304 = vand.u32 %v134, 4294901760
    %v6305 = vsub.f32 %v134, %v6304
    %6306 = vmatpush.msra.mxu0 %v6305
    %v6307 = vand.u32 %v132, 4294901760
    %v6308 = vsub.f32 %v132, %v6307
    %6309 = vmatpush.msra.mxu0 %v6308
    %v6310 = vand.u32 %v130, 4294901760
    %v6311 = vsub.f32 %v130, %v6310
    %6312 = vmatpush.msra.mxu0 %v6311
    %v6313 = vand.u32 %v128, 4294901760
    %v6314 = vsub.f32 %v128, %v6313
    %6315 = vmatpush.msra.mxu0 %v6314
    %v6316 = vand.u32 %v126, 4294901760
    %v6317 = vsub.f32 %v126, %v6316
    %6318 = vmatpush.msra.mxu0 %v6317
    %v6319 = vand.u32 %v124, 4294901760
    %v6320 = vsub.f32 %v124, %v6319
    %6321 = vmatpush.msra.mxu0 %v6320
    %v6322 = vand.u32 %v122, 4294901760
    %v6323 = vsub.f32 %v122, %v6322
    %6324 = vmatpush.msra.mxu0 %v6323
    %v6325 = vand.u32 %v120, 4294901760
    %v6326 = vsub.f32 %v120, %v6325
    %6327 = vmatpush.msra.mxu0 %v6326
    %v6328 = vand.u32 %v118, 4294901760
    %v6329 = vsub.f32 %v118, %v6328
    %6330 = vmatpush.msra.mxu0 %v6329
    %v6331 = vand.u32 %v116, 4294901760
    %v6332 = vsub.f32 %v116, %v6331
    %6333 = vmatpush.msra.mxu0 %v6332
    %v6334 = vand.u32 %v114, 4294901760
    %v6335 = vsub.f32 %v114, %v6334
    %6336 = vmatpush.msra.mxu0 %v6335
    %v6337 = vand.u32 %v112, 4294901760
    %v6338 = vsub.f32 %v112, %v6337
    %6339 = vmatpush.msra.mxu0 %v6338
    %v6340 = vand.u32 %v110, 4294901760
    %v6341 = vsub.f32 %v110, %v6340
    %6342 = vmatpush.msra.mxu0 %v6341
    %v6343 = vand.u32 %v108, 4294901760
    %v6344 = vsub.f32 %v108, %v6343
    %6345 = vmatpush.msra.mxu0 %v6344
    %v6346 = vand.u32 %v106, 4294901760
    %v6347 = vsub.f32 %v106, %v6346
    %6348 = vmatpush.msra.mxu0 %v6347
    %v6349 = vand.u32 %v4107, 4294901760
    %v6350 = vsub.f32 %v4107, %v6349
    %6351 = vmatmul.f32.gmra.mxu0 %v6350
    %v6352 = vpop.f32.mrf.mxu0
    %v6353 = vadd.f32 %v6299, %v6352
    %6354 = vdwg.mxu0
    %v6355 = vand.u32 %v136, 4294901760
    %6356 = vmatpush.msra.mxu0 %v6355
    %v6357 = vand.u32 %v134, 4294901760
    %6358 = vmatpush.msra.mxu0 %v6357
    %v6359 = vand.u32 %v132, 4294901760
    %6360 = vmatpush.msra.mxu0 %v6359
    %v6361 = vand.u32 %v130, 4294901760
    %6362 = vmatpush.msra.mxu0 %v6361
    %v6363 = vand.u32 %v128, 4294901760
    %6364 = vmatpush.msra.mxu0 %v6363
    %v6365 = vand.u32 %v126, 4294901760
    %6366 = vmatpush.msra.mxu0 %v6365
    %v6367 = vand.u32 %v124, 4294901760
    %6368 = vmatpush.msra.mxu0 %v6367
    %v6369 = vand.u32 %v122, 4294901760
    %6370 = vmatpush.msra.mxu0 %v6369
    %v6371 = vand.u32 %v120, 4294901760
    %6372 = vmatpush.msra.mxu0 %v6371
    %v6373 = vand.u32 %v118, 4294901760
    %6374 = vmatpush.msra.mxu0 %v6373
    %v6375 = vand.u32 %v116, 4294901760
    %6376 = vmatpush.msra.mxu0 %v6375
    %v6377 = vand.u32 %v114, 4294901760
    %6378 = vmatpush.msra.mxu0 %v6377
    %v6379 = vand.u32 %v112, 4294901760
    %6380 = vmatpush.msra.mxu0 %v6379
    %v6381 = vand.u32 %v110, 4294901760
    %6382 = vmatpush.msra.mxu0 %v6381
    %v6383 = vand.u32 %v108, 4294901760
    %6384 = vmatpush.msra.mxu0 %v6383
    %v6385 = vand.u32 %v106, 4294901760
    %6386 = vmatpush.msra.mxu0 %v6385
    %v6387 = vand.u32 %v4107, 4294901760
    %v6388 = vsub.f32 %v4107, %v6387
    %v6389 = vand.u32 %v6388, 4294901760
    %6390 = vmatmul.f32.gmra.mxu0 %v6389
    %v6391 = vpop.f32.mrf.mxu0
    %v6392 = vadd.f32 %v6353, %v6391
    %6393 = vdwg.mxu0
    %v6394 = vand.u32 %v136, 4294901760
    %v6395 = vsub.f32 %v136, %v6394
    %v6396 = vand.u32 %v6395, 4294901760
    %6397 = vmatpush.msra.mxu0 %v6396
    %v6398 = vand.u32 %v134, 4294901760
    %v6399 = vsub.f32 %v134, %v6398
    %v6400 = vand.u32 %v6399, 4294901760
    %6401 = vmatpush.msra.mxu0 %v6400
    %v6402 = vand.u32 %v132, 4294901760
    %v6403 = vsub.f32 %v132, %v6402
    %v6404 = vand.u32 %v6403, 4294901760
    %6405 = vmatpush.msra.mxu0 %v6404
    %v6406 = vand.u32 %v130, 4294901760
    %v6407 = vsub.f32 %v130, %v6406
    %v6408 = vand.u32 %v6407, 4294901760
    %6409 = vmatpush.msra.mxu0 %v6408
    %v6410 = vand.u32 %v128, 4294901760
    %v6411 = vsub.f32 %v128, %v6410
    %v6412 = vand.u32 %v6411, 4294901760
    %6413 = vmatpush.msra.mxu0 %v6412
    %v6414 = vand.u32 %v126, 4294901760
    %v6415 = vsub.f32 %v126, %v6414
    %v6416 = vand.u32 %v6415, 4294901760
    %6417 = vmatpush.msra.mxu0 %v6416
    %v6418 = vand.u32 %v124, 4294901760
    %v6419 = vsub.f32 %v124, %v6418
    %v6420 = vand.u32 %v6419, 4294901760
    %6421 = vmatpush.msra.mxu0 %v6420
    %v6422 = vand.u32 %v122, 4294901760
    %v6423 = vsub.f32 %v122, %v6422
    %v6424 = vand.u32 %v6423, 4294901760
    %6425 = vmatpush.msra.mxu0 %v6424
    %v6426 = vand.u32 %v120, 4294901760
    %v6427 = vsub.f32 %v120, %v6426
    %v6428 = vand.u32 %v6427, 4294901760
    %6429 = vmatpush.msra.mxu0 %v6428
    %v6430 = vand.u32 %v118, 4294901760
    %v6431 = vsub.f32 %v118, %v6430
    %v6432 = vand.u32 %v6431, 4294901760
    %6433 = vmatpush.msra.mxu0 %v6432
    %v6434 = vand.u32 %v116, 4294901760
    %v6435 = vsub.f32 %v116, %v6434
    %v6436 = vand.u32 %v6435, 4294901760
    %6437 = vmatpush.msra.mxu0 %v6436
    %v6438 = vand.u32 %v114, 4294901760
    %v6439 = vsub.f32 %v114, %v6438
    %v6440 = vand.u32 %v6439, 4294901760
    %6441 = vmatpush.msra.mxu0 %v6440
    %v6442 = vand.u32 %v112, 4294901760
    %v6443 = vsub.f32 %v112, %v6442
    %v6444 = vand.u32 %v6443, 4294901760
    %6445 = vmatpush.msra.mxu0 %v6444
    %v6446 = vand.u32 %v110, 4294901760
    %v6447 = vsub.f32 %v110, %v6446
    %v6448 = vand.u32 %v6447, 4294901760
    %6449 = vmatpush.msra.mxu0 %v6448
    %v6450 = vand.u32 %v108, 4294901760
    %v6451 = vsub.f32 %v108, %v6450
    %v6452 = vand.u32 %v6451, 4294901760
    %6453 = vmatpush.msra.mxu0 %v6452
    %v6454 = vand.u32 %v106, 4294901760
    %v6455 = vsub.f32 %v106, %v6454
    %v6456 = vand.u32 %v6455, 4294901760
    %6457 = vmatpush.msra.mxu0 %v6456
    %v6458 = vand.u32 %v4107, 4294901760
    %6459 = vmatmul.f32.gmra.mxu0 %v6458
    %v6460 = vpop.f32.mrf.mxu0
    %v6461 = vadd.f32 %v6392, %v6460
    %6462 = vdwg.mxu0
    %v6463 = vand.u32 %v136, 4294901760
    %6464 = vmatpush.msra.mxu0 %v6463
    %v6465 = vand.u32 %v134, 4294901760
    %6466 = vmatpush.msra.mxu0 %v6465
    %v6467 = vand.u32 %v132, 4294901760
    %6468 = vmatpush.msra.mxu0 %v6467
    %v6469 = vand.u32 %v130, 4294901760
    %6470 = vmatpush.msra.mxu0 %v6469
    %v6471 = vand.u32 %v128, 4294901760
    %6472 = vmatpush.msra.mxu0 %v6471
    %v6473 = vand.u32 %v126, 4294901760
    %6474 = vmatpush.msra.mxu0 %v6473
    %v6475 = vand.u32 %v124, 4294901760
    %6476 = vmatpush.msra.mxu0 %v6475
    %v6477 = vand.u32 %v122, 4294901760
    %6478 = vmatpush.msra.mxu0 %v6477
    %v6479 = vand.u32 %v120, 4294901760
    %6480 = vmatpush.msra.mxu0 %v6479
    %v6481 = vand.u32 %v118, 4294901760
    %6482 = vmatpush.msra.mxu0 %v6481
    %v6483 = vand.u32 %v116, 4294901760
    %6484 = vmatpush.msra.mxu0 %v6483
    %v6485 = vand.u32 %v114, 4294901760
    %6486 = vmatpush.msra.mxu0 %v6485
    %v6487 = vand.u32 %v112, 4294901760
    %6488 = vmatpush.msra.mxu0 %v6487
    %v6489 = vand.u32 %v110, 4294901760
    %6490 = vmatpush.msra.mxu0 %v6489
    %v6491 = vand.u32 %v108, 4294901760
    %6492 = vmatpush.msra.mxu0 %v6491
    %v6493 = vand.u32 %v106, 4294901760
    %6494 = vmatpush.msra.mxu0 %v6493
    %v6495 = vand.u32 %v4107, 4294901760
    %6496 = vmatmul.f32.gmra.mxu0 %v6495
    %v6497 = vpop.f32.mrf.mxu0
    %v6498 = vadd.f32 %v6461, %v6497
    %6499 = vdwg.mxu0
    %v6500 = vand.u32 %v168, 4294901760
    %6501 = vmatpush.msra.mxu0 %v6500
    %v6502 = vand.u32 %v166, 4294901760
    %6503 = vmatpush.msra.mxu0 %v6502
    %v6504 = vand.u32 %v164, 4294901760
    %6505 = vmatpush.msra.mxu0 %v6504
    %v6506 = vand.u32 %v162, 4294901760
    %6507 = vmatpush.msra.mxu0 %v6506
    %v6508 = vand.u32 %v160, 4294901760
    %6509 = vmatpush.msra.mxu0 %v6508
    %v6510 = vand.u32 %v158, 4294901760
    %6511 = vmatpush.msra.mxu0 %v6510
    %v6512 = vand.u32 %v156, 4294901760
    %6513 = vmatpush.msra.mxu0 %v6512
    %v6514 = vand.u32 %v154, 4294901760
    %6515 = vmatpush.msra.mxu0 %v6514
    %v6516 = vand.u32 %v152, 4294901760
    %6517 = vmatpush.msra.mxu0 %v6516
    %v6518 = vand.u32 %v150, 4294901760
    %6519 = vmatpush.msra.mxu0 %v6518
    %v6520 = vand.u32 %v148, 4294901760
    %6521 = vmatpush.msra.mxu0 %v6520
    %v6522 = vand.u32 %v146, 4294901760
    %6523 = vmatpush.msra.mxu0 %v6522
    %v6524 = vand.u32 %v144, 4294901760
    %6525 = vmatpush.msra.mxu0 %v6524
    %v6526 = vand.u32 %v142, 4294901760
    %6527 = vmatpush.msra.mxu0 %v6526
    %v6528 = vand.u32 %v140, 4294901760
    %6529 = vmatpush.msra.mxu0 %v6528
    %v6530 = vand.u32 %v138, 4294901760
    %6531 = vmatpush.msra.mxu0 %v6530
    %v6532 = vand.u32 %v4108, 4294901760
    %v6533 = vsub.f32 %v4108, %v6532
    %v6534 = vand.u32 %v6533, 4294901760
    %v6535 = vsub.f32 %v6533, %v6534
    %v6536 = vand.u32 %v6535, 4294901760
    %6537 = vmatmul.f32.gmra.mxu0 %v6536
    %v6538 = vpop.f32.mrf.mxu0
    %v6539 = vadd.f32 %v6498, %v6538
    %6540 = vdwg.mxu0
    %v6541 = vand.u32 %v168, 4294901760
    %v6542 = vsub.f32 %v168, %v6541
    %v6543 = vand.u32 %v6542, 4294901760
    %v6544 = vsub.f32 %v6542, %v6543
    %v6545 = vand.u32 %v6544, 4294901760
    %6546 = vmatpush.msra.mxu0 %v6545
    %v6547 = vand.u32 %v166, 4294901760
    %v6548 = vsub.f32 %v166, %v6547
    %v6549 = vand.u32 %v6548, 4294901760
    %v6550 = vsub.f32 %v6548, %v6549
    %v6551 = vand.u32 %v6550, 4294901760
    %6552 = vmatpush.msra.mxu0 %v6551
    %v6553 = vand.u32 %v164, 4294901760
    %v6554 = vsub.f32 %v164, %v6553
    %v6555 = vand.u32 %v6554, 4294901760
    %v6556 = vsub.f32 %v6554, %v6555
    %v6557 = vand.u32 %v6556, 4294901760
    %6558 = vmatpush.msra.mxu0 %v6557
    %v6559 = vand.u32 %v162, 4294901760
    %v6560 = vsub.f32 %v162, %v6559
    %v6561 = vand.u32 %v6560, 4294901760
    %v6562 = vsub.f32 %v6560, %v6561
    %v6563 = vand.u32 %v6562, 4294901760
    %6564 = vmatpush.msra.mxu0 %v6563
    %v6565 = vand.u32 %v160, 4294901760
    %v6566 = vsub.f32 %v160, %v6565
    %v6567 = vand.u32 %v6566, 4294901760
    %v6568 = vsub.f32 %v6566, %v6567
    %v6569 = vand.u32 %v6568, 4294901760
    %6570 = vmatpush.msra.mxu0 %v6569
    %v6571 = vand.u32 %v158, 4294901760
    %v6572 = vsub.f32 %v158, %v6571
    %v6573 = vand.u32 %v6572, 4294901760
    %v6574 = vsub.f32 %v6572, %v6573
    %v6575 = vand.u32 %v6574, 4294901760
    %6576 = vmatpush.msra.mxu0 %v6575
    %v6577 = vand.u32 %v156, 4294901760
    %v6578 = vsub.f32 %v156, %v6577
    %v6579 = vand.u32 %v6578, 4294901760
    %v6580 = vsub.f32 %v6578, %v6579
    %v6581 = vand.u32 %v6580, 4294901760
    %6582 = vmatpush.msra.mxu0 %v6581
    %v6583 = vand.u32 %v154, 4294901760
    %v6584 = vsub.f32 %v154, %v6583
    %v6585 = vand.u32 %v6584, 4294901760
    %v6586 = vsub.f32 %v6584, %v6585
    %v6587 = vand.u32 %v6586, 4294901760
    %6588 = vmatpush.msra.mxu0 %v6587
    %v6589 = vand.u32 %v152, 4294901760
    %v6590 = vsub.f32 %v152, %v6589
    %v6591 = vand.u32 %v6590, 4294901760
    %v6592 = vsub.f32 %v6590, %v6591
    %v6593 = vand.u32 %v6592, 4294901760
    %6594 = vmatpush.msra.mxu0 %v6593
    %v6595 = vand.u32 %v150, 4294901760
    %v6596 = vsub.f32 %v150, %v6595
    %v6597 = vand.u32 %v6596, 4294901760
    %v6598 = vsub.f32 %v6596, %v6597
    %v6599 = vand.u32 %v6598, 4294901760
    %6600 = vmatpush.msra.mxu0 %v6599
    %v6601 = vand.u32 %v148, 4294901760
    %v6602 = vsub.f32 %v148, %v6601
    %v6603 = vand.u32 %v6602, 4294901760
    %v6604 = vsub.f32 %v6602, %v6603
    %v6605 = vand.u32 %v6604, 4294901760
    %6606 = vmatpush.msra.mxu0 %v6605
    %v6607 = vand.u32 %v146, 4294901760
    %v6608 = vsub.f32 %v146, %v6607
    %v6609 = vand.u32 %v6608, 4294901760
    %v6610 = vsub.f32 %v6608, %v6609
    %v6611 = vand.u32 %v6610, 4294901760
    %6612 = vmatpush.msra.mxu0 %v6611
    %v6613 = vand.u32 %v144, 4294901760
    %v6614 = vsub.f32 %v144, %v6613
    %v6615 = vand.u32 %v6614, 4294901760
    %v6616 = vsub.f32 %v6614, %v6615
    %v6617 = vand.u32 %v6616, 4294901760
    %6618 = vmatpush.msra.mxu0 %v6617
    %v6619 = vand.u32 %v142, 4294901760
    %v6620 = vsub.f32 %v142, %v6619
    %v6621 = vand.u32 %v6620, 4294901760
    %v6622 = vsub.f32 %v6620, %v6621
    %v6623 = vand.u32 %v6622, 4294901760
    %6624 = vmatpush.msra.mxu0 %v6623
    %v6625 = vand.u32 %v140, 4294901760
    %v6626 = vsub.f32 %v140, %v6625
    %v6627 = vand.u32 %v6626, 4294901760
    %v6628 = vsub.f32 %v6626, %v6627
    %v6629 = vand.u32 %v6628, 4294901760
    %6630 = vmatpush.msra.mxu0 %v6629
    %v6631 = vand.u32 %v138, 4294901760
    %v6632 = vsub.f32 %v138, %v6631
    %v6633 = vand.u32 %v6632, 4294901760
    %v6634 = vsub.f32 %v6632, %v6633
    %v6635 = vand.u32 %v6634, 4294901760
    %6636 = vmatpush.msra.mxu0 %v6635
    %v6637 = vand.u32 %v4108, 4294901760
    %6638 = vmatmul.f32.gmra.mxu0 %v6637
    %v6639 = vpop.f32.mrf.mxu0
    %v6640 = vadd.f32 %v6539, %v6639
    %6641 = vdwg.mxu0
    %v6642 = vand.u32 %v168, 4294901760
    %v6643 = vsub.f32 %v168, %v6642
    %6644 = vmatpush.msra.mxu0 %v6643
    %v6645 = vand.u32 %v166, 4294901760
    %v6646 = vsub.f32 %v166, %v6645
    %6647 = vmatpush.msra.mxu0 %v6646
    %v6648 = vand.u32 %v164, 4294901760
    %v6649 = vsub.f32 %v164, %v6648
    %6650 = vmatpush.msra.mxu0 %v6649
    %v6651 = vand.u32 %v162, 4294901760
    %v6652 = vsub.f32 %v162, %v6651
    %6653 = vmatpush.msra.mxu0 %v6652
    %v6654 = vand.u32 %v160, 4294901760
    %v6655 = vsub.f32 %v160, %v6654
    %6656 = vmatpush.msra.mxu0 %v6655
    %v6657 = vand.u32 %v158, 4294901760
    %v6658 = vsub.f32 %v158, %v6657
    %6659 = vmatpush.msra.mxu0 %v6658
    %v6660 = vand.u32 %v156, 4294901760
    %v6661 = vsub.f32 %v156, %v6660
    %6662 = vmatpush.msra.mxu0 %v6661
    %v6663 = vand.u32 %v154, 4294901760
    %v6664 = vsub.f32 %v154, %v6663
    %6665 = vmatpush.msra.mxu0 %v6664
    %v6666 = vand.u32 %v152, 4294901760
    %v6667 = vsub.f32 %v152, %v6666
    %6668 = vmatpush.msra.mxu0 %v6667
    %v6669 = vand.u32 %v150, 4294901760
    %v6670 = vsub.f32 %v150, %v6669
    %6671 = vmatpush.msra.mxu0 %v6670
    %v6672 = vand.u32 %v148, 4294901760
    %v6673 = vsub.f32 %v148, %v6672
    %6674 = vmatpush.msra.mxu0 %v6673
    %v6675 = vand.u32 %v146, 4294901760
    %v6676 = vsub.f32 %v146, %v6675
    %6677 = vmatpush.msra.mxu0 %v6676
    %v6678 = vand.u32 %v144, 4294901760
    %v6679 = vsub.f32 %v144, %v6678
    %6680 = vmatpush.msra.mxu0 %v6679
    %v6681 = vand.u32 %v142, 4294901760
    %v6682 = vsub.f32 %v142, %v6681
    %6683 = vmatpush.msra.mxu0 %v6682
    %v6684 = vand.u32 %v140, 4294901760
    %v6685 = vsub.f32 %v140, %v6684
    %6686 = vmatpush.msra.mxu0 %v6685
    %v6687 = vand.u32 %v138, 4294901760
    %v6688 = vsub.f32 %v138, %v6687
    %6689 = vmatpush.msra.mxu0 %v6688
    %v6690 = vand.u32 %v4108, 4294901760
    %v6691 = vsub.f32 %v4108, %v6690
    %6692 = vmatmul.f32.gmra.mxu0 %v6691
    %v6693 = vpop.f32.mrf.mxu0
    %v6694 = vadd.f32 %v6640, %v6693
    %6695 = vdwg.mxu0
    %v6696 = vand.u32 %v168, 4294901760
    %6697 = vmatpush.msra.mxu0 %v6696
    %v6698 = vand.u32 %v166, 4294901760
    %6699 = vmatpush.msra.mxu0 %v6698
    %v6700 = vand.u32 %v164, 4294901760
    %6701 = vmatpush.msra.mxu0 %v6700
    %v6702 = vand.u32 %v162, 4294901760
    %6703 = vmatpush.msra.mxu0 %v6702
    %v6704 = vand.u32 %v160, 4294901760
    %6705 = vmatpush.msra.mxu0 %v6704
    %v6706 = vand.u32 %v158, 4294901760
    %6707 = vmatpush.msra.mxu0 %v6706
    %v6708 = vand.u32 %v156, 4294901760
    %6709 = vmatpush.msra.mxu0 %v6708
    %v6710 = vand.u32 %v154, 4294901760
    %6711 = vmatpush.msra.mxu0 %v6710
    %v6712 = vand.u32 %v152, 4294901760
    %6713 = vmatpush.msra.mxu0 %v6712
    %v6714 = vand.u32 %v150, 4294901760
    %6715 = vmatpush.msra.mxu0 %v6714
    %v6716 = vand.u32 %v148, 4294901760
    %6717 = vmatpush.msra.mxu0 %v6716
    %v6718 = vand.u32 %v146, 4294901760
    %6719 = vmatpush.msra.mxu0 %v6718
    %v6720 = vand.u32 %v144, 4294901760
    %6721 = vmatpush.msra.mxu0 %v6720
    %v6722 = vand.u32 %v142, 4294901760
    %6723 = vmatpush.msra.mxu0 %v6722
    %v6724 = vand.u32 %v140, 4294901760
    %6725 = vmatpush.msra.mxu0 %v6724
    %v6726 = vand.u32 %v138, 4294901760
    %6727 = vmatpush.msra.mxu0 %v6726
    %v6728 = vand.u32 %v4108, 4294901760
    %v6729 = vsub.f32 %v4108, %v6728
    %v6730 = vand.u32 %v6729, 4294901760
    %6731 = vmatmul.f32.gmra.mxu0 %v6730
    %v6732 = vpop.f32.mrf.mxu0
    %v6733 = vadd.f32 %v6694, %v6732
    %6734 = vdwg.mxu0
    %v6735 = vand.u32 %v168, 4294901760
    %v6736 = vsub.f32 %v168, %v6735
    %v6737 = vand.u32 %v6736, 4294901760
    %6738 = vmatpush.msra.mxu0 %v6737
    %v6739 = vand.u32 %v166, 4294901760
    %v6740 = vsub.f32 %v166, %v6739
    %v6741 = vand.u32 %v6740, 4294901760
    %6742 = vmatpush.msra.mxu0 %v6741
    %v6743 = vand.u32 %v164, 4294901760
    %v6744 = vsub.f32 %v164, %v6743
    %v6745 = vand.u32 %v6744, 4294901760
    %6746 = vmatpush.msra.mxu0 %v6745
    %v6747 = vand.u32 %v162, 4294901760
    %v6748 = vsub.f32 %v162, %v6747
    %v6749 = vand.u32 %v6748, 4294901760
    %6750 = vmatpush.msra.mxu0 %v6749
    %v6751 = vand.u32 %v160, 4294901760
    %v6752 = vsub.f32 %v160, %v6751
    %v6753 = vand.u32 %v6752, 4294901760
    %6754 = vmatpush.msra.mxu0 %v6753
    %v6755 = vand.u32 %v158, 4294901760
    %v6756 = vsub.f32 %v158, %v6755
    %v6757 = vand.u32 %v6756, 4294901760
    %6758 = vmatpush.msra.mxu0 %v6757
    %v6759 = vand.u32 %v156, 4294901760
    %v6760 = vsub.f32 %v156, %v6759
    %v6761 = vand.u32 %v6760, 4294901760
    %6762 = vmatpush.msra.mxu0 %v6761
    %v6763 = vand.u32 %v154, 4294901760
    %v6764 = vsub.f32 %v154, %v6763
    %v6765 = vand.u32 %v6764, 4294901760
    %6766 = vmatpush.msra.mxu0 %v6765
    %v6767 = vand.u32 %v152, 4294901760
    %v6768 = vsub.f32 %v152, %v6767
    %v6769 = vand.u32 %v6768, 4294901760
    %6770 = vmatpush.msra.mxu0 %v6769
    %v6771 = vand.u32 %v150, 4294901760
    %v6772 = vsub.f32 %v150, %v6771
    %v6773 = vand.u32 %v6772, 4294901760
    %6774 = vmatpush.msra.mxu0 %v6773
    %v6775 = vand.u32 %v148, 4294901760
    %v6776 = vsub.f32 %v148, %v6775
    %v6777 = vand.u32 %v6776, 4294901760
    %6778 = vmatpush.msra.mxu0 %v6777
    %v6779 = vand.u32 %v146, 4294901760
    %v6780 = vsub.f32 %v146, %v6779
    %v6781 = vand.u32 %v6780, 4294901760
    %6782 = vmatpush.msra.mxu0 %v6781
    %v6783 = vand.u32 %v144, 4294901760
    %v6784 = vsub.f32 %v144, %v6783
    %v6785 = vand.u32 %v6784, 4294901760
    %6786 = vmatpush.msra.mxu0 %v6785
    %v6787 = vand.u32 %v142, 4294901760
    %v6788 = vsub.f32 %v142, %v6787
    %v6789 = vand.u32 %v6788, 4294901760
    %6790 = vmatpush.msra.mxu0 %v6789
    %v6791 = vand.u32 %v140, 4294901760
    %v6792 = vsub.f32 %v140, %v6791
    %v6793 = vand.u32 %v6792, 4294901760
    %6794 = vmatpush.msra.mxu0 %v6793
    %v6795 = vand.u32 %v138, 4294901760
    %v6796 = vsub.f32 %v138, %v6795
    %v6797 = vand.u32 %v6796, 4294901760
    %6798 = vmatpush.msra.mxu0 %v6797
    %v6799 = vand.u32 %v4108, 4294901760
    %6800 = vmatmul.f32.gmra.mxu0 %v6799
    %v6801 = vpop.f32.mrf.mxu0
    %v6802 = vadd.f32 %v6733, %v6801
    %6803 = vdwg.mxu0
    %v6804 = vand.u32 %v168, 4294901760
    %6805 = vmatpush.msra.mxu0 %v6804
    %v6806 = vand.u32 %v166, 4294901760
    %6807 = vmatpush.msra.mxu0 %v6806
    %v6808 = vand.u32 %v164, 4294901760
    %6809 = vmatpush.msra.mxu0 %v6808
    %v6810 = vand.u32 %v162, 4294901760
    %6811 = vmatpush.msra.mxu0 %v6810
    %v6812 = vand.u32 %v160, 4294901760
    %6813 = vmatpush.msra.mxu0 %v6812
    %v6814 = vand.u32 %v158, 4294901760
    %6815 = vmatpush.msra.mxu0 %v6814
    %v6816 = vand.u32 %v156, 4294901760
    %6817 = vmatpush.msra.mxu0 %v6816
    %v6818 = vand.u32 %v154, 4294901760
    %6819 = vmatpush.msra.mxu0 %v6818
    %v6820 = vand.u32 %v152, 4294901760
    %6821 = vmatpush.msra.mxu0 %v6820
    %v6822 = vand.u32 %v150, 4294901760
    %6823 = vmatpush.msra.mxu0 %v6822
    %v6824 = vand.u32 %v148, 4294901760
    %6825 = vmatpush.msra.mxu0 %v6824
    %v6826 = vand.u32 %v146, 4294901760
    %6827 = vmatpush.msra.mxu0 %v6826
    %v6828 = vand.u32 %v144, 4294901760
    %6829 = vmatpush.msra.mxu0 %v6828
    %v6830 = vand.u32 %v142, 4294901760
    %6831 = vmatpush.msra.mxu0 %v6830
    %v6832 = vand.u32 %v140, 4294901760
    %6833 = vmatpush.msra.mxu0 %v6832
    %v6834 = vand.u32 %v138, 4294901760
    %6835 = vmatpush.msra.mxu0 %v6834
    %v6836 = vand.u32 %v4108, 4294901760
    %6837 = vmatmul.f32.gmra.mxu0 %v6836
    %v6838 = vpop.f32.mrf.mxu0
    %v6839 = vadd.f32 %v6802, %v6838
    %6840 = vdwg.mxu0
    %6841 = vst [vmem:[#allocation11] sm:$0xff] %v6157
    %6842 = vst [vmem:[#allocation11 + $0x8] sm:$0xff] %v6839
    // Predicated region
    $region50: #{tpu_custom_call.1} parent=1 // pred_check
      _
    $region51: #{tpu_custom_call.1} parent=1 // pred_check_branch
      %6844 = sbr.rel (0) target = $region53
    $region52: #{tpu_custom_call.1} parent=1 // pred_region
      %6846 = vsyncadd [#allocation4], 0
      %s6848 = sshll.u32 [#allocation11], 4
      %s6849 = int_to_ptr.vmem [resolvable:$true] %s6848
      %s6850 = sshll.u32 %s7, 4
      %s6851 = int_to_ptr.hbm [resolvable:$true] %s6850
      %6853 = dma.vmem_to_hbm [thread:$0]  %s6849, 256, %s6851, [#allocation4]
    $region53: #{tpu_custom_call.1} parent=1 // pred_fallthru
      _
    // Predicated region
    $region54: #{tpu_custom_call.1} parent=1 // pred_check
      _
    $region55: #{tpu_custom_call.1} parent=1 // pred_check_branch
      %6855 = sbr.rel (0) target = $region57
    $region56: #{tpu_custom_call.1} parent=1 // pred_region
      %6857 = dma.done [#allocation4], 256
    $region57: #{tpu_custom_call.1} parent=1 // pred_fallthru
      _
    %6858 = vsyncpa [#allocation3], 1
    %6859 = vsyncpa [#allocation6], 1
    %6860 = vsyncpa [#allocation9], 1
    %6861 = vsyncpa [#allocation4], 1

</llo_original>
